<compile_context>
chip_gen: v7x
topology: tpu7x:2x2x1
jax: 0.10.0
libtpu: 0.0.40
codegen_flags: <defaults>
</compile_context>

<pallas_src>
import math

import jax
import jax.numpy as jnp
from jax.experimental import pallas as pl
from jax.experimental.pallas import tpu as pltpu

LN_EPS = 1e-5  # nn.LayerNorm default


def _silu(x):
    # x * sigmoid(x) == x * 0.5 * (1 + tanh(x/2)):  one EUP transcendental.
    return x * (0.5 * (1.0 + jnp.tanh(0.5 * x)))


def _layernorm(x, gamma, beta):
    # Single-pass: mean(x) and mean(x*x) are independent XLU reductions.
    # (E[x^2]-mu^2 is fine here: post-linear activations have mean ~ std.)
    mu = jnp.mean(x, axis=-1, keepdims=True)
    ms = jnp.mean(x * x, axis=-1, keepdims=True)
    var = ms - mu * mu
    return (x - mu) * jax.lax.rsqrt(var + LN_EPS) * gamma + beta


def _mm(x_f32, w_ref, b):
    # bf16 MXU operands, f32 accumulation.
    return jnp.dot(x_f32.astype(jnp.bfloat16), w_ref[...],
                   preferred_element_type=jnp.float32) + b


def diffusion_prior_kernel(
    x_ref, args_ref, c_ref,
    w1_ref, b1_ref,                    # time_embedding.linear_1
    wtc_ref, btc_ref,                  # fused [time_embedding.linear_2 ; cond_embedding]
    wi_ref, bi_ref, gi_ref, bti_ref,   # input_layer: Linear + LayerNorm(gamma, beta)
    wl_ref, bl_ref, gl_ref, btl_ref,   # hidden layer k (streamed slab along grid axis 1)
    wo_ref, bo_ref,                    # output_layer
    out_ref,
    h_sc, tc_sc,                       # VMEM scratch: residual stream (f32), t+c (bf16)
):
    k = pl.program_id(1)

    @pl.when(k == 0)
    def _prologue():
        # Timesteps(time_embed_dim, flip_sin_to_cos=True, shift=0):
        # wrapper supplies args = t*[f|f] + [pi/2|0] so sin(args) == [cos|sin].
        emb = jnp.sin(args_ref[...])

        # TimestepEmbedding: linear_1 -> SiLU
        h_t = _silu(_mm(emb, w1_ref, b1_ref[...]))

        # Fused linear_2 + cond_embedding: one K=(H+cond_dim) MXU push.
        htc = jnp.concatenate(
            [h_t.astype(jnp.bfloat16), c_ref[...].astype(jnp.bfloat16)], axis=-1)
        tc = jnp.dot(htc, wtc_ref[...],
                     preferred_element_type=jnp.float32) + btc_ref[...]
        tc_sc[...] = tc.astype(jnp.bfloat16)   # bf16 storage across layer steps

        # input_layer: Linear -> LayerNorm -> SiLU
        h = _mm(x_ref[...], wi_ref, bi_ref[...])
        h_sc[...] = _silu(_layernorm(h, gi_ref[...], bti_ref[...]))

    # Residual hidden block k:  x = x + t + c ;  x = layer(x) + x
    h = h_sc[...] + tc_sc[...]                              # f32 + bf16 -> f32
    y = jnp.dot(h.astype(jnp.bfloat16), wl_ref[0],
                preferred_element_type=jnp.float32) + bl_ref[0]
    y = _silu(_layernorm(y, gl_ref[0], btl_ref[0]))         # Dropout(p=0.0) == identity
    h_sc[...] = y + h

    @pl.when(k == pl.num_programs(1) - 1)
    def _epilogue():
        out_ref[...] = _mm(h_sc[...], wo_ref, bo_ref[...])


def init_params(key, embed_dim, cond_dim, hidden_dim, time_embed_dim, num_layers):
    """Deterministic synthetic parameters (PyTorch-style uniform(-1/sqrt(fan_in)))."""
    ks = jax.random.split(key, 8 + num_layers)

    def lin(k, fan_in, fan_out):
        bound = 1.0 / math.sqrt(fan_in)
        kw, kb = jax.random.split(k)
        w = jax.random.uniform(kw, (fan_in, fan_out), jnp.float32, -bound, bound)
        b = jax.random.uniform(kb, (1, fan_out), jnp.float32, -bound, bound)
        return w.astype(jnp.bfloat16), b                    # bf16 MXU weights, f32 bias

    p = {}
    p["w1"], p["b1"] = lin(ks[0], time_embed_dim, hidden_dim)
    p["w2"], p["b2"] = lin(ks[1], hidden_dim, hidden_dim)
    p["wc"], p["bc"] = lin(ks[2], cond_dim, hidden_dim)
    p["wi"], p["bi"] = lin(ks[3], embed_dim, hidden_dim)
    p["gi"] = jnp.ones((1, hidden_dim), jnp.float32)         # LayerNorm default affine
    p["bti"] = jnp.zeros((1, hidden_dim), jnp.float32)
    wl, bl = [], []
    for i in range(num_layers):
        w, b = lin(ks[4 + i], hidden_dim, hidden_dim)
        wl.append(w)
        bl.append(b)
    p["wl"] = jnp.stack(wl)                                  # (L, hidden, hidden) bf16
    p["bl"] = jnp.stack(bl)                                  # (L, 1, hidden) f32
    p["gl"] = jnp.ones((num_layers, 1, hidden_dim), jnp.float32)
    p["btl"] = jnp.zeros((num_layers, 1, hidden_dim), jnp.float32)
    p["wo"], p["bo"] = lin(ks[4 + num_layers], hidden_dim, embed_dim)
    return p


def diffusion_prior_forward(x, t, c, params, time_embed_dim, num_layers, tile_b=256):
    B, embed_dim = x.shape
    cond_dim = c.shape[1]
    hidden_dim = params["wi"].shape[1]
    half = time_embed_dim // 2

    # ---- wrapper-side glue --------------------------------------------------
    # Sinusoidal projection as one sin():  first half phase pi/2 -> cos.
    freqs = jnp.exp(
        -math.log(10000.0) * jnp.arange(half, dtype=jnp.float32) / float(half))
    freqs2 = jnp.concatenate([freqs, freqs])                              # [f | f]
    phase = jnp.concatenate([jnp.full((half,), 0.5 * math.pi, jnp.float32),
                             jnp.zeros((half,), jnp.float32)])            # [pi/2 | 0]
    args = (t.astype(jnp.float32).reshape(B, 1) * freqs2.reshape(1, -1)
            + phase.reshape(1, -1))                                       # (B, T) lane-dense

    # Fused [time_embedding.linear_2 ; cond_embedding] (could be hoisted to init).
    wtc = jnp.concatenate([params["w2"], params["wc"]], axis=0)           # (H+cond, H) bf16
    btc = params["b2"] + params["bc"]                                     # (1, H) f32

    tile_b = min(tile_b, B)
    nb = pl.cdiv(B, tile_b)          # tail rows (if any) compute garbage that is clipped on write
    grid = (nb, num_layers)

    def row_spec(feat):
        return pl.BlockSpec((tile_b, feat), lambda i, k: (i, 0))

    def resident(shape):
        nd = len(shape)
        return pl.BlockSpec(shape, lambda i, k, _nd=nd: (0,) * _nd)

    def layer_spec(shape):
        nd = len(shape)
        return pl.BlockSpec((1,) + tuple(shape[1:]),
                            lambda i, k, _nd=nd: (k,) + (0,) * (_nd - 1))

    # Advisory cost hint for the XLA scheduler.
    weight_bytes = sum(int(v.size) * v.dtype.itemsize for v in params.values())
    flops = 2 * B * hidden_dim * (time_embed_dim + hidden_dim + cond_dim
                                  + embed_dim + num_layers * hidden_dim + embed_dim)
    transcendentals = B * time_embed_dim + (2 + num_layers) * B * hidden_dim
    bytes_accessed = 4 * B * (2 * embed_dim + time_embed_dim + cond_dim) + weight_bytes

    in_specs = [
        row_spec(embed_dim),                     # x
        row_spec(time_embed_dim),                # args (precomputed t*freqs + phase)
        row_spec(cond_dim),                      # c
        resident(params["w1"].shape), resident(params["b1"].shape),
        resident(wtc.shape), resident(btc.shape),
        resident(params["wi"].shape), resident(params["bi"].shape),
        resident(params["gi"].shape), resident(params["bti"].shape),
        layer_spec(params["wl"].shape), layer_spec(params["bl"].shape),
        layer_spec(params["gl"].shape), layer_spec(params["btl"].shape),
        resident(params["wo"].shape), resident(params["bo"].shape),
    ]

    return pl.pallas_call(
        diffusion_prior_kernel,
        out_shape=jax.ShapeDtypeStruct((B, embed_dim), jnp.float32),
        grid=grid,
        in_specs=in_specs,
        out_specs=row_spec(embed_dim),
        scratch_shapes=[
            pltpu.VMEM((tile_b, hidden_dim), jnp.float32),    # residual stream h
            pltpu.VMEM((tile_b, hidden_dim), jnp.bfloat16),   # t_vec + c_vec
        ],
        compiler_params=pltpu.CompilerParams(
            # Batch axis parallel (megacore / v7x TC sharding), layer axis is a
            # carried reduction.  On v7x, pltpu.CORE_PARALLEL on axis 0 is worth
            # trying once the chip is available.
            dimension_semantics=("parallel", "arbitrary"),
        ),
        cost_estimate=pl.CostEstimate(flops=flops,
                                      transcendentals=transcendentals,
                                      bytes_accessed=bytes_accessed),
    )(
        x, args, c,
        params["w1"], params["b1"],
        wtc, btc,
        params["wi"], params["bi"], params["gi"], params["bti"],
        params["wl"], params["bl"], params["gl"], params["btl"],
        params["wo"], params["bo"],
    )


def reference_forward(x, t, c, params, time_embed_dim, num_layers):
    """Pure-JAX reference mirroring the PyTorch forward (bf16 matmul operands,
    f32 accumulation, exact sigmoid, two-pass LayerNorm, separate matmuls)."""
    half = time_embed_dim // 2
    bf16 = jnp.bfloat16

    def mm(a, w, b):
        return jnp.dot(a.astype(bf16), w, preferred_element_type=jnp.float32) + b

    def silu(v):
        return v * jax.nn.sigmoid(v)

    def ln(v, g, b):
        mu = v.mean(-1, keepdims=True)
        var = ((v - mu) ** 2).mean(-1, keepdims=True)
        return (v - mu) / jnp.sqrt(var + LN_EPS) * g + b

    freqs = jnp.exp(
        -math.log(10000.0) * jnp.arange(half, dtype=jnp.float32) / float(half))
    a = t.astype(jnp.float32)[:, None] * freqs[None, :]
    temb = jnp.concatenate([jnp.cos(a), jnp.sin(a)], axis=-1)   # flip_sin_to_cos=True

    ht = silu(mm(temb, params["w1"], params["b1"]))
    tv = mm(ht, params["w2"], params["b2"])
    cv = mm(c, params["wc"], params["bc"])
    h = silu(ln(mm(x, params["wi"], params["bi"]), params["gi"], params["bti"]))
    for k in range(num_layers):
        h = h + tv + cv
        y = silu(ln(mm(h, params["wl"][k], params["bl"][k]),
                    params["gl"][k], params["btl"][k]))
        h = y + h
    return mm(h, params["wo"], params["bo"])


if __name__ == "__main__":
    # Scaled-down dims consistent with the module's forward, with enough batch
    # rows for 256-row MXU tiles AND >= 2 parallel grid steps (v7x sharding).
    B = 512
    EMBED_DIM = 128
    COND_DIM = 32
    HIDDEN_DIM = 128
    TIME_EMBED_DIM = 64
    NUM_LAYERS = 4
    TILE_B = 256

    key = jax.random.PRNGKey(0)
    kx, kt, kc, kp = jax.random.split(key, 4)
    x = jax.random.normal(kx, (B, EMBED_DIM), jnp.float32)
    t = jax.random.randint(kt, (B,), 0, 1000).astype(jnp.float32)
    c = jax.random.normal(kc, (B, COND_DIM), jnp.float32)
    params = init_params(kp, EMBED_DIM, COND_DIM, HIDDEN_DIM, TIME_EMBED_DIM, NUM_LAYERS)

    out = diffusion_prior_forward(x, t, c, params, TIME_EMBED_DIM, NUM_LAYERS,
                                  tile_b=TILE_B)
    out = jax.block_until_ready(out)

    ref = reference_forward(x, t, c, params, TIME_EMBED_DIM, NUM_LAYERS)
    assert out.shape == (B, EMBED_DIM)
    max_err = float(jnp.max(jnp.abs(out - ref)))
    assert jnp.allclose(out, ref, atol=5e-2, rtol=5e-2), f"max abs err {max_err}"

    print("KERNEL_OK")
</pallas_src>

<mosaic_0001>
module attributes {stable_mosaic.version = 11 : i64} {
  func.func @diffusion_prior_kernel(%arg0: i32, %arg1: i32, %arg2: memref<256x128xf32, #tpu.memory_space<vmem>>, %arg3: memref<256x64xf32, #tpu.memory_space<vmem>>, %arg4: memref<256x32xf32, #tpu.memory_space<vmem>>, %arg5: memref<64x128xbf16, #tpu.memory_space<vmem>>, %arg6: memref<1x128xf32, #tpu.memory_space<vmem>>, %arg7: memref<160x128xbf16, #tpu.memory_space<vmem>>, %arg8: memref<1x128xf32, #tpu.memory_space<vmem>>, %arg9: memref<128x128xbf16, #tpu.memory_space<vmem>>, %arg10: memref<1x128xf32, #tpu.memory_space<vmem>>, %arg11: memref<1x128xf32, #tpu.memory_space<vmem>>, %arg12: memref<1x128xf32, #tpu.memory_space<vmem>>, %arg13: memref<1x128x128xbf16, #tpu.memory_space<vmem>>, %arg14: memref<1x1x128xf32, #tpu.memory_space<vmem>>, %arg15: memref<1x1x128xf32, #tpu.memory_space<vmem>>, %arg16: memref<1x1x128xf32, #tpu.memory_space<vmem>>, %arg17: memref<128x128xbf16, #tpu.memory_space<vmem>>, %arg18: memref<1x128xf32, #tpu.memory_space<vmem>>, %arg19: memref<256x128xf32, #tpu.memory_space<vmem>>, %arg20: memref<256x128xf32, #tpu.memory_space<vmem>>, %arg21: memref<256x128xbf16, #tpu.memory_space<vmem>>) attributes {dimension_semantics = [#tpu.dimension_semantics<parallel>, #tpu.dimension_semantics<arbitrary>], iteration_bounds = array<i64: 2, 4>, scalar_prefetch = 0 : i64, scratch_operands = 2 : i64, tpu.core_type = #tpu.core_type<tc>, window_params = [{transform_indices = @transform_0, window_bounds = array<i64: 256, 128>}, {transform_indices = @transform_1, window_bounds = array<i64: 256, 64>}, {transform_indices = @transform_2, window_bounds = array<i64: 256, 32>}, {pipeline_mode = #tpu.pipeline_mode<synchronous>, transform_indices = @transform_3, window_bounds = array<i64: 64, 128>}, {pipeline_mode = #tpu.pipeline_mode<synchronous>, transform_indices = @transform_4, window_bounds = array<i64: 1, 128>}, {pipeline_mode = #tpu.pipeline_mode<synchronous>, transform_indices = @transform_5, window_bounds = array<i64: 160, 128>}, {pipeline_mode = #tpu.pipeline_mode<synchronous>, transform_indices = @transform_6, window_bounds = array<i64: 1, 128>}, {pipeline_mode = #tpu.pipeline_mode<synchronous>, transform_indices = @transform_7, window_bounds = array<i64: 128, 128>}, {pipeline_mode = #tpu.pipeline_mode<synchronous>, transform_indices = @transform_8, window_bounds = array<i64: 1, 128>}, {pipeline_mode = #tpu.pipeline_mode<synchronous>, transform_indices = @transform_9, window_bounds = array<i64: 1, 128>}, {pipeline_mode = #tpu.pipeline_mode<synchronous>, transform_indices = @transform_10, window_bounds = array<i64: 1, 128>}, {transform_indices = @transform_11, window_bounds = array<i64: 1, 128, 128>}, {transform_indices = @transform_12, window_bounds = array<i64: 1, 1, 128>}, {transform_indices = @transform_13, window_bounds = array<i64: 1, 1, 128>}, {transform_indices = @transform_14, window_bounds = array<i64: 1, 1, 128>}, {pipeline_mode = #tpu.pipeline_mode<synchronous>, transform_indices = @transform_15, window_bounds = array<i64: 128, 128>}, {pipeline_mode = #tpu.pipeline_mode<synchronous>, transform_indices = @transform_16, window_bounds = array<i64: 1, 128>}, {transform_indices = @transform_17, window_bounds = array<i64: 256, 128>}]} {
    %c0_i32 = arith.constant 0 : i32
    %0 = arith.cmpi eq, %arg1, %c0_i32 : i32
    %1 = arith.extui %0 : i1 to i32
    %c0_i32_0 = arith.constant 0 : i32
    %2 = arith.cmpi ne, %1, %c0_i32_0 : i32
    scf.if %2 {
      %c0_27 = arith.constant 0 : index
      %c0_28 = arith.constant 0 : index
      %54 = vector.load %arg3[%c0_27, %c0_28] : memref<256x64xf32, #tpu.memory_space<vmem>>, vector<256x64xf32>
      %55 = math.sin %54 : vector<256x64xf32>
      %c0_29 = arith.constant 0 : index
      %c0_30 = arith.constant 0 : index
      %56 = vector.load %arg6[%c0_29, %c0_30] : memref<1x128xf32, #tpu.memory_space<vmem>>, vector<1x128xf32>
      %57 = arith.truncf %55 : vector<256x64xf32> to vector<256x64xbf16>
      %c0_31 = arith.constant 0 : index
      %c0_32 = arith.constant 0 : index
      %58 = vector.load %arg5[%c0_31, %c0_32] : memref<64x128xbf16, #tpu.memory_space<vmem>>, vector<64x128xbf16>
      %cst_33 = arith.constant dense<0.000000e+00> : vector<256x128xf32>
      %59 = tpu.matmul %57, %58, %cst_33 {dimension_numbers = #tpu.dot_dimension_numbers<[1], [0], [0], [1], [0, 0, 1, 1], [], []>} : vector<256x64xbf16>, vector<64x128xbf16>, vector<256x128xf32> -> vector<256x128xf32>
      %60 = vector.broadcast %56 : vector<1x128xf32> to vector<256x128xf32>
      %61 = arith.addf %59, %60 : vector<256x128xf32>
      %cst_34 = arith.constant 5.000000e-01 : f32
      %62 = vector.broadcast %cst_34 : f32 to vector<256x128xf32>
      %63 = arith.mulf %62, %61 : vector<256x128xf32>
      %64 = math.tanh %63 : vector<256x128xf32>
      %cst_35 = arith.constant 1.000000e+00 : f32
      %65 = vector.broadcast %cst_35 : f32 to vector<256x128xf32>
      %66 = arith.addf %65, %64 : vector<256x128xf32>
      %cst_36 = arith.constant 5.000000e-01 : f32
      %67 = vector.broadcast %cst_36 : f32 to vector<256x128xf32>
      %68 = arith.mulf %67, %66 : vector<256x128xf32>
      %69 = arith.mulf %61, %68 : vector<256x128xf32>
      %70 = arith.truncf %69 : vector<256x128xf32> to vector<256x128xbf16>
      %c0_37 = arith.constant 0 : index
      %c0_38 = arith.constant 0 : index
      %71 = vector.load %arg4[%c0_37, %c0_38] : memref<256x32xf32, #tpu.memory_space<vmem>>, vector<256x32xf32>
      %72 = arith.truncf %71 : vector<256x32xf32> to vector<256x32xbf16>
      %73 = tpu.concatenate %70, %72 in 1 : vector<256x128xbf16>, vector<256x32xbf16> -> vector<256x160xbf16>
      %c0_39 = arith.constant 0 : index
      %c0_40 = arith.constant 0 : index
      %74 = vector.load %arg7[%c0_39, %c0_40] : memref<160x128xbf16, #tpu.memory_space<vmem>>, vector<160x128xbf16>
      %cst_41 = arith.constant dense<0.000000e+00> : vector<256x128xf32>
      %75 = tpu.matmul %73, %74, %cst_41 {dimension_numbers = #tpu.dot_dimension_numbers<[1], [0], [0], [1], [0, 0, 1, 1], [], []>} : vector<256x160xbf16>, vector<160x128xbf16>, vector<256x128xf32> -> vector<256x128xf32>
      %c0_42 = arith.constant 0 : index
      %c0_43 = arith.constant 0 : index
      %76 = vector.load %arg8[%c0_42, %c0_43] : memref<1x128xf32, #tpu.memory_space<vmem>>, vector<1x128xf32>
      %77 = vector.broadcast %76 : vector<1x128xf32> to vector<256x128xf32>
      %78 = arith.addf %75, %77 : vector<256x128xf32>
      %79 = arith.truncf %78 : vector<256x128xf32> to vector<256x128xbf16>
      %c0_44 = arith.constant 0 : index
      %c0_45 = arith.constant 0 : index
      %80 = vector.load %arg21[%c0_44, %c0_45] : memref<256x128xbf16, #tpu.memory_space<vmem>>, vector<256x128xbf16>
      tpu.vector_store %arg21[%c0_44, %c0_45], %79 {strides = array<i32>} : memref<256x128xbf16, #tpu.memory_space<vmem>>, vector<256x128xbf16>,
      %c0_46 = arith.constant 0 : index
      %c0_47 = arith.constant 0 : index
      %81 = vector.load %arg2[%c0_46, %c0_47] : memref<256x128xf32, #tpu.memory_space<vmem>>, vector<256x128xf32>
      %c0_48 = arith.constant 0 : index
      %c0_49 = arith.constant 0 : index
      %82 = vector.load %arg10[%c0_48, %c0_49] : memref<1x128xf32, #tpu.memory_space<vmem>>, vector<1x128xf32>
      %83 = arith.truncf %81 : vector<256x128xf32> to vector<256x128xbf16>
      %c0_50 = arith.constant 0 : index
      %c0_51 = arith.constant 0 : index
      %84 = vector.load %arg9[%c0_50, %c0_51] : memref<128x128xbf16, #tpu.memory_space<vmem>>, vector<128x128xbf16>
      %cst_52 = arith.constant dense<0.000000e+00> : vector<256x128xf32>
      %85 = tpu.matmul %83, %84, %cst_52 {dimension_numbers = #tpu.dot_dimension_numbers<[1], [0], [0], [1], [0, 0, 1, 1], [], []>} : vector<256x128xbf16>, vector<128x128xbf16>, vector<256x128xf32> -> vector<256x128xf32>
      %86 = vector.broadcast %82 : vector<1x128xf32> to vector<256x128xf32>
      %87 = arith.addf %85, %86 : vector<256x128xf32>
      %c0_53 = arith.constant 0 : index
      %c0_54 = arith.constant 0 : index
      %88 = vector.load %arg11[%c0_53, %c0_54] : memref<1x128xf32, #tpu.memory_space<vmem>>, vector<1x128xf32>
      %c0_55 = arith.constant 0 : index
      %c0_56 = arith.constant 0 : index
      %89 = vector.load %arg12[%c0_55, %c0_56] : memref<1x128xf32, #tpu.memory_space<vmem>>, vector<1x128xf32>
      %cst_57 = arith.constant dense<0.000000e+00> : vector<256xf32>
      %90 = vector.multi_reduction <add>, %87, %cst_57 [1] : vector<256x128xf32> to vector<256xf32>
      %91 = vector.shape_cast %90 : vector<256xf32> to vector<256x1xf32>
      %cst_58 = arith.constant 1.280000e+02 : f32
      %92 = vector.broadcast %cst_58 : f32 to vector<256x1xf32>
      %93 = arith.divf %91, %92 : vector<256x1xf32>
      %94 = arith.mulf %87, %87 : vector<256x128xf32>
      %cst_59 = arith.constant dense<0.000000e+00> : vector<256xf32>
      %95 = vector.multi_reduction <add>, %94, %cst_59 [1] : vector<256x128xf32> to vector<256xf32>
      %96 = vector.shape_cast %95 : vector<256xf32> to vector<256x1xf32>
      %cst_60 = arith.constant 1.280000e+02 : f32
      %97 = vector.broadcast %cst_60 : f32 to vector<256x1xf32>
      %98 = arith.divf %96, %97 : vector<256x1xf32>
      %99 = arith.mulf %93, %93 : vector<256x1xf32>
      %100 = arith.subf %98, %99 : vector<256x1xf32>
      %101 = vector.broadcast %93 : vector<256x1xf32> to vector<256x128xf32>
      %102 = arith.subf %87, %101 : vector<256x128xf32>
      %cst_61 = arith.constant 9.99999974E-6 : f32
      %103 = vector.broadcast %cst_61 : f32 to vector<256x1xf32>
      %104 = arith.addf %100, %103 : vector<256x1xf32>
      %105 = math.rsqrt %104 : vector<256x1xf32>
      %106 = vector.broadcast %105 : vector<256x1xf32> to vector<256x128xf32>
      %107 = arith.mulf %102, %106 : vector<256x128xf32>
      %108 = vector.broadcast %88 : vector<1x128xf32> to vector<256x128xf32>
      %109 = arith.mulf %107, %108 : vector<256x128xf32>
      %110 = vector.broadcast %89 : vector<1x128xf32> to vector<256x128xf32>
      %111 = arith.addf %109, %110 : vector<256x128xf32>
      %cst_62 = arith.constant 5.000000e-01 : f32
      %112 = vector.broadcast %cst_62 : f32 to vector<256x128xf32>
      %113 = arith.mulf %112, %111 : vector<256x128xf32>
      %114 = math.tanh %113 : vector<256x128xf32>
      %cst_63 = arith.constant 1.000000e+00 : f32
      %115 = vector.broadcast %cst_63 : f32 to vector<256x128xf32>
      %116 = arith.addf %115, %114 : vector<256x128xf32>
      %cst_64 = arith.constant 5.000000e-01 : f32
      %117 = vector.broadcast %cst_64 : f32 to vector<256x128xf32>
      %118 = arith.mulf %117, %116 : vector<256x128xf32>
      %119 = arith.mulf %111, %118 : vector<256x128xf32>
      %c0_65 = arith.constant 0 : index
      %c0_66 = arith.constant 0 : index
      %120 = vector.load %arg20[%c0_65, %c0_66] : memref<256x128xf32, #tpu.memory_space<vmem>>, vector<256x128xf32>
      tpu.vector_store %arg20[%c0_65, %c0_66], %119 {strides = array<i32>} : memref<256x128xf32, #tpu.memory_space<vmem>>, vector<256x128xf32>,
    } else {
    }
    %c0 = arith.constant 0 : index
    %c0_1 = arith.constant 0 : index
    %3 = vector.load %arg20[%c0, %c0_1] : memref<256x128xf32, #tpu.memory_space<vmem>>, vector<256x128xf32>
    %c0_2 = arith.constant 0 : index
    %c0_3 = arith.constant 0 : index
    %4 = vector.load %arg21[%c0_2, %c0_3] : memref<256x128xbf16, #tpu.memory_space<vmem>>, vector<256x128xbf16>
    %5 = arith.extf %4 : vector<256x128xbf16> to vector<256x128xf32>
    %6 = arith.addf %3, %5 : vector<256x128xf32>
    %7 = arith.truncf %6 : vector<256x128xf32> to vector<256x128xbf16>
    %c0_4 = arith.constant 0 : index
    %c0_5 = arith.constant 0 : index
    %c0_6 = arith.constant 0 : index
    %8 = vector.load %arg13[%c0_4, %c0_5, %c0_6] : memref<1x128x128xbf16, #tpu.memory_space<vmem>>, vector<1x128x128xbf16>
    %9 = vector.shape_cast %8 : vector<1x128x128xbf16> to vector<128x128xbf16>
    %cst = arith.constant dense<0.000000e+00> : vector<256x128xf32>
    %10 = tpu.matmul %7, %9, %cst {dimension_numbers = #tpu.dot_dimension_numbers<[1], [0], [0], [1], [0, 0, 1, 1], [], []>} : vector<256x128xbf16>, vector<128x128xbf16>, vector<256x128xf32> -> vector<256x128xf32>
    %c0_7 = arith.constant 0 : index
    %c0_8 = arith.constant 0 : index
    %c0_9 = arith.constant 0 : index
    %11 = vector.load %arg14[%c0_7, %c0_8, %c0_9] : memref<1x1x128xf32, #tpu.memory_space<vmem>>, vector<1x1x128xf32>
    %12 = vector.shape_cast %11 : vector<1x1x128xf32> to vector<1x128xf32>
    %13 = vector.broadcast %12 : vector<1x128xf32> to vector<256x128xf32>
    %14 = arith.addf %10, %13 : vector<256x128xf32>
    %c0_10 = arith.constant 0 : index
    %c0_11 = arith.constant 0 : index
    %c0_12 = arith.constant 0 : index
    %15 = vector.load %arg15[%c0_10, %c0_11, %c0_12] : memref<1x1x128xf32, #tpu.memory_space<vmem>>, vector<1x1x128xf32>
    %16 = vector.shape_cast %15 : vector<1x1x128xf32> to vector<1x128xf32>
    %c0_13 = arith.constant 0 : index
    %c0_14 = arith.constant 0 : index
    %c0_15 = arith.constant 0 : index
    %17 = vector.load %arg16[%c0_13, %c0_14, %c0_15] : memref<1x1x128xf32, #tpu.memory_space<vmem>>, vector<1x1x128xf32>
    %18 = vector.shape_cast %17 : vector<1x1x128xf32> to vector<1x128xf32>
    %cst_16 = arith.constant dense<0.000000e+00> : vector<256xf32>
    %19 = vector.multi_reduction <add>, %14, %cst_16 [1] : vector<256x128xf32> to vector<256xf32>
    %20 = vector.shape_cast %19 : vector<256xf32> to vector<256x1xf32>
    %cst_17 = arith.constant 1.280000e+02 : f32
    %21 = vector.broadcast %cst_17 : f32 to vector<256x1xf32>
    %22 = arith.divf %20, %21 : vector<256x1xf32>
    %23 = arith.mulf %14, %14 : vector<256x128xf32>
    %cst_18 = arith.constant dense<0.000000e+00> : vector<256xf32>
    %24 = vector.multi_reduction <add>, %23, %cst_18 [1] : vector<256x128xf32> to vector<256xf32>
    %25 = vector.shape_cast %24 : vector<256xf32> to vector<256x1xf32>
    %cst_19 = arith.constant 1.280000e+02 : f32
    %26 = vector.broadcast %cst_19 : f32 to vector<256x1xf32>
    %27 = arith.divf %25, %26 : vector<256x1xf32>
    %28 = arith.mulf %22, %22 : vector<256x1xf32>
    %29 = arith.subf %27, %28 : vector<256x1xf32>
    %30 = vector.broadcast %22 : vector<256x1xf32> to vector<256x128xf32>
    %31 = arith.subf %14, %30 : vector<256x128xf32>
    %cst_20 = arith.constant 9.99999974E-6 : f32
    %32 = vector.broadcast %cst_20 : f32 to vector<256x1xf32>
    %33 = arith.addf %29, %32 : vector<256x1xf32>
    %34 = math.rsqrt %33 : vector<256x1xf32>
    %35 = vector.broadcast %34 : vector<256x1xf32> to vector<256x128xf32>
    %36 = arith.mulf %31, %35 : vector<256x128xf32>
    %37 = vector.broadcast %16 : vector<1x128xf32> to vector<256x128xf32>
    %38 = arith.mulf %36, %37 : vector<256x128xf32>
    %39 = vector.broadcast %18 : vector<1x128xf32> to vector<256x128xf32>
    %40 = arith.addf %38, %39 : vector<256x128xf32>
    %cst_21 = arith.constant 5.000000e-01 : f32
    %41 = vector.broadcast %cst_21 : f32 to vector<256x128xf32>
    %42 = arith.mulf %41, %40 : vector<256x128xf32>
    %43 = math.tanh %42 : vector<256x128xf32>
    %cst_22 = arith.constant 1.000000e+00 : f32
    %44 = vector.broadcast %cst_22 : f32 to vector<256x128xf32>
    %45 = arith.addf %44, %43 : vector<256x128xf32>
    %cst_23 = arith.constant 5.000000e-01 : f32
    %46 = vector.broadcast %cst_23 : f32 to vector<256x128xf32>
    %47 = arith.mulf %46, %45 : vector<256x128xf32>
    %48 = arith.mulf %40, %47 : vector<256x128xf32>
    %49 = arith.addf %48, %6 : vector<256x128xf32>
    %c0_24 = arith.constant 0 : index
    %c0_25 = arith.constant 0 : index
    %50 = vector.load %arg20[%c0_24, %c0_25] : memref<256x128xf32, #tpu.memory_space<vmem>>, vector<256x128xf32>
    tpu.vector_store %arg20[%c0_24, %c0_25], %49 {strides = array<i32>} : memref<256x128xf32, #tpu.memory_space<vmem>>, vector<256x128xf32>,
    %c3_i32 = arith.constant 3 : i32
    %51 = arith.cmpi eq, %arg1, %c3_i32 : i32
    %52 = arith.extui %51 : i1 to i32
    %c0_i32_26 = arith.constant 0 : i32
    %53 = arith.cmpi ne, %52, %c0_i32_26 : i32
    scf.if %53 {
      %c0_27 = arith.constant 0 : index
      %c0_28 = arith.constant 0 : index
      %54 = vector.load %arg20[%c0_27, %c0_28] : memref<256x128xf32, #tpu.memory_space<vmem>>, vector<256x128xf32>
      %c0_29 = arith.constant 0 : index
      %c0_30 = arith.constant 0 : index
      %55 = vector.load %arg18[%c0_29, %c0_30] : memref<1x128xf32, #tpu.memory_space<vmem>>, vector<1x128xf32>
      %56 = arith.truncf %54 : vector<256x128xf32> to vector<256x128xbf16>
      %c0_31 = arith.constant 0 : index
      %c0_32 = arith.constant 0 : index
      %57 = vector.load %arg17[%c0_31, %c0_32] : memref<128x128xbf16, #tpu.memory_space<vmem>>, vector<128x128xbf16>
      %cst_33 = arith.constant dense<0.000000e+00> : vector<256x128xf32>
      %58 = tpu.matmul %56, %57, %cst_33 {dimension_numbers = #tpu.dot_dimension_numbers<[1], [0], [0], [1], [0, 0, 1, 1], [], []>} : vector<256x128xbf16>, vector<128x128xbf16>, vector<256x128xf32> -> vector<256x128xf32>
      %59 = vector.broadcast %55 : vector<1x128xf32> to vector<256x128xf32>
      %60 = arith.addf %58, %59 : vector<256x128xf32>
      %c0_34 = arith.constant 0 : index
      %c0_35 = arith.constant 0 : index
      %61 = vector.load %arg19[%c0_34, %c0_35] : memref<256x128xf32, #tpu.memory_space<vmem>>, vector<256x128xf32>
      tpu.vector_store %arg19[%c0_34, %c0_35], %60 {strides = array<i32>} : memref<256x128xf32, #tpu.memory_space<vmem>>, vector<256x128xf32>,
    } else {
    }
    return
  }
  func.func @transform_0(%arg0: i32, %arg1: i32) -> (i32, i32) {
    %c0_i32 = arith.constant 0 : i32
    %c0_i32_0 = arith.constant 0 : i32
    return %arg0, %c0_i32 : i32, i32
  }
  func.func @transform_1(%arg0: i32, %arg1: i32) -> (i32, i32) {
    %c0_i32 = arith.constant 0 : i32
    %c0_i32_0 = arith.constant 0 : i32
    return %arg0, %c0_i32 : i32, i32
  }
  func.func @transform_2(%arg0: i32, %arg1: i32) -> (i32, i32) {
    %c0_i32 = arith.constant 0 : i32
    %c0_i32_0 = arith.constant 0 : i32
    return %arg0, %c0_i32 : i32, i32
  }
  func.func @transform_3(%arg0: i32, %arg1: i32) -> (i32, i32) {
    %c0_i32 = arith.constant 0 : i32
    %c0_i32_0 = arith.constant 0 : i32
    %c0_i32_1 = arith.constant 0 : i32
    return %c0_i32, %c0_i32_0 : i32, i32
  }
  func.func @transform_4(%arg0: i32, %arg1: i32) -> (i32, i32) {
    %c0_i32 = arith.constant 0 : i32
    %c0_i32_0 = arith.constant 0 : i32
    %c0_i32_1 = arith.constant 0 : i32
    return %c0_i32, %c0_i32_0 : i32, i32
  }
  func.func @transform_5(%arg0: i32, %arg1: i32) -> (i32, i32) {
    %c0_i32 = arith.constant 0 : i32
    %c0_i32_0 = arith.constant 0 : i32
    %c0_i32_1 = arith.constant 0 : i32
    return %c0_i32, %c0_i32_0 : i32, i32
  }
  func.func @transform_6(%arg0: i32, %arg1: i32) -> (i32, i32) {
    %c0_i32 = arith.constant 0 : i32
    %c0_i32_0 = arith.constant 0 : i32
    %c0_i32_1 = arith.constant 0 : i32
    return %c0_i32, %c0_i32_0 : i32, i32
  }
  func.func @transform_7(%arg0: i32, %arg1: i32) -> (i32, i32) {
    %c0_i32 = arith.constant 0 : i32
    %c0_i32_0 = arith.constant 0 : i32
    %c0_i32_1 = arith.constant 0 : i32
    return %c0_i32, %c0_i32_0 : i32, i32
  }
  func.func @transform_8(%arg0: i32, %arg1: i32) -> (i32, i32) {
    %c0_i32 = arith.constant 0 : i32
    %c0_i32_0 = arith.constant 0 : i32
    %c0_i32_1 = arith.constant 0 : i32
    return %c0_i32, %c0_i32_0 : i32, i32
  }
  func.func @transform_9(%arg0: i32, %arg1: i32) -> (i32, i32) {
    %c0_i32 = arith.constant 0 : i32
    %c0_i32_0 = arith.constant 0 : i32
    %c0_i32_1 = arith.constant 0 : i32
    return %c0_i32, %c0_i32_0 : i32, i32
  }
  func.func @transform_10(%arg0: i32, %arg1: i32) -> (i32, i32) {
    %c0_i32 = arith.constant 0 : i32
    %c0_i32_0 = arith.constant 0 : i32
    %c0_i32_1 = arith.constant 0 : i32
    return %c0_i32, %c0_i32_0 : i32, i32
  }
  func.func @transform_11(%arg0: i32, %arg1: i32) -> (i32, i32, i32) {
    %c0_i32 = arith.constant 0 : i32
    %c0_i32_0 = arith.constant 0 : i32
    %c0_i32_1 = arith.constant 0 : i32
    return %arg1, %c0_i32, %c0_i32_0 : i32, i32, i32
  }
  func.func @transform_12(%arg0: i32, %arg1: i32) -> (i32, i32, i32) {
    %c0_i32 = arith.constant 0 : i32
    %c0_i32_0 = arith.constant 0 : i32
    %c0_i32_1 = arith.constant 0 : i32
    return %arg1, %c0_i32, %c0_i32_0 : i32, i32, i32
  }
  func.func @transform_13(%arg0: i32, %arg1: i32) -> (i32, i32, i32) {
    %c0_i32 = arith.constant 0 : i32
    %c0_i32_0 = arith.constant 0 : i32
    %c0_i32_1 = arith.constant 0 : i32
    return %arg1, %c0_i32, %c0_i32_0 : i32, i32, i32
  }
  func.func @transform_14(%arg0: i32, %arg1: i32) -> (i32, i32, i32) {
    %c0_i32 = arith.constant 0 : i32
    %c0_i32_0 = arith.constant 0 : i32
    %c0_i32_1 = arith.constant 0 : i32
    return %arg1, %c0_i32, %c0_i32_0 : i32, i32, i32
  }
  func.func @transform_15(%arg0: i32, %arg1: i32) -> (i32, i32) {
    %c0_i32 = arith.constant 0 : i32
    %c0_i32_0 = arith.constant 0 : i32
    %c0_i32_1 = arith.constant 0 : i32
    return %c0_i32, %c0_i32_0 : i32, i32
  }
  func.func @transform_16(%arg0: i32, %arg1: i32) -> (i32, i32) {
    %c0_i32 = arith.constant 0 : i32
    %c0_i32_0 = arith.constant 0 : i32
    %c0_i32_1 = arith.constant 0 : i32
    return %c0_i32, %c0_i32_0 : i32, i32
  }
  func.func @transform_17(%arg0: i32, %arg1: i32) -> (i32, i32) {
    %c0_i32 = arith.constant 0 : i32
    %c0_i32_0 = arith.constant 0 : i32
    return %arg0, %c0_i32 : i32, i32
  }
}

</mosaic_0001>

<llo_original>
// kernel: tpu_custom_call.1
$region0: #{tpu_custom_call.1}
  #allocation0 [shape = 'u32[]', space=smem, size = 0x4, offset = 0x4, fixed_abs, tag = 'smem constant byte address 0x4 - core index']
  #allocation1 [shape = 'u32[144,128]{1,0:T(1,128)}', space=vmem, size = 0x12000, scoped, tag = 'internal scratch']
  #allocation2 [shape = 'f32[256,128]{1,0:T(8,128)}', space=vmem, size = 0x20000, scoped, tag = 'scratch operand']
  #allocation3 [shape = 'bf16[256,128]{1,0:T(16,128)(2,1)}', space=vmem, size = 0x10000, scoped, tag = 'scratch operand']
  %s0 = inlined_call_operand.vmem [shape: f32[512,128], index: 0, kind: input, shape index: {}]
  %s1 = inlined_call_operand.vmem [shape: f32[512,64], index: 1, kind: input, shape index: {}]
  %s2 = inlined_call_operand.vmem [shape: f32[512,32], index: 2, kind: input, shape index: {}]
  %s3 = inlined_call_operand.vmem [shape: bf16[64,128], index: 3, kind: input, shape index: {}]
  %s4 = inlined_call_operand.vmem [shape: f32[1,128], index: 4, kind: input, shape index: {}]
  %s5 = inlined_call_operand.vmem [shape: bf16[160,128], index: 5, kind: input, shape index: {}]
  %s6 = inlined_call_operand.vmem [shape: f32[1,128], index: 6, kind: input, shape index: {}]
  %s7 = inlined_call_operand.vmem [shape: bf16[128,128], index: 7, kind: input, shape index: {}]
  %s8 = inlined_call_operand.vmem [shape: f32[1,128], index: 8, kind: input, shape index: {}]
  %s9 = inlined_call_operand.vmem [shape: f32[1,128], index: 9, kind: input, shape index: {}]
  %s10 = inlined_call_operand.vmem [shape: f32[1,128], index: 10, kind: input, shape index: {}]
  %s11 = inlined_call_operand.vmem [shape: bf16[4,128,128], index: 11, kind: input, shape index: {}]
  %s12 = inlined_call_operand.vmem [shape: f32[4,1,128], index: 12, kind: input, shape index: {}]
  %s13 = inlined_call_operand.vmem [shape: f32[4,1,128], index: 13, kind: input, shape index: {}]
  %s14 = inlined_call_operand.vmem [shape: f32[4,1,128], index: 14, kind: input, shape index: {}]
  %s15 = inlined_call_operand.vmem [shape: bf16[128,128], index: 15, kind: input, shape index: {}]
  %s16 = inlined_call_operand.vmem [shape: f32[1,128], index: 16, kind: input, shape index: {}]
  %s17 = inlined_call_operand.hbm [shape: f32[512,128], index: 17, kind: output, shape index: {}]
  %s18 = sld [smem:[#allocation0]]
  $region109: #{tpu_custom_call.1} parent=0
    _
  %s20 = ssub.s32 1, %s18
  %s21 = scalar_select 0, %s20, %s18
  $region1: #{tpu_custom_call.1} parent=0
    #allocation4 [shape = 'u8[262144]{0}', space=vmem, size = 0x40000, scoped, tag = 'output window, operand 0']
    #allocation5 [shape = 's32[2]{0}', space=sflag, size = 0x8, scoped, tag = 'scoped memory for tpu_custom_call.1']
    %22 = vsyncpa [#allocation5], 0
    %s23 = scalar_lea.sflag [#allocation5], 1
    %24 = vsyncpa %s23, 0
    loop: start=0, step=1, limit=10
    $region2: #{tpu_custom_call.1} parent=1 // loop_pre_header
      _
    $region3: #{tpu_custom_call.1} parent=1 // loop_header
      %s26 = sphi 0, %s30
      %p27 = scmp.ge.s32.totalorder %s26, 10
      %s33 = sphi 0, %s45
      %s34 = sphi 0, %s41
      %s35 = sphi 0, %s33
      %s36 = sphi 0, %s34
      %s37 = sphi 0, %s35
      %s38 = sphi 0, %s36
      %s48 = sphi 0, %s50
      %s51 = sphi 0, %s48
      %s52 = sphi 0, %s51
      %s68 = sphi 0, %s52
      %s74 = sphi 0, %s76
      %s77 = sphi 0, %s74
      %s78 = sphi 0, %s77
      %s94 = sphi 0, %s78
      %s100 = sphi 0, %s102
      %s103 = sphi 0, %s100
      %s104 = sphi 0, %s103
      %s120 = sphi 0, %s104
      %s124 = sphi 0, %s124
      %s126 = sphi 0, %s124
      %s127 = sphi 0, %s126
      %s141 = sphi 0, %s127
      %s145 = sphi 0, %s145
      %s147 = sphi 0, %s145
      %s148 = sphi 0, %s147
      %s162 = sphi 0, %s148
      %s166 = sphi 0, %s166
      %s168 = sphi 0, %s166
      %s169 = sphi 0, %s168
      %s183 = sphi 0, %s169
      %s187 = sphi 0, %s187
      %s189 = sphi 0, %s187
      %s190 = sphi 0, %s189
      %s204 = sphi 0, %s190
      %s208 = sphi 0, %s208
      %s210 = sphi 0, %s208
      %s211 = sphi 0, %s210
      %s225 = sphi 0, %s211
      %s229 = sphi 0, %s229
      %s231 = sphi 0, %s229
      %s232 = sphi 0, %s231
      %s246 = sphi 0, %s232
      %s250 = sphi 0, %s250
      %s252 = sphi 0, %s250
      %s253 = sphi 0, %s252
      %s267 = sphi 0, %s253
      %s271 = sphi 0, %s271
      %s273 = sphi 0, %s271
      %s274 = sphi 0, %s273
      %s288 = sphi 0, %s274
      %s294 = sphi 0, %s296
      %s297 = sphi 0, %s294
      %s298 = sphi 0, %s297
      %s314 = sphi 0, %s298
      %s320 = sphi 0, %s322
      %s323 = sphi 0, %s320
      %s324 = sphi 0, %s323
      %s340 = sphi 0, %s324
      %s346 = sphi 0, %s348
      %s349 = sphi 0, %s346
      %s350 = sphi 0, %s349
      %s366 = sphi 0, %s350
      %s372 = sphi 0, %s374
      %s375 = sphi 0, %s372
      %s376 = sphi 0, %s375
      %s392 = sphi 0, %s376
      %s396 = sphi 0, %s396
      %s398 = sphi 0, %s396
      %s399 = sphi 0, %s398
      %s413 = sphi 0, %s399
      %s417 = sphi 0, %s417
      %s419 = sphi 0, %s417
      %s420 = sphi 0, %s419
      %s434 = sphi 0, %s420
      %s440 = sphi 0, %s442
      %s443 = sphi 0, %s440
      %s444 = sphi 0, %s443
      %s460 = sphi 0, %s444
    $region4: #{tpu_custom_call.1} parent=1 // loop_header_branch
      %29 = sbr.rel (%p27) target = $region8
    $region5: #{tpu_custom_call.1} parent=1 // loop_body
      %s31 = ssub.s32 %s26, 1
      %s32 = ssub.s32 %s26, 2
      %s39 = sadd.s32 1, %s34
      %p40 = scmp.ge.s32.totalorder %s39, 4
      %s41 = scalar_select %p40, 0, %s39
      %s42 = sadd.s32 1, %s33
      %s43 = scalar_select %p40, %s42, %s33
      %p44 = scmp.ge.s32.totalorder %s43, 2
      %s45 = scalar_select %p44, 0, %s43
      %s46 = ssub.s32 %s33, %s45
      %p47 = scmp.eq.s32.totalorder %s46, 0
      %s49 = sadd.s32 %s48, 1
      %s50 = scalar_select %p47, %s48, %s49
      %p53 = pneg %p47
      %p54 = scmp.eq.s32.totalorder %s26, 7
      %p55 = por %p53, %p54
      %p56 = scmp.ne.s32.totalorder %s48, %s51
      %p57 = scmp.eq.s32.totalorder %s26, 0
      %p58 = por %p56, %p57
      %p59 = scmp.ne.s32.totalorder %s48, %s51
      %p60 = scmp.eq.s32.totalorder %s31, 7
      %p61 = por %p59, %p60
      %p62 = scmp.ne.s32.totalorder %s51, %s52
      %p63 = scmp.eq.s32.totalorder %s31, 0
      %p64 = por %p62, %p63
      %p65 = scmp.ne.s32.totalorder %s51, %s52
      %p66 = scmp.eq.s32.totalorder %s32, 7
      %p67 = por %p65, %p66
      %p69 = scmp.ne.s32.totalorder %s52, %s68
      %p70 = scmp.eq.s32.totalorder %s32, 0
      %p71 = por %p69, %p70
      %s72 = ssub.s32 %s33, %s45
      %p73 = scmp.eq.s32.totalorder %s72, 0
      %s75 = sadd.s32 %s74, 1
      %s76 = scalar_select %p73, %s74, %s75
      %p79 = pneg %p73
      %p80 = scmp.eq.s32.totalorder %s26, 7
      %p81 = por %p79, %p80
      %p82 = scmp.ne.s32.totalorder %s74, %s77
      %p83 = scmp.eq.s32.totalorder %s26, 0
      %p84 = por %p82, %p83
      %p85 = scmp.ne.s32.totalorder %s74, %s77
      %p86 = scmp.eq.s32.totalorder %s31, 7
      %p87 = por %p85, %p86
      %p88 = scmp.ne.s32.totalorder %s77, %s78
      %p89 = scmp.eq.s32.totalorder %s31, 0
      %p90 = por %p88, %p89
      %p91 = scmp.ne.s32.totalorder %s77, %s78
      %p92 = scmp.eq.s32.totalorder %s32, 7
      %p93 = por %p91, %p92
      %p95 = scmp.ne.s32.totalorder %s78, %s94
      %p96 = scmp.eq.s32.totalorder %s32, 0
      %p97 = por %p95, %p96
      %s98 = ssub.s32 %s33, %s45
      %p99 = scmp.eq.s32.totalorder %s98, 0
      %s101 = sadd.s32 %s100, 1
      %s102 = scalar_select %p99, %s100, %s101
      %p105 = pneg %p99
      %p106 = scmp.eq.s32.totalorder %s26, 7
      %p107 = por %p105, %p106
      %p108 = scmp.ne.s32.totalorder %s100, %s103
      %p109 = scmp.eq.s32.totalorder %s26, 0
      %p110 = por %p108, %p109
      %p111 = scmp.ne.s32.totalorder %s100, %s103
      %p112 = scmp.eq.s32.totalorder %s31, 7
      %p113 = por %p111, %p112
      %p114 = scmp.ne.s32.totalorder %s103, %s104
      %p115 = scmp.eq.s32.totalorder %s31, 0
      %p116 = por %p114, %p115
      %p117 = scmp.ne.s32.totalorder %s103, %s104
      %p118 = scmp.eq.s32.totalorder %s32, 7
      %p119 = por %p117, %p118
      %p121 = scmp.ne.s32.totalorder %s104, %s120
      %p122 = scmp.eq.s32.totalorder %s32, 0
      %p123 = por %p121, %p122
      %s125 = sadd.s32 %s124, 1
      %p128 = scmp.eq.s32.totalorder %s26, 7
      %p129 = scmp.ne.s32.totalorder %s124, %s126
      %p130 = scmp.eq.s32.totalorder %s26, 0
      %p131 = por %p129, %p130
      %p132 = scmp.ne.s32.totalorder %s124, %s126
      %p133 = scmp.eq.s32.totalorder %s31, 7
      %p134 = por %p132, %p133
      %p135 = scmp.ne.s32.totalorder %s126, %s127
      %p136 = scmp.eq.s32.totalorder %s31, 0
      %p137 = por %p135, %p136
      %p138 = scmp.ne.s32.totalorder %s126, %s127
      %p139 = scmp.eq.s32.totalorder %s32, 7
      %p140 = por %p138, %p139
      %p142 = scmp.ne.s32.totalorder %s127, %s141
      %p143 = scmp.eq.s32.totalorder %s32, 0
      %p144 = por %p142, %p143
      %s146 = sadd.s32 %s145, 1
      %p149 = scmp.eq.s32.totalorder %s26, 7
      %p150 = scmp.ne.s32.totalorder %s145, %s147
      %p151 = scmp.eq.s32.totalorder %s26, 0
      %p152 = por %p150, %p151
      %p153 = scmp.ne.s32.totalorder %s145, %s147
      %p154 = scmp.eq.s32.totalorder %s31, 7
      %p155 = por %p153, %p154
      %p156 = scmp.ne.s32.totalorder %s147, %s148
      %p157 = scmp.eq.s32.totalorder %s31, 0
      %p158 = por %p156, %p157
      %p159 = scmp.ne.s32.totalorder %s147, %s148
      %p160 = scmp.eq.s32.totalorder %s32, 7
      %p161 = por %p159, %p160
      %p163 = scmp.ne.s32.totalorder %s148, %s162
      %p164 = scmp.eq.s32.totalorder %s32, 0
      %p165 = por %p163, %p164
      %s167 = sadd.s32 %s166, 1
      %p170 = scmp.eq.s32.totalorder %s26, 7
      %p171 = scmp.ne.s32.totalorder %s166, %s168
      %p172 = scmp.eq.s32.totalorder %s26, 0
      %p173 = por %p171, %p172
      %p174 = scmp.ne.s32.totalorder %s166, %s168
      %p175 = scmp.eq.s32.totalorder %s31, 7
      %p176 = por %p174, %p175
      %p177 = scmp.ne.s32.totalorder %s168, %s169
      %p178 = scmp.eq.s32.totalorder %s31, 0
      %p179 = por %p177, %p178
      %p180 = scmp.ne.s32.totalorder %s168, %s169
      %p181 = scmp.eq.s32.totalorder %s32, 7
      %p182 = por %p180, %p181
      %p184 = scmp.ne.s32.totalorder %s169, %s183
      %p185 = scmp.eq.s32.totalorder %s32, 0
      %p186 = por %p184, %p185
      %s188 = sadd.s32 %s187, 1
      %p191 = scmp.eq.s32.totalorder %s26, 7
      %p192 = scmp.ne.s32.totalorder %s187, %s189
      %p193 = scmp.eq.s32.totalorder %s26, 0
      %p194 = por %p192, %p193
      %p195 = scmp.ne.s32.totalorder %s187, %s189
      %p196 = scmp.eq.s32.totalorder %s31, 7
      %p197 = por %p195, %p196
      %p198 = scmp.ne.s32.totalorder %s189, %s190
      %p199 = scmp.eq.s32.totalorder %s31, 0
      %p200 = por %p198, %p199
      %p201 = scmp.ne.s32.totalorder %s189, %s190
      %p202 = scmp.eq.s32.totalorder %s32, 7
      %p203 = por %p201, %p202
      %p205 = scmp.ne.s32.totalorder %s190, %s204
      %p206 = scmp.eq.s32.totalorder %s32, 0
      %p207 = por %p205, %p206
      %s209 = sadd.s32 %s208, 1
      %p212 = scmp.eq.s32.totalorder %s26, 7
      %p213 = scmp.ne.s32.totalorder %s208, %s210
      %p214 = scmp.eq.s32.totalorder %s26, 0
      %p215 = por %p213, %p214
      %p216 = scmp.ne.s32.totalorder %s208, %s210
      %p217 = scmp.eq.s32.totalorder %s31, 7
      %p218 = por %p216, %p217
      %p219 = scmp.ne.s32.totalorder %s210, %s211
      %p220 = scmp.eq.s32.totalorder %s31, 0
      %p221 = por %p219, %p220
      %p222 = scmp.ne.s32.totalorder %s210, %s211
      %p223 = scmp.eq.s32.totalorder %s32, 7
      %p224 = por %p222, %p223
      %p226 = scmp.ne.s32.totalorder %s211, %s225
      %p227 = scmp.eq.s32.totalorder %s32, 0
      %p228 = por %p226, %p227
      %s230 = sadd.s32 %s229, 1
      %p233 = scmp.eq.s32.totalorder %s26, 7
      %p234 = scmp.ne.s32.totalorder %s229, %s231
      %p235 = scmp.eq.s32.totalorder %s26, 0
      %p236 = por %p234, %p235
      %p237 = scmp.ne.s32.totalorder %s229, %s231
      %p238 = scmp.eq.s32.totalorder %s31, 7
      %p239 = por %p237, %p238
      %p240 = scmp.ne.s32.totalorder %s231, %s232
      %p241 = scmp.eq.s32.totalorder %s31, 0
      %p242 = por %p240, %p241
      %p243 = scmp.ne.s32.totalorder %s231, %s232
      %p244 = scmp.eq.s32.totalorder %s32, 7
      %p245 = por %p243, %p244
      %p247 = scmp.ne.s32.totalorder %s232, %s246
      %p248 = scmp.eq.s32.totalorder %s32, 0
      %p249 = por %p247, %p248
      %s251 = sadd.s32 %s250, 1
      %p254 = scmp.eq.s32.totalorder %s26, 7
      %p255 = scmp.ne.s32.totalorder %s250, %s252
      %p256 = scmp.eq.s32.totalorder %s26, 0
      %p257 = por %p255, %p256
      %p258 = scmp.ne.s32.totalorder %s250, %s252
      %p259 = scmp.eq.s32.totalorder %s31, 7
      %p260 = por %p258, %p259
      %p261 = scmp.ne.s32.totalorder %s252, %s253
      %p262 = scmp.eq.s32.totalorder %s31, 0
      %p263 = por %p261, %p262
      %p264 = scmp.ne.s32.totalorder %s252, %s253
      %p265 = scmp.eq.s32.totalorder %s32, 7
      %p266 = por %p264, %p265
      %p268 = scmp.ne.s32.totalorder %s253, %s267
      %p269 = scmp.eq.s32.totalorder %s32, 0
      %p270 = por %p268, %p269
      %s272 = sadd.s32 %s271, 1
      %p275 = scmp.eq.s32.totalorder %s26, 7
      %p276 = scmp.ne.s32.totalorder %s271, %s273
      %p277 = scmp.eq.s32.totalorder %s26, 0
      %p278 = por %p276, %p277
      %p279 = scmp.ne.s32.totalorder %s271, %s273
      %p280 = scmp.eq.s32.totalorder %s31, 7
      %p281 = por %p279, %p280
      %p282 = scmp.ne.s32.totalorder %s273, %s274
      %p283 = scmp.eq.s32.totalorder %s31, 0
      %p284 = por %p282, %p283
      %p285 = scmp.ne.s32.totalorder %s273, %s274
      %p286 = scmp.eq.s32.totalorder %s32, 7
      %p287 = por %p285, %p286
      %p289 = scmp.ne.s32.totalorder %s274, %s288
      %p290 = scmp.eq.s32.totalorder %s32, 0
      %p291 = por %p289, %p290
      %s292 = ssub.s32 %s34, %s41
      %p293 = scmp.eq.s32.totalorder %s292, 0
      %s295 = sadd.s32 %s294, 1
      %s296 = scalar_select %p293, %s294, %s295
      %p299 = pneg %p293
      %p300 = scmp.eq.s32.totalorder %s26, 7
      %p301 = por %p299, %p300
      %p302 = scmp.ne.s32.totalorder %s294, %s297
      %p303 = scmp.eq.s32.totalorder %s26, 0
      %p304 = por %p302, %p303
      %p305 = scmp.ne.s32.totalorder %s294, %s297
      %p306 = scmp.eq.s32.totalorder %s31, 7
      %p307 = por %p305, %p306
      %p308 = scmp.ne.s32.totalorder %s297, %s298
      %p309 = scmp.eq.s32.totalorder %s31, 0
      %p310 = por %p308, %p309
      %p311 = scmp.ne.s32.totalorder %s297, %s298
      %p312 = scmp.eq.s32.totalorder %s32, 7
      %p313 = por %p311, %p312
      %p315 = scmp.ne.s32.totalorder %s298, %s314
      %p316 = scmp.eq.s32.totalorder %s32, 0
      %p317 = por %p315, %p316
      %s318 = ssub.s32 %s34, %s41
      %p319 = scmp.eq.s32.totalorder %s318, 0
      %s321 = sadd.s32 %s320, 1
      %s322 = scalar_select %p319, %s320, %s321
      %p325 = pneg %p319
      %p326 = scmp.eq.s32.totalorder %s26, 7
      %p327 = por %p325, %p326
      %p328 = scmp.ne.s32.totalorder %s320, %s323
      %p329 = scmp.eq.s32.totalorder %s26, 0
      %p330 = por %p328, %p329
      %p331 = scmp.ne.s32.totalorder %s320, %s323
      %p332 = scmp.eq.s32.totalorder %s31, 7
      %p333 = por %p331, %p332
      %p334 = scmp.ne.s32.totalorder %s323, %s324
      %p335 = scmp.eq.s32.totalorder %s31, 0
      %p336 = por %p334, %p335
      %p337 = scmp.ne.s32.totalorder %s323, %s324
      %p338 = scmp.eq.s32.totalorder %s32, 7
      %p339 = por %p337, %p338
      %p341 = scmp.ne.s32.totalorder %s324, %s340
      %p342 = scmp.eq.s32.totalorder %s32, 0
      %p343 = por %p341, %p342
      %s344 = ssub.s32 %s34, %s41
      %p345 = scmp.eq.s32.totalorder %s344, 0
      %s347 = sadd.s32 %s346, 1
      %s348 = scalar_select %p345, %s346, %s347
      %p351 = pneg %p345
      %p352 = scmp.eq.s32.totalorder %s26, 7
      %p353 = por %p351, %p352
      %p354 = scmp.ne.s32.totalorder %s346, %s349
      %p355 = scmp.eq.s32.totalorder %s26, 0
      %p356 = por %p354, %p355
      %p357 = scmp.ne.s32.totalorder %s346, %s349
      %p358 = scmp.eq.s32.totalorder %s31, 7
      %p359 = por %p357, %p358
      %p360 = scmp.ne.s32.totalorder %s349, %s350
      %p361 = scmp.eq.s32.totalorder %s31, 0
      %p362 = por %p360, %p361
      %p363 = scmp.ne.s32.totalorder %s349, %s350
      %p364 = scmp.eq.s32.totalorder %s32, 7
      %p365 = por %p363, %p364
      %p367 = scmp.ne.s32.totalorder %s350, %s366
      %p368 = scmp.eq.s32.totalorder %s32, 0
      %p369 = por %p367, %p368
      %s370 = ssub.s32 %s34, %s41
      %p371 = scmp.eq.s32.totalorder %s370, 0
      %s373 = sadd.s32 %s372, 1
      %s374 = scalar_select %p371, %s372, %s373
      %p377 = pneg %p371
      %p378 = scmp.eq.s32.totalorder %s26, 7
      %p379 = por %p377, %p378
      %p380 = scmp.ne.s32.totalorder %s372, %s375
      %p381 = scmp.eq.s32.totalorder %s26, 0
      %p382 = por %p380, %p381
      %p383 = scmp.ne.s32.totalorder %s372, %s375
      %p384 = scmp.eq.s32.totalorder %s31, 7
      %p385 = por %p383, %p384
      %p386 = scmp.ne.s32.totalorder %s375, %s376
      %p387 = scmp.eq.s32.totalorder %s31, 0
      %p388 = por %p386, %p387
      %p389 = scmp.ne.s32.totalorder %s375, %s376
      %p390 = scmp.eq.s32.totalorder %s32, 7
      %p391 = por %p389, %p390
      %p393 = scmp.ne.s32.totalorder %s376, %s392
      %p394 = scmp.eq.s32.totalorder %s32, 0
      %p395 = por %p393, %p394
      %s397 = sadd.s32 %s396, 1
      %p400 = scmp.eq.s32.totalorder %s26, 7
      %p401 = scmp.ne.s32.totalorder %s396, %s398
      %p402 = scmp.eq.s32.totalorder %s26, 0
      %p403 = por %p401, %p402
      %p404 = scmp.ne.s32.totalorder %s396, %s398
      %p405 = scmp.eq.s32.totalorder %s31, 7
      %p406 = por %p404, %p405
      %p407 = scmp.ne.s32.totalorder %s398, %s399
      %p408 = scmp.eq.s32.totalorder %s31, 0
      %p409 = por %p407, %p408
      %p410 = scmp.ne.s32.totalorder %s398, %s399
      %p411 = scmp.eq.s32.totalorder %s32, 7
      %p412 = por %p410, %p411
      %p414 = scmp.ne.s32.totalorder %s399, %s413
      %p415 = scmp.eq.s32.totalorder %s32, 0
      %p416 = por %p414, %p415
      %s418 = sadd.s32 %s417, 1
      %p421 = scmp.eq.s32.totalorder %s26, 7
      %p422 = scmp.ne.s32.totalorder %s417, %s419
      %p423 = scmp.eq.s32.totalorder %s26, 0
      %p424 = por %p422, %p423
      %p425 = scmp.ne.s32.totalorder %s417, %s419
      %p426 = scmp.eq.s32.totalorder %s31, 7
      %p427 = por %p425, %p426
      %p428 = scmp.ne.s32.totalorder %s419, %s420
      %p429 = scmp.eq.s32.totalorder %s31, 0
      %p430 = por %p428, %p429
      %p431 = scmp.ne.s32.totalorder %s419, %s420
      %p432 = scmp.eq.s32.totalorder %s32, 7
      %p433 = por %p431, %p432
      %p435 = scmp.ne.s32.totalorder %s420, %s434
      %p436 = scmp.eq.s32.totalorder %s32, 0
      %p437 = por %p435, %p436
      %s438 = ssub.s32 %s33, %s45
      %p439 = scmp.eq.s32.totalorder %s438, 0
      %s441 = sadd.s32 %s440, 1
      %s442 = scalar_select %p439, %s440, %s441
      %p445 = pneg %p439
      %p446 = scmp.eq.s32.totalorder %s26, 7
      %p447 = por %p445, %p446
      %p448 = scmp.ne.s32.totalorder %s440, %s443
      %p449 = scmp.eq.s32.totalorder %s26, 0
      %p450 = por %p448, %p449
      %p451 = scmp.ne.s32.totalorder %s440, %s443
      %p452 = scmp.eq.s32.totalorder %s31, 7
      %p453 = por %p451, %p452
      %p454 = scmp.ne.s32.totalorder %s443, %s444
      %p455 = scmp.eq.s32.totalorder %s31, 0
      %p456 = por %p454, %p455
      %p457 = scmp.ne.s32.totalorder %s443, %s444
      %p458 = scmp.eq.s32.totalorder %s32, 7
      %p459 = por %p457, %p458
      %p461 = scmp.ne.s32.totalorder %s444, %s460
      %p462 = scmp.eq.s32.totalorder %s32, 0
      %p463 = por %p461, %p462
      %p464 = scmp.le.s32.totalorder 1, %s26
      %p465 = scmp.lt.s32.totalorder %s26, 9
      %p466 = pnand %p464, %p465
      %p467 = pneg %p466
      // Predicated region
      $region9: #{tpu_custom_call.1} parent=5 // pred_check
        _
      $region10: #{tpu_custom_call.1} parent=5 // pred_check_branch
        %469 = sbr.rel (%p466) target = $region12
      $region11: #{tpu_custom_call.1} parent=5 // pred_region
        %s470 = ssub.s32 %s26, 1
        // Predicated region
        $region13: #{tpu_custom_call.1} parent=11 // pred_check
          %p471 = pneg %p137
        $region14: #{tpu_custom_call.1} parent=11 // pred_check_branch
          %473 = sbr.rel (%p471) target = $region16
        $region15: #{tpu_custom_call.1} parent=11 // pred_region
          _
        $region16: #{tpu_custom_call.1} parent=11 // pred_fallthru
          _
        // Predicated region
        $region17: #{tpu_custom_call.1} parent=11 // pred_check
          %p474 = pneg %p158
        $region18: #{tpu_custom_call.1} parent=11 // pred_check_branch
          %476 = sbr.rel (%p474) target = $region20
        $region19: #{tpu_custom_call.1} parent=11 // pred_region
          _
        $region20: #{tpu_custom_call.1} parent=11 // pred_fallthru
          _
        // Predicated region
        $region21: #{tpu_custom_call.1} parent=11 // pred_check
          %p477 = pneg %p179
        $region22: #{tpu_custom_call.1} parent=11 // pred_check_branch
          %479 = sbr.rel (%p477) target = $region24
        $region23: #{tpu_custom_call.1} parent=11 // pred_region
          _
        $region24: #{tpu_custom_call.1} parent=11 // pred_fallthru
          _
        // Predicated region
        $region25: #{tpu_custom_call.1} parent=11 // pred_check
          %p480 = pneg %p200
        $region26: #{tpu_custom_call.1} parent=11 // pred_check_branch
          %482 = sbr.rel (%p480) target = $region28
        $region27: #{tpu_custom_call.1} parent=11 // pred_region
          _
        $region28: #{tpu_custom_call.1} parent=11 // pred_fallthru
          _
        // Predicated region
        $region29: #{tpu_custom_call.1} parent=11 // pred_check
          %p483 = pneg %p221
        $region30: #{tpu_custom_call.1} parent=11 // pred_check_branch
          %485 = sbr.rel (%p483) target = $region32
        $region31: #{tpu_custom_call.1} parent=11 // pred_region
          _
        $region32: #{tpu_custom_call.1} parent=11 // pred_fallthru
          _
        // Predicated region
        $region33: #{tpu_custom_call.1} parent=11 // pred_check
          %p486 = pneg %p242
        $region34: #{tpu_custom_call.1} parent=11 // pred_check_branch
          %488 = sbr.rel (%p486) target = $region36
        $region35: #{tpu_custom_call.1} parent=11 // pred_region
          _
        $region36: #{tpu_custom_call.1} parent=11 // pred_fallthru
          _
        // Predicated region
        $region37: #{tpu_custom_call.1} parent=11 // pred_check
          %p489 = pneg %p263
        $region38: #{tpu_custom_call.1} parent=11 // pred_check_branch
          %491 = sbr.rel (%p489) target = $region40
        $region39: #{tpu_custom_call.1} parent=11 // pred_region
          _
        $region40: #{tpu_custom_call.1} parent=11 // pred_fallthru
          _
        // Predicated region
        $region41: #{tpu_custom_call.1} parent=11 // pred_check
          %p492 = pneg %p284
        $region42: #{tpu_custom_call.1} parent=11 // pred_check_branch
          %494 = sbr.rel (%p492) target = $region44
        $region43: #{tpu_custom_call.1} parent=11 // pred_region
          _
        $region44: #{tpu_custom_call.1} parent=11 // pred_fallthru
          _
        // Predicated region
        $region45: #{tpu_custom_call.1} parent=11 // pred_check
          %p495 = pneg %p409
        $region46: #{tpu_custom_call.1} parent=11 // pred_check_branch
          %497 = sbr.rel (%p495) target = $region48
        $region47: #{tpu_custom_call.1} parent=11 // pred_region
          _
        $region48: #{tpu_custom_call.1} parent=11 // pred_fallthru
          _
        // Predicated region
        $region49: #{tpu_custom_call.1} parent=11 // pred_check
          %p498 = pneg %p430
        $region50: #{tpu_custom_call.1} parent=11 // pred_check_branch
          %500 = sbr.rel (%p498) target = $region52
        $region51: #{tpu_custom_call.1} parent=11 // pred_region
          _
        $region52: #{tpu_custom_call.1} parent=11 // pred_fallthru
          _
      $region12: #{tpu_custom_call.1} parent=5 // pred_fallthru
        _
      %p501 = scmp.lt.s32.totalorder %s26, 8
      // Predicated region
      $region53: #{tpu_custom_call.1} parent=5 // pred_check
        %p502 = pneg %p501
      $region54: #{tpu_custom_call.1} parent=5 // pred_check_branch
        %504 = sbr.rel (%p502) target = $region56
      $region55: #{tpu_custom_call.1} parent=5 // pred_region
        // Predicated region
        $region57: #{tpu_custom_call.1} parent=55 // pred_check
          %p505 = pneg %p58
        $region58: #{tpu_custom_call.1} parent=55 // pred_check_branch
          %507 = sbr.rel (%p505) target = $region60
        $region59: #{tpu_custom_call.1} parent=55 // pred_region
          %s508 = smul.u32 32, %s33
          %p509 = scmp.lt.s32.totalorder %s508, 63
          %s510 = scalar_select %p509, %s508, 63
          %s511 = smul.addr %s510, 8
          %s512 = scalar_lea.vmem %s0, %s511
          %s513 = smul.u32 32, %s33
        $region60: #{tpu_custom_call.1} parent=55 // pred_fallthru
          _
        // Predicated region
        $region61: #{tpu_custom_call.1} parent=55 // pred_check
          %p514 = pneg %p84
        $region62: #{tpu_custom_call.1} parent=55 // pred_check_branch
          %516 = sbr.rel (%p514) target = $region64
        $region63: #{tpu_custom_call.1} parent=55 // pred_region
          %s517 = smul.u32 32, %s33
          %p518 = scmp.lt.s32.totalorder %s517, 63
          %s519 = scalar_select %p518, %s517, 63
          %s520 = smul.addr %s519, 8
          %s521 = scalar_lea.vmem %s1, %s520
          %s522 = smul.u32 32, %s33
        $region64: #{tpu_custom_call.1} parent=55 // pred_fallthru
          _
        // Predicated region
        $region65: #{tpu_custom_call.1} parent=55 // pred_check
          %p523 = pneg %p110
        $region66: #{tpu_custom_call.1} parent=55 // pred_check_branch
          %525 = sbr.rel (%p523) target = $region68
        $region67: #{tpu_custom_call.1} parent=55 // pred_region
          %s526 = smul.u32 32, %s33
          %p527 = scmp.lt.s32.totalorder %s526, 63
          %s528 = scalar_select %p527, %s526, 63
          %s529 = smul.addr %s528, 8
          %s530 = scalar_lea.vmem %s2, %s529
          %s531 = smul.u32 32, %s33
        $region68: #{tpu_custom_call.1} parent=55 // pred_fallthru
          _
        // Predicated region
        $region69: #{tpu_custom_call.1} parent=55 // pred_check
          %p532 = pneg %p304
        $region70: #{tpu_custom_call.1} parent=55 // pred_check_branch
          %534 = sbr.rel (%p532) target = $region72
        $region71: #{tpu_custom_call.1} parent=55 // pred_region
          %p535 = scmp.lt.s32.totalorder %s34, 3
          %s536 = scalar_select %p535, %s34, 3
          %s537 = smul.addr %s536, 16
          %s538 = smul.addr %s537, 4
          %s539 = scalar_lea.vmem %s11, %s538
        $region72: #{tpu_custom_call.1} parent=55 // pred_fallthru
          _
        // Predicated region
        $region73: #{tpu_custom_call.1} parent=55 // pred_check
          %p540 = pneg %p330
        $region74: #{tpu_custom_call.1} parent=55 // pred_check_branch
          %542 = sbr.rel (%p540) target = $region76
        $region75: #{tpu_custom_call.1} parent=55 // pred_region
          %p543 = scmp.lt.s32.totalorder %s34, 3
          %s544 = scalar_select %p543, %s34, 3
          %s545 = scalar_lea.vmem %s12, %s544
        $region76: #{tpu_custom_call.1} parent=55 // pred_fallthru
          _
        // Predicated region
        $region77: #{tpu_custom_call.1} parent=55 // pred_check
          %p546 = pneg %p356
        $region78: #{tpu_custom_call.1} parent=55 // pred_check_branch
          %548 = sbr.rel (%p546) target = $region80
        $region79: #{tpu_custom_call.1} parent=55 // pred_region
          %p549 = scmp.lt.s32.totalorder %s34, 3
          %s550 = scalar_select %p549, %s34, 3
          %s551 = scalar_lea.vmem %s13, %s550
        $region80: #{tpu_custom_call.1} parent=55 // pred_fallthru
          _
        // Predicated region
        $region81: #{tpu_custom_call.1} parent=55 // pred_check
          %p552 = pneg %p382
        $region82: #{tpu_custom_call.1} parent=55 // pred_check_branch
          %554 = sbr.rel (%p552) target = $region84
        $region83: #{tpu_custom_call.1} parent=55 // pred_region
          %p555 = scmp.lt.s32.totalorder %s34, 3
          %s556 = scalar_select %p555, %s34, 3
          %s557 = scalar_lea.vmem %s14, %s556
        $region84: #{tpu_custom_call.1} parent=55 // pred_fallthru
          _
      $region56: #{tpu_custom_call.1} parent=5 // pred_fallthru
        _
      %p558 = scmp.le.s32.totalorder 1, %s26
      %p559 = scmp.lt.s32.totalorder %s26, 9
      %p560 = pnand %p558, %p559
      %p561 = pneg %p560
      // Predicated region
      $region85: #{tpu_custom_call.1} parent=5 // pred_check
        _
      $region86: #{tpu_custom_call.1} parent=5 // pred_check_branch
        %563 = sbr.rel (%p560) target = $region88
      $region87: #{tpu_custom_call.1} parent=5 // pred_region
        %s564 = ssub.s32 %s26, 1
        %s565 = smul.u32 32, %s35
        %p566 = scmp.lt.s32.totalorder %s565, 63
        %s567 = scalar_select %p566, %s565, 63
        %s568 = smul.addr %s567, 8
        %s569 = scalar_lea.vmem %s0, %s568
        %p570 = pneg %p64
        %p571 = pneg %p61
        %s572 = smul.u32 32, %s35
        %p573 = scmp.lt.s32.totalorder %s572, 63
        %s574 = scalar_select %p573, %s572, 63
        %s575 = smul.addr %s574, 8
        %s576 = scalar_lea.vmem %s1, %s575
        %p577 = pneg %p90
        %p578 = pneg %p87
        %s579 = smul.u32 32, %s35
        %p580 = scmp.lt.s32.totalorder %s579, 63
        %s581 = scalar_select %p580, %s579, 63
        %s582 = smul.addr %s581, 8
        %s583 = scalar_lea.vmem %s2, %s582
        %p584 = pneg %p116
        %p585 = pneg %p113
        %p586 = pneg %p137
        %p587 = pneg %p134
        %p588 = pneg %p158
        %p589 = pneg %p155
        %p590 = pneg %p179
        %p591 = pneg %p176
        %p592 = pneg %p200
        %p593 = pneg %p197
        %p594 = pneg %p221
        %p595 = pneg %p218
        %p596 = pneg %p242
        %p597 = pneg %p239
        %p598 = pneg %p263
        %p599 = pneg %p260
        %p600 = pneg %p284
        %p601 = pneg %p281
        %p602 = scmp.lt.s32.totalorder %s36, 3
        %s603 = scalar_select %p602, %s36, 3
        %s604 = smul.addr %s603, 16
        %s605 = smul.addr %s604, 4
        %s606 = scalar_lea.vmem %s11, %s605
        %p607 = pneg %p310
        %p608 = pneg %p307
        %p609 = scmp.lt.s32.totalorder %s36, 3
        %s610 = scalar_select %p609, %s36, 3
        %s611 = scalar_lea.vmem %s12, %s610
        %p612 = pneg %p336
        %p613 = pneg %p333
        %p614 = scmp.lt.s32.totalorder %s36, 3
        %s615 = scalar_select %p614, %s36, 3
        %s616 = scalar_lea.vmem %s13, %s615
        %p617 = pneg %p362
        %p618 = pneg %p359
        %p619 = scmp.lt.s32.totalorder %s36, 3
        %s620 = scalar_select %p619, %s36, 3
        %s621 = scalar_lea.vmem %s14, %s620
        %p622 = pneg %p388
        %p623 = pneg %p385
        %p624 = pneg %p409
        %p625 = pneg %p406
        %p626 = pneg %p430
        %p627 = pneg %p427
        %p628 = pneg %p456
        %p629 = pneg %p453
        %s630 = sand.u32 %s443, 1
        %s631 = scalar_lea.sflag [#allocation5], %s630
        %s632 = sand.u32 %s443, 1
        %s633 = smul.addr %s632, 256
        %s634 = scalar_lea.vmem [#allocation4], %s633
        %s635 = smul.u32 32, %s35
        %p636 = scmp.lt.s32.totalorder %s635, 63
        %s637 = scalar_select %p636, %s635, 63
        %s638 = smul.addr %s637, 8
        %s639 = scalar_lea.vmem %s0, %s638
        %s640 = smul.u32 32, %s35
        %s641 = smul.u32 32, %s35
        %p642 = scmp.lt.s32.totalorder %s641, 63
        %s643 = scalar_select %p642, %s641, 63
        %s644 = smul.addr %s643, 8
        %s645 = scalar_lea.vmem %s1, %s644
        %s646 = smul.u32 32, %s35
        %s647 = smul.u32 32, %s35
        %p648 = scmp.lt.s32.totalorder %s647, 63
        %s649 = scalar_select %p648, %s647, 63
        %s650 = smul.addr %s649, 8
        %s651 = scalar_lea.vmem %s2, %s650
        %s652 = smul.u32 32, %s35
        %p653 = scmp.lt.s32.totalorder %s36, 3
        %s654 = scalar_select %p653, %s36, 3
        %s655 = smul.addr %s654, 16
        %s656 = smul.addr %s655, 4
        %s657 = scalar_lea.vmem %s11, %s656
        %p658 = scmp.lt.s32.totalorder %s36, 3
        %s659 = scalar_select %p658, %s36, 3
        %s660 = scalar_lea.vmem %s12, %s659
        %p661 = scmp.lt.s32.totalorder %s36, 3
        %s662 = scalar_select %p661, %s36, 3
        %s663 = scalar_lea.vmem %s13, %s662
        %p664 = scmp.lt.s32.totalorder %s36, 3
        %s665 = scalar_select %p664, %s36, 3
        %s666 = scalar_lea.vmem %s14, %s665
        %s667 = smul.u32 32, %s35
        %p669 = scmp.eq.s32.totalorder %s36, 0
        // Predicated region
        $region89: #{tpu_custom_call.1} parent=87 // pred_check
          %p670 = pneg %p669
        $region90: #{tpu_custom_call.1} parent=87 // pred_check_branch
          %672 = sbr.rel (%p670) target = $region92
        $region91: #{tpu_custom_call.1} parent=87 // pred_region
          %v673 = vld [vmem:[%s645] sm:$0xff]
          %v674 = vld [vmem:[%s645 + $0x8] sm:$0xff]
          %v675 = vld [vmem:[%s645 + $0x10] sm:$0xff]
          %v676 = vld [vmem:[%s645 + $0x18] sm:$0xff]
          %v677 = vld [vmem:[%s645 + $0x20] sm:$0xff]
          %v678 = vld [vmem:[%s645 + $0x28] sm:$0xff]
          %v679 = vld [vmem:[%s645 + $0x30] sm:$0xff]
          %v680 = vld [vmem:[%s645 + $0x38] sm:$0xff]
          %v681 = vld [vmem:[%s645 + $0x40] sm:$0xff]
          %v682 = vld [vmem:[%s645 + $0x48] sm:$0xff]
          %v683 = vld [vmem:[%s645 + $0x50] sm:$0xff]
          %v684 = vld [vmem:[%s645 + $0x58] sm:$0xff]
          %v685 = vld [vmem:[%s645 + $0x60] sm:$0xff]
          %v686 = vld [vmem:[%s645 + $0x68] sm:$0xff]
          %v687 = vld [vmem:[%s645 + $0x70] sm:$0xff]
          %v688 = vld [vmem:[%s645 + $0x78] sm:$0xff]
          %v689 = vld [vmem:[%s645 + $0x80] sm:$0xff]
          %v690 = vld [vmem:[%s645 + $0x88] sm:$0xff]
          %v691 = vld [vmem:[%s645 + $0x90] sm:$0xff]
          %v692 = vld [vmem:[%s645 + $0x98] sm:$0xff]
          %v693 = vld [vmem:[%s645 + $0xa0] sm:$0xff]
          %v694 = vld [vmem:[%s645 + $0xa8] sm:$0xff]
          %v695 = vld [vmem:[%s645 + $0xb0] sm:$0xff]
          %v696 = vld [vmem:[%s645 + $0xb8] sm:$0xff]
          %v697 = vld [vmem:[%s645 + $0xc0] sm:$0xff]
          %v698 = vld [vmem:[%s645 + $0xc8] sm:$0xff]
          %v699 = vld [vmem:[%s645 + $0xd0] sm:$0xff]
          %v700 = vld [vmem:[%s645 + $0xd8] sm:$0xff]
          %v701 = vld [vmem:[%s645 + $0xe0] sm:$0xff]
          %v702 = vld [vmem:[%s645 + $0xe8] sm:$0xff]
          %v703 = vld [vmem:[%s645 + $0xf0] sm:$0xff]
          %v704 = vld [vmem:[%s645 + $0xf8] sm:$0xff]
          %v705 = vand.u32 2147483647, %v673
          %vm706 = vcmp.le.f32.partialorder %v705, 0.7853982
          %vm707 = vcmp.lt.s32.totalorder %v673, 0
          %v708 = vand.u32 %v673, 2139095040
          %v709 = vshrl.u32 %v708, 23
          %v710 = vsub.s32 %v709, 127
          %v711 = vand.u32 2147483647, %v673
          %v712 = vand.u32 %v711, 8388607
          %v713 = vor.u32 %v712, 8388608
          %v714 = vsub.s32 0, %v713
          %v715 = vadd.s32 %v710, 1
          %vm716 = vcmp.gt.s32.totalorder %v715, 0
          %v717 = vsel %vm716, %v715, 0
          %v718 = vshrl.u32 %v717, 5
          %v719 = vand.u32 %v717, 31
          %v720 = vsub.s32 32, %v719
          %v721 = vshrl.u32 683565275, %v720
          %v722 = vshll.u32 683565275, %v719
          %v723 = vshrl.u32 2475754826, %v720
          %v724 = vor.u32 %v722, %v723
          %v725 = vshll.u32 2475754826, %v719
          %v726 = vshrl.u32 2131351028, %v720
          %v727 = vor.u32 %v725, %v726
          %v728 = vshll.u32 2131351028, %v719
          %v729 = vshrl.u32 2102212464, %v720
          %v730 = vor.u32 %v728, %v729
          %v731 = vshll.u32 2102212464, %v719
          %v732 = vshrl.u32 920167782, %v720
          %v733 = vor.u32 %v731, %v732
          %v734 = vshll.u32 920167782, %v719
          %v735 = vshrl.u32 1326507024, %v720
          %v736 = vor.u32 %v734, %v735
          %vm737 = vcmp.lt.s32.totalorder %v718, 1
          %vm738 = vcmp.lt.s32.totalorder %v718, 2
          %vm739 = vcmp.lt.s32.totalorder %v718, 3
          %vm740 = vcmp.lt.s32.totalorder %v718, 4
          %v741 = vsel %vm737, %v721, %v724
          %v742 = vsel %vm740, %v730, 2102212464
          %v743 = vsel %vm739, %v727, %v742
          %v744 = vsel %vm738, %v741, %v743
          %v745 = vsel %vm737, %v724, %v727
          %v746 = vsel %vm740, %v733, 920167782
          %v747 = vsel %vm739, %v730, %v746
          %v748 = vsel %vm738, %v745, %v747
          %v749 = vsel %vm737, %v727, %v730
          %v750 = vsel %vm740, %v736, 1326507024
          %v751 = vsel %vm739, %v733, %v750
          %v752 = vsel %vm738, %v749, %v751
          %v753 = vshll.u32 %v713, 8
          %v754 = vmul.u32.u64.compose %v753, %v752
          %v755 = vextract.low.u32 %v754
          %v756 = vextract.high.u32 %v754
          %v757 = vmul.u32.u64.compose %v753, %v748
          %v758 = vextract.low.u32 %v757
          %v759 = vextract.high.u32 %v757
          %v760 = vmul.u32 %v753, %v744
          %v761 = vadd.s32 %v756, %v758
          %vm762 = vc.u32 %v756, %v758
          %v763 = vadd.s32 %v759, 1
          %v764 = vsel %vm762, %v763, %v759
          %v765 = vadd.s32 %v760, %v764
          %v766 = vadd.s32 %v765, 536870912
          %v767 = vshrl.u32 %v766, 30
          %v768 = vshll.u32 %v767, 30
          %v769 = vsub.s32 %v765, %v768
          %vm770 = vcmp.lt.s32.totalorder %v769, 0
          %v771 = vsub.s32 0, %v769
          %v772 = vsel %vm770, %v771, %v769
          %v773 = vclz %v772
          %v774 = vsub.s32 %v773, 2
          %vm775 = vcmp.gt.s32.totalorder 0, %v774
          %v776 = vsel %vm775, 0, %v774
          %v777 = vsub.s32 32, %v776
          %v778 = vshll.u32 %v769, %v776
          %v779 = vshrl.u32 %v761, %v777
          %v780 = vor.u32 %v778, %v779
          %v781 = vsub.s32 4294967266, %v776
          %v782 = vadd.s32 %v781, 127
          %v783 = vshll.u32 %v782, 23
          %v784 = vor.u32 4788187, %v783
          %v785 = vand.u32 2147483647, %v784
          %v787 = vcvt.s32.f32 %v780
          %v788 = vmul.f32 %v787, %v785
          %v789 = vxor.u32 %v788, 2147483648
          %v790 = vsel %vm707, %v789, %v788
          %v791 = vsub.s32 4, %v767
          %v792 = vsel %vm707, %v791, %v767
          %v793 = vsel %vm706, %v673, %v790
          %v794 = vsel %vm706, 0, %v792
          %v795 = vcosq.f32.pop %v793
          %v796 = vsinq.f32.pop %v793
          %vm797 = vweird.f32 %v673
          %v798 = vadd.s32 %v794, 3
          %v799 = vand.u32 %v798, 3
          %vm800 = vcmp.lt.s32.totalorder %v799, 2
          %vm801 = vcmp.eq.s32.totalorder %v799, 0
          %v802 = vxor.u32 %v796, 2147483648
          %v803 = vsel %vm801, %v795, %v802
          %vm804 = vcmp.eq.s32.totalorder %v799, 2
          %v805 = vxor.u32 %v795, 2147483648
          %v806 = vsel %vm804, %v805, %v796
          %v807 = vsel %vm800, %v803, %v806
          %v808 = vsel %vm797, nan, %v807
          %v809 = vand.u32 2147483647, %v674
          %vm810 = vcmp.le.f32.partialorder %v809, 0.7853982
          %vm811 = vcmp.lt.s32.totalorder %v674, 0
          %v812 = vand.u32 %v674, 2139095040
          %v813 = vshrl.u32 %v812, 23
          %v814 = vsub.s32 %v813, 127
          %v815 = vand.u32 2147483647, %v674
          %v816 = vand.u32 %v815, 8388607
          %v817 = vor.u32 %v816, 8388608
          %v818 = vsub.s32 0, %v817
          %v819 = vadd.s32 %v814, 1
          %vm820 = vcmp.gt.s32.totalorder %v819, 0
          %v821 = vsel %vm820, %v819, 0
          %v822 = vshrl.u32 %v821, 5
          %v823 = vand.u32 %v821, 31
          %v824 = vsub.s32 32, %v823
          %v825 = vshrl.u32 683565275, %v824
          %v826 = vshll.u32 683565275, %v823
          %v827 = vshrl.u32 2475754826, %v824
          %v828 = vor.u32 %v826, %v827
          %v829 = vshll.u32 2475754826, %v823
          %v830 = vshrl.u32 2131351028, %v824
          %v831 = vor.u32 %v829, %v830
          %v832 = vshll.u32 2131351028, %v823
          %v833 = vshrl.u32 2102212464, %v824
          %v834 = vor.u32 %v832, %v833
          %v835 = vshll.u32 2102212464, %v823
          %v836 = vshrl.u32 920167782, %v824
          %v837 = vor.u32 %v835, %v836
          %v838 = vshll.u32 920167782, %v823
          %v839 = vshrl.u32 1326507024, %v824
          %v840 = vor.u32 %v838, %v839
          %vm841 = vcmp.lt.s32.totalorder %v822, 1
          %vm842 = vcmp.lt.s32.totalorder %v822, 2
          %vm843 = vcmp.lt.s32.totalorder %v822, 3
          %vm844 = vcmp.lt.s32.totalorder %v822, 4
          %v845 = vsel %vm841, %v825, %v828
          %v846 = vsel %vm844, %v834, 2102212464
          %v847 = vsel %vm843, %v831, %v846
          %v848 = vsel %vm842, %v845, %v847
          %v849 = vsel %vm841, %v828, %v831
          %v850 = vsel %vm844, %v837, 920167782
          %v851 = vsel %vm843, %v834, %v850
          %v852 = vsel %vm842, %v849, %v851
          %v853 = vsel %vm841, %v831, %v834
          %v854 = vsel %vm844, %v840, 1326507024
          %v855 = vsel %vm843, %v837, %v854
          %v856 = vsel %vm842, %v853, %v855
          %v857 = vshll.u32 %v817, 8
          %v858 = vmul.u32.u64.compose %v857, %v856
          %v859 = vextract.low.u32 %v858
          %v860 = vextract.high.u32 %v858
          %v861 = vmul.u32.u64.compose %v857, %v852
          %v862 = vextract.low.u32 %v861
          %v863 = vextract.high.u32 %v861
          %v864 = vmul.u32 %v857, %v848
          %v865 = vadd.s32 %v860, %v862
          %vm866 = vc.u32 %v860, %v862
          %v867 = vadd.s32 %v863, 1
          %v868 = vsel %vm866, %v867, %v863
          %v869 = vadd.s32 %v864, %v868
          %v870 = vadd.s32 %v869, 536870912
          %v871 = vshrl.u32 %v870, 30
          %v872 = vshll.u32 %v871, 30
          %v873 = vsub.s32 %v869, %v872
          %vm874 = vcmp.lt.s32.totalorder %v873, 0
          %v875 = vsub.s32 0, %v873
          %v876 = vsel %vm874, %v875, %v873
          %v877 = vclz %v876
          %v878 = vsub.s32 %v877, 2
          %vm879 = vcmp.gt.s32.totalorder 0, %v878
          %v880 = vsel %vm879, 0, %v878
          %v881 = vsub.s32 32, %v880
          %v882 = vshll.u32 %v873, %v880
          %v883 = vshrl.u32 %v865, %v881
          %v884 = vor.u32 %v882, %v883
          %v885 = vsub.s32 4294967266, %v880
          %v886 = vadd.s32 %v885, 127
          %v887 = vshll.u32 %v886, 23
          %v888 = vor.u32 4788187, %v887
          %v889 = vand.u32 2147483647, %v888
          %v891 = vcvt.s32.f32 %v884
          %v892 = vmul.f32 %v891, %v889
          %v893 = vxor.u32 %v892, 2147483648
          %v894 = vsel %vm811, %v893, %v892
          %v895 = vsub.s32 4, %v871
          %v896 = vsel %vm811, %v895, %v871
          %v897 = vsel %vm810, %v674, %v894
          %v898 = vsel %vm810, 0, %v896
          %v899 = vcosq.f32.pop %v897
          %v900 = vsinq.f32.pop %v897
          %vm901 = vweird.f32 %v674
          %v902 = vadd.s32 %v898, 3
          %v903 = vand.u32 %v902, 3
          %vm904 = vcmp.lt.s32.totalorder %v903, 2
          %vm905 = vcmp.eq.s32.totalorder %v903, 0
          %v906 = vxor.u32 %v900, 2147483648
          %v907 = vsel %vm905, %v899, %v906
          %vm908 = vcmp.eq.s32.totalorder %v903, 2
          %v909 = vxor.u32 %v899, 2147483648
          %v910 = vsel %vm908, %v909, %v900
          %v911 = vsel %vm904, %v907, %v910
          %v912 = vsel %vm901, nan, %v911
          %v913 = vand.u32 2147483647, %v675
          %vm914 = vcmp.le.f32.partialorder %v913, 0.7853982
          %vm915 = vcmp.lt.s32.totalorder %v675, 0
          %v916 = vand.u32 %v675, 2139095040
          %v917 = vshrl.u32 %v916, 23
          %v918 = vsub.s32 %v917, 127
          %v919 = vand.u32 2147483647, %v675
          %v920 = vand.u32 %v919, 8388607
          %v921 = vor.u32 %v920, 8388608
          %v922 = vsub.s32 0, %v921
          %v923 = vadd.s32 %v918, 1
          %vm924 = vcmp.gt.s32.totalorder %v923, 0
          %v925 = vsel %vm924, %v923, 0
          %v926 = vshrl.u32 %v925, 5
          %v927 = vand.u32 %v925, 31
          %v928 = vsub.s32 32, %v927
          %v929 = vshrl.u32 683565275, %v928
          %v930 = vshll.u32 683565275, %v927
          %v931 = vshrl.u32 2475754826, %v928
          %v932 = vor.u32 %v930, %v931
          %v933 = vshll.u32 2475754826, %v927
          %v934 = vshrl.u32 2131351028, %v928
          %v935 = vor.u32 %v933, %v934
          %v936 = vshll.u32 2131351028, %v927
          %v937 = vshrl.u32 2102212464, %v928
          %v938 = vor.u32 %v936, %v937
          %v939 = vshll.u32 2102212464, %v927
          %v940 = vshrl.u32 920167782, %v928
          %v941 = vor.u32 %v939, %v940
          %v942 = vshll.u32 920167782, %v927
          %v943 = vshrl.u32 1326507024, %v928
          %v944 = vor.u32 %v942, %v943
          %vm945 = vcmp.lt.s32.totalorder %v926, 1
          %vm946 = vcmp.lt.s32.totalorder %v926, 2
          %vm947 = vcmp.lt.s32.totalorder %v926, 3
          %vm948 = vcmp.lt.s32.totalorder %v926, 4
          %v949 = vsel %vm945, %v929, %v932
          %v950 = vsel %vm948, %v938, 2102212464
          %v951 = vsel %vm947, %v935, %v950
          %v952 = vsel %vm946, %v949, %v951
          %v953 = vsel %vm945, %v932, %v935
          %v954 = vsel %vm948, %v941, 920167782
          %v955 = vsel %vm947, %v938, %v954
          %v956 = vsel %vm946, %v953, %v955
          %v957 = vsel %vm945, %v935, %v938
          %v958 = vsel %vm948, %v944, 1326507024
          %v959 = vsel %vm947, %v941, %v958
          %v960 = vsel %vm946, %v957, %v959
          %v961 = vshll.u32 %v921, 8
          %v962 = vmul.u32.u64.compose %v961, %v960
          %v963 = vextract.low.u32 %v962
          %v964 = vextract.high.u32 %v962
          %v965 = vmul.u32.u64.compose %v961, %v956
          %v966 = vextract.low.u32 %v965
          %v967 = vextract.high.u32 %v965
          %v968 = vmul.u32 %v961, %v952
          %v969 = vadd.s32 %v964, %v966
          %vm970 = vc.u32 %v964, %v966
          %v971 = vadd.s32 %v967, 1
          %v972 = vsel %vm970, %v971, %v967
          %v973 = vadd.s32 %v968, %v972
          %v974 = vadd.s32 %v973, 536870912
          %v975 = vshrl.u32 %v974, 30
          %v976 = vshll.u32 %v975, 30
          %v977 = vsub.s32 %v973, %v976
          %vm978 = vcmp.lt.s32.totalorder %v977, 0
          %v979 = vsub.s32 0, %v977
          %v980 = vsel %vm978, %v979, %v977
          %v981 = vclz %v980
          %v982 = vsub.s32 %v981, 2
          %vm983 = vcmp.gt.s32.totalorder 0, %v982
          %v984 = vsel %vm983, 0, %v982
          %v985 = vsub.s32 32, %v984
          %v986 = vshll.u32 %v977, %v984
          %v987 = vshrl.u32 %v969, %v985
          %v988 = vor.u32 %v986, %v987
          %v989 = vsub.s32 4294967266, %v984
          %v990 = vadd.s32 %v989, 127
          %v991 = vshll.u32 %v990, 23
          %v992 = vor.u32 4788187, %v991
          %v993 = vand.u32 2147483647, %v992
          %v995 = vcvt.s32.f32 %v988
          %v996 = vmul.f32 %v995, %v993
          %v997 = vxor.u32 %v996, 2147483648
          %v998 = vsel %vm915, %v997, %v996
          %v999 = vsub.s32 4, %v975
          %v1000 = vsel %vm915, %v999, %v975
          %v1001 = vsel %vm914, %v675, %v998
          %v1002 = vsel %vm914, 0, %v1000
          %v1003 = vcosq.f32.pop %v1001
          %v1004 = vsinq.f32.pop %v1001
          %vm1005 = vweird.f32 %v675
          %v1006 = vadd.s32 %v1002, 3
          %v1007 = vand.u32 %v1006, 3
          %vm1008 = vcmp.lt.s32.totalorder %v1007, 2
          %vm1009 = vcmp.eq.s32.totalorder %v1007, 0
          %v1010 = vxor.u32 %v1004, 2147483648
          %v1011 = vsel %vm1009, %v1003, %v1010
          %vm1012 = vcmp.eq.s32.totalorder %v1007, 2
          %v1013 = vxor.u32 %v1003, 2147483648
          %v1014 = vsel %vm1012, %v1013, %v1004
          %v1015 = vsel %vm1008, %v1011, %v1014
          %v1016 = vsel %vm1005, nan, %v1015
          %v1017 = vand.u32 2147483647, %v676
          %vm1018 = vcmp.le.f32.partialorder %v1017, 0.7853982
          %vm1019 = vcmp.lt.s32.totalorder %v676, 0
          %v1020 = vand.u32 %v676, 2139095040
          %v1021 = vshrl.u32 %v1020, 23
          %v1022 = vsub.s32 %v1021, 127
          %v1023 = vand.u32 2147483647, %v676
          %v1024 = vand.u32 %v1023, 8388607
          %v1025 = vor.u32 %v1024, 8388608
          %v1026 = vsub.s32 0, %v1025
          %v1027 = vadd.s32 %v1022, 1
          %vm1028 = vcmp.gt.s32.totalorder %v1027, 0
          %v1029 = vsel %vm1028, %v1027, 0
          %v1030 = vshrl.u32 %v1029, 5
          %v1031 = vand.u32 %v1029, 31
          %v1032 = vsub.s32 32, %v1031
          %v1033 = vshrl.u32 683565275, %v1032
          %v1034 = vshll.u32 683565275, %v1031
          %v1035 = vshrl.u32 2475754826, %v1032
          %v1036 = vor.u32 %v1034, %v1035
          %v1037 = vshll.u32 2475754826, %v1031
          %v1038 = vshrl.u32 2131351028, %v1032
          %v1039 = vor.u32 %v1037, %v1038
          %v1040 = vshll.u32 2131351028, %v1031
          %v1041 = vshrl.u32 2102212464, %v1032
          %v1042 = vor.u32 %v1040, %v1041
          %v1043 = vshll.u32 2102212464, %v1031
          %v1044 = vshrl.u32 920167782, %v1032
          %v1045 = vor.u32 %v1043, %v1044
          %v1046 = vshll.u32 920167782, %v1031
          %v1047 = vshrl.u32 1326507024, %v1032
          %v1048 = vor.u32 %v1046, %v1047
          %vm1049 = vcmp.lt.s32.totalorder %v1030, 1
          %vm1050 = vcmp.lt.s32.totalorder %v1030, 2
          %vm1051 = vcmp.lt.s32.totalorder %v1030, 3
          %vm1052 = vcmp.lt.s32.totalorder %v1030, 4
          %v1053 = vsel %vm1049, %v1033, %v1036
          %v1054 = vsel %vm1052, %v1042, 2102212464
          %v1055 = vsel %vm1051, %v1039, %v1054
          %v1056 = vsel %vm1050, %v1053, %v1055
          %v1057 = vsel %vm1049, %v1036, %v1039
          %v1058 = vsel %vm1052, %v1045, 920167782
          %v1059 = vsel %vm1051, %v1042, %v1058
          %v1060 = vsel %vm1050, %v1057, %v1059
          %v1061 = vsel %vm1049, %v1039, %v1042
          %v1062 = vsel %vm1052, %v1048, 1326507024
          %v1063 = vsel %vm1051, %v1045, %v1062
          %v1064 = vsel %vm1050, %v1061, %v1063
          %v1065 = vshll.u32 %v1025, 8
          %v1066 = vmul.u32.u64.compose %v1065, %v1064
          %v1067 = vextract.low.u32 %v1066
          %v1068 = vextract.high.u32 %v1066
          %v1069 = vmul.u32.u64.compose %v1065, %v1060
          %v1070 = vextract.low.u32 %v1069
          %v1071 = vextract.high.u32 %v1069
          %v1072 = vmul.u32 %v1065, %v1056
          %v1073 = vadd.s32 %v1068, %v1070
          %vm1074 = vc.u32 %v1068, %v1070
          %v1075 = vadd.s32 %v1071, 1
          %v1076 = vsel %vm1074, %v1075, %v1071
          %v1077 = vadd.s32 %v1072, %v1076
          %v1078 = vadd.s32 %v1077, 536870912
          %v1079 = vshrl.u32 %v1078, 30
          %v1080 = vshll.u32 %v1079, 30
          %v1081 = vsub.s32 %v1077, %v1080
          %vm1082 = vcmp.lt.s32.totalorder %v1081, 0
          %v1083 = vsub.s32 0, %v1081
          %v1084 = vsel %vm1082, %v1083, %v1081
          %v1085 = vclz %v1084
          %v1086 = vsub.s32 %v1085, 2
          %vm1087 = vcmp.gt.s32.totalorder 0, %v1086
          %v1088 = vsel %vm1087, 0, %v1086
          %v1089 = vsub.s32 32, %v1088
          %v1090 = vshll.u32 %v1081, %v1088
          %v1091 = vshrl.u32 %v1073, %v1089
          %v1092 = vor.u32 %v1090, %v1091
          %v1093 = vsub.s32 4294967266, %v1088
          %v1094 = vadd.s32 %v1093, 127
          %v1095 = vshll.u32 %v1094, 23
          %v1096 = vor.u32 4788187, %v1095
          %v1097 = vand.u32 2147483647, %v1096
          %v1099 = vcvt.s32.f32 %v1092
          %v1100 = vmul.f32 %v1099, %v1097
          %v1101 = vxor.u32 %v1100, 2147483648
          %v1102 = vsel %vm1019, %v1101, %v1100
          %v1103 = vsub.s32 4, %v1079
          %v1104 = vsel %vm1019, %v1103, %v1079
          %v1105 = vsel %vm1018, %v676, %v1102
          %v1106 = vsel %vm1018, 0, %v1104
          %v1107 = vcosq.f32.pop %v1105
          %v1108 = vsinq.f32.pop %v1105
          %vm1109 = vweird.f32 %v676
          %v1110 = vadd.s32 %v1106, 3
          %v1111 = vand.u32 %v1110, 3
          %vm1112 = vcmp.lt.s32.totalorder %v1111, 2
          %vm1113 = vcmp.eq.s32.totalorder %v1111, 0
          %v1114 = vxor.u32 %v1108, 2147483648
          %v1115 = vsel %vm1113, %v1107, %v1114
          %vm1116 = vcmp.eq.s32.totalorder %v1111, 2
          %v1117 = vxor.u32 %v1107, 2147483648
          %v1118 = vsel %vm1116, %v1117, %v1108
          %v1119 = vsel %vm1112, %v1115, %v1118
          %v1120 = vsel %vm1109, nan, %v1119
          %v1121 = vand.u32 2147483647, %v677
          %vm1122 = vcmp.le.f32.partialorder %v1121, 0.7853982
          %vm1123 = vcmp.lt.s32.totalorder %v677, 0
          %v1124 = vand.u32 %v677, 2139095040
          %v1125 = vshrl.u32 %v1124, 23
          %v1126 = vsub.s32 %v1125, 127
          %v1127 = vand.u32 2147483647, %v677
          %v1128 = vand.u32 %v1127, 8388607
          %v1129 = vor.u32 %v1128, 8388608
          %v1130 = vsub.s32 0, %v1129
          %v1131 = vadd.s32 %v1126, 1
          %vm1132 = vcmp.gt.s32.totalorder %v1131, 0
          %v1133 = vsel %vm1132, %v1131, 0
          %v1134 = vshrl.u32 %v1133, 5
          %v1135 = vand.u32 %v1133, 31
          %v1136 = vsub.s32 32, %v1135
          %v1137 = vshrl.u32 683565275, %v1136
          %v1138 = vshll.u32 683565275, %v1135
          %v1139 = vshrl.u32 2475754826, %v1136
          %v1140 = vor.u32 %v1138, %v1139
          %v1141 = vshll.u32 2475754826, %v1135
          %v1142 = vshrl.u32 2131351028, %v1136
          %v1143 = vor.u32 %v1141, %v1142
          %v1144 = vshll.u32 2131351028, %v1135
          %v1145 = vshrl.u32 2102212464, %v1136
          %v1146 = vor.u32 %v1144, %v1145
          %v1147 = vshll.u32 2102212464, %v1135
          %v1148 = vshrl.u32 920167782, %v1136
          %v1149 = vor.u32 %v1147, %v1148
          %v1150 = vshll.u32 920167782, %v1135
          %v1151 = vshrl.u32 1326507024, %v1136
          %v1152 = vor.u32 %v1150, %v1151
          %vm1153 = vcmp.lt.s32.totalorder %v1134, 1
          %vm1154 = vcmp.lt.s32.totalorder %v1134, 2
          %vm1155 = vcmp.lt.s32.totalorder %v1134, 3
          %vm1156 = vcmp.lt.s32.totalorder %v1134, 4
          %v1157 = vsel %vm1153, %v1137, %v1140
          %v1158 = vsel %vm1156, %v1146, 2102212464
          %v1159 = vsel %vm1155, %v1143, %v1158
          %v1160 = vsel %vm1154, %v1157, %v1159
          %v1161 = vsel %vm1153, %v1140, %v1143
          %v1162 = vsel %vm1156, %v1149, 920167782
          %v1163 = vsel %vm1155, %v1146, %v1162
          %v1164 = vsel %vm1154, %v1161, %v1163
          %v1165 = vsel %vm1153, %v1143, %v1146
          %v1166 = vsel %vm1156, %v1152, 1326507024
          %v1167 = vsel %vm1155, %v1149, %v1166
          %v1168 = vsel %vm1154, %v1165, %v1167
          %v1169 = vshll.u32 %v1129, 8
          %v1170 = vmul.u32.u64.compose %v1169, %v1168
          %v1171 = vextract.low.u32 %v1170
          %v1172 = vextract.high.u32 %v1170
          %v1173 = vmul.u32.u64.compose %v1169, %v1164
          %v1174 = vextract.low.u32 %v1173
          %v1175 = vextract.high.u32 %v1173
          %v1176 = vmul.u32 %v1169, %v1160
          %v1177 = vadd.s32 %v1172, %v1174
          %vm1178 = vc.u32 %v1172, %v1174
          %v1179 = vadd.s32 %v1175, 1
          %v1180 = vsel %vm1178, %v1179, %v1175
          %v1181 = vadd.s32 %v1176, %v1180
          %v1182 = vadd.s32 %v1181, 536870912
          %v1183 = vshrl.u32 %v1182, 30
          %v1184 = vshll.u32 %v1183, 30
          %v1185 = vsub.s32 %v1181, %v1184
          %vm1186 = vcmp.lt.s32.totalorder %v1185, 0
          %v1187 = vsub.s32 0, %v1185
          %v1188 = vsel %vm1186, %v1187, %v1185
          %v1189 = vclz %v1188
          %v1190 = vsub.s32 %v1189, 2
          %vm1191 = vcmp.gt.s32.totalorder 0, %v1190
          %v1192 = vsel %vm1191, 0, %v1190
          %v1193 = vsub.s32 32, %v1192
          %v1194 = vshll.u32 %v1185, %v1192
          %v1195 = vshrl.u32 %v1177, %v1193
          %v1196 = vor.u32 %v1194, %v1195
          %v1197 = vsub.s32 4294967266, %v1192
          %v1198 = vadd.s32 %v1197, 127
          %v1199 = vshll.u32 %v1198, 23
          %v1200 = vor.u32 4788187, %v1199
          %v1201 = vand.u32 2147483647, %v1200
          %v1203 = vcvt.s32.f32 %v1196
          %v1204 = vmul.f32 %v1203, %v1201
          %v1205 = vxor.u32 %v1204, 2147483648
          %v1206 = vsel %vm1123, %v1205, %v1204
          %v1207 = vsub.s32 4, %v1183
          %v1208 = vsel %vm1123, %v1207, %v1183
          %v1209 = vsel %vm1122, %v677, %v1206
          %v1210 = vsel %vm1122, 0, %v1208
          %v1211 = vcosq.f32.pop %v1209
          %v1212 = vsinq.f32.pop %v1209
          %vm1213 = vweird.f32 %v677
          %v1214 = vadd.s32 %v1210, 3
          %v1215 = vand.u32 %v1214, 3
          %vm1216 = vcmp.lt.s32.totalorder %v1215, 2
          %vm1217 = vcmp.eq.s32.totalorder %v1215, 0
          %v1218 = vxor.u32 %v1212, 2147483648
          %v1219 = vsel %vm1217, %v1211, %v1218
          %vm1220 = vcmp.eq.s32.totalorder %v1215, 2
          %v1221 = vxor.u32 %v1211, 2147483648
          %v1222 = vsel %vm1220, %v1221, %v1212
          %v1223 = vsel %vm1216, %v1219, %v1222
          %v1224 = vsel %vm1213, nan, %v1223
          %v1225 = vand.u32 2147483647, %v678
          %vm1226 = vcmp.le.f32.partialorder %v1225, 0.7853982
          %vm1227 = vcmp.lt.s32.totalorder %v678, 0
          %v1228 = vand.u32 %v678, 2139095040
          %v1229 = vshrl.u32 %v1228, 23
          %v1230 = vsub.s32 %v1229, 127
          %v1231 = vand.u32 2147483647, %v678
          %v1232 = vand.u32 %v1231, 8388607
          %v1233 = vor.u32 %v1232, 8388608
          %v1234 = vsub.s32 0, %v1233
          %v1235 = vadd.s32 %v1230, 1
          %vm1236 = vcmp.gt.s32.totalorder %v1235, 0
          %v1237 = vsel %vm1236, %v1235, 0
          %v1238 = vshrl.u32 %v1237, 5
          %v1239 = vand.u32 %v1237, 31
          %v1240 = vsub.s32 32, %v1239
          %v1241 = vshrl.u32 683565275, %v1240
          %v1242 = vshll.u32 683565275, %v1239
          %v1243 = vshrl.u32 2475754826, %v1240
          %v1244 = vor.u32 %v1242, %v1243
          %v1245 = vshll.u32 2475754826, %v1239
          %v1246 = vshrl.u32 2131351028, %v1240
          %v1247 = vor.u32 %v1245, %v1246
          %v1248 = vshll.u32 2131351028, %v1239
          %v1249 = vshrl.u32 2102212464, %v1240
          %v1250 = vor.u32 %v1248, %v1249
          %v1251 = vshll.u32 2102212464, %v1239
          %v1252 = vshrl.u32 920167782, %v1240
          %v1253 = vor.u32 %v1251, %v1252
          %v1254 = vshll.u32 920167782, %v1239
          %v1255 = vshrl.u32 1326507024, %v1240
          %v1256 = vor.u32 %v1254, %v1255
          %vm1257 = vcmp.lt.s32.totalorder %v1238, 1
          %vm1258 = vcmp.lt.s32.totalorder %v1238, 2
          %vm1259 = vcmp.lt.s32.totalorder %v1238, 3
          %vm1260 = vcmp.lt.s32.totalorder %v1238, 4
          %v1261 = vsel %vm1257, %v1241, %v1244
          %v1262 = vsel %vm1260, %v1250, 2102212464
          %v1263 = vsel %vm1259, %v1247, %v1262
          %v1264 = vsel %vm1258, %v1261, %v1263
          %v1265 = vsel %vm1257, %v1244, %v1247
          %v1266 = vsel %vm1260, %v1253, 920167782
          %v1267 = vsel %vm1259, %v1250, %v1266
          %v1268 = vsel %vm1258, %v1265, %v1267
          %v1269 = vsel %vm1257, %v1247, %v1250
          %v1270 = vsel %vm1260, %v1256, 1326507024
          %v1271 = vsel %vm1259, %v1253, %v1270
          %v1272 = vsel %vm1258, %v1269, %v1271
          %v1273 = vshll.u32 %v1233, 8
          %v1274 = vmul.u32.u64.compose %v1273, %v1272
          %v1275 = vextract.low.u32 %v1274
          %v1276 = vextract.high.u32 %v1274
          %v1277 = vmul.u32.u64.compose %v1273, %v1268
          %v1278 = vextract.low.u32 %v1277
          %v1279 = vextract.high.u32 %v1277
          %v1280 = vmul.u32 %v1273, %v1264
          %v1281 = vadd.s32 %v1276, %v1278
          %vm1282 = vc.u32 %v1276, %v1278
          %v1283 = vadd.s32 %v1279, 1
          %v1284 = vsel %vm1282, %v1283, %v1279
          %v1285 = vadd.s32 %v1280, %v1284
          %v1286 = vadd.s32 %v1285, 536870912
          %v1287 = vshrl.u32 %v1286, 30
          %v1288 = vshll.u32 %v1287, 30
          %v1289 = vsub.s32 %v1285, %v1288
          %vm1290 = vcmp.lt.s32.totalorder %v1289, 0
          %v1291 = vsub.s32 0, %v1289
          %v1292 = vsel %vm1290, %v1291, %v1289
          %v1293 = vclz %v1292
          %v1294 = vsub.s32 %v1293, 2
          %vm1295 = vcmp.gt.s32.totalorder 0, %v1294
          %v1296 = vsel %vm1295, 0, %v1294
          %v1297 = vsub.s32 32, %v1296
          %v1298 = vshll.u32 %v1289, %v1296
          %v1299 = vshrl.u32 %v1281, %v1297
          %v1300 = vor.u32 %v1298, %v1299
          %v1301 = vsub.s32 4294967266, %v1296
          %v1302 = vadd.s32 %v1301, 127
          %v1303 = vshll.u32 %v1302, 23
          %v1304 = vor.u32 4788187, %v1303
          %v1305 = vand.u32 2147483647, %v1304
          %v1307 = vcvt.s32.f32 %v1300
          %v1308 = vmul.f32 %v1307, %v1305
          %v1309 = vxor.u32 %v1308, 2147483648
          %v1310 = vsel %vm1227, %v1309, %v1308
          %v1311 = vsub.s32 4, %v1287
          %v1312 = vsel %vm1227, %v1311, %v1287
          %v1313 = vsel %vm1226, %v678, %v1310
          %v1314 = vsel %vm1226, 0, %v1312
          %v1315 = vcosq.f32.pop %v1313
          %v1316 = vsinq.f32.pop %v1313
          %vm1317 = vweird.f32 %v678
          %v1318 = vadd.s32 %v1314, 3
          %v1319 = vand.u32 %v1318, 3
          %vm1320 = vcmp.lt.s32.totalorder %v1319, 2
          %vm1321 = vcmp.eq.s32.totalorder %v1319, 0
          %v1322 = vxor.u32 %v1316, 2147483648
          %v1323 = vsel %vm1321, %v1315, %v1322
          %vm1324 = vcmp.eq.s32.totalorder %v1319, 2
          %v1325 = vxor.u32 %v1315, 2147483648
          %v1326 = vsel %vm1324, %v1325, %v1316
          %v1327 = vsel %vm1320, %v1323, %v1326
          %v1328 = vsel %vm1317, nan, %v1327
          %v1329 = vand.u32 2147483647, %v679
          %vm1330 = vcmp.le.f32.partialorder %v1329, 0.7853982
          %vm1331 = vcmp.lt.s32.totalorder %v679, 0
          %v1332 = vand.u32 %v679, 2139095040
          %v1333 = vshrl.u32 %v1332, 23
          %v1334 = vsub.s32 %v1333, 127
          %v1335 = vand.u32 2147483647, %v679
          %v1336 = vand.u32 %v1335, 8388607
          %v1337 = vor.u32 %v1336, 8388608
          %v1338 = vsub.s32 0, %v1337
          %v1339 = vadd.s32 %v1334, 1
          %vm1340 = vcmp.gt.s32.totalorder %v1339, 0
          %v1341 = vsel %vm1340, %v1339, 0
          %v1342 = vshrl.u32 %v1341, 5
          %v1343 = vand.u32 %v1341, 31
          %v1344 = vsub.s32 32, %v1343
          %v1345 = vshrl.u32 683565275, %v1344
          %v1346 = vshll.u32 683565275, %v1343
          %v1347 = vshrl.u32 2475754826, %v1344
          %v1348 = vor.u32 %v1346, %v1347
          %v1349 = vshll.u32 2475754826, %v1343
          %v1350 = vshrl.u32 2131351028, %v1344
          %v1351 = vor.u32 %v1349, %v1350
          %v1352 = vshll.u32 2131351028, %v1343
          %v1353 = vshrl.u32 2102212464, %v1344
          %v1354 = vor.u32 %v1352, %v1353
          %v1355 = vshll.u32 2102212464, %v1343
          %v1356 = vshrl.u32 920167782, %v1344
          %v1357 = vor.u32 %v1355, %v1356
          %v1358 = vshll.u32 920167782, %v1343
          %v1359 = vshrl.u32 1326507024, %v1344
          %v1360 = vor.u32 %v1358, %v1359
          %vm1361 = vcmp.lt.s32.totalorder %v1342, 1
          %vm1362 = vcmp.lt.s32.totalorder %v1342, 2
          %vm1363 = vcmp.lt.s32.totalorder %v1342, 3
          %vm1364 = vcmp.lt.s32.totalorder %v1342, 4
          %v1365 = vsel %vm1361, %v1345, %v1348
          %v1366 = vsel %vm1364, %v1354, 2102212464
          %v1367 = vsel %vm1363, %v1351, %v1366
          %v1368 = vsel %vm1362, %v1365, %v1367
          %v1369 = vsel %vm1361, %v1348, %v1351
          %v1370 = vsel %vm1364, %v1357, 920167782
          %v1371 = vsel %vm1363, %v1354, %v1370
          %v1372 = vsel %vm1362, %v1369, %v1371
          %v1373 = vsel %vm1361, %v1351, %v1354
          %v1374 = vsel %vm1364, %v1360, 1326507024
          %v1375 = vsel %vm1363, %v1357, %v1374
          %v1376 = vsel %vm1362, %v1373, %v1375
          %v1377 = vshll.u32 %v1337, 8
          %v1378 = vmul.u32.u64.compose %v1377, %v1376
          %v1379 = vextract.low.u32 %v1378
          %v1380 = vextract.high.u32 %v1378
          %v1381 = vmul.u32.u64.compose %v1377, %v1372
          %v1382 = vextract.low.u32 %v1381
          %v1383 = vextract.high.u32 %v1381
          %v1384 = vmul.u32 %v1377, %v1368
          %v1385 = vadd.s32 %v1380, %v1382
          %vm1386 = vc.u32 %v1380, %v1382
          %v1387 = vadd.s32 %v1383, 1
          %v1388 = vsel %vm1386, %v1387, %v1383
          %v1389 = vadd.s32 %v1384, %v1388
          %v1390 = vadd.s32 %v1389, 536870912
          %v1391 = vshrl.u32 %v1390, 30
          %v1392 = vshll.u32 %v1391, 30
          %v1393 = vsub.s32 %v1389, %v1392
          %vm1394 = vcmp.lt.s32.totalorder %v1393, 0
          %v1395 = vsub.s32 0, %v1393
          %v1396 = vsel %vm1394, %v1395, %v1393
          %v1397 = vclz %v1396
          %v1398 = vsub.s32 %v1397, 2
          %vm1399 = vcmp.gt.s32.totalorder 0, %v1398
          %v1400 = vsel %vm1399, 0, %v1398
          %v1401 = vsub.s32 32, %v1400
          %v1402 = vshll.u32 %v1393, %v1400
          %v1403 = vshrl.u32 %v1385, %v1401
          %v1404 = vor.u32 %v1402, %v1403
          %v1405 = vsub.s32 4294967266, %v1400
          %v1406 = vadd.s32 %v1405, 127
          %v1407 = vshll.u32 %v1406, 23
          %v1408 = vor.u32 4788187, %v1407
          %v1409 = vand.u32 2147483647, %v1408
          %v1411 = vcvt.s32.f32 %v1404
          %v1412 = vmul.f32 %v1411, %v1409
          %v1413 = vxor.u32 %v1412, 2147483648
          %v1414 = vsel %vm1331, %v1413, %v1412
          %v1415 = vsub.s32 4, %v1391
          %v1416 = vsel %vm1331, %v1415, %v1391
          %v1417 = vsel %vm1330, %v679, %v1414
          %v1418 = vsel %vm1330, 0, %v1416
          %v1419 = vcosq.f32.pop %v1417
          %v1420 = vsinq.f32.pop %v1417
          %vm1421 = vweird.f32 %v679
          %v1422 = vadd.s32 %v1418, 3
          %v1423 = vand.u32 %v1422, 3
          %vm1424 = vcmp.lt.s32.totalorder %v1423, 2
          %vm1425 = vcmp.eq.s32.totalorder %v1423, 0
          %v1426 = vxor.u32 %v1420, 2147483648
          %v1427 = vsel %vm1425, %v1419, %v1426
          %vm1428 = vcmp.eq.s32.totalorder %v1423, 2
          %v1429 = vxor.u32 %v1419, 2147483648
          %v1430 = vsel %vm1428, %v1429, %v1420
          %v1431 = vsel %vm1424, %v1427, %v1430
          %v1432 = vsel %vm1421, nan, %v1431
          %v1433 = vand.u32 2147483647, %v680
          %vm1434 = vcmp.le.f32.partialorder %v1433, 0.7853982
          %vm1435 = vcmp.lt.s32.totalorder %v680, 0
          %v1436 = vand.u32 %v680, 2139095040
          %v1437 = vshrl.u32 %v1436, 23
          %v1438 = vsub.s32 %v1437, 127
          %v1439 = vand.u32 2147483647, %v680
          %v1440 = vand.u32 %v1439, 8388607
          %v1441 = vor.u32 %v1440, 8388608
          %v1442 = vsub.s32 0, %v1441
          %v1443 = vadd.s32 %v1438, 1
          %vm1444 = vcmp.gt.s32.totalorder %v1443, 0
          %v1445 = vsel %vm1444, %v1443, 0
          %v1446 = vshrl.u32 %v1445, 5
          %v1447 = vand.u32 %v1445, 31
          %v1448 = vsub.s32 32, %v1447
          %v1449 = vshrl.u32 683565275, %v1448
          %v1450 = vshll.u32 683565275, %v1447
          %v1451 = vshrl.u32 2475754826, %v1448
          %v1452 = vor.u32 %v1450, %v1451
          %v1453 = vshll.u32 2475754826, %v1447
          %v1454 = vshrl.u32 2131351028, %v1448
          %v1455 = vor.u32 %v1453, %v1454
          %v1456 = vshll.u32 2131351028, %v1447
          %v1457 = vshrl.u32 2102212464, %v1448
          %v1458 = vor.u32 %v1456, %v1457
          %v1459 = vshll.u32 2102212464, %v1447
          %v1460 = vshrl.u32 920167782, %v1448
          %v1461 = vor.u32 %v1459, %v1460
          %v1462 = vshll.u32 920167782, %v1447
          %v1463 = vshrl.u32 1326507024, %v1448
          %v1464 = vor.u32 %v1462, %v1463
          %vm1465 = vcmp.lt.s32.totalorder %v1446, 1
          %vm1466 = vcmp.lt.s32.totalorder %v1446, 2
          %vm1467 = vcmp.lt.s32.totalorder %v1446, 3
          %vm1468 = vcmp.lt.s32.totalorder %v1446, 4
          %v1469 = vsel %vm1465, %v1449, %v1452
          %v1470 = vsel %vm1468, %v1458, 2102212464
          %v1471 = vsel %vm1467, %v1455, %v1470
          %v1472 = vsel %vm1466, %v1469, %v1471
          %v1473 = vsel %vm1465, %v1452, %v1455
          %v1474 = vsel %vm1468, %v1461, 920167782
          %v1475 = vsel %vm1467, %v1458, %v1474
          %v1476 = vsel %vm1466, %v1473, %v1475
          %v1477 = vsel %vm1465, %v1455, %v1458
          %v1478 = vsel %vm1468, %v1464, 1326507024
          %v1479 = vsel %vm1467, %v1461, %v1478
          %v1480 = vsel %vm1466, %v1477, %v1479
          %v1481 = vshll.u32 %v1441, 8
          %v1482 = vmul.u32.u64.compose %v1481, %v1480
          %v1483 = vextract.low.u32 %v1482
          %v1484 = vextract.high.u32 %v1482
          %v1485 = vmul.u32.u64.compose %v1481, %v1476
          %v1486 = vextract.low.u32 %v1485
          %v1487 = vextract.high.u32 %v1485
          %v1488 = vmul.u32 %v1481, %v1472
          %v1489 = vadd.s32 %v1484, %v1486
          %vm1490 = vc.u32 %v1484, %v1486
          %v1491 = vadd.s32 %v1487, 1
          %v1492 = vsel %vm1490, %v1491, %v1487
          %v1493 = vadd.s32 %v1488, %v1492
          %v1494 = vadd.s32 %v1493, 536870912
          %v1495 = vshrl.u32 %v1494, 30
          %v1496 = vshll.u32 %v1495, 30
          %v1497 = vsub.s32 %v1493, %v1496
          %vm1498 = vcmp.lt.s32.totalorder %v1497, 0
          %v1499 = vsub.s32 0, %v1497
          %v1500 = vsel %vm1498, %v1499, %v1497
          %v1501 = vclz %v1500
          %v1502 = vsub.s32 %v1501, 2
          %vm1503 = vcmp.gt.s32.totalorder 0, %v1502
          %v1504 = vsel %vm1503, 0, %v1502
          %v1505 = vsub.s32 32, %v1504
          %v1506 = vshll.u32 %v1497, %v1504
          %v1507 = vshrl.u32 %v1489, %v1505
          %v1508 = vor.u32 %v1506, %v1507
          %v1509 = vsub.s32 4294967266, %v1504
          %v1510 = vadd.s32 %v1509, 127
          %v1511 = vshll.u32 %v1510, 23
          %v1512 = vor.u32 4788187, %v1511
          %v1513 = vand.u32 2147483647, %v1512
          %v1515 = vcvt.s32.f32 %v1508
          %v1516 = vmul.f32 %v1515, %v1513
          %v1517 = vxor.u32 %v1516, 2147483648
          %v1518 = vsel %vm1435, %v1517, %v1516
          %v1519 = vsub.s32 4, %v1495
          %v1520 = vsel %vm1435, %v1519, %v1495
          %v1521 = vsel %vm1434, %v680, %v1518
          %v1522 = vsel %vm1434, 0, %v1520
          %v1523 = vcosq.f32.pop %v1521
          %v1524 = vsinq.f32.pop %v1521
          %vm1525 = vweird.f32 %v680
          %v1526 = vadd.s32 %v1522, 3
          %v1527 = vand.u32 %v1526, 3
          %vm1528 = vcmp.lt.s32.totalorder %v1527, 2
          %vm1529 = vcmp.eq.s32.totalorder %v1527, 0
          %v1530 = vxor.u32 %v1524, 2147483648
          %v1531 = vsel %vm1529, %v1523, %v1530
          %vm1532 = vcmp.eq.s32.totalorder %v1527, 2
          %v1533 = vxor.u32 %v1523, 2147483648
          %v1534 = vsel %vm1532, %v1533, %v1524
          %v1535 = vsel %vm1528, %v1531, %v1534
          %v1536 = vsel %vm1525, nan, %v1535
          %v1537 = vand.u32 2147483647, %v681
          %vm1538 = vcmp.le.f32.partialorder %v1537, 0.7853982
          %vm1539 = vcmp.lt.s32.totalorder %v681, 0
          %v1540 = vand.u32 %v681, 2139095040
          %v1541 = vshrl.u32 %v1540, 23
          %v1542 = vsub.s32 %v1541, 127
          %v1543 = vand.u32 2147483647, %v681
          %v1544 = vand.u32 %v1543, 8388607
          %v1545 = vor.u32 %v1544, 8388608
          %v1546 = vsub.s32 0, %v1545
          %v1547 = vadd.s32 %v1542, 1
          %vm1548 = vcmp.gt.s32.totalorder %v1547, 0
          %v1549 = vsel %vm1548, %v1547, 0
          %v1550 = vshrl.u32 %v1549, 5
          %v1551 = vand.u32 %v1549, 31
          %v1552 = vsub.s32 32, %v1551
          %v1553 = vshrl.u32 683565275, %v1552
          %v1554 = vshll.u32 683565275, %v1551
          %v1555 = vshrl.u32 2475754826, %v1552
          %v1556 = vor.u32 %v1554, %v1555
          %v1557 = vshll.u32 2475754826, %v1551
          %v1558 = vshrl.u32 2131351028, %v1552
          %v1559 = vor.u32 %v1557, %v1558
          %v1560 = vshll.u32 2131351028, %v1551
          %v1561 = vshrl.u32 2102212464, %v1552
          %v1562 = vor.u32 %v1560, %v1561
          %v1563 = vshll.u32 2102212464, %v1551
          %v1564 = vshrl.u32 920167782, %v1552
          %v1565 = vor.u32 %v1563, %v1564
          %v1566 = vshll.u32 920167782, %v1551
          %v1567 = vshrl.u32 1326507024, %v1552
          %v1568 = vor.u32 %v1566, %v1567
          %vm1569 = vcmp.lt.s32.totalorder %v1550, 1
          %vm1570 = vcmp.lt.s32.totalorder %v1550, 2
          %vm1571 = vcmp.lt.s32.totalorder %v1550, 3
          %vm1572 = vcmp.lt.s32.totalorder %v1550, 4
          %v1573 = vsel %vm1569, %v1553, %v1556
          %v1574 = vsel %vm1572, %v1562, 2102212464
          %v1575 = vsel %vm1571, %v1559, %v1574
          %v1576 = vsel %vm1570, %v1573, %v1575
          %v1577 = vsel %vm1569, %v1556, %v1559
          %v1578 = vsel %vm1572, %v1565, 920167782
          %v1579 = vsel %vm1571, %v1562, %v1578
          %v1580 = vsel %vm1570, %v1577, %v1579
          %v1581 = vsel %vm1569, %v1559, %v1562
          %v1582 = vsel %vm1572, %v1568, 1326507024
          %v1583 = vsel %vm1571, %v1565, %v1582
          %v1584 = vsel %vm1570, %v1581, %v1583
          %v1585 = vshll.u32 %v1545, 8
          %v1586 = vmul.u32.u64.compose %v1585, %v1584
          %v1587 = vextract.low.u32 %v1586
          %v1588 = vextract.high.u32 %v1586
          %v1589 = vmul.u32.u64.compose %v1585, %v1580
          %v1590 = vextract.low.u32 %v1589
          %v1591 = vextract.high.u32 %v1589
          %v1592 = vmul.u32 %v1585, %v1576
          %v1593 = vadd.s32 %v1588, %v1590
          %vm1594 = vc.u32 %v1588, %v1590
          %v1595 = vadd.s32 %v1591, 1
          %v1596 = vsel %vm1594, %v1595, %v1591
          %v1597 = vadd.s32 %v1592, %v1596
          %v1598 = vadd.s32 %v1597, 536870912
          %v1599 = vshrl.u32 %v1598, 30
          %v1600 = vshll.u32 %v1599, 30
          %v1601 = vsub.s32 %v1597, %v1600
          %vm1602 = vcmp.lt.s32.totalorder %v1601, 0
          %v1603 = vsub.s32 0, %v1601
          %v1604 = vsel %vm1602, %v1603, %v1601
          %v1605 = vclz %v1604
          %v1606 = vsub.s32 %v1605, 2
          %vm1607 = vcmp.gt.s32.totalorder 0, %v1606
          %v1608 = vsel %vm1607, 0, %v1606
          %v1609 = vsub.s32 32, %v1608
          %v1610 = vshll.u32 %v1601, %v1608
          %v1611 = vshrl.u32 %v1593, %v1609
          %v1612 = vor.u32 %v1610, %v1611
          %v1613 = vsub.s32 4294967266, %v1608
          %v1614 = vadd.s32 %v1613, 127
          %v1615 = vshll.u32 %v1614, 23
          %v1616 = vor.u32 4788187, %v1615
          %v1617 = vand.u32 2147483647, %v1616
          %v1619 = vcvt.s32.f32 %v1612
          %v1620 = vmul.f32 %v1619, %v1617
          %v1621 = vxor.u32 %v1620, 2147483648
          %v1622 = vsel %vm1539, %v1621, %v1620
          %v1623 = vsub.s32 4, %v1599
          %v1624 = vsel %vm1539, %v1623, %v1599
          %v1625 = vsel %vm1538, %v681, %v1622
          %v1626 = vsel %vm1538, 0, %v1624
          %v1627 = vcosq.f32.pop %v1625
          %v1628 = vsinq.f32.pop %v1625
          %vm1629 = vweird.f32 %v681
          %v1630 = vadd.s32 %v1626, 3
          %v1631 = vand.u32 %v1630, 3
          %vm1632 = vcmp.lt.s32.totalorder %v1631, 2
          %vm1633 = vcmp.eq.s32.totalorder %v1631, 0
          %v1634 = vxor.u32 %v1628, 2147483648
          %v1635 = vsel %vm1633, %v1627, %v1634
          %vm1636 = vcmp.eq.s32.totalorder %v1631, 2
          %v1637 = vxor.u32 %v1627, 2147483648
          %v1638 = vsel %vm1636, %v1637, %v1628
          %v1639 = vsel %vm1632, %v1635, %v1638
          %v1640 = vsel %vm1629, nan, %v1639
          %v1641 = vand.u32 2147483647, %v682
          %vm1642 = vcmp.le.f32.partialorder %v1641, 0.7853982
          %vm1643 = vcmp.lt.s32.totalorder %v682, 0
          %v1644 = vand.u32 %v682, 2139095040
          %v1645 = vshrl.u32 %v1644, 23
          %v1646 = vsub.s32 %v1645, 127
          %v1647 = vand.u32 2147483647, %v682
          %v1648 = vand.u32 %v1647, 8388607
          %v1649 = vor.u32 %v1648, 8388608
          %v1650 = vsub.s32 0, %v1649
          %v1651 = vadd.s32 %v1646, 1
          %vm1652 = vcmp.gt.s32.totalorder %v1651, 0
          %v1653 = vsel %vm1652, %v1651, 0
          %v1654 = vshrl.u32 %v1653, 5
          %v1655 = vand.u32 %v1653, 31
          %v1656 = vsub.s32 32, %v1655
          %v1657 = vshrl.u32 683565275, %v1656
          %v1658 = vshll.u32 683565275, %v1655
          %v1659 = vshrl.u32 2475754826, %v1656
          %v1660 = vor.u32 %v1658, %v1659
          %v1661 = vshll.u32 2475754826, %v1655
          %v1662 = vshrl.u32 2131351028, %v1656
          %v1663 = vor.u32 %v1661, %v1662
          %v1664 = vshll.u32 2131351028, %v1655
          %v1665 = vshrl.u32 2102212464, %v1656
          %v1666 = vor.u32 %v1664, %v1665
          %v1667 = vshll.u32 2102212464, %v1655
          %v1668 = vshrl.u32 920167782, %v1656
          %v1669 = vor.u32 %v1667, %v1668
          %v1670 = vshll.u32 920167782, %v1655
          %v1671 = vshrl.u32 1326507024, %v1656
          %v1672 = vor.u32 %v1670, %v1671
          %vm1673 = vcmp.lt.s32.totalorder %v1654, 1
          %vm1674 = vcmp.lt.s32.totalorder %v1654, 2
          %vm1675 = vcmp.lt.s32.totalorder %v1654, 3
          %vm1676 = vcmp.lt.s32.totalorder %v1654, 4
          %v1677 = vsel %vm1673, %v1657, %v1660
          %v1678 = vsel %vm1676, %v1666, 2102212464
          %v1679 = vsel %vm1675, %v1663, %v1678
          %v1680 = vsel %vm1674, %v1677, %v1679
          %v1681 = vsel %vm1673, %v1660, %v1663
          %v1682 = vsel %vm1676, %v1669, 920167782
          %v1683 = vsel %vm1675, %v1666, %v1682
          %v1684 = vsel %vm1674, %v1681, %v1683
          %v1685 = vsel %vm1673, %v1663, %v1666
          %v1686 = vsel %vm1676, %v1672, 1326507024
          %v1687 = vsel %vm1675, %v1669, %v1686
          %v1688 = vsel %vm1674, %v1685, %v1687
          %v1689 = vshll.u32 %v1649, 8
          %v1690 = vmul.u32.u64.compose %v1689, %v1688
          %v1691 = vextract.low.u32 %v1690
          %v1692 = vextract.high.u32 %v1690
          %v1693 = vmul.u32.u64.compose %v1689, %v1684
          %v1694 = vextract.low.u32 %v1693
          %v1695 = vextract.high.u32 %v1693
          %v1696 = vmul.u32 %v1689, %v1680
          %v1697 = vadd.s32 %v1692, %v1694
          %vm1698 = vc.u32 %v1692, %v1694
          %v1699 = vadd.s32 %v1695, 1
          %v1700 = vsel %vm1698, %v1699, %v1695
          %v1701 = vadd.s32 %v1696, %v1700
          %v1702 = vadd.s32 %v1701, 536870912
          %v1703 = vshrl.u32 %v1702, 30
          %v1704 = vshll.u32 %v1703, 30
          %v1705 = vsub.s32 %v1701, %v1704
          %vm1706 = vcmp.lt.s32.totalorder %v1705, 0
          %v1707 = vsub.s32 0, %v1705
          %v1708 = vsel %vm1706, %v1707, %v1705
          %v1709 = vclz %v1708
          %v1710 = vsub.s32 %v1709, 2
          %vm1711 = vcmp.gt.s32.totalorder 0, %v1710
          %v1712 = vsel %vm1711, 0, %v1710
          %v1713 = vsub.s32 32, %v1712
          %v1714 = vshll.u32 %v1705, %v1712
          %v1715 = vshrl.u32 %v1697, %v1713
          %v1716 = vor.u32 %v1714, %v1715
          %v1717 = vsub.s32 4294967266, %v1712
          %v1718 = vadd.s32 %v1717, 127
          %v1719 = vshll.u32 %v1718, 23
          %v1720 = vor.u32 4788187, %v1719
          %v1721 = vand.u32 2147483647, %v1720
          %v1723 = vcvt.s32.f32 %v1716
          %v1724 = vmul.f32 %v1723, %v1721
          %v1725 = vxor.u32 %v1724, 2147483648
          %v1726 = vsel %vm1643, %v1725, %v1724
          %v1727 = vsub.s32 4, %v1703
          %v1728 = vsel %vm1643, %v1727, %v1703
          %v1729 = vsel %vm1642, %v682, %v1726
          %v1730 = vsel %vm1642, 0, %v1728
          %v1731 = vcosq.f32.pop %v1729
          %v1732 = vsinq.f32.pop %v1729
          %vm1733 = vweird.f32 %v682
          %v1734 = vadd.s32 %v1730, 3
          %v1735 = vand.u32 %v1734, 3
          %vm1736 = vcmp.lt.s32.totalorder %v1735, 2
          %vm1737 = vcmp.eq.s32.totalorder %v1735, 0
          %v1738 = vxor.u32 %v1732, 2147483648
          %v1739 = vsel %vm1737, %v1731, %v1738
          %vm1740 = vcmp.eq.s32.totalorder %v1735, 2
          %v1741 = vxor.u32 %v1731, 2147483648
          %v1742 = vsel %vm1740, %v1741, %v1732
          %v1743 = vsel %vm1736, %v1739, %v1742
          %v1744 = vsel %vm1733, nan, %v1743
          %v1745 = vand.u32 2147483647, %v683
          %vm1746 = vcmp.le.f32.partialorder %v1745, 0.7853982
          %vm1747 = vcmp.lt.s32.totalorder %v683, 0
          %v1748 = vand.u32 %v683, 2139095040
          %v1749 = vshrl.u32 %v1748, 23
          %v1750 = vsub.s32 %v1749, 127
          %v1751 = vand.u32 2147483647, %v683
          %v1752 = vand.u32 %v1751, 8388607
          %v1753 = vor.u32 %v1752, 8388608
          %v1754 = vsub.s32 0, %v1753
          %v1755 = vadd.s32 %v1750, 1
          %vm1756 = vcmp.gt.s32.totalorder %v1755, 0
          %v1757 = vsel %vm1756, %v1755, 0
          %v1758 = vshrl.u32 %v1757, 5
          %v1759 = vand.u32 %v1757, 31
          %v1760 = vsub.s32 32, %v1759
          %v1761 = vshrl.u32 683565275, %v1760
          %v1762 = vshll.u32 683565275, %v1759
          %v1763 = vshrl.u32 2475754826, %v1760
          %v1764 = vor.u32 %v1762, %v1763
          %v1765 = vshll.u32 2475754826, %v1759
          %v1766 = vshrl.u32 2131351028, %v1760
          %v1767 = vor.u32 %v1765, %v1766
          %v1768 = vshll.u32 2131351028, %v1759
          %v1769 = vshrl.u32 2102212464, %v1760
          %v1770 = vor.u32 %v1768, %v1769
          %v1771 = vshll.u32 2102212464, %v1759
          %v1772 = vshrl.u32 920167782, %v1760
          %v1773 = vor.u32 %v1771, %v1772
          %v1774 = vshll.u32 920167782, %v1759
          %v1775 = vshrl.u32 1326507024, %v1760
          %v1776 = vor.u32 %v1774, %v1775
          %vm1777 = vcmp.lt.s32.totalorder %v1758, 1
          %vm1778 = vcmp.lt.s32.totalorder %v1758, 2
          %vm1779 = vcmp.lt.s32.totalorder %v1758, 3
          %vm1780 = vcmp.lt.s32.totalorder %v1758, 4
          %v1781 = vsel %vm1777, %v1761, %v1764
          %v1782 = vsel %vm1780, %v1770, 2102212464
          %v1783 = vsel %vm1779, %v1767, %v1782
          %v1784 = vsel %vm1778, %v1781, %v1783
          %v1785 = vsel %vm1777, %v1764, %v1767
          %v1786 = vsel %vm1780, %v1773, 920167782
          %v1787 = vsel %vm1779, %v1770, %v1786
          %v1788 = vsel %vm1778, %v1785, %v1787
          %v1789 = vsel %vm1777, %v1767, %v1770
          %v1790 = vsel %vm1780, %v1776, 1326507024
          %v1791 = vsel %vm1779, %v1773, %v1790
          %v1792 = vsel %vm1778, %v1789, %v1791
          %v1793 = vshll.u32 %v1753, 8
          %v1794 = vmul.u32.u64.compose %v1793, %v1792
          %v1795 = vextract.low.u32 %v1794
          %v1796 = vextract.high.u32 %v1794
          %v1797 = vmul.u32.u64.compose %v1793, %v1788
          %v1798 = vextract.low.u32 %v1797
          %v1799 = vextract.high.u32 %v1797
          %v1800 = vmul.u32 %v1793, %v1784
          %v1801 = vadd.s32 %v1796, %v1798
          %vm1802 = vc.u32 %v1796, %v1798
          %v1803 = vadd.s32 %v1799, 1
          %v1804 = vsel %vm1802, %v1803, %v1799
          %v1805 = vadd.s32 %v1800, %v1804
          %v1806 = vadd.s32 %v1805, 536870912
          %v1807 = vshrl.u32 %v1806, 30
          %v1808 = vshll.u32 %v1807, 30
          %v1809 = vsub.s32 %v1805, %v1808
          %vm1810 = vcmp.lt.s32.totalorder %v1809, 0
          %v1811 = vsub.s32 0, %v1809
          %v1812 = vsel %vm1810, %v1811, %v1809
          %v1813 = vclz %v1812
          %v1814 = vsub.s32 %v1813, 2
          %vm1815 = vcmp.gt.s32.totalorder 0, %v1814
          %v1816 = vsel %vm1815, 0, %v1814
          %v1817 = vsub.s32 32, %v1816
          %v1818 = vshll.u32 %v1809, %v1816
          %v1819 = vshrl.u32 %v1801, %v1817
          %v1820 = vor.u32 %v1818, %v1819
          %v1821 = vsub.s32 4294967266, %v1816
          %v1822 = vadd.s32 %v1821, 127
          %v1823 = vshll.u32 %v1822, 23
          %v1824 = vor.u32 4788187, %v1823
          %v1825 = vand.u32 2147483647, %v1824
          %v1827 = vcvt.s32.f32 %v1820
          %v1828 = vmul.f32 %v1827, %v1825
          %v1829 = vxor.u32 %v1828, 2147483648
          %v1830 = vsel %vm1747, %v1829, %v1828
          %v1831 = vsub.s32 4, %v1807
          %v1832 = vsel %vm1747, %v1831, %v1807
          %v1833 = vsel %vm1746, %v683, %v1830
          %v1834 = vsel %vm1746, 0, %v1832
          %v1835 = vcosq.f32.pop %v1833
          %v1836 = vsinq.f32.pop %v1833
          %vm1837 = vweird.f32 %v683
          %v1838 = vadd.s32 %v1834, 3
          %v1839 = vand.u32 %v1838, 3
          %vm1840 = vcmp.lt.s32.totalorder %v1839, 2
          %vm1841 = vcmp.eq.s32.totalorder %v1839, 0
          %v1842 = vxor.u32 %v1836, 2147483648
          %v1843 = vsel %vm1841, %v1835, %v1842
          %vm1844 = vcmp.eq.s32.totalorder %v1839, 2
          %v1845 = vxor.u32 %v1835, 2147483648
          %v1846 = vsel %vm1844, %v1845, %v1836
          %v1847 = vsel %vm1840, %v1843, %v1846
          %v1848 = vsel %vm1837, nan, %v1847
          %v1849 = vand.u32 2147483647, %v684
          %vm1850 = vcmp.le.f32.partialorder %v1849, 0.7853982
          %vm1851 = vcmp.lt.s32.totalorder %v684, 0
          %v1852 = vand.u32 %v684, 2139095040
          %v1853 = vshrl.u32 %v1852, 23
          %v1854 = vsub.s32 %v1853, 127
          %v1855 = vand.u32 2147483647, %v684
          %v1856 = vand.u32 %v1855, 8388607
          %v1857 = vor.u32 %v1856, 8388608
          %v1858 = vsub.s32 0, %v1857
          %v1859 = vadd.s32 %v1854, 1
          %vm1860 = vcmp.gt.s32.totalorder %v1859, 0
          %v1861 = vsel %vm1860, %v1859, 0
          %v1862 = vshrl.u32 %v1861, 5
          %v1863 = vand.u32 %v1861, 31
          %v1864 = vsub.s32 32, %v1863
          %v1865 = vshrl.u32 683565275, %v1864
          %v1866 = vshll.u32 683565275, %v1863
          %v1867 = vshrl.u32 2475754826, %v1864
          %v1868 = vor.u32 %v1866, %v1867
          %v1869 = vshll.u32 2475754826, %v1863
          %v1870 = vshrl.u32 2131351028, %v1864
          %v1871 = vor.u32 %v1869, %v1870
          %v1872 = vshll.u32 2131351028, %v1863
          %v1873 = vshrl.u32 2102212464, %v1864
          %v1874 = vor.u32 %v1872, %v1873
          %v1875 = vshll.u32 2102212464, %v1863
          %v1876 = vshrl.u32 920167782, %v1864
          %v1877 = vor.u32 %v1875, %v1876
          %v1878 = vshll.u32 920167782, %v1863
          %v1879 = vshrl.u32 1326507024, %v1864
          %v1880 = vor.u32 %v1878, %v1879
          %vm1881 = vcmp.lt.s32.totalorder %v1862, 1
          %vm1882 = vcmp.lt.s32.totalorder %v1862, 2
          %vm1883 = vcmp.lt.s32.totalorder %v1862, 3
          %vm1884 = vcmp.lt.s32.totalorder %v1862, 4
          %v1885 = vsel %vm1881, %v1865, %v1868
          %v1886 = vsel %vm1884, %v1874, 2102212464
          %v1887 = vsel %vm1883, %v1871, %v1886
          %v1888 = vsel %vm1882, %v1885, %v1887
          %v1889 = vsel %vm1881, %v1868, %v1871
          %v1890 = vsel %vm1884, %v1877, 920167782
          %v1891 = vsel %vm1883, %v1874, %v1890
          %v1892 = vsel %vm1882, %v1889, %v1891
          %v1893 = vsel %vm1881, %v1871, %v1874
          %v1894 = vsel %vm1884, %v1880, 1326507024
          %v1895 = vsel %vm1883, %v1877, %v1894
          %v1896 = vsel %vm1882, %v1893, %v1895
          %v1897 = vshll.u32 %v1857, 8
          %v1898 = vmul.u32.u64.compose %v1897, %v1896
          %v1899 = vextract.low.u32 %v1898
          %v1900 = vextract.high.u32 %v1898
          %v1901 = vmul.u32.u64.compose %v1897, %v1892
          %v1902 = vextract.low.u32 %v1901
          %v1903 = vextract.high.u32 %v1901
          %v1904 = vmul.u32 %v1897, %v1888
          %v1905 = vadd.s32 %v1900, %v1902
          %vm1906 = vc.u32 %v1900, %v1902
          %v1907 = vadd.s32 %v1903, 1
          %v1908 = vsel %vm1906, %v1907, %v1903
          %v1909 = vadd.s32 %v1904, %v1908
          %v1910 = vadd.s32 %v1909, 536870912
          %v1911 = vshrl.u32 %v1910, 30
          %v1912 = vshll.u32 %v1911, 30
          %v1913 = vsub.s32 %v1909, %v1912
          %vm1914 = vcmp.lt.s32.totalorder %v1913, 0
          %v1915 = vsub.s32 0, %v1913
          %v1916 = vsel %vm1914, %v1915, %v1913
          %v1917 = vclz %v1916
          %v1918 = vsub.s32 %v1917, 2
          %vm1919 = vcmp.gt.s32.totalorder 0, %v1918
          %v1920 = vsel %vm1919, 0, %v1918
          %v1921 = vsub.s32 32, %v1920
          %v1922 = vshll.u32 %v1913, %v1920
          %v1923 = vshrl.u32 %v1905, %v1921
          %v1924 = vor.u32 %v1922, %v1923
          %v1925 = vsub.s32 4294967266, %v1920
          %v1926 = vadd.s32 %v1925, 127
          %v1927 = vshll.u32 %v1926, 23
          %v1928 = vor.u32 4788187, %v1927
          %v1929 = vand.u32 2147483647, %v1928
          %v1931 = vcvt.s32.f32 %v1924
          %v1932 = vmul.f32 %v1931, %v1929
          %v1933 = vxor.u32 %v1932, 2147483648
          %v1934 = vsel %vm1851, %v1933, %v1932
          %v1935 = vsub.s32 4, %v1911
          %v1936 = vsel %vm1851, %v1935, %v1911
          %v1937 = vsel %vm1850, %v684, %v1934
          %v1938 = vsel %vm1850, 0, %v1936
          %v1939 = vcosq.f32.pop %v1937
          %v1940 = vsinq.f32.pop %v1937
          %vm1941 = vweird.f32 %v684
          %v1942 = vadd.s32 %v1938, 3
          %v1943 = vand.u32 %v1942, 3
          %vm1944 = vcmp.lt.s32.totalorder %v1943, 2
          %vm1945 = vcmp.eq.s32.totalorder %v1943, 0
          %v1946 = vxor.u32 %v1940, 2147483648
          %v1947 = vsel %vm1945, %v1939, %v1946
          %vm1948 = vcmp.eq.s32.totalorder %v1943, 2
          %v1949 = vxor.u32 %v1939, 2147483648
          %v1950 = vsel %vm1948, %v1949, %v1940
          %v1951 = vsel %vm1944, %v1947, %v1950
          %v1952 = vsel %vm1941, nan, %v1951
          %v1953 = vand.u32 2147483647, %v685
          %vm1954 = vcmp.le.f32.partialorder %v1953, 0.7853982
          %vm1955 = vcmp.lt.s32.totalorder %v685, 0
          %v1956 = vand.u32 %v685, 2139095040
          %v1957 = vshrl.u32 %v1956, 23
          %v1958 = vsub.s32 %v1957, 127
          %v1959 = vand.u32 2147483647, %v685
          %v1960 = vand.u32 %v1959, 8388607
          %v1961 = vor.u32 %v1960, 8388608
          %v1962 = vsub.s32 0, %v1961
          %v1963 = vadd.s32 %v1958, 1
          %vm1964 = vcmp.gt.s32.totalorder %v1963, 0
          %v1965 = vsel %vm1964, %v1963, 0
          %v1966 = vshrl.u32 %v1965, 5
          %v1967 = vand.u32 %v1965, 31
          %v1968 = vsub.s32 32, %v1967
          %v1969 = vshrl.u32 683565275, %v1968
          %v1970 = vshll.u32 683565275, %v1967
          %v1971 = vshrl.u32 2475754826, %v1968
          %v1972 = vor.u32 %v1970, %v1971
          %v1973 = vshll.u32 2475754826, %v1967
          %v1974 = vshrl.u32 2131351028, %v1968
          %v1975 = vor.u32 %v1973, %v1974
          %v1976 = vshll.u32 2131351028, %v1967
          %v1977 = vshrl.u32 2102212464, %v1968
          %v1978 = vor.u32 %v1976, %v1977
          %v1979 = vshll.u32 2102212464, %v1967
          %v1980 = vshrl.u32 920167782, %v1968
          %v1981 = vor.u32 %v1979, %v1980
          %v1982 = vshll.u32 920167782, %v1967
          %v1983 = vshrl.u32 1326507024, %v1968
          %v1984 = vor.u32 %v1982, %v1983
          %vm1985 = vcmp.lt.s32.totalorder %v1966, 1
          %vm1986 = vcmp.lt.s32.totalorder %v1966, 2
          %vm1987 = vcmp.lt.s32.totalorder %v1966, 3
          %vm1988 = vcmp.lt.s32.totalorder %v1966, 4
          %v1989 = vsel %vm1985, %v1969, %v1972
          %v1990 = vsel %vm1988, %v1978, 2102212464
          %v1991 = vsel %vm1987, %v1975, %v1990
          %v1992 = vsel %vm1986, %v1989, %v1991
          %v1993 = vsel %vm1985, %v1972, %v1975
          %v1994 = vsel %vm1988, %v1981, 920167782
          %v1995 = vsel %vm1987, %v1978, %v1994
          %v1996 = vsel %vm1986, %v1993, %v1995
          %v1997 = vsel %vm1985, %v1975, %v1978
          %v1998 = vsel %vm1988, %v1984, 1326507024
          %v1999 = vsel %vm1987, %v1981, %v1998
          %v2000 = vsel %vm1986, %v1997, %v1999
          %v2001 = vshll.u32 %v1961, 8
          %v2002 = vmul.u32.u64.compose %v2001, %v2000
          %v2003 = vextract.low.u32 %v2002
          %v2004 = vextract.high.u32 %v2002
          %v2005 = vmul.u32.u64.compose %v2001, %v1996
          %v2006 = vextract.low.u32 %v2005
          %v2007 = vextract.high.u32 %v2005
          %v2008 = vmul.u32 %v2001, %v1992
          %v2009 = vadd.s32 %v2004, %v2006
          %vm2010 = vc.u32 %v2004, %v2006
          %v2011 = vadd.s32 %v2007, 1
          %v2012 = vsel %vm2010, %v2011, %v2007
          %v2013 = vadd.s32 %v2008, %v2012
          %v2014 = vadd.s32 %v2013, 536870912
          %v2015 = vshrl.u32 %v2014, 30
          %v2016 = vshll.u32 %v2015, 30
          %v2017 = vsub.s32 %v2013, %v2016
          %vm2018 = vcmp.lt.s32.totalorder %v2017, 0
          %v2019 = vsub.s32 0, %v2017
          %v2020 = vsel %vm2018, %v2019, %v2017
          %v2021 = vclz %v2020
          %v2022 = vsub.s32 %v2021, 2
          %vm2023 = vcmp.gt.s32.totalorder 0, %v2022
          %v2024 = vsel %vm2023, 0, %v2022
          %v2025 = vsub.s32 32, %v2024
          %v2026 = vshll.u32 %v2017, %v2024
          %v2027 = vshrl.u32 %v2009, %v2025
          %v2028 = vor.u32 %v2026, %v2027
          %v2029 = vsub.s32 4294967266, %v2024
          %v2030 = vadd.s32 %v2029, 127
          %v2031 = vshll.u32 %v2030, 23
          %v2032 = vor.u32 4788187, %v2031
          %v2033 = vand.u32 2147483647, %v2032
          %v2035 = vcvt.s32.f32 %v2028
          %v2036 = vmul.f32 %v2035, %v2033
          %v2037 = vxor.u32 %v2036, 2147483648
          %v2038 = vsel %vm1955, %v2037, %v2036
          %v2039 = vsub.s32 4, %v2015
          %v2040 = vsel %vm1955, %v2039, %v2015
          %v2041 = vsel %vm1954, %v685, %v2038
          %v2042 = vsel %vm1954, 0, %v2040
          %v2043 = vcosq.f32.pop %v2041
          %v2044 = vsinq.f32.pop %v2041
          %vm2045 = vweird.f32 %v685
          %v2046 = vadd.s32 %v2042, 3
          %v2047 = vand.u32 %v2046, 3
          %vm2048 = vcmp.lt.s32.totalorder %v2047, 2
          %vm2049 = vcmp.eq.s32.totalorder %v2047, 0
          %v2050 = vxor.u32 %v2044, 2147483648
          %v2051 = vsel %vm2049, %v2043, %v2050
          %vm2052 = vcmp.eq.s32.totalorder %v2047, 2
          %v2053 = vxor.u32 %v2043, 2147483648
          %v2054 = vsel %vm2052, %v2053, %v2044
          %v2055 = vsel %vm2048, %v2051, %v2054
          %v2056 = vsel %vm2045, nan, %v2055
          %v2057 = vand.u32 2147483647, %v686
          %vm2058 = vcmp.le.f32.partialorder %v2057, 0.7853982
          %vm2059 = vcmp.lt.s32.totalorder %v686, 0
          %v2060 = vand.u32 %v686, 2139095040
          %v2061 = vshrl.u32 %v2060, 23
          %v2062 = vsub.s32 %v2061, 127
          %v2063 = vand.u32 2147483647, %v686
          %v2064 = vand.u32 %v2063, 8388607
          %v2065 = vor.u32 %v2064, 8388608
          %v2066 = vsub.s32 0, %v2065
          %v2067 = vadd.s32 %v2062, 1
          %vm2068 = vcmp.gt.s32.totalorder %v2067, 0
          %v2069 = vsel %vm2068, %v2067, 0
          %v2070 = vshrl.u32 %v2069, 5
          %v2071 = vand.u32 %v2069, 31
          %v2072 = vsub.s32 32, %v2071
          %v2073 = vshrl.u32 683565275, %v2072
          %v2074 = vshll.u32 683565275, %v2071
          %v2075 = vshrl.u32 2475754826, %v2072
          %v2076 = vor.u32 %v2074, %v2075
          %v2077 = vshll.u32 2475754826, %v2071
          %v2078 = vshrl.u32 2131351028, %v2072
          %v2079 = vor.u32 %v2077, %v2078
          %v2080 = vshll.u32 2131351028, %v2071
          %v2081 = vshrl.u32 2102212464, %v2072
          %v2082 = vor.u32 %v2080, %v2081
          %v2083 = vshll.u32 2102212464, %v2071
          %v2084 = vshrl.u32 920167782, %v2072
          %v2085 = vor.u32 %v2083, %v2084
          %v2086 = vshll.u32 920167782, %v2071
          %v2087 = vshrl.u32 1326507024, %v2072
          %v2088 = vor.u32 %v2086, %v2087
          %vm2089 = vcmp.lt.s32.totalorder %v2070, 1
          %vm2090 = vcmp.lt.s32.totalorder %v2070, 2
          %vm2091 = vcmp.lt.s32.totalorder %v2070, 3
          %vm2092 = vcmp.lt.s32.totalorder %v2070, 4
          %v2093 = vsel %vm2089, %v2073, %v2076
          %v2094 = vsel %vm2092, %v2082, 2102212464
          %v2095 = vsel %vm2091, %v2079, %v2094
          %v2096 = vsel %vm2090, %v2093, %v2095
          %v2097 = vsel %vm2089, %v2076, %v2079
          %v2098 = vsel %vm2092, %v2085, 920167782
          %v2099 = vsel %vm2091, %v2082, %v2098
          %v2100 = vsel %vm2090, %v2097, %v2099
          %v2101 = vsel %vm2089, %v2079, %v2082
          %v2102 = vsel %vm2092, %v2088, 1326507024
          %v2103 = vsel %vm2091, %v2085, %v2102
          %v2104 = vsel %vm2090, %v2101, %v2103
          %v2105 = vshll.u32 %v2065, 8
          %v2106 = vmul.u32.u64.compose %v2105, %v2104
          %v2107 = vextract.low.u32 %v2106
          %v2108 = vextract.high.u32 %v2106
          %v2109 = vmul.u32.u64.compose %v2105, %v2100
          %v2110 = vextract.low.u32 %v2109
          %v2111 = vextract.high.u32 %v2109
          %v2112 = vmul.u32 %v2105, %v2096
          %v2113 = vadd.s32 %v2108, %v2110
          %vm2114 = vc.u32 %v2108, %v2110
          %v2115 = vadd.s32 %v2111, 1
          %v2116 = vsel %vm2114, %v2115, %v2111
          %v2117 = vadd.s32 %v2112, %v2116
          %v2118 = vadd.s32 %v2117, 536870912
          %v2119 = vshrl.u32 %v2118, 30
          %v2120 = vshll.u32 %v2119, 30
          %v2121 = vsub.s32 %v2117, %v2120
          %vm2122 = vcmp.lt.s32.totalorder %v2121, 0
          %v2123 = vsub.s32 0, %v2121
          %v2124 = vsel %vm2122, %v2123, %v2121
          %v2125 = vclz %v2124
          %v2126 = vsub.s32 %v2125, 2
          %vm2127 = vcmp.gt.s32.totalorder 0, %v2126
          %v2128 = vsel %vm2127, 0, %v2126
          %v2129 = vsub.s32 32, %v2128
          %v2130 = vshll.u32 %v2121, %v2128
          %v2131 = vshrl.u32 %v2113, %v2129
          %v2132 = vor.u32 %v2130, %v2131
          %v2133 = vsub.s32 4294967266, %v2128
          %v2134 = vadd.s32 %v2133, 127
          %v2135 = vshll.u32 %v2134, 23
          %v2136 = vor.u32 4788187, %v2135
          %v2137 = vand.u32 2147483647, %v2136
          %v2139 = vcvt.s32.f32 %v2132
          %v2140 = vmul.f32 %v2139, %v2137
          %v2141 = vxor.u32 %v2140, 2147483648
          %v2142 = vsel %vm2059, %v2141, %v2140
          %v2143 = vsub.s32 4, %v2119
          %v2144 = vsel %vm2059, %v2143, %v2119
          %v2145 = vsel %vm2058, %v686, %v2142
          %v2146 = vsel %vm2058, 0, %v2144
          %v2147 = vcosq.f32.pop %v2145
          %v2148 = vsinq.f32.pop %v2145
          %vm2149 = vweird.f32 %v686
          %v2150 = vadd.s32 %v2146, 3
          %v2151 = vand.u32 %v2150, 3
          %vm2152 = vcmp.lt.s32.totalorder %v2151, 2
          %vm2153 = vcmp.eq.s32.totalorder %v2151, 0
          %v2154 = vxor.u32 %v2148, 2147483648
          %v2155 = vsel %vm2153, %v2147, %v2154
          %vm2156 = vcmp.eq.s32.totalorder %v2151, 2
          %v2157 = vxor.u32 %v2147, 2147483648
          %v2158 = vsel %vm2156, %v2157, %v2148
          %v2159 = vsel %vm2152, %v2155, %v2158
          %v2160 = vsel %vm2149, nan, %v2159
          %v2161 = vand.u32 2147483647, %v687
          %vm2162 = vcmp.le.f32.partialorder %v2161, 0.7853982
          %vm2163 = vcmp.lt.s32.totalorder %v687, 0
          %v2164 = vand.u32 %v687, 2139095040
          %v2165 = vshrl.u32 %v2164, 23
          %v2166 = vsub.s32 %v2165, 127
          %v2167 = vand.u32 2147483647, %v687
          %v2168 = vand.u32 %v2167, 8388607
          %v2169 = vor.u32 %v2168, 8388608
          %v2170 = vsub.s32 0, %v2169
          %v2171 = vadd.s32 %v2166, 1
          %vm2172 = vcmp.gt.s32.totalorder %v2171, 0
          %v2173 = vsel %vm2172, %v2171, 0
          %v2174 = vshrl.u32 %v2173, 5
          %v2175 = vand.u32 %v2173, 31
          %v2176 = vsub.s32 32, %v2175
          %v2177 = vshrl.u32 683565275, %v2176
          %v2178 = vshll.u32 683565275, %v2175
          %v2179 = vshrl.u32 2475754826, %v2176
          %v2180 = vor.u32 %v2178, %v2179
          %v2181 = vshll.u32 2475754826, %v2175
          %v2182 = vshrl.u32 2131351028, %v2176
          %v2183 = vor.u32 %v2181, %v2182
          %v2184 = vshll.u32 2131351028, %v2175
          %v2185 = vshrl.u32 2102212464, %v2176
          %v2186 = vor.u32 %v2184, %v2185
          %v2187 = vshll.u32 2102212464, %v2175
          %v2188 = vshrl.u32 920167782, %v2176
          %v2189 = vor.u32 %v2187, %v2188
          %v2190 = vshll.u32 920167782, %v2175
          %v2191 = vshrl.u32 1326507024, %v2176
          %v2192 = vor.u32 %v2190, %v2191
          %vm2193 = vcmp.lt.s32.totalorder %v2174, 1
          %vm2194 = vcmp.lt.s32.totalorder %v2174, 2
          %vm2195 = vcmp.lt.s32.totalorder %v2174, 3
          %vm2196 = vcmp.lt.s32.totalorder %v2174, 4
          %v2197 = vsel %vm2193, %v2177, %v2180
          %v2198 = vsel %vm2196, %v2186, 2102212464
          %v2199 = vsel %vm2195, %v2183, %v2198
          %v2200 = vsel %vm2194, %v2197, %v2199
          %v2201 = vsel %vm2193, %v2180, %v2183
          %v2202 = vsel %vm2196, %v2189, 920167782
          %v2203 = vsel %vm2195, %v2186, %v2202
          %v2204 = vsel %vm2194, %v2201, %v2203
          %v2205 = vsel %vm2193, %v2183, %v2186
          %v2206 = vsel %vm2196, %v2192, 1326507024
          %v2207 = vsel %vm2195, %v2189, %v2206
          %v2208 = vsel %vm2194, %v2205, %v2207
          %v2209 = vshll.u32 %v2169, 8
          %v2210 = vmul.u32.u64.compose %v2209, %v2208
          %v2211 = vextract.low.u32 %v2210
          %v2212 = vextract.high.u32 %v2210
          %v2213 = vmul.u32.u64.compose %v2209, %v2204
          %v2214 = vextract.low.u32 %v2213
          %v2215 = vextract.high.u32 %v2213
          %v2216 = vmul.u32 %v2209, %v2200
          %v2217 = vadd.s32 %v2212, %v2214
          %vm2218 = vc.u32 %v2212, %v2214
          %v2219 = vadd.s32 %v2215, 1
          %v2220 = vsel %vm2218, %v2219, %v2215
          %v2221 = vadd.s32 %v2216, %v2220
          %v2222 = vadd.s32 %v2221, 536870912
          %v2223 = vshrl.u32 %v2222, 30
          %v2224 = vshll.u32 %v2223, 30
          %v2225 = vsub.s32 %v2221, %v2224
          %vm2226 = vcmp.lt.s32.totalorder %v2225, 0
          %v2227 = vsub.s32 0, %v2225
          %v2228 = vsel %vm2226, %v2227, %v2225
          %v2229 = vclz %v2228
          %v2230 = vsub.s32 %v2229, 2
          %vm2231 = vcmp.gt.s32.totalorder 0, %v2230
          %v2232 = vsel %vm2231, 0, %v2230
          %v2233 = vsub.s32 32, %v2232
          %v2234 = vshll.u32 %v2225, %v2232
          %v2235 = vshrl.u32 %v2217, %v2233
          %v2236 = vor.u32 %v2234, %v2235
          %v2237 = vsub.s32 4294967266, %v2232
          %v2238 = vadd.s32 %v2237, 127
          %v2239 = vshll.u32 %v2238, 23
          %v2240 = vor.u32 4788187, %v2239
          %v2241 = vand.u32 2147483647, %v2240
          %v2243 = vcvt.s32.f32 %v2236
          %v2244 = vmul.f32 %v2243, %v2241
          %v2245 = vxor.u32 %v2244, 2147483648
          %v2246 = vsel %vm2163, %v2245, %v2244
          %v2247 = vsub.s32 4, %v2223
          %v2248 = vsel %vm2163, %v2247, %v2223
          %v2249 = vsel %vm2162, %v687, %v2246
          %v2250 = vsel %vm2162, 0, %v2248
          %v2251 = vcosq.f32.pop %v2249
          %v2252 = vsinq.f32.pop %v2249
          %vm2253 = vweird.f32 %v687
          %v2254 = vadd.s32 %v2250, 3
          %v2255 = vand.u32 %v2254, 3
          %vm2256 = vcmp.lt.s32.totalorder %v2255, 2
          %vm2257 = vcmp.eq.s32.totalorder %v2255, 0
          %v2258 = vxor.u32 %v2252, 2147483648
          %v2259 = vsel %vm2257, %v2251, %v2258
          %vm2260 = vcmp.eq.s32.totalorder %v2255, 2
          %v2261 = vxor.u32 %v2251, 2147483648
          %v2262 = vsel %vm2260, %v2261, %v2252
          %v2263 = vsel %vm2256, %v2259, %v2262
          %v2264 = vsel %vm2253, nan, %v2263
          %v2265 = vand.u32 2147483647, %v688
          %vm2266 = vcmp.le.f32.partialorder %v2265, 0.7853982
          %vm2267 = vcmp.lt.s32.totalorder %v688, 0
          %v2268 = vand.u32 %v688, 2139095040
          %v2269 = vshrl.u32 %v2268, 23
          %v2270 = vsub.s32 %v2269, 127
          %v2271 = vand.u32 2147483647, %v688
          %v2272 = vand.u32 %v2271, 8388607
          %v2273 = vor.u32 %v2272, 8388608
          %v2274 = vsub.s32 0, %v2273
          %v2275 = vadd.s32 %v2270, 1
          %vm2276 = vcmp.gt.s32.totalorder %v2275, 0
          %v2277 = vsel %vm2276, %v2275, 0
          %v2278 = vshrl.u32 %v2277, 5
          %v2279 = vand.u32 %v2277, 31
          %v2280 = vsub.s32 32, %v2279
          %v2281 = vshrl.u32 683565275, %v2280
          %v2282 = vshll.u32 683565275, %v2279
          %v2283 = vshrl.u32 2475754826, %v2280
          %v2284 = vor.u32 %v2282, %v2283
          %v2285 = vshll.u32 2475754826, %v2279
          %v2286 = vshrl.u32 2131351028, %v2280
          %v2287 = vor.u32 %v2285, %v2286
          %v2288 = vshll.u32 2131351028, %v2279
          %v2289 = vshrl.u32 2102212464, %v2280
          %v2290 = vor.u32 %v2288, %v2289
          %v2291 = vshll.u32 2102212464, %v2279
          %v2292 = vshrl.u32 920167782, %v2280
          %v2293 = vor.u32 %v2291, %v2292
          %v2294 = vshll.u32 920167782, %v2279
          %v2295 = vshrl.u32 1326507024, %v2280
          %v2296 = vor.u32 %v2294, %v2295
          %vm2297 = vcmp.lt.s32.totalorder %v2278, 1
          %vm2298 = vcmp.lt.s32.totalorder %v2278, 2
          %vm2299 = vcmp.lt.s32.totalorder %v2278, 3
          %vm2300 = vcmp.lt.s32.totalorder %v2278, 4
          %v2301 = vsel %vm2297, %v2281, %v2284
          %v2302 = vsel %vm2300, %v2290, 2102212464
          %v2303 = vsel %vm2299, %v2287, %v2302
          %v2304 = vsel %vm2298, %v2301, %v2303
          %v2305 = vsel %vm2297, %v2284, %v2287
          %v2306 = vsel %vm2300, %v2293, 920167782
          %v2307 = vsel %vm2299, %v2290, %v2306
          %v2308 = vsel %vm2298, %v2305, %v2307
          %v2309 = vsel %vm2297, %v2287, %v2290
          %v2310 = vsel %vm2300, %v2296, 1326507024
          %v2311 = vsel %vm2299, %v2293, %v2310
          %v2312 = vsel %vm2298, %v2309, %v2311
          %v2313 = vshll.u32 %v2273, 8
          %v2314 = vmul.u32.u64.compose %v2313, %v2312
          %v2315 = vextract.low.u32 %v2314
          %v2316 = vextract.high.u32 %v2314
          %v2317 = vmul.u32.u64.compose %v2313, %v2308
          %v2318 = vextract.low.u32 %v2317
          %v2319 = vextract.high.u32 %v2317
          %v2320 = vmul.u32 %v2313, %v2304
          %v2321 = vadd.s32 %v2316, %v2318
          %vm2322 = vc.u32 %v2316, %v2318
          %v2323 = vadd.s32 %v2319, 1
          %v2324 = vsel %vm2322, %v2323, %v2319
          %v2325 = vadd.s32 %v2320, %v2324
          %v2326 = vadd.s32 %v2325, 536870912
          %v2327 = vshrl.u32 %v2326, 30
          %v2328 = vshll.u32 %v2327, 30
          %v2329 = vsub.s32 %v2325, %v2328
          %vm2330 = vcmp.lt.s32.totalorder %v2329, 0
          %v2331 = vsub.s32 0, %v2329
          %v2332 = vsel %vm2330, %v2331, %v2329
          %v2333 = vclz %v2332
          %v2334 = vsub.s32 %v2333, 2
          %vm2335 = vcmp.gt.s32.totalorder 0, %v2334
          %v2336 = vsel %vm2335, 0, %v2334
          %v2337 = vsub.s32 32, %v2336
          %v2338 = vshll.u32 %v2329, %v2336
          %v2339 = vshrl.u32 %v2321, %v2337
          %v2340 = vor.u32 %v2338, %v2339
          %v2341 = vsub.s32 4294967266, %v2336
          %v2342 = vadd.s32 %v2341, 127
          %v2343 = vshll.u32 %v2342, 23
          %v2344 = vor.u32 4788187, %v2343
          %v2345 = vand.u32 2147483647, %v2344
          %v2347 = vcvt.s32.f32 %v2340
          %v2348 = vmul.f32 %v2347, %v2345
          %v2349 = vxor.u32 %v2348, 2147483648
          %v2350 = vsel %vm2267, %v2349, %v2348
          %v2351 = vsub.s32 4, %v2327
          %v2352 = vsel %vm2267, %v2351, %v2327
          %v2353 = vsel %vm2266, %v688, %v2350
          %v2354 = vsel %vm2266, 0, %v2352
          %v2355 = vcosq.f32.pop %v2353
          %v2356 = vsinq.f32.pop %v2353
          %vm2357 = vweird.f32 %v688
          %v2358 = vadd.s32 %v2354, 3
          %v2359 = vand.u32 %v2358, 3
          %vm2360 = vcmp.lt.s32.totalorder %v2359, 2
          %vm2361 = vcmp.eq.s32.totalorder %v2359, 0
          %v2362 = vxor.u32 %v2356, 2147483648
          %v2363 = vsel %vm2361, %v2355, %v2362
          %vm2364 = vcmp.eq.s32.totalorder %v2359, 2
          %v2365 = vxor.u32 %v2355, 2147483648
          %v2366 = vsel %vm2364, %v2365, %v2356
          %v2367 = vsel %vm2360, %v2363, %v2366
          %v2368 = vsel %vm2357, nan, %v2367
          %v2369 = vand.u32 2147483647, %v689
          %vm2370 = vcmp.le.f32.partialorder %v2369, 0.7853982
          %vm2371 = vcmp.lt.s32.totalorder %v689, 0
          %v2372 = vand.u32 %v689, 2139095040
          %v2373 = vshrl.u32 %v2372, 23
          %v2374 = vsub.s32 %v2373, 127
          %v2375 = vand.u32 2147483647, %v689
          %v2376 = vand.u32 %v2375, 8388607
          %v2377 = vor.u32 %v2376, 8388608
          %v2378 = vsub.s32 0, %v2377
          %v2379 = vadd.s32 %v2374, 1
          %vm2380 = vcmp.gt.s32.totalorder %v2379, 0
          %v2381 = vsel %vm2380, %v2379, 0
          %v2382 = vshrl.u32 %v2381, 5
          %v2383 = vand.u32 %v2381, 31
          %v2384 = vsub.s32 32, %v2383
          %v2385 = vshrl.u32 683565275, %v2384
          %v2386 = vshll.u32 683565275, %v2383
          %v2387 = vshrl.u32 2475754826, %v2384
          %v2388 = vor.u32 %v2386, %v2387
          %v2389 = vshll.u32 2475754826, %v2383
          %v2390 = vshrl.u32 2131351028, %v2384
          %v2391 = vor.u32 %v2389, %v2390
          %v2392 = vshll.u32 2131351028, %v2383
          %v2393 = vshrl.u32 2102212464, %v2384
          %v2394 = vor.u32 %v2392, %v2393
          %v2395 = vshll.u32 2102212464, %v2383
          %v2396 = vshrl.u32 920167782, %v2384
          %v2397 = vor.u32 %v2395, %v2396
          %v2398 = vshll.u32 920167782, %v2383
          %v2399 = vshrl.u32 1326507024, %v2384
          %v2400 = vor.u32 %v2398, %v2399
          %vm2401 = vcmp.lt.s32.totalorder %v2382, 1
          %vm2402 = vcmp.lt.s32.totalorder %v2382, 2
          %vm2403 = vcmp.lt.s32.totalorder %v2382, 3
          %vm2404 = vcmp.lt.s32.totalorder %v2382, 4
          %v2405 = vsel %vm2401, %v2385, %v2388
          %v2406 = vsel %vm2404, %v2394, 2102212464
          %v2407 = vsel %vm2403, %v2391, %v2406
          %v2408 = vsel %vm2402, %v2405, %v2407
          %v2409 = vsel %vm2401, %v2388, %v2391
          %v2410 = vsel %vm2404, %v2397, 920167782
          %v2411 = vsel %vm2403, %v2394, %v2410
          %v2412 = vsel %vm2402, %v2409, %v2411
          %v2413 = vsel %vm2401, %v2391, %v2394
          %v2414 = vsel %vm2404, %v2400, 1326507024
          %v2415 = vsel %vm2403, %v2397, %v2414
          %v2416 = vsel %vm2402, %v2413, %v2415
          %v2417 = vshll.u32 %v2377, 8
          %v2418 = vmul.u32.u64.compose %v2417, %v2416
          %v2419 = vextract.low.u32 %v2418
          %v2420 = vextract.high.u32 %v2418
          %v2421 = vmul.u32.u64.compose %v2417, %v2412
          %v2422 = vextract.low.u32 %v2421
          %v2423 = vextract.high.u32 %v2421
          %v2424 = vmul.u32 %v2417, %v2408
          %v2425 = vadd.s32 %v2420, %v2422
          %vm2426 = vc.u32 %v2420, %v2422
          %v2427 = vadd.s32 %v2423, 1
          %v2428 = vsel %vm2426, %v2427, %v2423
          %v2429 = vadd.s32 %v2424, %v2428
          %v2430 = vadd.s32 %v2429, 536870912
          %v2431 = vshrl.u32 %v2430, 30
          %v2432 = vshll.u32 %v2431, 30
          %v2433 = vsub.s32 %v2429, %v2432
          %vm2434 = vcmp.lt.s32.totalorder %v2433, 0
          %v2435 = vsub.s32 0, %v2433
          %v2436 = vsel %vm2434, %v2435, %v2433
          %v2437 = vclz %v2436
          %v2438 = vsub.s32 %v2437, 2
          %vm2439 = vcmp.gt.s32.totalorder 0, %v2438
          %v2440 = vsel %vm2439, 0, %v2438
          %v2441 = vsub.s32 32, %v2440
          %v2442 = vshll.u32 %v2433, %v2440
          %v2443 = vshrl.u32 %v2425, %v2441
          %v2444 = vor.u32 %v2442, %v2443
          %v2445 = vsub.s32 4294967266, %v2440
          %v2446 = vadd.s32 %v2445, 127
          %v2447 = vshll.u32 %v2446, 23
          %v2448 = vor.u32 4788187, %v2447
          %v2449 = vand.u32 2147483647, %v2448
          %v2451 = vcvt.s32.f32 %v2444
          %v2452 = vmul.f32 %v2451, %v2449
          %v2453 = vxor.u32 %v2452, 2147483648
          %v2454 = vsel %vm2371, %v2453, %v2452
          %v2455 = vsub.s32 4, %v2431
          %v2456 = vsel %vm2371, %v2455, %v2431
          %v2457 = vsel %vm2370, %v689, %v2454
          %v2458 = vsel %vm2370, 0, %v2456
          %v2459 = vcosq.f32.pop %v2457
          %v2460 = vsinq.f32.pop %v2457
          %vm2461 = vweird.f32 %v689
          %v2462 = vadd.s32 %v2458, 3
          %v2463 = vand.u32 %v2462, 3
          %vm2464 = vcmp.lt.s32.totalorder %v2463, 2
          %vm2465 = vcmp.eq.s32.totalorder %v2463, 0
          %v2466 = vxor.u32 %v2460, 2147483648
          %v2467 = vsel %vm2465, %v2459, %v2466
          %vm2468 = vcmp.eq.s32.totalorder %v2463, 2
          %v2469 = vxor.u32 %v2459, 2147483648
          %v2470 = vsel %vm2468, %v2469, %v2460
          %v2471 = vsel %vm2464, %v2467, %v2470
          %v2472 = vsel %vm2461, nan, %v2471
          %v2473 = vand.u32 2147483647, %v690
          %vm2474 = vcmp.le.f32.partialorder %v2473, 0.7853982
          %vm2475 = vcmp.lt.s32.totalorder %v690, 0
          %v2476 = vand.u32 %v690, 2139095040
          %v2477 = vshrl.u32 %v2476, 23
          %v2478 = vsub.s32 %v2477, 127
          %v2479 = vand.u32 2147483647, %v690
          %v2480 = vand.u32 %v2479, 8388607
          %v2481 = vor.u32 %v2480, 8388608
          %v2482 = vsub.s32 0, %v2481
          %v2483 = vadd.s32 %v2478, 1
          %vm2484 = vcmp.gt.s32.totalorder %v2483, 0
          %v2485 = vsel %vm2484, %v2483, 0
          %v2486 = vshrl.u32 %v2485, 5
          %v2487 = vand.u32 %v2485, 31
          %v2488 = vsub.s32 32, %v2487
          %v2489 = vshrl.u32 683565275, %v2488
          %v2490 = vshll.u32 683565275, %v2487
          %v2491 = vshrl.u32 2475754826, %v2488
          %v2492 = vor.u32 %v2490, %v2491
          %v2493 = vshll.u32 2475754826, %v2487
          %v2494 = vshrl.u32 2131351028, %v2488
          %v2495 = vor.u32 %v2493, %v2494
          %v2496 = vshll.u32 2131351028, %v2487
          %v2497 = vshrl.u32 2102212464, %v2488
          %v2498 = vor.u32 %v2496, %v2497
          %v2499 = vshll.u32 2102212464, %v2487
          %v2500 = vshrl.u32 920167782, %v2488
          %v2501 = vor.u32 %v2499, %v2500
          %v2502 = vshll.u32 920167782, %v2487
          %v2503 = vshrl.u32 1326507024, %v2488
          %v2504 = vor.u32 %v2502, %v2503
          %vm2505 = vcmp.lt.s32.totalorder %v2486, 1
          %vm2506 = vcmp.lt.s32.totalorder %v2486, 2
          %vm2507 = vcmp.lt.s32.totalorder %v2486, 3
          %vm2508 = vcmp.lt.s32.totalorder %v2486, 4
          %v2509 = vsel %vm2505, %v2489, %v2492
          %v2510 = vsel %vm2508, %v2498, 2102212464
          %v2511 = vsel %vm2507, %v2495, %v2510
          %v2512 = vsel %vm2506, %v2509, %v2511
          %v2513 = vsel %vm2505, %v2492, %v2495
          %v2514 = vsel %vm2508, %v2501, 920167782
          %v2515 = vsel %vm2507, %v2498, %v2514
          %v2516 = vsel %vm2506, %v2513, %v2515
          %v2517 = vsel %vm2505, %v2495, %v2498
          %v2518 = vsel %vm2508, %v2504, 1326507024
          %v2519 = vsel %vm2507, %v2501, %v2518
          %v2520 = vsel %vm2506, %v2517, %v2519
          %v2521 = vshll.u32 %v2481, 8
          %v2522 = vmul.u32.u64.compose %v2521, %v2520
          %v2523 = vextract.low.u32 %v2522
          %v2524 = vextract.high.u32 %v2522
          %v2525 = vmul.u32.u64.compose %v2521, %v2516
          %v2526 = vextract.low.u32 %v2525
          %v2527 = vextract.high.u32 %v2525
          %v2528 = vmul.u32 %v2521, %v2512
          %v2529 = vadd.s32 %v2524, %v2526
          %vm2530 = vc.u32 %v2524, %v2526
          %v2531 = vadd.s32 %v2527, 1
          %v2532 = vsel %vm2530, %v2531, %v2527
          %v2533 = vadd.s32 %v2528, %v2532
          %v2534 = vadd.s32 %v2533, 536870912
          %v2535 = vshrl.u32 %v2534, 30
          %v2536 = vshll.u32 %v2535, 30
          %v2537 = vsub.s32 %v2533, %v2536
          %vm2538 = vcmp.lt.s32.totalorder %v2537, 0
          %v2539 = vsub.s32 0, %v2537
          %v2540 = vsel %vm2538, %v2539, %v2537
          %v2541 = vclz %v2540
          %v2542 = vsub.s32 %v2541, 2
          %vm2543 = vcmp.gt.s32.totalorder 0, %v2542
          %v2544 = vsel %vm2543, 0, %v2542
          %v2545 = vsub.s32 32, %v2544
          %v2546 = vshll.u32 %v2537, %v2544
          %v2547 = vshrl.u32 %v2529, %v2545
          %v2548 = vor.u32 %v2546, %v2547
          %v2549 = vsub.s32 4294967266, %v2544
          %v2550 = vadd.s32 %v2549, 127
          %v2551 = vshll.u32 %v2550, 23
          %v2552 = vor.u32 4788187, %v2551
          %v2553 = vand.u32 2147483647, %v2552
          %v2555 = vcvt.s32.f32 %v2548
          %v2556 = vmul.f32 %v2555, %v2553
          %v2557 = vxor.u32 %v2556, 2147483648
          %v2558 = vsel %vm2475, %v2557, %v2556
          %v2559 = vsub.s32 4, %v2535
          %v2560 = vsel %vm2475, %v2559, %v2535
          %v2561 = vsel %vm2474, %v690, %v2558
          %v2562 = vsel %vm2474, 0, %v2560
          %v2563 = vcosq.f32.pop %v2561
          %v2564 = vsinq.f32.pop %v2561
          %vm2565 = vweird.f32 %v690
          %v2566 = vadd.s32 %v2562, 3
          %v2567 = vand.u32 %v2566, 3
          %vm2568 = vcmp.lt.s32.totalorder %v2567, 2
          %vm2569 = vcmp.eq.s32.totalorder %v2567, 0
          %v2570 = vxor.u32 %v2564, 2147483648
          %v2571 = vsel %vm2569, %v2563, %v2570
          %vm2572 = vcmp.eq.s32.totalorder %v2567, 2
          %v2573 = vxor.u32 %v2563, 2147483648
          %v2574 = vsel %vm2572, %v2573, %v2564
          %v2575 = vsel %vm2568, %v2571, %v2574
          %v2576 = vsel %vm2565, nan, %v2575
          %v2577 = vand.u32 2147483647, %v691
          %vm2578 = vcmp.le.f32.partialorder %v2577, 0.7853982
          %vm2579 = vcmp.lt.s32.totalorder %v691, 0
          %v2580 = vand.u32 %v691, 2139095040
          %v2581 = vshrl.u32 %v2580, 23
          %v2582 = vsub.s32 %v2581, 127
          %v2583 = vand.u32 2147483647, %v691
          %v2584 = vand.u32 %v2583, 8388607
          %v2585 = vor.u32 %v2584, 8388608
          %v2586 = vsub.s32 0, %v2585
          %v2587 = vadd.s32 %v2582, 1
          %vm2588 = vcmp.gt.s32.totalorder %v2587, 0
          %v2589 = vsel %vm2588, %v2587, 0
          %v2590 = vshrl.u32 %v2589, 5
          %v2591 = vand.u32 %v2589, 31
          %v2592 = vsub.s32 32, %v2591
          %v2593 = vshrl.u32 683565275, %v2592
          %v2594 = vshll.u32 683565275, %v2591
          %v2595 = vshrl.u32 2475754826, %v2592
          %v2596 = vor.u32 %v2594, %v2595
          %v2597 = vshll.u32 2475754826, %v2591
          %v2598 = vshrl.u32 2131351028, %v2592
          %v2599 = vor.u32 %v2597, %v2598
          %v2600 = vshll.u32 2131351028, %v2591
          %v2601 = vshrl.u32 2102212464, %v2592
          %v2602 = vor.u32 %v2600, %v2601
          %v2603 = vshll.u32 2102212464, %v2591
          %v2604 = vshrl.u32 920167782, %v2592
          %v2605 = vor.u32 %v2603, %v2604
          %v2606 = vshll.u32 920167782, %v2591
          %v2607 = vshrl.u32 1326507024, %v2592
          %v2608 = vor.u32 %v2606, %v2607
          %vm2609 = vcmp.lt.s32.totalorder %v2590, 1
          %vm2610 = vcmp.lt.s32.totalorder %v2590, 2
          %vm2611 = vcmp.lt.s32.totalorder %v2590, 3
          %vm2612 = vcmp.lt.s32.totalorder %v2590, 4
          %v2613 = vsel %vm2609, %v2593, %v2596
          %v2614 = vsel %vm2612, %v2602, 2102212464
          %v2615 = vsel %vm2611, %v2599, %v2614
          %v2616 = vsel %vm2610, %v2613, %v2615
          %v2617 = vsel %vm2609, %v2596, %v2599
          %v2618 = vsel %vm2612, %v2605, 920167782
          %v2619 = vsel %vm2611, %v2602, %v2618
          %v2620 = vsel %vm2610, %v2617, %v2619
          %v2621 = vsel %vm2609, %v2599, %v2602
          %v2622 = vsel %vm2612, %v2608, 1326507024
          %v2623 = vsel %vm2611, %v2605, %v2622
          %v2624 = vsel %vm2610, %v2621, %v2623
          %v2625 = vshll.u32 %v2585, 8
          %v2626 = vmul.u32.u64.compose %v2625, %v2624
          %v2627 = vextract.low.u32 %v2626
          %v2628 = vextract.high.u32 %v2626
          %v2629 = vmul.u32.u64.compose %v2625, %v2620
          %v2630 = vextract.low.u32 %v2629
          %v2631 = vextract.high.u32 %v2629
          %v2632 = vmul.u32 %v2625, %v2616
          %v2633 = vadd.s32 %v2628, %v2630
          %vm2634 = vc.u32 %v2628, %v2630
          %v2635 = vadd.s32 %v2631, 1
          %v2636 = vsel %vm2634, %v2635, %v2631
          %v2637 = vadd.s32 %v2632, %v2636
          %v2638 = vadd.s32 %v2637, 536870912
          %v2639 = vshrl.u32 %v2638, 30
          %v2640 = vshll.u32 %v2639, 30
          %v2641 = vsub.s32 %v2637, %v2640
          %vm2642 = vcmp.lt.s32.totalorder %v2641, 0
          %v2643 = vsub.s32 0, %v2641
          %v2644 = vsel %vm2642, %v2643, %v2641
          %v2645 = vclz %v2644
          %v2646 = vsub.s32 %v2645, 2
          %vm2647 = vcmp.gt.s32.totalorder 0, %v2646
          %v2648 = vsel %vm2647, 0, %v2646
          %v2649 = vsub.s32 32, %v2648
          %v2650 = vshll.u32 %v2641, %v2648
          %v2651 = vshrl.u32 %v2633, %v2649
          %v2652 = vor.u32 %v2650, %v2651
          %v2653 = vsub.s32 4294967266, %v2648
          %v2654 = vadd.s32 %v2653, 127
          %v2655 = vshll.u32 %v2654, 23
          %v2656 = vor.u32 4788187, %v2655
          %v2657 = vand.u32 2147483647, %v2656
          %v2659 = vcvt.s32.f32 %v2652
          %v2660 = vmul.f32 %v2659, %v2657
          %v2661 = vxor.u32 %v2660, 2147483648
          %v2662 = vsel %vm2579, %v2661, %v2660
          %v2663 = vsub.s32 4, %v2639
          %v2664 = vsel %vm2579, %v2663, %v2639
          %v2665 = vsel %vm2578, %v691, %v2662
          %v2666 = vsel %vm2578, 0, %v2664
          %v2667 = vcosq.f32.pop %v2665
          %v2668 = vsinq.f32.pop %v2665
          %vm2669 = vweird.f32 %v691
          %v2670 = vadd.s32 %v2666, 3
          %v2671 = vand.u32 %v2670, 3
          %vm2672 = vcmp.lt.s32.totalorder %v2671, 2
          %vm2673 = vcmp.eq.s32.totalorder %v2671, 0
          %v2674 = vxor.u32 %v2668, 2147483648
          %v2675 = vsel %vm2673, %v2667, %v2674
          %vm2676 = vcmp.eq.s32.totalorder %v2671, 2
          %v2677 = vxor.u32 %v2667, 2147483648
          %v2678 = vsel %vm2676, %v2677, %v2668
          %v2679 = vsel %vm2672, %v2675, %v2678
          %v2680 = vsel %vm2669, nan, %v2679
          %v2681 = vand.u32 2147483647, %v692
          %vm2682 = vcmp.le.f32.partialorder %v2681, 0.7853982
          %vm2683 = vcmp.lt.s32.totalorder %v692, 0
          %v2684 = vand.u32 %v692, 2139095040
          %v2685 = vshrl.u32 %v2684, 23
          %v2686 = vsub.s32 %v2685, 127
          %v2687 = vand.u32 2147483647, %v692
          %v2688 = vand.u32 %v2687, 8388607
          %v2689 = vor.u32 %v2688, 8388608
          %v2690 = vsub.s32 0, %v2689
          %v2691 = vadd.s32 %v2686, 1
          %vm2692 = vcmp.gt.s32.totalorder %v2691, 0
          %v2693 = vsel %vm2692, %v2691, 0
          %v2694 = vshrl.u32 %v2693, 5
          %v2695 = vand.u32 %v2693, 31
          %v2696 = vsub.s32 32, %v2695
          %v2697 = vshrl.u32 683565275, %v2696
          %v2698 = vshll.u32 683565275, %v2695
          %v2699 = vshrl.u32 2475754826, %v2696
          %v2700 = vor.u32 %v2698, %v2699
          %v2701 = vshll.u32 2475754826, %v2695
          %v2702 = vshrl.u32 2131351028, %v2696
          %v2703 = vor.u32 %v2701, %v2702
          %v2704 = vshll.u32 2131351028, %v2695
          %v2705 = vshrl.u32 2102212464, %v2696
          %v2706 = vor.u32 %v2704, %v2705
          %v2707 = vshll.u32 2102212464, %v2695
          %v2708 = vshrl.u32 920167782, %v2696
          %v2709 = vor.u32 %v2707, %v2708
          %v2710 = vshll.u32 920167782, %v2695
          %v2711 = vshrl.u32 1326507024, %v2696
          %v2712 = vor.u32 %v2710, %v2711
          %vm2713 = vcmp.lt.s32.totalorder %v2694, 1
          %vm2714 = vcmp.lt.s32.totalorder %v2694, 2
          %vm2715 = vcmp.lt.s32.totalorder %v2694, 3
          %vm2716 = vcmp.lt.s32.totalorder %v2694, 4
          %v2717 = vsel %vm2713, %v2697, %v2700
          %v2718 = vsel %vm2716, %v2706, 2102212464
          %v2719 = vsel %vm2715, %v2703, %v2718
          %v2720 = vsel %vm2714, %v2717, %v2719
          %v2721 = vsel %vm2713, %v2700, %v2703
          %v2722 = vsel %vm2716, %v2709, 920167782
          %v2723 = vsel %vm2715, %v2706, %v2722
          %v2724 = vsel %vm2714, %v2721, %v2723
          %v2725 = vsel %vm2713, %v2703, %v2706
          %v2726 = vsel %vm2716, %v2712, 1326507024
          %v2727 = vsel %vm2715, %v2709, %v2726
          %v2728 = vsel %vm2714, %v2725, %v2727
          %v2729 = vshll.u32 %v2689, 8
          %v2730 = vmul.u32.u64.compose %v2729, %v2728
          %v2731 = vextract.low.u32 %v2730
          %v2732 = vextract.high.u32 %v2730
          %v2733 = vmul.u32.u64.compose %v2729, %v2724
          %v2734 = vextract.low.u32 %v2733
          %v2735 = vextract.high.u32 %v2733
          %v2736 = vmul.u32 %v2729, %v2720
          %v2737 = vadd.s32 %v2732, %v2734
          %vm2738 = vc.u32 %v2732, %v2734
          %v2739 = vadd.s32 %v2735, 1
          %v2740 = vsel %vm2738, %v2739, %v2735
          %v2741 = vadd.s32 %v2736, %v2740
          %v2742 = vadd.s32 %v2741, 536870912
          %v2743 = vshrl.u32 %v2742, 30
          %v2744 = vshll.u32 %v2743, 30
          %v2745 = vsub.s32 %v2741, %v2744
          %vm2746 = vcmp.lt.s32.totalorder %v2745, 0
          %v2747 = vsub.s32 0, %v2745
          %v2748 = vsel %vm2746, %v2747, %v2745
          %v2749 = vclz %v2748
          %v2750 = vsub.s32 %v2749, 2
          %vm2751 = vcmp.gt.s32.totalorder 0, %v2750
          %v2752 = vsel %vm2751, 0, %v2750
          %v2753 = vsub.s32 32, %v2752
          %v2754 = vshll.u32 %v2745, %v2752
          %v2755 = vshrl.u32 %v2737, %v2753
          %v2756 = vor.u32 %v2754, %v2755
          %v2757 = vsub.s32 4294967266, %v2752
          %v2758 = vadd.s32 %v2757, 127
          %v2759 = vshll.u32 %v2758, 23
          %v2760 = vor.u32 4788187, %v2759
          %v2761 = vand.u32 2147483647, %v2760
          %v2763 = vcvt.s32.f32 %v2756
          %v2764 = vmul.f32 %v2763, %v2761
          %v2765 = vxor.u32 %v2764, 2147483648
          %v2766 = vsel %vm2683, %v2765, %v2764
          %v2767 = vsub.s32 4, %v2743
          %v2768 = vsel %vm2683, %v2767, %v2743
          %v2769 = vsel %vm2682, %v692, %v2766
          %v2770 = vsel %vm2682, 0, %v2768
          %v2771 = vcosq.f32.pop %v2769
          %v2772 = vsinq.f32.pop %v2769
          %vm2773 = vweird.f32 %v692
          %v2774 = vadd.s32 %v2770, 3
          %v2775 = vand.u32 %v2774, 3
          %vm2776 = vcmp.lt.s32.totalorder %v2775, 2
          %vm2777 = vcmp.eq.s32.totalorder %v2775, 0
          %v2778 = vxor.u32 %v2772, 2147483648
          %v2779 = vsel %vm2777, %v2771, %v2778
          %vm2780 = vcmp.eq.s32.totalorder %v2775, 2
          %v2781 = vxor.u32 %v2771, 2147483648
          %v2782 = vsel %vm2780, %v2781, %v2772
          %v2783 = vsel %vm2776, %v2779, %v2782
          %v2784 = vsel %vm2773, nan, %v2783
          %v2785 = vand.u32 2147483647, %v693
          %vm2786 = vcmp.le.f32.partialorder %v2785, 0.7853982
          %vm2787 = vcmp.lt.s32.totalorder %v693, 0
          %v2788 = vand.u32 %v693, 2139095040
          %v2789 = vshrl.u32 %v2788, 23
          %v2790 = vsub.s32 %v2789, 127
          %v2791 = vand.u32 2147483647, %v693
          %v2792 = vand.u32 %v2791, 8388607
          %v2793 = vor.u32 %v2792, 8388608
          %v2794 = vsub.s32 0, %v2793
          %v2795 = vadd.s32 %v2790, 1
          %vm2796 = vcmp.gt.s32.totalorder %v2795, 0
          %v2797 = vsel %vm2796, %v2795, 0
          %v2798 = vshrl.u32 %v2797, 5
          %v2799 = vand.u32 %v2797, 31
          %v2800 = vsub.s32 32, %v2799
          %v2801 = vshrl.u32 683565275, %v2800
          %v2802 = vshll.u32 683565275, %v2799
          %v2803 = vshrl.u32 2475754826, %v2800
          %v2804 = vor.u32 %v2802, %v2803
          %v2805 = vshll.u32 2475754826, %v2799
          %v2806 = vshrl.u32 2131351028, %v2800
          %v2807 = vor.u32 %v2805, %v2806
          %v2808 = vshll.u32 2131351028, %v2799
          %v2809 = vshrl.u32 2102212464, %v2800
          %v2810 = vor.u32 %v2808, %v2809
          %v2811 = vshll.u32 2102212464, %v2799
          %v2812 = vshrl.u32 920167782, %v2800
          %v2813 = vor.u32 %v2811, %v2812
          %v2814 = vshll.u32 920167782, %v2799
          %v2815 = vshrl.u32 1326507024, %v2800
          %v2816 = vor.u32 %v2814, %v2815
          %vm2817 = vcmp.lt.s32.totalorder %v2798, 1
          %vm2818 = vcmp.lt.s32.totalorder %v2798, 2
          %vm2819 = vcmp.lt.s32.totalorder %v2798, 3
          %vm2820 = vcmp.lt.s32.totalorder %v2798, 4
          %v2821 = vsel %vm2817, %v2801, %v2804
          %v2822 = vsel %vm2820, %v2810, 2102212464
          %v2823 = vsel %vm2819, %v2807, %v2822
          %v2824 = vsel %vm2818, %v2821, %v2823
          %v2825 = vsel %vm2817, %v2804, %v2807
          %v2826 = vsel %vm2820, %v2813, 920167782
          %v2827 = vsel %vm2819, %v2810, %v2826
          %v2828 = vsel %vm2818, %v2825, %v2827
          %v2829 = vsel %vm2817, %v2807, %v2810
          %v2830 = vsel %vm2820, %v2816, 1326507024
          %v2831 = vsel %vm2819, %v2813, %v2830
          %v2832 = vsel %vm2818, %v2829, %v2831
          %v2833 = vshll.u32 %v2793, 8
          %v2834 = vmul.u32.u64.compose %v2833, %v2832
          %v2835 = vextract.low.u32 %v2834
          %v2836 = vextract.high.u32 %v2834
          %v2837 = vmul.u32.u64.compose %v2833, %v2828
          %v2838 = vextract.low.u32 %v2837
          %v2839 = vextract.high.u32 %v2837
          %v2840 = vmul.u32 %v2833, %v2824
          %v2841 = vadd.s32 %v2836, %v2838
          %vm2842 = vc.u32 %v2836, %v2838
          %v2843 = vadd.s32 %v2839, 1
          %v2844 = vsel %vm2842, %v2843, %v2839
          %v2845 = vadd.s32 %v2840, %v2844
          %v2846 = vadd.s32 %v2845, 536870912
          %v2847 = vshrl.u32 %v2846, 30
          %v2848 = vshll.u32 %v2847, 30
          %v2849 = vsub.s32 %v2845, %v2848
          %vm2850 = vcmp.lt.s32.totalorder %v2849, 0
          %v2851 = vsub.s32 0, %v2849
          %v2852 = vsel %vm2850, %v2851, %v2849
          %v2853 = vclz %v2852
          %v2854 = vsub.s32 %v2853, 2
          %vm2855 = vcmp.gt.s32.totalorder 0, %v2854
          %v2856 = vsel %vm2855, 0, %v2854
          %v2857 = vsub.s32 32, %v2856
          %v2858 = vshll.u32 %v2849, %v2856
          %v2859 = vshrl.u32 %v2841, %v2857
          %v2860 = vor.u32 %v2858, %v2859
          %v2861 = vsub.s32 4294967266, %v2856
          %v2862 = vadd.s32 %v2861, 127
          %v2863 = vshll.u32 %v2862, 23
          %v2864 = vor.u32 4788187, %v2863
          %v2865 = vand.u32 2147483647, %v2864
          %v2867 = vcvt.s32.f32 %v2860
          %v2868 = vmul.f32 %v2867, %v2865
          %v2869 = vxor.u32 %v2868, 2147483648
          %v2870 = vsel %vm2787, %v2869, %v2868
          %v2871 = vsub.s32 4, %v2847
          %v2872 = vsel %vm2787, %v2871, %v2847
          %v2873 = vsel %vm2786, %v693, %v2870
          %v2874 = vsel %vm2786, 0, %v2872
          %v2875 = vcosq.f32.pop %v2873
          %v2876 = vsinq.f32.pop %v2873
          %vm2877 = vweird.f32 %v693
          %v2878 = vadd.s32 %v2874, 3
          %v2879 = vand.u32 %v2878, 3
          %vm2880 = vcmp.lt.s32.totalorder %v2879, 2
          %vm2881 = vcmp.eq.s32.totalorder %v2879, 0
          %v2882 = vxor.u32 %v2876, 2147483648
          %v2883 = vsel %vm2881, %v2875, %v2882
          %vm2884 = vcmp.eq.s32.totalorder %v2879, 2
          %v2885 = vxor.u32 %v2875, 2147483648
          %v2886 = vsel %vm2884, %v2885, %v2876
          %v2887 = vsel %vm2880, %v2883, %v2886
          %v2888 = vsel %vm2877, nan, %v2887
          %v2889 = vand.u32 2147483647, %v694
          %vm2890 = vcmp.le.f32.partialorder %v2889, 0.7853982
          %vm2891 = vcmp.lt.s32.totalorder %v694, 0
          %v2892 = vand.u32 %v694, 2139095040
          %v2893 = vshrl.u32 %v2892, 23
          %v2894 = vsub.s32 %v2893, 127
          %v2895 = vand.u32 2147483647, %v694
          %v2896 = vand.u32 %v2895, 8388607
          %v2897 = vor.u32 %v2896, 8388608
          %v2898 = vsub.s32 0, %v2897
          %v2899 = vadd.s32 %v2894, 1
          %vm2900 = vcmp.gt.s32.totalorder %v2899, 0
          %v2901 = vsel %vm2900, %v2899, 0
          %v2902 = vshrl.u32 %v2901, 5
          %v2903 = vand.u32 %v2901, 31
          %v2904 = vsub.s32 32, %v2903
          %v2905 = vshrl.u32 683565275, %v2904
          %v2906 = vshll.u32 683565275, %v2903
          %v2907 = vshrl.u32 2475754826, %v2904
          %v2908 = vor.u32 %v2906, %v2907
          %v2909 = vshll.u32 2475754826, %v2903
          %v2910 = vshrl.u32 2131351028, %v2904
          %v2911 = vor.u32 %v2909, %v2910
          %v2912 = vshll.u32 2131351028, %v2903
          %v2913 = vshrl.u32 2102212464, %v2904
          %v2914 = vor.u32 %v2912, %v2913
          %v2915 = vshll.u32 2102212464, %v2903
          %v2916 = vshrl.u32 920167782, %v2904
          %v2917 = vor.u32 %v2915, %v2916
          %v2918 = vshll.u32 920167782, %v2903
          %v2919 = vshrl.u32 1326507024, %v2904
          %v2920 = vor.u32 %v2918, %v2919
          %vm2921 = vcmp.lt.s32.totalorder %v2902, 1
          %vm2922 = vcmp.lt.s32.totalorder %v2902, 2
          %vm2923 = vcmp.lt.s32.totalorder %v2902, 3
          %vm2924 = vcmp.lt.s32.totalorder %v2902, 4
          %v2925 = vsel %vm2921, %v2905, %v2908
          %v2926 = vsel %vm2924, %v2914, 2102212464
          %v2927 = vsel %vm2923, %v2911, %v2926
          %v2928 = vsel %vm2922, %v2925, %v2927
          %v2929 = vsel %vm2921, %v2908, %v2911
          %v2930 = vsel %vm2924, %v2917, 920167782
          %v2931 = vsel %vm2923, %v2914, %v2930
          %v2932 = vsel %vm2922, %v2929, %v2931
          %v2933 = vsel %vm2921, %v2911, %v2914
          %v2934 = vsel %vm2924, %v2920, 1326507024
          %v2935 = vsel %vm2923, %v2917, %v2934
          %v2936 = vsel %vm2922, %v2933, %v2935
          %v2937 = vshll.u32 %v2897, 8
          %v2938 = vmul.u32.u64.compose %v2937, %v2936
          %v2939 = vextract.low.u32 %v2938
          %v2940 = vextract.high.u32 %v2938
          %v2941 = vmul.u32.u64.compose %v2937, %v2932
          %v2942 = vextract.low.u32 %v2941
          %v2943 = vextract.high.u32 %v2941
          %v2944 = vmul.u32 %v2937, %v2928
          %v2945 = vadd.s32 %v2940, %v2942
          %vm2946 = vc.u32 %v2940, %v2942
          %v2947 = vadd.s32 %v2943, 1
          %v2948 = vsel %vm2946, %v2947, %v2943
          %v2949 = vadd.s32 %v2944, %v2948
          %v2950 = vadd.s32 %v2949, 536870912
          %v2951 = vshrl.u32 %v2950, 30
          %v2952 = vshll.u32 %v2951, 30
          %v2953 = vsub.s32 %v2949, %v2952
          %vm2954 = vcmp.lt.s32.totalorder %v2953, 0
          %v2955 = vsub.s32 0, %v2953
          %v2956 = vsel %vm2954, %v2955, %v2953
          %v2957 = vclz %v2956
          %v2958 = vsub.s32 %v2957, 2
          %vm2959 = vcmp.gt.s32.totalorder 0, %v2958
          %v2960 = vsel %vm2959, 0, %v2958
          %v2961 = vsub.s32 32, %v2960
          %v2962 = vshll.u32 %v2953, %v2960
          %v2963 = vshrl.u32 %v2945, %v2961
          %v2964 = vor.u32 %v2962, %v2963
          %v2965 = vsub.s32 4294967266, %v2960
          %v2966 = vadd.s32 %v2965, 127
          %v2967 = vshll.u32 %v2966, 23
          %v2968 = vor.u32 4788187, %v2967
          %v2969 = vand.u32 2147483647, %v2968
          %v2971 = vcvt.s32.f32 %v2964
          %v2972 = vmul.f32 %v2971, %v2969
          %v2973 = vxor.u32 %v2972, 2147483648
          %v2974 = vsel %vm2891, %v2973, %v2972
          %v2975 = vsub.s32 4, %v2951
          %v2976 = vsel %vm2891, %v2975, %v2951
          %v2977 = vsel %vm2890, %v694, %v2974
          %v2978 = vsel %vm2890, 0, %v2976
          %v2979 = vcosq.f32.pop %v2977
          %v2980 = vsinq.f32.pop %v2977
          %vm2981 = vweird.f32 %v694
          %v2982 = vadd.s32 %v2978, 3
          %v2983 = vand.u32 %v2982, 3
          %vm2984 = vcmp.lt.s32.totalorder %v2983, 2
          %vm2985 = vcmp.eq.s32.totalorder %v2983, 0
          %v2986 = vxor.u32 %v2980, 2147483648
          %v2987 = vsel %vm2985, %v2979, %v2986
          %vm2988 = vcmp.eq.s32.totalorder %v2983, 2
          %v2989 = vxor.u32 %v2979, 2147483648
          %v2990 = vsel %vm2988, %v2989, %v2980
          %v2991 = vsel %vm2984, %v2987, %v2990
          %v2992 = vsel %vm2981, nan, %v2991
          %v2993 = vand.u32 2147483647, %v695
          %vm2994 = vcmp.le.f32.partialorder %v2993, 0.7853982
          %vm2995 = vcmp.lt.s32.totalorder %v695, 0
          %v2996 = vand.u32 %v695, 2139095040
          %v2997 = vshrl.u32 %v2996, 23
          %v2998 = vsub.s32 %v2997, 127
          %v2999 = vand.u32 2147483647, %v695
          %v3000 = vand.u32 %v2999, 8388607
          %v3001 = vor.u32 %v3000, 8388608
          %v3002 = vsub.s32 0, %v3001
          %v3003 = vadd.s32 %v2998, 1
          %vm3004 = vcmp.gt.s32.totalorder %v3003, 0
          %v3005 = vsel %vm3004, %v3003, 0
          %v3006 = vshrl.u32 %v3005, 5
          %v3007 = vand.u32 %v3005, 31
          %v3008 = vsub.s32 32, %v3007
          %v3009 = vshrl.u32 683565275, %v3008
          %v3010 = vshll.u32 683565275, %v3007
          %v3011 = vshrl.u32 2475754826, %v3008
          %v3012 = vor.u32 %v3010, %v3011
          %v3013 = vshll.u32 2475754826, %v3007
          %v3014 = vshrl.u32 2131351028, %v3008
          %v3015 = vor.u32 %v3013, %v3014
          %v3016 = vshll.u32 2131351028, %v3007
          %v3017 = vshrl.u32 2102212464, %v3008
          %v3018 = vor.u32 %v3016, %v3017
          %v3019 = vshll.u32 2102212464, %v3007
          %v3020 = vshrl.u32 920167782, %v3008
          %v3021 = vor.u32 %v3019, %v3020
          %v3022 = vshll.u32 920167782, %v3007
          %v3023 = vshrl.u32 1326507024, %v3008
          %v3024 = vor.u32 %v3022, %v3023
          %vm3025 = vcmp.lt.s32.totalorder %v3006, 1
          %vm3026 = vcmp.lt.s32.totalorder %v3006, 2
          %vm3027 = vcmp.lt.s32.totalorder %v3006, 3
          %vm3028 = vcmp.lt.s32.totalorder %v3006, 4
          %v3029 = vsel %vm3025, %v3009, %v3012
          %v3030 = vsel %vm3028, %v3018, 2102212464
          %v3031 = vsel %vm3027, %v3015, %v3030
          %v3032 = vsel %vm3026, %v3029, %v3031
          %v3033 = vsel %vm3025, %v3012, %v3015
          %v3034 = vsel %vm3028, %v3021, 920167782
          %v3035 = vsel %vm3027, %v3018, %v3034
          %v3036 = vsel %vm3026, %v3033, %v3035
          %v3037 = vsel %vm3025, %v3015, %v3018
          %v3038 = vsel %vm3028, %v3024, 1326507024
          %v3039 = vsel %vm3027, %v3021, %v3038
          %v3040 = vsel %vm3026, %v3037, %v3039
          %v3041 = vshll.u32 %v3001, 8
          %v3042 = vmul.u32.u64.compose %v3041, %v3040
          %v3043 = vextract.low.u32 %v3042
          %v3044 = vextract.high.u32 %v3042
          %v3045 = vmul.u32.u64.compose %v3041, %v3036
          %v3046 = vextract.low.u32 %v3045
          %v3047 = vextract.high.u32 %v3045
          %v3048 = vmul.u32 %v3041, %v3032
          %v3049 = vadd.s32 %v3044, %v3046
          %vm3050 = vc.u32 %v3044, %v3046
          %v3051 = vadd.s32 %v3047, 1
          %v3052 = vsel %vm3050, %v3051, %v3047
          %v3053 = vadd.s32 %v3048, %v3052
          %v3054 = vadd.s32 %v3053, 536870912
          %v3055 = vshrl.u32 %v3054, 30
          %v3056 = vshll.u32 %v3055, 30
          %v3057 = vsub.s32 %v3053, %v3056
          %vm3058 = vcmp.lt.s32.totalorder %v3057, 0
          %v3059 = vsub.s32 0, %v3057
          %v3060 = vsel %vm3058, %v3059, %v3057
          %v3061 = vclz %v3060
          %v3062 = vsub.s32 %v3061, 2
          %vm3063 = vcmp.gt.s32.totalorder 0, %v3062
          %v3064 = vsel %vm3063, 0, %v3062
          %v3065 = vsub.s32 32, %v3064
          %v3066 = vshll.u32 %v3057, %v3064
          %v3067 = vshrl.u32 %v3049, %v3065
          %v3068 = vor.u32 %v3066, %v3067
          %v3069 = vsub.s32 4294967266, %v3064
          %v3070 = vadd.s32 %v3069, 127
          %v3071 = vshll.u32 %v3070, 23
          %v3072 = vor.u32 4788187, %v3071
          %v3073 = vand.u32 2147483647, %v3072
          %v3075 = vcvt.s32.f32 %v3068
          %v3076 = vmul.f32 %v3075, %v3073
          %v3077 = vxor.u32 %v3076, 2147483648
          %v3078 = vsel %vm2995, %v3077, %v3076
          %v3079 = vsub.s32 4, %v3055
          %v3080 = vsel %vm2995, %v3079, %v3055
          %v3081 = vsel %vm2994, %v695, %v3078
          %v3082 = vsel %vm2994, 0, %v3080
          %v3083 = vcosq.f32.pop %v3081
          %v3084 = vsinq.f32.pop %v3081
          %vm3085 = vweird.f32 %v695
          %v3086 = vadd.s32 %v3082, 3
          %v3087 = vand.u32 %v3086, 3
          %vm3088 = vcmp.lt.s32.totalorder %v3087, 2
          %vm3089 = vcmp.eq.s32.totalorder %v3087, 0
          %v3090 = vxor.u32 %v3084, 2147483648
          %v3091 = vsel %vm3089, %v3083, %v3090
          %vm3092 = vcmp.eq.s32.totalorder %v3087, 2
          %v3093 = vxor.u32 %v3083, 2147483648
          %v3094 = vsel %vm3092, %v3093, %v3084
          %v3095 = vsel %vm3088, %v3091, %v3094
          %v3096 = vsel %vm3085, nan, %v3095
          %v3097 = vand.u32 2147483647, %v696
          %vm3098 = vcmp.le.f32.partialorder %v3097, 0.7853982
          %vm3099 = vcmp.lt.s32.totalorder %v696, 0
          %v3100 = vand.u32 %v696, 2139095040
          %v3101 = vshrl.u32 %v3100, 23
          %v3102 = vsub.s32 %v3101, 127
          %v3103 = vand.u32 2147483647, %v696
          %v3104 = vand.u32 %v3103, 8388607
          %v3105 = vor.u32 %v3104, 8388608
          %v3106 = vsub.s32 0, %v3105
          %v3107 = vadd.s32 %v3102, 1
          %vm3108 = vcmp.gt.s32.totalorder %v3107, 0
          %v3109 = vsel %vm3108, %v3107, 0
          %v3110 = vshrl.u32 %v3109, 5
          %v3111 = vand.u32 %v3109, 31
          %v3112 = vsub.s32 32, %v3111
          %v3113 = vshrl.u32 683565275, %v3112
          %v3114 = vshll.u32 683565275, %v3111
          %v3115 = vshrl.u32 2475754826, %v3112
          %v3116 = vor.u32 %v3114, %v3115
          %v3117 = vshll.u32 2475754826, %v3111
          %v3118 = vshrl.u32 2131351028, %v3112
          %v3119 = vor.u32 %v3117, %v3118
          %v3120 = vshll.u32 2131351028, %v3111
          %v3121 = vshrl.u32 2102212464, %v3112
          %v3122 = vor.u32 %v3120, %v3121
          %v3123 = vshll.u32 2102212464, %v3111
          %v3124 = vshrl.u32 920167782, %v3112
          %v3125 = vor.u32 %v3123, %v3124
          %v3126 = vshll.u32 920167782, %v3111
          %v3127 = vshrl.u32 1326507024, %v3112
          %v3128 = vor.u32 %v3126, %v3127
          %vm3129 = vcmp.lt.s32.totalorder %v3110, 1
          %vm3130 = vcmp.lt.s32.totalorder %v3110, 2
          %vm3131 = vcmp.lt.s32.totalorder %v3110, 3
          %vm3132 = vcmp.lt.s32.totalorder %v3110, 4
          %v3133 = vsel %vm3129, %v3113, %v3116
          %v3134 = vsel %vm3132, %v3122, 2102212464
          %v3135 = vsel %vm3131, %v3119, %v3134
          %v3136 = vsel %vm3130, %v3133, %v3135
          %v3137 = vsel %vm3129, %v3116, %v3119
          %v3138 = vsel %vm3132, %v3125, 920167782
          %v3139 = vsel %vm3131, %v3122, %v3138
          %v3140 = vsel %vm3130, %v3137, %v3139
          %v3141 = vsel %vm3129, %v3119, %v3122
          %v3142 = vsel %vm3132, %v3128, 1326507024
          %v3143 = vsel %vm3131, %v3125, %v3142
          %v3144 = vsel %vm3130, %v3141, %v3143
          %v3145 = vshll.u32 %v3105, 8
          %v3146 = vmul.u32.u64.compose %v3145, %v3144
          %v3147 = vextract.low.u32 %v3146
          %v3148 = vextract.high.u32 %v3146
          %v3149 = vmul.u32.u64.compose %v3145, %v3140
          %v3150 = vextract.low.u32 %v3149
          %v3151 = vextract.high.u32 %v3149
          %v3152 = vmul.u32 %v3145, %v3136
          %v3153 = vadd.s32 %v3148, %v3150
          %vm3154 = vc.u32 %v3148, %v3150
          %v3155 = vadd.s32 %v3151, 1
          %v3156 = vsel %vm3154, %v3155, %v3151
          %v3157 = vadd.s32 %v3152, %v3156
          %v3158 = vadd.s32 %v3157, 536870912
          %v3159 = vshrl.u32 %v3158, 30
          %v3160 = vshll.u32 %v3159, 30
          %v3161 = vsub.s32 %v3157, %v3160
          %vm3162 = vcmp.lt.s32.totalorder %v3161, 0
          %v3163 = vsub.s32 0, %v3161
          %v3164 = vsel %vm3162, %v3163, %v3161
          %v3165 = vclz %v3164
          %v3166 = vsub.s32 %v3165, 2
          %vm3167 = vcmp.gt.s32.totalorder 0, %v3166
          %v3168 = vsel %vm3167, 0, %v3166
          %v3169 = vsub.s32 32, %v3168
          %v3170 = vshll.u32 %v3161, %v3168
          %v3171 = vshrl.u32 %v3153, %v3169
          %v3172 = vor.u32 %v3170, %v3171
          %v3173 = vsub.s32 4294967266, %v3168
          %v3174 = vadd.s32 %v3173, 127
          %v3175 = vshll.u32 %v3174, 23
          %v3176 = vor.u32 4788187, %v3175
          %v3177 = vand.u32 2147483647, %v3176
          %v3179 = vcvt.s32.f32 %v3172
          %v3180 = vmul.f32 %v3179, %v3177
          %v3181 = vxor.u32 %v3180, 2147483648
          %v3182 = vsel %vm3099, %v3181, %v3180
          %v3183 = vsub.s32 4, %v3159
          %v3184 = vsel %vm3099, %v3183, %v3159
          %v3185 = vsel %vm3098, %v696, %v3182
          %v3186 = vsel %vm3098, 0, %v3184
          %v3187 = vcosq.f32.pop %v3185
          %v3188 = vsinq.f32.pop %v3185
          %vm3189 = vweird.f32 %v696
          %v3190 = vadd.s32 %v3186, 3
          %v3191 = vand.u32 %v3190, 3
          %vm3192 = vcmp.lt.s32.totalorder %v3191, 2
          %vm3193 = vcmp.eq.s32.totalorder %v3191, 0
          %v3194 = vxor.u32 %v3188, 2147483648
          %v3195 = vsel %vm3193, %v3187, %v3194
          %vm3196 = vcmp.eq.s32.totalorder %v3191, 2
          %v3197 = vxor.u32 %v3187, 2147483648
          %v3198 = vsel %vm3196, %v3197, %v3188
          %v3199 = vsel %vm3192, %v3195, %v3198
          %v3200 = vsel %vm3189, nan, %v3199
          %v3201 = vand.u32 2147483647, %v697
          %vm3202 = vcmp.le.f32.partialorder %v3201, 0.7853982
          %vm3203 = vcmp.lt.s32.totalorder %v697, 0
          %v3204 = vand.u32 %v697, 2139095040
          %v3205 = vshrl.u32 %v3204, 23
          %v3206 = vsub.s32 %v3205, 127
          %v3207 = vand.u32 2147483647, %v697
          %v3208 = vand.u32 %v3207, 8388607
          %v3209 = vor.u32 %v3208, 8388608
          %v3210 = vsub.s32 0, %v3209
          %v3211 = vadd.s32 %v3206, 1
          %vm3212 = vcmp.gt.s32.totalorder %v3211, 0
          %v3213 = vsel %vm3212, %v3211, 0
          %v3214 = vshrl.u32 %v3213, 5
          %v3215 = vand.u32 %v3213, 31
          %v3216 = vsub.s32 32, %v3215
          %v3217 = vshrl.u32 683565275, %v3216
          %v3218 = vshll.u32 683565275, %v3215
          %v3219 = vshrl.u32 2475754826, %v3216
          %v3220 = vor.u32 %v3218, %v3219
          %v3221 = vshll.u32 2475754826, %v3215
          %v3222 = vshrl.u32 2131351028, %v3216
          %v3223 = vor.u32 %v3221, %v3222
          %v3224 = vshll.u32 2131351028, %v3215
          %v3225 = vshrl.u32 2102212464, %v3216
          %v3226 = vor.u32 %v3224, %v3225
          %v3227 = vshll.u32 2102212464, %v3215
          %v3228 = vshrl.u32 920167782, %v3216
          %v3229 = vor.u32 %v3227, %v3228
          %v3230 = vshll.u32 920167782, %v3215
          %v3231 = vshrl.u32 1326507024, %v3216
          %v3232 = vor.u32 %v3230, %v3231
          %vm3233 = vcmp.lt.s32.totalorder %v3214, 1
          %vm3234 = vcmp.lt.s32.totalorder %v3214, 2
          %vm3235 = vcmp.lt.s32.totalorder %v3214, 3
          %vm3236 = vcmp.lt.s32.totalorder %v3214, 4
          %v3237 = vsel %vm3233, %v3217, %v3220
          %v3238 = vsel %vm3236, %v3226, 2102212464
          %v3239 = vsel %vm3235, %v3223, %v3238
          %v3240 = vsel %vm3234, %v3237, %v3239
          %v3241 = vsel %vm3233, %v3220, %v3223
          %v3242 = vsel %vm3236, %v3229, 920167782
          %v3243 = vsel %vm3235, %v3226, %v3242
          %v3244 = vsel %vm3234, %v3241, %v3243
          %v3245 = vsel %vm3233, %v3223, %v3226
          %v3246 = vsel %vm3236, %v3232, 1326507024
          %v3247 = vsel %vm3235, %v3229, %v3246
          %v3248 = vsel %vm3234, %v3245, %v3247
          %v3249 = vshll.u32 %v3209, 8
          %v3250 = vmul.u32.u64.compose %v3249, %v3248
          %v3251 = vextract.low.u32 %v3250
          %v3252 = vextract.high.u32 %v3250
          %v3253 = vmul.u32.u64.compose %v3249, %v3244
          %v3254 = vextract.low.u32 %v3253
          %v3255 = vextract.high.u32 %v3253
          %v3256 = vmul.u32 %v3249, %v3240
          %v3257 = vadd.s32 %v3252, %v3254
          %vm3258 = vc.u32 %v3252, %v3254
          %v3259 = vadd.s32 %v3255, 1
          %v3260 = vsel %vm3258, %v3259, %v3255
          %v3261 = vadd.s32 %v3256, %v3260
          %v3262 = vadd.s32 %v3261, 536870912
          %v3263 = vshrl.u32 %v3262, 30
          %v3264 = vshll.u32 %v3263, 30
          %v3265 = vsub.s32 %v3261, %v3264
          %vm3266 = vcmp.lt.s32.totalorder %v3265, 0
          %v3267 = vsub.s32 0, %v3265
          %v3268 = vsel %vm3266, %v3267, %v3265
          %v3269 = vclz %v3268
          %v3270 = vsub.s32 %v3269, 2
          %vm3271 = vcmp.gt.s32.totalorder 0, %v3270
          %v3272 = vsel %vm3271, 0, %v3270
          %v3273 = vsub.s32 32, %v3272
          %v3274 = vshll.u32 %v3265, %v3272
          %v3275 = vshrl.u32 %v3257, %v3273
          %v3276 = vor.u32 %v3274, %v3275
          %v3277 = vsub.s32 4294967266, %v3272
          %v3278 = vadd.s32 %v3277, 127
          %v3279 = vshll.u32 %v3278, 23
          %v3280 = vor.u32 4788187, %v3279
          %v3281 = vand.u32 2147483647, %v3280
          %v3283 = vcvt.s32.f32 %v3276
          %v3284 = vmul.f32 %v3283, %v3281
          %v3285 = vxor.u32 %v3284, 2147483648
          %v3286 = vsel %vm3203, %v3285, %v3284
          %v3287 = vsub.s32 4, %v3263
          %v3288 = vsel %vm3203, %v3287, %v3263
          %v3289 = vsel %vm3202, %v697, %v3286
          %v3290 = vsel %vm3202, 0, %v3288
          %v3291 = vcosq.f32.pop %v3289
          %v3292 = vsinq.f32.pop %v3289
          %vm3293 = vweird.f32 %v697
          %v3294 = vadd.s32 %v3290, 3
          %v3295 = vand.u32 %v3294, 3
          %vm3296 = vcmp.lt.s32.totalorder %v3295, 2
          %vm3297 = vcmp.eq.s32.totalorder %v3295, 0
          %v3298 = vxor.u32 %v3292, 2147483648
          %v3299 = vsel %vm3297, %v3291, %v3298
          %vm3300 = vcmp.eq.s32.totalorder %v3295, 2
          %v3301 = vxor.u32 %v3291, 2147483648
          %v3302 = vsel %vm3300, %v3301, %v3292
          %v3303 = vsel %vm3296, %v3299, %v3302
          %v3304 = vsel %vm3293, nan, %v3303
          %v3305 = vand.u32 2147483647, %v698
          %vm3306 = vcmp.le.f32.partialorder %v3305, 0.7853982
          %vm3307 = vcmp.lt.s32.totalorder %v698, 0
          %v3308 = vand.u32 %v698, 2139095040
          %v3309 = vshrl.u32 %v3308, 23
          %v3310 = vsub.s32 %v3309, 127
          %v3311 = vand.u32 2147483647, %v698
          %v3312 = vand.u32 %v3311, 8388607
          %v3313 = vor.u32 %v3312, 8388608
          %v3314 = vsub.s32 0, %v3313
          %v3315 = vadd.s32 %v3310, 1
          %vm3316 = vcmp.gt.s32.totalorder %v3315, 0
          %v3317 = vsel %vm3316, %v3315, 0
          %v3318 = vshrl.u32 %v3317, 5
          %v3319 = vand.u32 %v3317, 31
          %v3320 = vsub.s32 32, %v3319
          %v3321 = vshrl.u32 683565275, %v3320
          %v3322 = vshll.u32 683565275, %v3319
          %v3323 = vshrl.u32 2475754826, %v3320
          %v3324 = vor.u32 %v3322, %v3323
          %v3325 = vshll.u32 2475754826, %v3319
          %v3326 = vshrl.u32 2131351028, %v3320
          %v3327 = vor.u32 %v3325, %v3326
          %v3328 = vshll.u32 2131351028, %v3319
          %v3329 = vshrl.u32 2102212464, %v3320
          %v3330 = vor.u32 %v3328, %v3329
          %v3331 = vshll.u32 2102212464, %v3319
          %v3332 = vshrl.u32 920167782, %v3320
          %v3333 = vor.u32 %v3331, %v3332
          %v3334 = vshll.u32 920167782, %v3319
          %v3335 = vshrl.u32 1326507024, %v3320
          %v3336 = vor.u32 %v3334, %v3335
          %vm3337 = vcmp.lt.s32.totalorder %v3318, 1
          %vm3338 = vcmp.lt.s32.totalorder %v3318, 2
          %vm3339 = vcmp.lt.s32.totalorder %v3318, 3
          %vm3340 = vcmp.lt.s32.totalorder %v3318, 4
          %v3341 = vsel %vm3337, %v3321, %v3324
          %v3342 = vsel %vm3340, %v3330, 2102212464
          %v3343 = vsel %vm3339, %v3327, %v3342
          %v3344 = vsel %vm3338, %v3341, %v3343
          %v3345 = vsel %vm3337, %v3324, %v3327
          %v3346 = vsel %vm3340, %v3333, 920167782
          %v3347 = vsel %vm3339, %v3330, %v3346
          %v3348 = vsel %vm3338, %v3345, %v3347
          %v3349 = vsel %vm3337, %v3327, %v3330
          %v3350 = vsel %vm3340, %v3336, 1326507024
          %v3351 = vsel %vm3339, %v3333, %v3350
          %v3352 = vsel %vm3338, %v3349, %v3351
          %v3353 = vshll.u32 %v3313, 8
          %v3354 = vmul.u32.u64.compose %v3353, %v3352
          %v3355 = vextract.low.u32 %v3354
          %v3356 = vextract.high.u32 %v3354
          %v3357 = vmul.u32.u64.compose %v3353, %v3348
          %v3358 = vextract.low.u32 %v3357
          %v3359 = vextract.high.u32 %v3357
          %v3360 = vmul.u32 %v3353, %v3344
          %v3361 = vadd.s32 %v3356, %v3358
          %vm3362 = vc.u32 %v3356, %v3358
          %v3363 = vadd.s32 %v3359, 1
          %v3364 = vsel %vm3362, %v3363, %v3359
          %v3365 = vadd.s32 %v3360, %v3364
          %v3366 = vadd.s32 %v3365, 536870912
          %v3367 = vshrl.u32 %v3366, 30
          %v3368 = vshll.u32 %v3367, 30
          %v3369 = vsub.s32 %v3365, %v3368
          %vm3370 = vcmp.lt.s32.totalorder %v3369, 0
          %v3371 = vsub.s32 0, %v3369
          %v3372 = vsel %vm3370, %v3371, %v3369
          %v3373 = vclz %v3372
          %v3374 = vsub.s32 %v3373, 2
          %vm3375 = vcmp.gt.s32.totalorder 0, %v3374
          %v3376 = vsel %vm3375, 0, %v3374
          %v3377 = vsub.s32 32, %v3376
          %v3378 = vshll.u32 %v3369, %v3376
          %v3379 = vshrl.u32 %v3361, %v3377
          %v3380 = vor.u32 %v3378, %v3379
          %v3381 = vsub.s32 4294967266, %v3376
          %v3382 = vadd.s32 %v3381, 127
          %v3383 = vshll.u32 %v3382, 23
          %v3384 = vor.u32 4788187, %v3383
          %v3385 = vand.u32 2147483647, %v3384
          %v3387 = vcvt.s32.f32 %v3380
          %v3388 = vmul.f32 %v3387, %v3385
          %v3389 = vxor.u32 %v3388, 2147483648
          %v3390 = vsel %vm3307, %v3389, %v3388
          %v3391 = vsub.s32 4, %v3367
          %v3392 = vsel %vm3307, %v3391, %v3367
          %v3393 = vsel %vm3306, %v698, %v3390
          %v3394 = vsel %vm3306, 0, %v3392
          %v3395 = vcosq.f32.pop %v3393
          %v3396 = vsinq.f32.pop %v3393
          %vm3397 = vweird.f32 %v698
          %v3398 = vadd.s32 %v3394, 3
          %v3399 = vand.u32 %v3398, 3
          %vm3400 = vcmp.lt.s32.totalorder %v3399, 2
          %vm3401 = vcmp.eq.s32.totalorder %v3399, 0
          %v3402 = vxor.u32 %v3396, 2147483648
          %v3403 = vsel %vm3401, %v3395, %v3402
          %vm3404 = vcmp.eq.s32.totalorder %v3399, 2
          %v3405 = vxor.u32 %v3395, 2147483648
          %v3406 = vsel %vm3404, %v3405, %v3396
          %v3407 = vsel %vm3400, %v3403, %v3406
          %v3408 = vsel %vm3397, nan, %v3407
          %v3409 = vand.u32 2147483647, %v699
          %vm3410 = vcmp.le.f32.partialorder %v3409, 0.7853982
          %vm3411 = vcmp.lt.s32.totalorder %v699, 0
          %v3412 = vand.u32 %v699, 2139095040
          %v3413 = vshrl.u32 %v3412, 23
          %v3414 = vsub.s32 %v3413, 127
          %v3415 = vand.u32 2147483647, %v699
          %v3416 = vand.u32 %v3415, 8388607
          %v3417 = vor.u32 %v3416, 8388608
          %v3418 = vsub.s32 0, %v3417
          %v3419 = vadd.s32 %v3414, 1
          %vm3420 = vcmp.gt.s32.totalorder %v3419, 0
          %v3421 = vsel %vm3420, %v3419, 0
          %v3422 = vshrl.u32 %v3421, 5
          %v3423 = vand.u32 %v3421, 31
          %v3424 = vsub.s32 32, %v3423
          %v3425 = vshrl.u32 683565275, %v3424
          %v3426 = vshll.u32 683565275, %v3423
          %v3427 = vshrl.u32 2475754826, %v3424
          %v3428 = vor.u32 %v3426, %v3427
          %v3429 = vshll.u32 2475754826, %v3423
          %v3430 = vshrl.u32 2131351028, %v3424
          %v3431 = vor.u32 %v3429, %v3430
          %v3432 = vshll.u32 2131351028, %v3423
          %v3433 = vshrl.u32 2102212464, %v3424
          %v3434 = vor.u32 %v3432, %v3433
          %v3435 = vshll.u32 2102212464, %v3423
          %v3436 = vshrl.u32 920167782, %v3424
          %v3437 = vor.u32 %v3435, %v3436
          %v3438 = vshll.u32 920167782, %v3423
          %v3439 = vshrl.u32 1326507024, %v3424
          %v3440 = vor.u32 %v3438, %v3439
          %vm3441 = vcmp.lt.s32.totalorder %v3422, 1
          %vm3442 = vcmp.lt.s32.totalorder %v3422, 2
          %vm3443 = vcmp.lt.s32.totalorder %v3422, 3
          %vm3444 = vcmp.lt.s32.totalorder %v3422, 4
          %v3445 = vsel %vm3441, %v3425, %v3428
          %v3446 = vsel %vm3444, %v3434, 2102212464
          %v3447 = vsel %vm3443, %v3431, %v3446
          %v3448 = vsel %vm3442, %v3445, %v3447
          %v3449 = vsel %vm3441, %v3428, %v3431
          %v3450 = vsel %vm3444, %v3437, 920167782
          %v3451 = vsel %vm3443, %v3434, %v3450
          %v3452 = vsel %vm3442, %v3449, %v3451
          %v3453 = vsel %vm3441, %v3431, %v3434
          %v3454 = vsel %vm3444, %v3440, 1326507024
          %v3455 = vsel %vm3443, %v3437, %v3454
          %v3456 = vsel %vm3442, %v3453, %v3455
          %v3457 = vshll.u32 %v3417, 8
          %v3458 = vmul.u32.u64.compose %v3457, %v3456
          %v3459 = vextract.low.u32 %v3458
          %v3460 = vextract.high.u32 %v3458
          %v3461 = vmul.u32.u64.compose %v3457, %v3452
          %v3462 = vextract.low.u32 %v3461
          %v3463 = vextract.high.u32 %v3461
          %v3464 = vmul.u32 %v3457, %v3448
          %v3465 = vadd.s32 %v3460, %v3462
          %vm3466 = vc.u32 %v3460, %v3462
          %v3467 = vadd.s32 %v3463, 1
          %v3468 = vsel %vm3466, %v3467, %v3463
          %v3469 = vadd.s32 %v3464, %v3468
          %v3470 = vadd.s32 %v3469, 536870912
          %v3471 = vshrl.u32 %v3470, 30
          %v3472 = vshll.u32 %v3471, 30
          %v3473 = vsub.s32 %v3469, %v3472
          %vm3474 = vcmp.lt.s32.totalorder %v3473, 0
          %v3475 = vsub.s32 0, %v3473
          %v3476 = vsel %vm3474, %v3475, %v3473
          %v3477 = vclz %v3476
          %v3478 = vsub.s32 %v3477, 2
          %vm3479 = vcmp.gt.s32.totalorder 0, %v3478
          %v3480 = vsel %vm3479, 0, %v3478
          %v3481 = vsub.s32 32, %v3480
          %v3482 = vshll.u32 %v3473, %v3480
          %v3483 = vshrl.u32 %v3465, %v3481
          %v3484 = vor.u32 %v3482, %v3483
          %v3485 = vsub.s32 4294967266, %v3480
          %v3486 = vadd.s32 %v3485, 127
          %v3487 = vshll.u32 %v3486, 23
          %v3488 = vor.u32 4788187, %v3487
          %v3489 = vand.u32 2147483647, %v3488
          %v3491 = vcvt.s32.f32 %v3484
          %v3492 = vmul.f32 %v3491, %v3489
          %v3493 = vxor.u32 %v3492, 2147483648
          %v3494 = vsel %vm3411, %v3493, %v3492
          %v3495 = vsub.s32 4, %v3471
          %v3496 = vsel %vm3411, %v3495, %v3471
          %v3497 = vsel %vm3410, %v699, %v3494
          %v3498 = vsel %vm3410, 0, %v3496
          %v3499 = vcosq.f32.pop %v3497
          %v3500 = vsinq.f32.pop %v3497
          %vm3501 = vweird.f32 %v699
          %v3502 = vadd.s32 %v3498, 3
          %v3503 = vand.u32 %v3502, 3
          %vm3504 = vcmp.lt.s32.totalorder %v3503, 2
          %vm3505 = vcmp.eq.s32.totalorder %v3503, 0
          %v3506 = vxor.u32 %v3500, 2147483648
          %v3507 = vsel %vm3505, %v3499, %v3506
          %vm3508 = vcmp.eq.s32.totalorder %v3503, 2
          %v3509 = vxor.u32 %v3499, 2147483648
          %v3510 = vsel %vm3508, %v3509, %v3500
          %v3511 = vsel %vm3504, %v3507, %v3510
          %v3512 = vsel %vm3501, nan, %v3511
          %v3513 = vand.u32 2147483647, %v700
          %vm3514 = vcmp.le.f32.partialorder %v3513, 0.7853982
          %vm3515 = vcmp.lt.s32.totalorder %v700, 0
          %v3516 = vand.u32 %v700, 2139095040
          %v3517 = vshrl.u32 %v3516, 23
          %v3518 = vsub.s32 %v3517, 127
          %v3519 = vand.u32 2147483647, %v700
          %v3520 = vand.u32 %v3519, 8388607
          %v3521 = vor.u32 %v3520, 8388608
          %v3522 = vsub.s32 0, %v3521
          %v3523 = vadd.s32 %v3518, 1
          %vm3524 = vcmp.gt.s32.totalorder %v3523, 0
          %v3525 = vsel %vm3524, %v3523, 0
          %v3526 = vshrl.u32 %v3525, 5
          %v3527 = vand.u32 %v3525, 31
          %v3528 = vsub.s32 32, %v3527
          %v3529 = vshrl.u32 683565275, %v3528
          %v3530 = vshll.u32 683565275, %v3527
          %v3531 = vshrl.u32 2475754826, %v3528
          %v3532 = vor.u32 %v3530, %v3531
          %v3533 = vshll.u32 2475754826, %v3527
          %v3534 = vshrl.u32 2131351028, %v3528
          %v3535 = vor.u32 %v3533, %v3534
          %v3536 = vshll.u32 2131351028, %v3527
          %v3537 = vshrl.u32 2102212464, %v3528
          %v3538 = vor.u32 %v3536, %v3537
          %v3539 = vshll.u32 2102212464, %v3527
          %v3540 = vshrl.u32 920167782, %v3528
          %v3541 = vor.u32 %v3539, %v3540
          %v3542 = vshll.u32 920167782, %v3527
          %v3543 = vshrl.u32 1326507024, %v3528
          %v3544 = vor.u32 %v3542, %v3543
          %vm3545 = vcmp.lt.s32.totalorder %v3526, 1
          %vm3546 = vcmp.lt.s32.totalorder %v3526, 2
          %vm3547 = vcmp.lt.s32.totalorder %v3526, 3
          %vm3548 = vcmp.lt.s32.totalorder %v3526, 4
          %v3549 = vsel %vm3545, %v3529, %v3532
          %v3550 = vsel %vm3548, %v3538, 2102212464
          %v3551 = vsel %vm3547, %v3535, %v3550
          %v3552 = vsel %vm3546, %v3549, %v3551
          %v3553 = vsel %vm3545, %v3532, %v3535
          %v3554 = vsel %vm3548, %v3541, 920167782
          %v3555 = vsel %vm3547, %v3538, %v3554
          %v3556 = vsel %vm3546, %v3553, %v3555
          %v3557 = vsel %vm3545, %v3535, %v3538
          %v3558 = vsel %vm3548, %v3544, 1326507024
          %v3559 = vsel %vm3547, %v3541, %v3558
          %v3560 = vsel %vm3546, %v3557, %v3559
          %v3561 = vshll.u32 %v3521, 8
          %v3562 = vmul.u32.u64.compose %v3561, %v3560
          %v3563 = vextract.low.u32 %v3562
          %v3564 = vextract.high.u32 %v3562
          %v3565 = vmul.u32.u64.compose %v3561, %v3556
          %v3566 = vextract.low.u32 %v3565
          %v3567 = vextract.high.u32 %v3565
          %v3568 = vmul.u32 %v3561, %v3552
          %v3569 = vadd.s32 %v3564, %v3566
          %vm3570 = vc.u32 %v3564, %v3566
          %v3571 = vadd.s32 %v3567, 1
          %v3572 = vsel %vm3570, %v3571, %v3567
          %v3573 = vadd.s32 %v3568, %v3572
          %v3574 = vadd.s32 %v3573, 536870912
          %v3575 = vshrl.u32 %v3574, 30
          %v3576 = vshll.u32 %v3575, 30
          %v3577 = vsub.s32 %v3573, %v3576
          %vm3578 = vcmp.lt.s32.totalorder %v3577, 0
          %v3579 = vsub.s32 0, %v3577
          %v3580 = vsel %vm3578, %v3579, %v3577
          %v3581 = vclz %v3580
          %v3582 = vsub.s32 %v3581, 2
          %vm3583 = vcmp.gt.s32.totalorder 0, %v3582
          %v3584 = vsel %vm3583, 0, %v3582
          %v3585 = vsub.s32 32, %v3584
          %v3586 = vshll.u32 %v3577, %v3584
          %v3587 = vshrl.u32 %v3569, %v3585
          %v3588 = vor.u32 %v3586, %v3587
          %v3589 = vsub.s32 4294967266, %v3584
          %v3590 = vadd.s32 %v3589, 127
          %v3591 = vshll.u32 %v3590, 23
          %v3592 = vor.u32 4788187, %v3591
          %v3593 = vand.u32 2147483647, %v3592
          %v3595 = vcvt.s32.f32 %v3588
          %v3596 = vmul.f32 %v3595, %v3593
          %v3597 = vxor.u32 %v3596, 2147483648
          %v3598 = vsel %vm3515, %v3597, %v3596
          %v3599 = vsub.s32 4, %v3575
          %v3600 = vsel %vm3515, %v3599, %v3575
          %v3601 = vsel %vm3514, %v700, %v3598
          %v3602 = vsel %vm3514, 0, %v3600
          %v3603 = vcosq.f32.pop %v3601
          %v3604 = vsinq.f32.pop %v3601
          %vm3605 = vweird.f32 %v700
          %v3606 = vadd.s32 %v3602, 3
          %v3607 = vand.u32 %v3606, 3
          %vm3608 = vcmp.lt.s32.totalorder %v3607, 2
          %vm3609 = vcmp.eq.s32.totalorder %v3607, 0
          %v3610 = vxor.u32 %v3604, 2147483648
          %v3611 = vsel %vm3609, %v3603, %v3610
          %vm3612 = vcmp.eq.s32.totalorder %v3607, 2
          %v3613 = vxor.u32 %v3603, 2147483648
          %v3614 = vsel %vm3612, %v3613, %v3604
          %v3615 = vsel %vm3608, %v3611, %v3614
          %v3616 = vsel %vm3605, nan, %v3615
          %v3617 = vand.u32 2147483647, %v701
          %vm3618 = vcmp.le.f32.partialorder %v3617, 0.7853982
          %vm3619 = vcmp.lt.s32.totalorder %v701, 0
          %v3620 = vand.u32 %v701, 2139095040
          %v3621 = vshrl.u32 %v3620, 23
          %v3622 = vsub.s32 %v3621, 127
          %v3623 = vand.u32 2147483647, %v701
          %v3624 = vand.u32 %v3623, 8388607
          %v3625 = vor.u32 %v3624, 8388608
          %v3626 = vsub.s32 0, %v3625
          %v3627 = vadd.s32 %v3622, 1
          %vm3628 = vcmp.gt.s32.totalorder %v3627, 0
          %v3629 = vsel %vm3628, %v3627, 0
          %v3630 = vshrl.u32 %v3629, 5
          %v3631 = vand.u32 %v3629, 31
          %v3632 = vsub.s32 32, %v3631
          %v3633 = vshrl.u32 683565275, %v3632
          %v3634 = vshll.u32 683565275, %v3631
          %v3635 = vshrl.u32 2475754826, %v3632
          %v3636 = vor.u32 %v3634, %v3635
          %v3637 = vshll.u32 2475754826, %v3631
          %v3638 = vshrl.u32 2131351028, %v3632
          %v3639 = vor.u32 %v3637, %v3638
          %v3640 = vshll.u32 2131351028, %v3631
          %v3641 = vshrl.u32 2102212464, %v3632
          %v3642 = vor.u32 %v3640, %v3641
          %v3643 = vshll.u32 2102212464, %v3631
          %v3644 = vshrl.u32 920167782, %v3632
          %v3645 = vor.u32 %v3643, %v3644
          %v3646 = vshll.u32 920167782, %v3631
          %v3647 = vshrl.u32 1326507024, %v3632
          %v3648 = vor.u32 %v3646, %v3647
          %vm3649 = vcmp.lt.s32.totalorder %v3630, 1
          %vm3650 = vcmp.lt.s32.totalorder %v3630, 2
          %vm3651 = vcmp.lt.s32.totalorder %v3630, 3
          %vm3652 = vcmp.lt.s32.totalorder %v3630, 4
          %v3653 = vsel %vm3649, %v3633, %v3636
          %v3654 = vsel %vm3652, %v3642, 2102212464
          %v3655 = vsel %vm3651, %v3639, %v3654
          %v3656 = vsel %vm3650, %v3653, %v3655
          %v3657 = vsel %vm3649, %v3636, %v3639
          %v3658 = vsel %vm3652, %v3645, 920167782
          %v3659 = vsel %vm3651, %v3642, %v3658
          %v3660 = vsel %vm3650, %v3657, %v3659
          %v3661 = vsel %vm3649, %v3639, %v3642
          %v3662 = vsel %vm3652, %v3648, 1326507024
          %v3663 = vsel %vm3651, %v3645, %v3662
          %v3664 = vsel %vm3650, %v3661, %v3663
          %v3665 = vshll.u32 %v3625, 8
          %v3666 = vmul.u32.u64.compose %v3665, %v3664
          %v3667 = vextract.low.u32 %v3666
          %v3668 = vextract.high.u32 %v3666
          %v3669 = vmul.u32.u64.compose %v3665, %v3660
          %v3670 = vextract.low.u32 %v3669
          %v3671 = vextract.high.u32 %v3669
          %v3672 = vmul.u32 %v3665, %v3656
          %v3673 = vadd.s32 %v3668, %v3670
          %vm3674 = vc.u32 %v3668, %v3670
          %v3675 = vadd.s32 %v3671, 1
          %v3676 = vsel %vm3674, %v3675, %v3671
          %v3677 = vadd.s32 %v3672, %v3676
          %v3678 = vadd.s32 %v3677, 536870912
          %v3679 = vshrl.u32 %v3678, 30
          %v3680 = vshll.u32 %v3679, 30
          %v3681 = vsub.s32 %v3677, %v3680
          %vm3682 = vcmp.lt.s32.totalorder %v3681, 0
          %v3683 = vsub.s32 0, %v3681
          %v3684 = vsel %vm3682, %v3683, %v3681
          %v3685 = vclz %v3684
          %v3686 = vsub.s32 %v3685, 2
          %vm3687 = vcmp.gt.s32.totalorder 0, %v3686
          %v3688 = vsel %vm3687, 0, %v3686
          %v3689 = vsub.s32 32, %v3688
          %v3690 = vshll.u32 %v3681, %v3688
          %v3691 = vshrl.u32 %v3673, %v3689
          %v3692 = vor.u32 %v3690, %v3691
          %v3693 = vsub.s32 4294967266, %v3688
          %v3694 = vadd.s32 %v3693, 127
          %v3695 = vshll.u32 %v3694, 23
          %v3696 = vor.u32 4788187, %v3695
          %v3697 = vand.u32 2147483647, %v3696
          %v3699 = vcvt.s32.f32 %v3692
          %v3700 = vmul.f32 %v3699, %v3697
          %v3701 = vxor.u32 %v3700, 2147483648
          %v3702 = vsel %vm3619, %v3701, %v3700
          %v3703 = vsub.s32 4, %v3679
          %v3704 = vsel %vm3619, %v3703, %v3679
          %v3705 = vsel %vm3618, %v701, %v3702
          %v3706 = vsel %vm3618, 0, %v3704
          %v3707 = vcosq.f32.pop %v3705
          %v3708 = vsinq.f32.pop %v3705
          %vm3709 = vweird.f32 %v701
          %v3710 = vadd.s32 %v3706, 3
          %v3711 = vand.u32 %v3710, 3
          %vm3712 = vcmp.lt.s32.totalorder %v3711, 2
          %vm3713 = vcmp.eq.s32.totalorder %v3711, 0
          %v3714 = vxor.u32 %v3708, 2147483648
          %v3715 = vsel %vm3713, %v3707, %v3714
          %vm3716 = vcmp.eq.s32.totalorder %v3711, 2
          %v3717 = vxor.u32 %v3707, 2147483648
          %v3718 = vsel %vm3716, %v3717, %v3708
          %v3719 = vsel %vm3712, %v3715, %v3718
          %v3720 = vsel %vm3709, nan, %v3719
          %v3721 = vand.u32 2147483647, %v702
          %vm3722 = vcmp.le.f32.partialorder %v3721, 0.7853982
          %vm3723 = vcmp.lt.s32.totalorder %v702, 0
          %v3724 = vand.u32 %v702, 2139095040
          %v3725 = vshrl.u32 %v3724, 23
          %v3726 = vsub.s32 %v3725, 127
          %v3727 = vand.u32 2147483647, %v702
          %v3728 = vand.u32 %v3727, 8388607
          %v3729 = vor.u32 %v3728, 8388608
          %v3730 = vsub.s32 0, %v3729
          %v3731 = vadd.s32 %v3726, 1
          %vm3732 = vcmp.gt.s32.totalorder %v3731, 0
          %v3733 = vsel %vm3732, %v3731, 0
          %v3734 = vshrl.u32 %v3733, 5
          %v3735 = vand.u32 %v3733, 31
          %v3736 = vsub.s32 32, %v3735
          %v3737 = vshrl.u32 683565275, %v3736
          %v3738 = vshll.u32 683565275, %v3735
          %v3739 = vshrl.u32 2475754826, %v3736
          %v3740 = vor.u32 %v3738, %v3739
          %v3741 = vshll.u32 2475754826, %v3735
          %v3742 = vshrl.u32 2131351028, %v3736
          %v3743 = vor.u32 %v3741, %v3742
          %v3744 = vshll.u32 2131351028, %v3735
          %v3745 = vshrl.u32 2102212464, %v3736
          %v3746 = vor.u32 %v3744, %v3745
          %v3747 = vshll.u32 2102212464, %v3735
          %v3748 = vshrl.u32 920167782, %v3736
          %v3749 = vor.u32 %v3747, %v3748
          %v3750 = vshll.u32 920167782, %v3735
          %v3751 = vshrl.u32 1326507024, %v3736
          %v3752 = vor.u32 %v3750, %v3751
          %vm3753 = vcmp.lt.s32.totalorder %v3734, 1
          %vm3754 = vcmp.lt.s32.totalorder %v3734, 2
          %vm3755 = vcmp.lt.s32.totalorder %v3734, 3
          %vm3756 = vcmp.lt.s32.totalorder %v3734, 4
          %v3757 = vsel %vm3753, %v3737, %v3740
          %v3758 = vsel %vm3756, %v3746, 2102212464
          %v3759 = vsel %vm3755, %v3743, %v3758
          %v3760 = vsel %vm3754, %v3757, %v3759
          %v3761 = vsel %vm3753, %v3740, %v3743
          %v3762 = vsel %vm3756, %v3749, 920167782
          %v3763 = vsel %vm3755, %v3746, %v3762
          %v3764 = vsel %vm3754, %v3761, %v3763
          %v3765 = vsel %vm3753, %v3743, %v3746
          %v3766 = vsel %vm3756, %v3752, 1326507024
          %v3767 = vsel %vm3755, %v3749, %v3766
          %v3768 = vsel %vm3754, %v3765, %v3767
          %v3769 = vshll.u32 %v3729, 8
          %v3770 = vmul.u32.u64.compose %v3769, %v3768
          %v3771 = vextract.low.u32 %v3770
          %v3772 = vextract.high.u32 %v3770
          %v3773 = vmul.u32.u64.compose %v3769, %v3764
          %v3774 = vextract.low.u32 %v3773
          %v3775 = vextract.high.u32 %v3773
          %v3776 = vmul.u32 %v3769, %v3760
          %v3777 = vadd.s32 %v3772, %v3774
          %vm3778 = vc.u32 %v3772, %v3774
          %v3779 = vadd.s32 %v3775, 1
          %v3780 = vsel %vm3778, %v3779, %v3775
          %v3781 = vadd.s32 %v3776, %v3780
          %v3782 = vadd.s32 %v3781, 536870912
          %v3783 = vshrl.u32 %v3782, 30
          %v3784 = vshll.u32 %v3783, 30
          %v3785 = vsub.s32 %v3781, %v3784
          %vm3786 = vcmp.lt.s32.totalorder %v3785, 0
          %v3787 = vsub.s32 0, %v3785
          %v3788 = vsel %vm3786, %v3787, %v3785
          %v3789 = vclz %v3788
          %v3790 = vsub.s32 %v3789, 2
          %vm3791 = vcmp.gt.s32.totalorder 0, %v3790
          %v3792 = vsel %vm3791, 0, %v3790
          %v3793 = vsub.s32 32, %v3792
          %v3794 = vshll.u32 %v3785, %v3792
          %v3795 = vshrl.u32 %v3777, %v3793
          %v3796 = vor.u32 %v3794, %v3795
          %v3797 = vsub.s32 4294967266, %v3792
          %v3798 = vadd.s32 %v3797, 127
          %v3799 = vshll.u32 %v3798, 23
          %v3800 = vor.u32 4788187, %v3799
          %v3801 = vand.u32 2147483647, %v3800
          %v3803 = vcvt.s32.f32 %v3796
          %v3804 = vmul.f32 %v3803, %v3801
          %v3805 = vxor.u32 %v3804, 2147483648
          %v3806 = vsel %vm3723, %v3805, %v3804
          %v3807 = vsub.s32 4, %v3783
          %v3808 = vsel %vm3723, %v3807, %v3783
          %v3809 = vsel %vm3722, %v702, %v3806
          %v3810 = vsel %vm3722, 0, %v3808
          %v3811 = vcosq.f32.pop %v3809
          %v3812 = vsinq.f32.pop %v3809
          %vm3813 = vweird.f32 %v702
          %v3814 = vadd.s32 %v3810, 3
          %v3815 = vand.u32 %v3814, 3
          %vm3816 = vcmp.lt.s32.totalorder %v3815, 2
          %vm3817 = vcmp.eq.s32.totalorder %v3815, 0
          %v3818 = vxor.u32 %v3812, 2147483648
          %v3819 = vsel %vm3817, %v3811, %v3818
          %vm3820 = vcmp.eq.s32.totalorder %v3815, 2
          %v3821 = vxor.u32 %v3811, 2147483648
          %v3822 = vsel %vm3820, %v3821, %v3812
          %v3823 = vsel %vm3816, %v3819, %v3822
          %v3824 = vsel %vm3813, nan, %v3823
          %v3825 = vand.u32 2147483647, %v703
          %vm3826 = vcmp.le.f32.partialorder %v3825, 0.7853982
          %vm3827 = vcmp.lt.s32.totalorder %v703, 0
          %v3828 = vand.u32 %v703, 2139095040
          %v3829 = vshrl.u32 %v3828, 23
          %v3830 = vsub.s32 %v3829, 127
          %v3831 = vand.u32 2147483647, %v703
          %v3832 = vand.u32 %v3831, 8388607
          %v3833 = vor.u32 %v3832, 8388608
          %v3834 = vsub.s32 0, %v3833
          %v3835 = vadd.s32 %v3830, 1
          %vm3836 = vcmp.gt.s32.totalorder %v3835, 0
          %v3837 = vsel %vm3836, %v3835, 0
          %v3838 = vshrl.u32 %v3837, 5
          %v3839 = vand.u32 %v3837, 31
          %v3840 = vsub.s32 32, %v3839
          %v3841 = vshrl.u32 683565275, %v3840
          %v3842 = vshll.u32 683565275, %v3839
          %v3843 = vshrl.u32 2475754826, %v3840
          %v3844 = vor.u32 %v3842, %v3843
          %v3845 = vshll.u32 2475754826, %v3839
          %v3846 = vshrl.u32 2131351028, %v3840
          %v3847 = vor.u32 %v3845, %v3846
          %v3848 = vshll.u32 2131351028, %v3839
          %v3849 = vshrl.u32 2102212464, %v3840
          %v3850 = vor.u32 %v3848, %v3849
          %v3851 = vshll.u32 2102212464, %v3839
          %v3852 = vshrl.u32 920167782, %v3840
          %v3853 = vor.u32 %v3851, %v3852
          %v3854 = vshll.u32 920167782, %v3839
          %v3855 = vshrl.u32 1326507024, %v3840
          %v3856 = vor.u32 %v3854, %v3855
          %vm3857 = vcmp.lt.s32.totalorder %v3838, 1
          %vm3858 = vcmp.lt.s32.totalorder %v3838, 2
          %vm3859 = vcmp.lt.s32.totalorder %v3838, 3
          %vm3860 = vcmp.lt.s32.totalorder %v3838, 4
          %v3861 = vsel %vm3857, %v3841, %v3844
          %v3862 = vsel %vm3860, %v3850, 2102212464
          %v3863 = vsel %vm3859, %v3847, %v3862
          %v3864 = vsel %vm3858, %v3861, %v3863
          %v3865 = vsel %vm3857, %v3844, %v3847
          %v3866 = vsel %vm3860, %v3853, 920167782
          %v3867 = vsel %vm3859, %v3850, %v3866
          %v3868 = vsel %vm3858, %v3865, %v3867
          %v3869 = vsel %vm3857, %v3847, %v3850
          %v3870 = vsel %vm3860, %v3856, 1326507024
          %v3871 = vsel %vm3859, %v3853, %v3870
          %v3872 = vsel %vm3858, %v3869, %v3871
          %v3873 = vshll.u32 %v3833, 8
          %v3874 = vmul.u32.u64.compose %v3873, %v3872
          %v3875 = vextract.low.u32 %v3874
          %v3876 = vextract.high.u32 %v3874
          %v3877 = vmul.u32.u64.compose %v3873, %v3868
          %v3878 = vextract.low.u32 %v3877
          %v3879 = vextract.high.u32 %v3877
          %v3880 = vmul.u32 %v3873, %v3864
          %v3881 = vadd.s32 %v3876, %v3878
          %vm3882 = vc.u32 %v3876, %v3878
          %v3883 = vadd.s32 %v3879, 1
          %v3884 = vsel %vm3882, %v3883, %v3879
          %v3885 = vadd.s32 %v3880, %v3884
          %v3886 = vadd.s32 %v3885, 536870912
          %v3887 = vshrl.u32 %v3886, 30
          %v3888 = vshll.u32 %v3887, 30
          %v3889 = vsub.s32 %v3885, %v3888
          %vm3890 = vcmp.lt.s32.totalorder %v3889, 0
          %v3891 = vsub.s32 0, %v3889
          %v3892 = vsel %vm3890, %v3891, %v3889
          %v3893 = vclz %v3892
          %v3894 = vsub.s32 %v3893, 2
          %vm3895 = vcmp.gt.s32.totalorder 0, %v3894
          %v3896 = vsel %vm3895, 0, %v3894
          %v3897 = vsub.s32 32, %v3896
          %v3898 = vshll.u32 %v3889, %v3896
          %v3899 = vshrl.u32 %v3881, %v3897
          %v3900 = vor.u32 %v3898, %v3899
          %v3901 = vsub.s32 4294967266, %v3896
          %v3902 = vadd.s32 %v3901, 127
          %v3903 = vshll.u32 %v3902, 23
          %v3904 = vor.u32 4788187, %v3903
          %v3905 = vand.u32 2147483647, %v3904
          %v3907 = vcvt.s32.f32 %v3900
          %v3908 = vmul.f32 %v3907, %v3905
          %v3909 = vxor.u32 %v3908, 2147483648
          %v3910 = vsel %vm3827, %v3909, %v3908
          %v3911 = vsub.s32 4, %v3887
          %v3912 = vsel %vm3827, %v3911, %v3887
          %v3913 = vsel %vm3826, %v703, %v3910
          %v3914 = vsel %vm3826, 0, %v3912
          %v3915 = vcosq.f32.pop %v3913
          %v3916 = vsinq.f32.pop %v3913
          %vm3917 = vweird.f32 %v703
          %v3918 = vadd.s32 %v3914, 3
          %v3919 = vand.u32 %v3918, 3
          %vm3920 = vcmp.lt.s32.totalorder %v3919, 2
          %vm3921 = vcmp.eq.s32.totalorder %v3919, 0
          %v3922 = vxor.u32 %v3916, 2147483648
          %v3923 = vsel %vm3921, %v3915, %v3922
          %vm3924 = vcmp.eq.s32.totalorder %v3919, 2
          %v3925 = vxor.u32 %v3915, 2147483648
          %v3926 = vsel %vm3924, %v3925, %v3916
          %v3927 = vsel %vm3920, %v3923, %v3926
          %v3928 = vsel %vm3917, nan, %v3927
          %v3929 = vand.u32 2147483647, %v704
          %vm3930 = vcmp.le.f32.partialorder %v3929, 0.7853982
          %vm3931 = vcmp.lt.s32.totalorder %v704, 0
          %v3932 = vand.u32 %v704, 2139095040
          %v3933 = vshrl.u32 %v3932, 23
          %v3934 = vsub.s32 %v3933, 127
          %v3935 = vand.u32 2147483647, %v704
          %v3936 = vand.u32 %v3935, 8388607
          %v3937 = vor.u32 %v3936, 8388608
          %v3938 = vsub.s32 0, %v3937
          %v3939 = vadd.s32 %v3934, 1
          %vm3940 = vcmp.gt.s32.totalorder %v3939, 0
          %v3941 = vsel %vm3940, %v3939, 0
          %v3942 = vshrl.u32 %v3941, 5
          %v3943 = vand.u32 %v3941, 31
          %v3944 = vsub.s32 32, %v3943
          %v3945 = vshrl.u32 683565275, %v3944
          %v3946 = vshll.u32 683565275, %v3943
          %v3947 = vshrl.u32 2475754826, %v3944
          %v3948 = vor.u32 %v3946, %v3947
          %v3949 = vshll.u32 2475754826, %v3943
          %v3950 = vshrl.u32 2131351028, %v3944
          %v3951 = vor.u32 %v3949, %v3950
          %v3952 = vshll.u32 2131351028, %v3943
          %v3953 = vshrl.u32 2102212464, %v3944
          %v3954 = vor.u32 %v3952, %v3953
          %v3955 = vshll.u32 2102212464, %v3943
          %v3956 = vshrl.u32 920167782, %v3944
          %v3957 = vor.u32 %v3955, %v3956
          %v3958 = vshll.u32 920167782, %v3943
          %v3959 = vshrl.u32 1326507024, %v3944
          %v3960 = vor.u32 %v3958, %v3959
          %vm3961 = vcmp.lt.s32.totalorder %v3942, 1
          %vm3962 = vcmp.lt.s32.totalorder %v3942, 2
          %vm3963 = vcmp.lt.s32.totalorder %v3942, 3
          %vm3964 = vcmp.lt.s32.totalorder %v3942, 4
          %v3965 = vsel %vm3961, %v3945, %v3948
          %v3966 = vsel %vm3964, %v3954, 2102212464
          %v3967 = vsel %vm3963, %v3951, %v3966
          %v3968 = vsel %vm3962, %v3965, %v3967
          %v3969 = vsel %vm3961, %v3948, %v3951
          %v3970 = vsel %vm3964, %v3957, 920167782
          %v3971 = vsel %vm3963, %v3954, %v3970
          %v3972 = vsel %vm3962, %v3969, %v3971
          %v3973 = vsel %vm3961, %v3951, %v3954
          %v3974 = vsel %vm3964, %v3960, 1326507024
          %v3975 = vsel %vm3963, %v3957, %v3974
          %v3976 = vsel %vm3962, %v3973, %v3975
          %v3977 = vshll.u32 %v3937, 8
          %v3978 = vmul.u32.u64.compose %v3977, %v3976
          %v3979 = vextract.low.u32 %v3978
          %v3980 = vextract.high.u32 %v3978
          %v3981 = vmul.u32.u64.compose %v3977, %v3972
          %v3982 = vextract.low.u32 %v3981
          %v3983 = vextract.high.u32 %v3981
          %v3984 = vmul.u32 %v3977, %v3968
          %v3985 = vadd.s32 %v3980, %v3982
          %vm3986 = vc.u32 %v3980, %v3982
          %v3987 = vadd.s32 %v3983, 1
          %v3988 = vsel %vm3986, %v3987, %v3983
          %v3989 = vadd.s32 %v3984, %v3988
          %v3990 = vadd.s32 %v3989, 536870912
          %v3991 = vshrl.u32 %v3990, 30
          %v3992 = vshll.u32 %v3991, 30
          %v3993 = vsub.s32 %v3989, %v3992
          %vm3994 = vcmp.lt.s32.totalorder %v3993, 0
          %v3995 = vsub.s32 0, %v3993
          %v3996 = vsel %vm3994, %v3995, %v3993
          %v3997 = vclz %v3996
          %v3998 = vsub.s32 %v3997, 2
          %vm3999 = vcmp.gt.s32.totalorder 0, %v3998
          %v4000 = vsel %vm3999, 0, %v3998
          %v4001 = vsub.s32 32, %v4000
          %v4002 = vshll.u32 %v3993, %v4000
          %v4003 = vshrl.u32 %v3985, %v4001
          %v4004 = vor.u32 %v4002, %v4003
          %v4005 = vsub.s32 4294967266, %v4000
          %v4006 = vadd.s32 %v4005, 127
          %v4007 = vshll.u32 %v4006, 23
          %v4008 = vor.u32 4788187, %v4007
          %v4009 = vand.u32 2147483647, %v4008
          %v4011 = vcvt.s32.f32 %v4004
          %v4012 = vmul.f32 %v4011, %v4009
          %v4013 = vxor.u32 %v4012, 2147483648
          %v4014 = vsel %vm3931, %v4013, %v4012
          %v4015 = vsub.s32 4, %v3991
          %v4016 = vsel %vm3931, %v4015, %v3991
          %v4017 = vsel %vm3930, %v704, %v4014
          %v4018 = vsel %vm3930, 0, %v4016
          %v4019 = vcosq.f32.pop %v4017
          %v4020 = vsinq.f32.pop %v4017
          %vm4021 = vweird.f32 %v704
          %v4022 = vadd.s32 %v4018, 3
          %v4023 = vand.u32 %v4022, 3
          %vm4024 = vcmp.lt.s32.totalorder %v4023, 2
          %vm4025 = vcmp.eq.s32.totalorder %v4023, 0
          %v4026 = vxor.u32 %v4020, 2147483648
          %v4027 = vsel %vm4025, %v4019, %v4026
          %vm4028 = vcmp.eq.s32.totalorder %v4023, 2
          %v4029 = vxor.u32 %v4019, 2147483648
          %v4030 = vsel %vm4028, %v4029, %v4020
          %v4031 = vsel %vm4024, %v4027, %v4030
          %v4032 = vsel %vm4021, nan, %v4031
          %v4033 = vld [vmem:[%s4] sm:$0x1]
          %v4034 = vpack.c.bf16 %v912, %v808
          %v4035 = vpack.c.bf16 %v1120, %v1016
          %v4036 = vpack.c.bf16 %v1328, %v1224
          %v4037 = vpack.c.bf16 %v1536, %v1432
          %v4038 = vpack.c.bf16 %v1744, %v1640
          %v4039 = vpack.c.bf16 %v1952, %v1848
          %v4040 = vpack.c.bf16 %v2160, %v2056
          %v4041 = vpack.c.bf16 %v2368, %v2264
          %v4042 = vpack.c.bf16 %v2576, %v2472
          %v4043 = vpack.c.bf16 %v2784, %v2680
          %v4044 = vpack.c.bf16 %v2992, %v2888
          %v4045 = vpack.c.bf16 %v3200, %v3096
          %v4046 = vpack.c.bf16 %v3408, %v3304
          %v4047 = vpack.c.bf16 %v3616, %v3512
          %v4048 = vpack.c.bf16 %v3824, %v3720
          %v4049 = vpack.c.bf16 %v4032, %v3928
          %v4050 = vld [vmem:[%s3] sm:$0xf]
          %v4051 = vld [vmem:[%s3 + $0x4] sm:$0xf]
          %v4052 = vld [vmem:[%s3 + $0x8] sm:$0xf]
          %v4053 = vld [vmem:[%s3 + $0xc] sm:$0xf]
          %v4054 = vld [vmem:[%s3 + $0x10] sm:$0xf]
          %v4055 = vld [vmem:[%s3 + $0x14] sm:$0xf]
          %v4056 = vld [vmem:[%s3 + $0x18] sm:$0xf]
          %v4057 = vld [vmem:[%s3 + $0x1c] sm:$0xf]
          %v4059 = vlaneseq
          %v4060 = vshrl.u32 %v4059, 7
          %v4061 = vsub.s32 0, %v4060
          %v4062 = vrot.slane %v4033, %v4061
          %v4072 = vunpack.c.l.b16 %v4050
          %v4073 = vunpack.c.l.b16 %v4051
          %v4074 = vunpack.c.l.b16 %v4052
          %v4075 = vunpack.c.l.b16 %v4053
          %v4076 = vunpack.c.l.b16 %v4054
          %v4077 = vunpack.c.l.b16 %v4055
          %v4078 = vunpack.c.l.b16 %v4056
          %v4079 = vunpack.c.l.b16 %v4057
          %v4080 = vpack.c.b16 %v4073, %v4072
          %v4081 = vpack.c.b16 %v4075, %v4074
          %v4082 = vpack.c.b16 %v4077, %v4076
          %v4083 = vpack.c.b16 %v4079, %v4078
          %vm4088 = vcmask 523264
          %v4090 = vsel %vm4088, %v4034, 0
          %v4093 = vsel %vm4088, %v4035, 0
          %v4096 = vsel %vm4088, %v4036, 0
          %v4099 = vsel %vm4088, %v4037, 0
          %v4102 = vsel %vm4088, %v4038, 0
          %v4105 = vsel %vm4088, %v4039, 0
          %v4108 = vsel %vm4088, %v4040, 0
          %v4111 = vsel %vm4088, %v4041, 0
          %v4114 = vsel %vm4088, %v4042, 0
          %v4117 = vsel %vm4088, %v4043, 0
          %v4120 = vsel %vm4088, %v4044, 0
          %v4123 = vsel %vm4088, %v4045, 0
          %v4126 = vsel %vm4088, %v4046, 0
          %v4129 = vsel %vm4088, %v4047, 0
          %v4132 = vsel %vm4088, %v4048, 0
          %v4135 = vsel %vm4088, %v4049, 0
          %4137 = vmatprep.subr.bf16.mxu0 0
          %4138 = vmatpush1.bf16.msra.mxu0 %v4080
          %4139 = vmatprep.subr.bf16.mxu0 0
          %4140 = vmatpush1.bf16.msra.mxu0 %v4081
          %4141 = vmatprep.subr.bf16.mxu0 0
          %4142 = vmatpush1.bf16.msra.mxu0 %v4082
          %4143 = vmatprep.subr.bf16.mxu0 0
          %4144 = vmatpush1.bf16.msra.mxu0 %v4083
          %4145 = vmatprep.subr.bf16.mxu0 0
          %4146 = vmatpush1.bf16.msra.mxu0 0
          %4147 = vmatprep.subr.bf16.mxu0 0
          %4148 = vmatpush1.bf16.msra.mxu0 0
          %4149 = vmatprep.subr.bf16.mxu0 0
          %4150 = vmatpush1.bf16.msra.mxu0 0
          %4151 = vmatprep.subr.bf16.mxu0 0
          %4152 = vmatpush1.bf16.msra.mxu0 0
          %4153 = vmatprep.subr.bf16.mxu0 0
          %4154 = vmatpush1.bf16.msra.mxu0 0
          %4155 = vmatprep.subr.bf16.mxu0 0
          %4156 = vmatpush1.bf16.msra.mxu0 0
          %4157 = vmatprep.subr.bf16.mxu0 0
          %4158 = vmatpush1.bf16.msra.mxu0 0
          %4159 = vmatprep.subr.bf16.mxu0 0
          %4160 = vmatpush1.bf16.msra.mxu0 0
          %4161 = vmatprep.subr.bf16.mxu0 0
          %4162 = vmatpush1.bf16.msra.mxu0 0
          %4163 = vmatprep.subr.bf16.mxu0 0
          %4164 = vmatpush1.bf16.msra.mxu0 0
          %4165 = vmatprep.subr.bf16.mxu0 0
          %4166 = vmatpush1.bf16.msra.mxu0 0
          %4167 = vmatprep.subr.bf16.mxu0 0
          %4168 = vmatpush1.bf16.msra.mxu0 0
          %4169 = vmatprep.mubr.bf16.mxu0 0
          %4170 = vmatmul.mubr.bf16.gmra.mrb[0].mxu0 %v4090
          %v4171 = vpop.f32.mrb[0].mxu0
          %v4172 = vadd.f32 %v4062, %v4171
          %v4173 = vpop.f32.mrb[0].mxu0
          %v4174 = vpop.f32.mrb[0].mxu0
          %v4175 = vadd.f32 %v4062, %v4174
          %v4176 = vpop.f32.mrb[0].mxu0
          %4177 = vmatprep.mubr.bf16.mxu0 0
          %4178 = vmatmul.mubr.bf16.gmra.mrb[0].mxu0 %v4093
          %v4179 = vpop.f32.mrb[0].mxu0
          %v4180 = vadd.f32 %v4062, %v4179
          %v4181 = vpop.f32.mrb[0].mxu0
          %v4182 = vpop.f32.mrb[0].mxu0
          %v4183 = vadd.f32 %v4062, %v4182
          %v4184 = vpop.f32.mrb[0].mxu0
          %4185 = vmatprep.mubr.bf16.mxu0 0
          %4186 = vmatmul.mubr.bf16.gmra.mrb[0].mxu0 %v4096
          %v4187 = vpop.f32.mrb[0].mxu0
          %v4188 = vadd.f32 %v4062, %v4187
          %v4189 = vpop.f32.mrb[0].mxu0
          %v4190 = vpop.f32.mrb[0].mxu0
          %v4191 = vadd.f32 %v4062, %v4190
          %v4192 = vpop.f32.mrb[0].mxu0
          %4193 = vmatprep.mubr.bf16.mxu0 0
          %4194 = vmatmul.mubr.bf16.gmra.mrb[0].mxu0 %v4099
          %v4195 = vpop.f32.mrb[0].mxu0
          %v4196 = vadd.f32 %v4062, %v4195
          %v4197 = vpop.f32.mrb[0].mxu0
          %v4198 = vpop.f32.mrb[0].mxu0
          %v4199 = vadd.f32 %v4062, %v4198
          %v4200 = vpop.f32.mrb[0].mxu0
          %4201 = vmatprep.mubr.bf16.mxu0 0
          %4202 = vmatmul.mubr.bf16.gmra.mrb[0].mxu0 %v4102
          %v4203 = vpop.f32.mrb[0].mxu0
          %v4204 = vadd.f32 %v4062, %v4203
          %v4205 = vpop.f32.mrb[0].mxu0
          %v4206 = vpop.f32.mrb[0].mxu0
          %v4207 = vadd.f32 %v4062, %v4206
          %v4208 = vpop.f32.mrb[0].mxu0
          %4209 = vmatprep.mubr.bf16.mxu0 0
          %4210 = vmatmul.mubr.bf16.gmra.mrb[0].mxu0 %v4105
          %v4211 = vpop.f32.mrb[0].mxu0
          %v4212 = vadd.f32 %v4062, %v4211
          %v4213 = vpop.f32.mrb[0].mxu0
          %v4214 = vpop.f32.mrb[0].mxu0
          %v4215 = vadd.f32 %v4062, %v4214
          %v4216 = vpop.f32.mrb[0].mxu0
          %4217 = vmatprep.mubr.bf16.mxu0 0
          %4218 = vmatmul.mubr.bf16.gmra.mrb[0].mxu0 %v4108
          %v4219 = vpop.f32.mrb[0].mxu0
          %v4220 = vadd.f32 %v4062, %v4219
          %v4221 = vpop.f32.mrb[0].mxu0
          %v4222 = vpop.f32.mrb[0].mxu0
          %v4223 = vadd.f32 %v4062, %v4222
          %v4224 = vpop.f32.mrb[0].mxu0
          %4225 = vmatprep.mubr.bf16.mxu0 0
          %4226 = vmatmul.mubr.bf16.gmra.mrb[0].mxu0 %v4111
          %v4227 = vpop.f32.mrb[0].mxu0
          %v4228 = vadd.f32 %v4062, %v4227
          %v4229 = vpop.f32.mrb[0].mxu0
          %v4230 = vpop.f32.mrb[0].mxu0
          %v4231 = vadd.f32 %v4062, %v4230
          %v4232 = vpop.f32.mrb[0].mxu0
          %4233 = vmatprep.mubr.bf16.mxu0 0
          %4234 = vmatmul.mubr.bf16.gmra.mrb[0].mxu0 %v4114
          %v4235 = vpop.f32.mrb[0].mxu0
          %v4236 = vadd.f32 %v4062, %v4235
          %v4237 = vpop.f32.mrb[0].mxu0
          %v4238 = vpop.f32.mrb[0].mxu0
          %v4239 = vadd.f32 %v4062, %v4238
          %v4240 = vpop.f32.mrb[0].mxu0
          %4241 = vmatprep.mubr.bf16.mxu0 0
          %4242 = vmatmul.mubr.bf16.gmra.mrb[0].mxu0 %v4117
          %v4243 = vpop.f32.mrb[0].mxu0
          %v4244 = vadd.f32 %v4062, %v4243
          %v4245 = vpop.f32.mrb[0].mxu0
          %v4246 = vpop.f32.mrb[0].mxu0
          %v4247 = vadd.f32 %v4062, %v4246
          %v4248 = vpop.f32.mrb[0].mxu0
          %4249 = vmatprep.mubr.bf16.mxu0 0
          %4250 = vmatmul.mubr.bf16.gmra.mrb[0].mxu0 %v4120
          %v4251 = vpop.f32.mrb[0].mxu0
          %v4252 = vadd.f32 %v4062, %v4251
          %v4253 = vpop.f32.mrb[0].mxu0
          %v4254 = vpop.f32.mrb[0].mxu0
          %v4255 = vadd.f32 %v4062, %v4254
          %v4256 = vpop.f32.mrb[0].mxu0
          %4257 = vmatprep.mubr.bf16.mxu0 0
          %4258 = vmatmul.mubr.bf16.gmra.mrb[0].mxu0 %v4123
          %v4259 = vpop.f32.mrb[0].mxu0
          %v4260 = vadd.f32 %v4062, %v4259
          %v4261 = vpop.f32.mrb[0].mxu0
          %v4262 = vpop.f32.mrb[0].mxu0
          %v4263 = vadd.f32 %v4062, %v4262
          %v4264 = vpop.f32.mrb[0].mxu0
          %4265 = vmatprep.mubr.bf16.mxu0 0
          %4266 = vmatmul.mubr.bf16.gmra.mrb[0].mxu0 %v4126
          %v4267 = vpop.f32.mrb[0].mxu0
          %v4268 = vadd.f32 %v4062, %v4267
          %v4269 = vpop.f32.mrb[0].mxu0
          %v4270 = vpop.f32.mrb[0].mxu0
          %v4271 = vadd.f32 %v4062, %v4270
          %v4272 = vpop.f32.mrb[0].mxu0
          %4273 = vmatprep.mubr.bf16.mxu0 0
          %4274 = vmatmul.mubr.bf16.gmra.mrb[0].mxu0 %v4129
          %v4275 = vpop.f32.mrb[0].mxu0
          %v4276 = vadd.f32 %v4062, %v4275
          %v4277 = vpop.f32.mrb[0].mxu0
          %v4278 = vpop.f32.mrb[0].mxu0
          %v4279 = vadd.f32 %v4062, %v4278
          %v4280 = vpop.f32.mrb[0].mxu0
          %4281 = vmatprep.mubr.bf16.mxu0 0
          %4282 = vmatmul.mubr.bf16.gmra.mrb[0].mxu0 %v4132
          %v4283 = vpop.f32.mrb[0].mxu0
          %v4284 = vadd.f32 %v4062, %v4283
          %v4285 = vpop.f32.mrb[0].mxu0
          %v4286 = vpop.f32.mrb[0].mxu0
          %v4287 = vadd.f32 %v4062, %v4286
          %v4288 = vpop.f32.mrb[0].mxu0
          %4289 = vmatprep.mubr.bf16.mxu0 0
          %4290 = vmatmul.mubr.bf16.gmra.mrb[0].mxu0 %v4135
          %v4291 = vpop.f32.mrb[0].mxu0
          %v4292 = vadd.f32 %v4062, %v4291
          %v4293 = vpop.f32.mrb[0].mxu0
          %v4294 = vpop.f32.mrb[0].mxu0
          %v4295 = vadd.f32 %v4062, %v4294
          %v4296 = vpop.f32.mrb[0].mxu0
          %4297 = vdwg.mxu0
          %v4298 = vmul.f32 %v4172, 0.5
          %v4299 = vmul.f32 %v4175, 0.5
          %v4300 = vmul.f32 %v4180, 0.5
          %v4301 = vmul.f32 %v4183, 0.5
          %v4302 = vmul.f32 %v4188, 0.5
          %v4303 = vmul.f32 %v4191, 0.5
          %v4304 = vmul.f32 %v4196, 0.5
          %v4305 = vmul.f32 %v4199, 0.5
          %v4306 = vmul.f32 %v4204, 0.5
          %v4307 = vmul.f32 %v4207, 0.5
          %v4308 = vmul.f32 %v4212, 0.5
          %v4309 = vmul.f32 %v4215, 0.5
          %v4310 = vmul.f32 %v4220, 0.5
          %v4311 = vmul.f32 %v4223, 0.5
          %v4312 = vmul.f32 %v4228, 0.5
          %v4313 = vmul.f32 %v4231, 0.5
          %v4314 = vmul.f32 %v4236, 0.5
          %v4315 = vmul.f32 %v4239, 0.5
          %v4316 = vmul.f32 %v4244, 0.5
          %v4317 = vmul.f32 %v4247, 0.5
          %v4318 = vmul.f32 %v4252, 0.5
          %v4319 = vmul.f32 %v4255, 0.5
          %v4320 = vmul.f32 %v4260, 0.5
          %v4321 = vmul.f32 %v4263, 0.5
          %v4322 = vmul.f32 %v4268, 0.5
          %v4323 = vmul.f32 %v4271, 0.5
          %v4324 = vmul.f32 %v4276, 0.5
          %v4325 = vmul.f32 %v4279, 0.5
          %v4326 = vmul.f32 %v4284, 0.5
          %v4327 = vmul.f32 %v4287, 0.5
          %v4328 = vmul.f32 %v4292, 0.5
          %v4329 = vmul.f32 %v4295, 0.5
          %v4330 = vtanh.pop %v4298
          %v4331 = vtanh.pop %v4299
          %v4332 = vtanh.pop %v4300
          %v4333 = vtanh.pop %v4301
          %v4334 = vtanh.pop %v4302
          %v4335 = vtanh.pop %v4303
          %v4336 = vtanh.pop %v4304
          %v4337 = vtanh.pop %v4305
          %v4338 = vtanh.pop %v4306
          %v4339 = vtanh.pop %v4307
          %v4340 = vtanh.pop %v4308
          %v4341 = vtanh.pop %v4309
          %v4342 = vtanh.pop %v4310
          %v4343 = vtanh.pop %v4311
          %v4344 = vtanh.pop %v4312
          %v4345 = vtanh.pop %v4313
          %v4346 = vtanh.pop %v4314
          %v4347 = vtanh.pop %v4315
          %v4348 = vtanh.pop %v4316
          %v4349 = vtanh.pop %v4317
          %v4350 = vtanh.pop %v4318
          %v4351 = vtanh.pop %v4319
          %v4352 = vtanh.pop %v4320
          %v4353 = vtanh.pop %v4321
          %v4354 = vtanh.pop %v4322
          %v4355 = vtanh.pop %v4323
          %v4356 = vtanh.pop %v4324
          %v4357 = vtanh.pop %v4325
          %v4358 = vtanh.pop %v4326
          %v4359 = vtanh.pop %v4327
          %v4360 = vtanh.pop %v4328
          %v4361 = vtanh.pop %v4329
          %v4362 = vadd.f32 %v4330, 1.0
          %v4363 = vadd.f32 %v4331, 1.0
          %v4364 = vadd.f32 %v4332, 1.0
          %v4365 = vadd.f32 %v4333, 1.0
          %v4366 = vadd.f32 %v4334, 1.0
          %v4367 = vadd.f32 %v4335, 1.0
          %v4368 = vadd.f32 %v4336, 1.0
          %v4369 = vadd.f32 %v4337, 1.0
          %v4370 = vadd.f32 %v4338, 1.0
          %v4371 = vadd.f32 %v4339, 1.0
          %v4372 = vadd.f32 %v4340, 1.0
          %v4373 = vadd.f32 %v4341, 1.0
          %v4374 = vadd.f32 %v4342, 1.0
          %v4375 = vadd.f32 %v4343, 1.0
          %v4376 = vadd.f32 %v4344, 1.0
          %v4377 = vadd.f32 %v4345, 1.0
          %v4378 = vadd.f32 %v4346, 1.0
          %v4379 = vadd.f32 %v4347, 1.0
          %v4380 = vadd.f32 %v4348, 1.0
          %v4381 = vadd.f32 %v4349, 1.0
          %v4382 = vadd.f32 %v4350, 1.0
          %v4383 = vadd.f32 %v4351, 1.0
          %v4384 = vadd.f32 %v4352, 1.0
          %v4385 = vadd.f32 %v4353, 1.0
          %v4386 = vadd.f32 %v4354, 1.0
          %v4387 = vadd.f32 %v4355, 1.0
          %v4388 = vadd.f32 %v4356, 1.0
          %v4389 = vadd.f32 %v4357, 1.0
          %v4390 = vadd.f32 %v4358, 1.0
          %v4391 = vadd.f32 %v4359, 1.0
          %v4392 = vadd.f32 %v4360, 1.0
          %v4393 = vadd.f32 %v4361, 1.0
          %v4394 = vmul.f32 %v4362, 0.5
          %v4395 = vmul.f32 %v4363, 0.5
          %v4396 = vmul.f32 %v4364, 0.5
          %v4397 = vmul.f32 %v4365, 0.5
          %v4398 = vmul.f32 %v4366, 0.5
          %v4399 = vmul.f32 %v4367, 0.5
          %v4400 = vmul.f32 %v4368, 0.5
          %v4401 = vmul.f32 %v4369, 0.5
          %v4402 = vmul.f32 %v4370, 0.5
          %v4403 = vmul.f32 %v4371, 0.5
          %v4404 = vmul.f32 %v4372, 0.5
          %v4405 = vmul.f32 %v4373, 0.5
          %v4406 = vmul.f32 %v4374, 0.5
          %v4407 = vmul.f32 %v4375, 0.5
          %v4408 = vmul.f32 %v4376, 0.5
          %v4409 = vmul.f32 %v4377, 0.5
          %v4410 = vmul.f32 %v4378, 0.5
          %v4411 = vmul.f32 %v4379, 0.5
          %v4412 = vmul.f32 %v4380, 0.5
          %v4413 = vmul.f32 %v4381, 0.5
          %v4414 = vmul.f32 %v4382, 0.5
          %v4415 = vmul.f32 %v4383, 0.5
          %v4416 = vmul.f32 %v4384, 0.5
          %v4417 = vmul.f32 %v4385, 0.5
          %v4418 = vmul.f32 %v4386, 0.5
          %v4419 = vmul.f32 %v4387, 0.5
          %v4420 = vmul.f32 %v4388, 0.5
          %v4421 = vmul.f32 %v4389, 0.5
          %v4422 = vmul.f32 %v4390, 0.5
          %v4423 = vmul.f32 %v4391, 0.5
          %v4424 = vmul.f32 %v4392, 0.5
          %v4425 = vmul.f32 %v4393, 0.5
          %v4426 = vmul.f32 %v4172, %v4394
          %v4427 = vmul.f32 %v4175, %v4395
          %v4428 = vmul.f32 %v4180, %v4396
          %v4429 = vmul.f32 %v4183, %v4397
          %v4430 = vmul.f32 %v4188, %v4398
          %v4431 = vmul.f32 %v4191, %v4399
          %v4432 = vmul.f32 %v4196, %v4400
          %v4433 = vmul.f32 %v4199, %v4401
          %v4434 = vmul.f32 %v4204, %v4402
          %v4435 = vmul.f32 %v4207, %v4403
          %v4436 = vmul.f32 %v4212, %v4404
          %v4437 = vmul.f32 %v4215, %v4405
          %v4438 = vmul.f32 %v4220, %v4406
          %v4439 = vmul.f32 %v4223, %v4407
          %v4440 = vmul.f32 %v4228, %v4408
          %v4441 = vmul.f32 %v4231, %v4409
          %v4442 = vmul.f32 %v4236, %v4410
          %v4443 = vmul.f32 %v4239, %v4411
          %v4444 = vmul.f32 %v4244, %v4412
          %v4445 = vmul.f32 %v4247, %v4413
          %v4446 = vmul.f32 %v4252, %v4414
          %v4447 = vmul.f32 %v4255, %v4415
          %v4448 = vmul.f32 %v4260, %v4416
          %v4449 = vmul.f32 %v4263, %v4417
          %v4450 = vmul.f32 %v4268, %v4418
          %v4451 = vmul.f32 %v4271, %v4419
          %v4452 = vmul.f32 %v4276, %v4420
          %v4453 = vmul.f32 %v4279, %v4421
          %v4454 = vmul.f32 %v4284, %v4422
          %v4455 = vmul.f32 %v4287, %v4423
          %v4456 = vmul.f32 %v4292, %v4424
          %v4457 = vmul.f32 %v4295, %v4425
          %v4458 = vpack.c.bf16 %v4427, %v4426
          %v4459 = vpack.c.bf16 %v4429, %v4428
          %v4460 = vpack.c.bf16 %v4431, %v4430
          %v4461 = vpack.c.bf16 %v4433, %v4432
          %v4462 = vpack.c.bf16 %v4435, %v4434
          %v4463 = vpack.c.bf16 %v4437, %v4436
          %v4464 = vpack.c.bf16 %v4439, %v4438
          %v4465 = vpack.c.bf16 %v4441, %v4440
          %v4466 = vpack.c.bf16 %v4443, %v4442
          %v4467 = vpack.c.bf16 %v4445, %v4444
          %v4468 = vpack.c.bf16 %v4447, %v4446
          %v4469 = vpack.c.bf16 %v4449, %v4448
          %v4470 = vpack.c.bf16 %v4451, %v4450
          %v4471 = vpack.c.bf16 %v4453, %v4452
          %v4472 = vpack.c.bf16 %v4455, %v4454
          %v4473 = vpack.c.bf16 %v4457, %v4456
          %v4474 = vld [vmem:[%s651] sm:$0xff]
          %v4475 = vld [vmem:[%s651 + $0x8] sm:$0xff]
          %v4476 = vld [vmem:[%s651 + $0x10] sm:$0xff]
          %v4477 = vld [vmem:[%s651 + $0x18] sm:$0xff]
          %v4478 = vld [vmem:[%s651 + $0x20] sm:$0xff]
          %v4479 = vld [vmem:[%s651 + $0x28] sm:$0xff]
          %v4480 = vld [vmem:[%s651 + $0x30] sm:$0xff]
          %v4481 = vld [vmem:[%s651 + $0x38] sm:$0xff]
          %v4482 = vld [vmem:[%s651 + $0x40] sm:$0xff]
          %v4483 = vld [vmem:[%s651 + $0x48] sm:$0xff]
          %v4484 = vld [vmem:[%s651 + $0x50] sm:$0xff]
          %v4485 = vld [vmem:[%s651 + $0x58] sm:$0xff]
          %v4486 = vld [vmem:[%s651 + $0x60] sm:$0xff]
          %v4487 = vld [vmem:[%s651 + $0x68] sm:$0xff]
          %v4488 = vld [vmem:[%s651 + $0x70] sm:$0xff]
          %v4489 = vld [vmem:[%s651 + $0x78] sm:$0xff]
          %v4490 = vld [vmem:[%s651 + $0x80] sm:$0xff]
          %v4491 = vld [vmem:[%s651 + $0x88] sm:$0xff]
          %v4492 = vld [vmem:[%s651 + $0x90] sm:$0xff]
          %v4493 = vld [vmem:[%s651 + $0x98] sm:$0xff]
          %v4494 = vld [vmem:[%s651 + $0xa0] sm:$0xff]
          %v4495 = vld [vmem:[%s651 + $0xa8] sm:$0xff]
          %v4496 = vld [vmem:[%s651 + $0xb0] sm:$0xff]
          %v4497 = vld [vmem:[%s651 + $0xb8] sm:$0xff]
          %v4498 = vld [vmem:[%s651 + $0xc0] sm:$0xff]
          %v4499 = vld [vmem:[%s651 + $0xc8] sm:$0xff]
          %v4500 = vld [vmem:[%s651 + $0xd0] sm:$0xff]
          %v4501 = vld [vmem:[%s651 + $0xd8] sm:$0xff]
          %v4502 = vld [vmem:[%s651 + $0xe0] sm:$0xff]
          %v4503 = vld [vmem:[%s651 + $0xe8] sm:$0xff]
          %v4504 = vld [vmem:[%s651 + $0xf0] sm:$0xff]
          %v4505 = vld [vmem:[%s651 + $0xf8] sm:$0xff]
          %v4506 = vpack.c.bf16 %v4475, %v4474
          %v4507 = vpack.c.bf16 %v4477, %v4476
          %v4508 = vpack.c.bf16 %v4479, %v4478
          %v4509 = vpack.c.bf16 %v4481, %v4480
          %v4510 = vpack.c.bf16 %v4483, %v4482
          %v4511 = vpack.c.bf16 %v4485, %v4484
          %v4512 = vpack.c.bf16 %v4487, %v4486
          %v4513 = vpack.c.bf16 %v4489, %v4488
          %v4514 = vpack.c.bf16 %v4491, %v4490
          %v4515 = vpack.c.bf16 %v4493, %v4492
          %v4516 = vpack.c.bf16 %v4495, %v4494
          %v4517 = vpack.c.bf16 %v4497, %v4496
          %v4518 = vpack.c.bf16 %v4499, %v4498
          %v4519 = vpack.c.bf16 %v4501, %v4500
          %v4520 = vpack.c.bf16 %v4503, %v4502
          %v4521 = vpack.c.bf16 %v4505, %v4504
          %v4522 = vld [vmem:[%s5] sm:$0xf]
          %v4523 = vld [vmem:[%s5 + $0x4] sm:$0xf]
          %v4524 = vld [vmem:[%s5 + $0x8] sm:$0xf]
          %v4525 = vld [vmem:[%s5 + $0xc] sm:$0xf]
          %v4526 = vld [vmem:[%s5 + $0x10] sm:$0xf]
          %v4527 = vld [vmem:[%s5 + $0x14] sm:$0xf]
          %v4528 = vld [vmem:[%s5 + $0x18] sm:$0xf]
          %v4529 = vld [vmem:[%s5 + $0x1c] sm:$0xf]
          %v4530 = vld [vmem:[%s5 + $0x20] sm:$0xf]
          %v4531 = vld [vmem:[%s5 + $0x24] sm:$0xf]
          %v4532 = vld [vmem:[%s5 + $0x28] sm:$0xf]
          %v4533 = vld [vmem:[%s5 + $0x2c] sm:$0xf]
          %v4534 = vld [vmem:[%s5 + $0x30] sm:$0xf]
          %v4535 = vld [vmem:[%s5 + $0x34] sm:$0xf]
          %v4536 = vld [vmem:[%s5 + $0x38] sm:$0xf]
          %v4537 = vld [vmem:[%s5 + $0x3c] sm:$0xf]
          %v4538 = vld [vmem:[%s5 + $0x40] sm:$0xf]
          %v4539 = vld [vmem:[%s5 + $0x44] sm:$0xf]
          %v4540 = vld [vmem:[%s5 + $0x48] sm:$0xf]
          %v4541 = vld [vmem:[%s5 + $0x4c] sm:$0xf]
          %v4542 = vld [vmem:[%s6] sm:$0x1]
          %v4544 = vlaneseq
          %v4545 = vshrl.u32 %v4544, 7
          %v4546 = vsub.s32 0, %v4545
          %v4547 = vrot.slane %v4542, %v4546
          %v4569 = vunpack.c.l.b16 %v4522
          %v4570 = vunpack.c.l.b16 %v4523
          %v4571 = vunpack.c.l.b16 %v4524
          %v4572 = vunpack.c.l.b16 %v4525
          %v4573 = vunpack.c.l.b16 %v4526
          %v4574 = vunpack.c.l.b16 %v4527
          %v4575 = vunpack.c.l.b16 %v4528
          %v4576 = vunpack.c.l.b16 %v4529
          %v4577 = vunpack.c.l.b16 %v4530
          %v4578 = vunpack.c.l.b16 %v4531
          %v4579 = vunpack.c.l.b16 %v4532
          %v4580 = vunpack.c.l.b16 %v4533
          %v4581 = vunpack.c.l.b16 %v4534
          %v4582 = vunpack.c.l.b16 %v4535
          %v4583 = vunpack.c.l.b16 %v4536
          %v4584 = vunpack.c.l.b16 %v4537
          %v4585 = vunpack.c.l.b16 %v4538
          %v4586 = vunpack.c.l.b16 %v4539
          %v4587 = vunpack.c.l.b16 %v4540
          %v4588 = vunpack.c.l.b16 %v4541
          %v4589 = vpack.c.b16 %v4570, %v4569
          %v4590 = vpack.c.b16 %v4572, %v4571
          %v4591 = vpack.c.b16 %v4574, %v4573
          %v4592 = vpack.c.b16 %v4576, %v4575
          %v4593 = vpack.c.b16 %v4578, %v4577
          %v4594 = vpack.c.b16 %v4580, %v4579
          %v4595 = vpack.c.b16 %v4582, %v4581
          %v4596 = vpack.c.b16 %v4584, %v4583
          %v4597 = vpack.c.b16 %v4586, %v4585
          %v4598 = vpack.c.b16 %v4588, %v4587
          %vm4609 = vcmask 261120
          %v4611 = vsel %vm4609, %v4506, 0
          %v4614 = vsel %vm4609, %v4507, 0
          %v4617 = vsel %vm4609, %v4508, 0
          %v4620 = vsel %vm4609, %v4509, 0
          %v4623 = vsel %vm4609, %v4510, 0
          %v4626 = vsel %vm4609, %v4511, 0
          %v4629 = vsel %vm4609, %v4512, 0
          %v4632 = vsel %vm4609, %v4513, 0
          %v4635 = vsel %vm4609, %v4514, 0
          %v4638 = vsel %vm4609, %v4515, 0
          %v4641 = vsel %vm4609, %v4516, 0
          %v4644 = vsel %vm4609, %v4517, 0
          %v4647 = vsel %vm4609, %v4518, 0
          %v4650 = vsel %vm4609, %v4519, 0
          %v4653 = vsel %vm4609, %v4520, 0
          %v4656 = vsel %vm4609, %v4521, 0
          %4658 = vmatprep.subr.bf16.mxu0 0
          %4659 = vmatpush1.bf16.msra.mxu0 %v4589
          %4660 = vmatprep.subr.bf16.mxu0 0
          %4661 = vmatpush1.bf16.msra.mxu0 %v4590
          %4662 = vmatprep.subr.bf16.mxu0 0
          %4663 = vmatpush1.bf16.msra.mxu0 %v4591
          %4664 = vmatprep.subr.bf16.mxu0 0
          %4665 = vmatpush1.bf16.msra.mxu0 %v4592
          %4666 = vmatprep.subr.bf16.mxu0 0
          %4667 = vmatpush1.bf16.msra.mxu0 %v4593
          %4668 = vmatprep.subr.bf16.mxu0 0
          %4669 = vmatpush1.bf16.msra.mxu0 %v4594
          %4670 = vmatprep.subr.bf16.mxu0 0
          %4671 = vmatpush1.bf16.msra.mxu0 %v4595
          %4672 = vmatprep.subr.bf16.mxu0 0
          %4673 = vmatpush1.bf16.msra.mxu0 %v4596
          %4674 = vmatprep.subr.bf16.mxu0 0
          %4675 = vmatpush1.bf16.msra.mxu0 %v4597
          %4676 = vmatprep.subr.bf16.mxu0 0
          %4677 = vmatpush1.bf16.msra.mxu0 %v4598
          %4678 = vmatprep.subr.bf16.mxu0 0
          %4679 = vmatpush1.bf16.msra.mxu0 0
          %4680 = vmatprep.subr.bf16.mxu0 0
          %4681 = vmatpush1.bf16.msra.mxu0 0
          %4682 = vmatprep.subr.bf16.mxu0 0
          %4683 = vmatpush1.bf16.msra.mxu0 0
          %4684 = vmatprep.subr.bf16.mxu0 0
          %4685 = vmatpush1.bf16.msra.mxu0 0
          %4686 = vmatprep.subr.bf16.mxu0 0
          %4687 = vmatpush1.bf16.msra.mxu0 0
          %4688 = vmatprep.subr.bf16.mxu0 0
          %4689 = vmatpush1.bf16.msra.mxu0 0
          %4690 = vmatprep.mubr.bf16.mxu0 %v4611
          %4691 = vmatmul.mubr.bf16.gmra.mrb[0].mxu0 %v4458
          %v4692 = vpop.f32.mrb[0].mxu0
          %v4693 = vadd.f32 %v4547, %v4692
          %v4694 = vpop.f32.mrb[0].mxu0
          %v4695 = vpop.f32.mrb[0].mxu0
          %v4696 = vadd.f32 %v4547, %v4695
          %v4697 = vpop.f32.mrb[0].mxu0
          %4698 = vmatprep.mubr.bf16.mxu0 %v4614
          %4699 = vmatmul.mubr.bf16.gmra.mrb[0].mxu0 %v4459
          %v4700 = vpop.f32.mrb[0].mxu0
          %v4701 = vadd.f32 %v4547, %v4700
          %v4702 = vpop.f32.mrb[0].mxu0
          %v4703 = vpop.f32.mrb[0].mxu0
          %v4704 = vadd.f32 %v4547, %v4703
          %v4705 = vpop.f32.mrb[0].mxu0
          %4706 = vmatprep.mubr.bf16.mxu0 %v4617
          %4707 = vmatmul.mubr.bf16.gmra.mrb[0].mxu0 %v4460
          %v4708 = vpop.f32.mrb[0].mxu0
          %v4709 = vadd.f32 %v4547, %v4708
          %v4710 = vpop.f32.mrb[0].mxu0
          %v4711 = vpop.f32.mrb[0].mxu0
          %v4712 = vadd.f32 %v4547, %v4711
          %v4713 = vpop.f32.mrb[0].mxu0
          %4714 = vmatprep.mubr.bf16.mxu0 %v4620
          %4715 = vmatmul.mubr.bf16.gmra.mrb[0].mxu0 %v4461
          %v4716 = vpop.f32.mrb[0].mxu0
          %v4717 = vadd.f32 %v4547, %v4716
          %v4718 = vpop.f32.mrb[0].mxu0
          %v4719 = vpop.f32.mrb[0].mxu0
          %v4720 = vadd.f32 %v4547, %v4719
          %v4721 = vpop.f32.mrb[0].mxu0
          %4722 = vmatprep.mubr.bf16.mxu0 %v4623
          %4723 = vmatmul.mubr.bf16.gmra.mrb[0].mxu0 %v4462
          %v4724 = vpop.f32.mrb[0].mxu0
          %v4725 = vadd.f32 %v4547, %v4724
          %v4726 = vpop.f32.mrb[0].mxu0
          %v4727 = vpop.f32.mrb[0].mxu0
          %v4728 = vadd.f32 %v4547, %v4727
          %v4729 = vpop.f32.mrb[0].mxu0
          %4730 = vmatprep.mubr.bf16.mxu0 %v4626
          %4731 = vmatmul.mubr.bf16.gmra.mrb[0].mxu0 %v4463
          %v4732 = vpop.f32.mrb[0].mxu0
          %v4733 = vadd.f32 %v4547, %v4732
          %v4734 = vpop.f32.mrb[0].mxu0
          %v4735 = vpop.f32.mrb[0].mxu0
          %v4736 = vadd.f32 %v4547, %v4735
          %v4737 = vpop.f32.mrb[0].mxu0
          %4738 = vmatprep.mubr.bf16.mxu0 %v4629
          %4739 = vmatmul.mubr.bf16.gmra.mrb[0].mxu0 %v4464
          %v4740 = vpop.f32.mrb[0].mxu0
          %v4741 = vadd.f32 %v4547, %v4740
          %v4742 = vpop.f32.mrb[0].mxu0
          %v4743 = vpop.f32.mrb[0].mxu0
          %v4744 = vadd.f32 %v4547, %v4743
          %v4745 = vpop.f32.mrb[0].mxu0
          %4746 = vmatprep.mubr.bf16.mxu0 %v4632
          %4747 = vmatmul.mubr.bf16.gmra.mrb[0].mxu0 %v4465
          %v4748 = vpop.f32.mrb[0].mxu0
          %v4749 = vadd.f32 %v4547, %v4748
          %v4750 = vpop.f32.mrb[0].mxu0
          %v4751 = vpop.f32.mrb[0].mxu0
          %v4752 = vadd.f32 %v4547, %v4751
          %v4753 = vpop.f32.mrb[0].mxu0
          %4754 = vmatprep.mubr.bf16.mxu0 %v4635
          %4755 = vmatmul.mubr.bf16.gmra.mrb[0].mxu0 %v4466
          %v4756 = vpop.f32.mrb[0].mxu0
          %v4757 = vadd.f32 %v4547, %v4756
          %v4758 = vpop.f32.mrb[0].mxu0
          %v4759 = vpop.f32.mrb[0].mxu0
          %v4760 = vadd.f32 %v4547, %v4759
          %v4761 = vpop.f32.mrb[0].mxu0
          %4762 = vmatprep.mubr.bf16.mxu0 %v4638
          %4763 = vmatmul.mubr.bf16.gmra.mrb[0].mxu0 %v4467
          %v4764 = vpop.f32.mrb[0].mxu0
          %v4765 = vadd.f32 %v4547, %v4764
          %v4766 = vpop.f32.mrb[0].mxu0
          %v4767 = vpop.f32.mrb[0].mxu0
          %v4768 = vadd.f32 %v4547, %v4767
          %v4769 = vpop.f32.mrb[0].mxu0
          %4770 = vmatprep.mubr.bf16.mxu0 %v4641
          %4771 = vmatmul.mubr.bf16.gmra.mrb[0].mxu0 %v4468
          %v4772 = vpop.f32.mrb[0].mxu0
          %v4773 = vadd.f32 %v4547, %v4772
          %v4774 = vpop.f32.mrb[0].mxu0
          %v4775 = vpop.f32.mrb[0].mxu0
          %v4776 = vadd.f32 %v4547, %v4775
          %v4777 = vpop.f32.mrb[0].mxu0
          %4778 = vmatprep.mubr.bf16.mxu0 %v4644
          %4779 = vmatmul.mubr.bf16.gmra.mrb[0].mxu0 %v4469
          %v4780 = vpop.f32.mrb[0].mxu0
          %v4781 = vadd.f32 %v4547, %v4780
          %v4782 = vpop.f32.mrb[0].mxu0
          %v4783 = vpop.f32.mrb[0].mxu0
          %v4784 = vadd.f32 %v4547, %v4783
          %v4785 = vpop.f32.mrb[0].mxu0
          %4786 = vmatprep.mubr.bf16.mxu0 %v4647
          %4787 = vmatmul.mubr.bf16.gmra.mrb[0].mxu0 %v4470
          %v4788 = vpop.f32.mrb[0].mxu0
          %v4789 = vadd.f32 %v4547, %v4788
          %v4790 = vpop.f32.mrb[0].mxu0
          %v4791 = vpop.f32.mrb[0].mxu0
          %v4792 = vadd.f32 %v4547, %v4791
          %v4793 = vpop.f32.mrb[0].mxu0
          %4794 = vmatprep.mubr.bf16.mxu0 %v4650
          %4795 = vmatmul.mubr.bf16.gmra.mrb[0].mxu0 %v4471
          %v4796 = vpop.f32.mrb[0].mxu0
          %v4797 = vadd.f32 %v4547, %v4796
          %v4798 = vpop.f32.mrb[0].mxu0
          %v4799 = vpop.f32.mrb[0].mxu0
          %v4800 = vadd.f32 %v4547, %v4799
          %v4801 = vpop.f32.mrb[0].mxu0
          %4802 = vmatprep.mubr.bf16.mxu0 %v4653
          %4803 = vmatmul.mubr.bf16.gmra.mrb[0].mxu0 %v4472
          %v4804 = vpop.f32.mrb[0].mxu0
          %v4805 = vadd.f32 %v4547, %v4804
          %v4806 = vpop.f32.mrb[0].mxu0
          %v4807 = vpop.f32.mrb[0].mxu0
          %v4808 = vadd.f32 %v4547, %v4807
          %v4809 = vpop.f32.mrb[0].mxu0
          %4810 = vmatprep.mubr.bf16.mxu0 %v4656
          %4811 = vmatmul.mubr.bf16.gmra.mrb[0].mxu0 %v4473
          %v4812 = vpop.f32.mrb[0].mxu0
          %v4813 = vadd.f32 %v4547, %v4812
          %v4814 = vpop.f32.mrb[0].mxu0
          %v4815 = vpop.f32.mrb[0].mxu0
          %v4816 = vadd.f32 %v4547, %v4815
          %v4817 = vpop.f32.mrb[0].mxu0
          %4818 = vdwg.mxu0
          %v4819 = vpack.c.bf16 %v4696, %v4693
          %v4820 = vpack.c.bf16 %v4704, %v4701
          %v4821 = vpack.c.bf16 %v4712, %v4709
          %v4822 = vpack.c.bf16 %v4720, %v4717
          %v4823 = vpack.c.bf16 %v4728, %v4725
          %v4824 = vpack.c.bf16 %v4736, %v4733
          %v4825 = vpack.c.bf16 %v4744, %v4741
          %v4826 = vpack.c.bf16 %v4752, %v4749
          %v4827 = vpack.c.bf16 %v4760, %v4757
          %v4828 = vpack.c.bf16 %v4768, %v4765
          %v4829 = vpack.c.bf16 %v4776, %v4773
          %v4830 = vpack.c.bf16 %v4784, %v4781
          %v4831 = vpack.c.bf16 %v4792, %v4789
          %v4832 = vpack.c.bf16 %v4800, %v4797
          %v4833 = vpack.c.bf16 %v4808, %v4805
          %v4834 = vpack.c.bf16 %v4816, %v4813
          %4835 = vst [vmem:[#allocation3] sm:$0xff] %v4819
          %4836 = vst [vmem:[#allocation3 + $0x8] sm:$0xff] %v4820
          %4837 = vst [vmem:[#allocation3 + $0x10] sm:$0xff] %v4821
          %4838 = vst [vmem:[#allocation3 + $0x18] sm:$0xff] %v4822
          %4839 = vst [vmem:[#allocation3 + $0x20] sm:$0xff] %v4823
          %4840 = vst [vmem:[#allocation3 + $0x28] sm:$0xff] %v4824
          %4841 = vst [vmem:[#allocation3 + $0x30] sm:$0xff] %v4825
          %4842 = vst [vmem:[#allocation3 + $0x38] sm:$0xff] %v4826
          %4843 = vst [vmem:[#allocation3 + $0x40] sm:$0xff] %v4827
          %4844 = vst [vmem:[#allocation3 + $0x48] sm:$0xff] %v4828
          %4845 = vst [vmem:[#allocation3 + $0x50] sm:$0xff] %v4829
          %4846 = vst [vmem:[#allocation3 + $0x58] sm:$0xff] %v4830
          %4847 = vst [vmem:[#allocation3 + $0x60] sm:$0xff] %v4831
          %4848 = vst [vmem:[#allocation3 + $0x68] sm:$0xff] %v4832
          %4849 = vst [vmem:[#allocation3 + $0x70] sm:$0xff] %v4833
          %4850 = vst [vmem:[#allocation3 + $0x78] sm:$0xff] %v4834
          %v4851 = vld [vmem:[%s639] sm:$0xff]
          %v4852 = vld [vmem:[%s639 + $0x8] sm:$0xff]
          %v4853 = vld [vmem:[%s639 + $0x10] sm:$0xff]
          %v4854 = vld [vmem:[%s639 + $0x18] sm:$0xff]
          %v4855 = vld [vmem:[%s639 + $0x20] sm:$0xff]
          %v4856 = vld [vmem:[%s639 + $0x28] sm:$0xff]
          %v4857 = vld [vmem:[%s639 + $0x30] sm:$0xff]
          %v4858 = vld [vmem:[%s639 + $0x38] sm:$0xff]
          %v4859 = vld [vmem:[%s639 + $0x40] sm:$0xff]
          %v4860 = vld [vmem:[%s639 + $0x48] sm:$0xff]
          %v4861 = vld [vmem:[%s639 + $0x50] sm:$0xff]
          %v4862 = vld [vmem:[%s639 + $0x58] sm:$0xff]
          %v4863 = vld [vmem:[%s639 + $0x60] sm:$0xff]
          %v4864 = vld [vmem:[%s639 + $0x68] sm:$0xff]
          %v4865 = vld [vmem:[%s639 + $0x70] sm:$0xff]
          %v4866 = vld [vmem:[%s639 + $0x78] sm:$0xff]
          %v4867 = vld [vmem:[%s639 + $0x80] sm:$0xff]
          %v4868 = vld [vmem:[%s639 + $0x88] sm:$0xff]
          %v4869 = vld [vmem:[%s639 + $0x90] sm:$0xff]
          %v4870 = vld [vmem:[%s639 + $0x98] sm:$0xff]
          %v4871 = vld [vmem:[%s639 + $0xa0] sm:$0xff]
          %v4872 = vld [vmem:[%s639 + $0xa8] sm:$0xff]
          %v4873 = vld [vmem:[%s639 + $0xb0] sm:$0xff]
          %v4874 = vld [vmem:[%s639 + $0xb8] sm:$0xff]
          %v4875 = vld [vmem:[%s639 + $0xc0] sm:$0xff]
          %v4876 = vld [vmem:[%s639 + $0xc8] sm:$0xff]
          %v4877 = vld [vmem:[%s639 + $0xd0] sm:$0xff]
          %v4878 = vld [vmem:[%s639 + $0xd8] sm:$0xff]
          %v4879 = vld [vmem:[%s639 + $0xe0] sm:$0xff]
          %v4880 = vld [vmem:[%s639 + $0xe8] sm:$0xff]
          %v4881 = vld [vmem:[%s639 + $0xf0] sm:$0xff]
          %v4882 = vld [vmem:[%s639 + $0xf8] sm:$0xff]
          %v4883 = vld [vmem:[%s8] sm:$0x1]
          %v4884 = vpack.c.bf16 %v4852, %v4851
          %v4885 = vpack.c.bf16 %v4854, %v4853
          %v4886 = vpack.c.bf16 %v4856, %v4855
          %v4887 = vpack.c.bf16 %v4858, %v4857
          %v4888 = vpack.c.bf16 %v4860, %v4859
          %v4889 = vpack.c.bf16 %v4862, %v4861
          %v4890 = vpack.c.bf16 %v4864, %v4863
          %v4891 = vpack.c.bf16 %v4866, %v4865
          %v4892 = vpack.c.bf16 %v4868, %v4867
          %v4893 = vpack.c.bf16 %v4870, %v4869
          %v4894 = vpack.c.bf16 %v4872, %v4871
          %v4895 = vpack.c.bf16 %v4874, %v4873
          %v4896 = vpack.c.bf16 %v4876, %v4875
          %v4897 = vpack.c.bf16 %v4878, %v4877
          %v4898 = vpack.c.bf16 %v4880, %v4879
          %v4899 = vpack.c.bf16 %v4882, %v4881
          %v4900 = vld [vmem:[%s7] sm:$0xf]
          %v4901 = vld [vmem:[%s7 + $0x4] sm:$0xf]
          %v4902 = vld [vmem:[%s7 + $0x8] sm:$0xf]
          %v4903 = vld [vmem:[%s7 + $0xc] sm:$0xf]
          %v4904 = vld [vmem:[%s7 + $0x10] sm:$0xf]
          %v4905 = vld [vmem:[%s7 + $0x14] sm:$0xf]
          %v4906 = vld [vmem:[%s7 + $0x18] sm:$0xf]
          %v4907 = vld [vmem:[%s7 + $0x1c] sm:$0xf]
          %v4908 = vld [vmem:[%s7 + $0x20] sm:$0xf]
          %v4909 = vld [vmem:[%s7 + $0x24] sm:$0xf]
          %v4910 = vld [vmem:[%s7 + $0x28] sm:$0xf]
          %v4911 = vld [vmem:[%s7 + $0x2c] sm:$0xf]
          %v4912 = vld [vmem:[%s7 + $0x30] sm:$0xf]
          %v4913 = vld [vmem:[%s7 + $0x34] sm:$0xf]
          %v4914 = vld [vmem:[%s7 + $0x38] sm:$0xf]
          %v4915 = vld [vmem:[%s7 + $0x3c] sm:$0xf]
          %v4917 = vlaneseq
          %v4918 = vshrl.u32 %v4917, 7
          %v4919 = vsub.s32 0, %v4918
          %v4920 = vrot.slane %v4883, %v4919
          %v4938 = vunpack.c.l.b16 %v4900
          %v4939 = vunpack.c.l.b16 %v4901
          %v4940 = vunpack.c.l.b16 %v4902
          %v4941 = vunpack.c.l.b16 %v4903
          %v4942 = vunpack.c.l.b16 %v4904
          %v4943 = vunpack.c.l.b16 %v4905
          %v4944 = vunpack.c.l.b16 %v4906
          %v4945 = vunpack.c.l.b16 %v4907
          %v4946 = vunpack.c.l.b16 %v4908
          %v4947 = vunpack.c.l.b16 %v4909
          %v4948 = vunpack.c.l.b16 %v4910
          %v4949 = vunpack.c.l.b16 %v4911
          %v4950 = vunpack.c.l.b16 %v4912
          %v4951 = vunpack.c.l.b16 %v4913
          %v4952 = vunpack.c.l.b16 %v4914
          %v4953 = vunpack.c.l.b16 %v4915
          %v4954 = vpack.c.b16 %v4939, %v4938
          %v4955 = vpack.c.b16 %v4941, %v4940
          %v4956 = vpack.c.b16 %v4943, %v4942
          %v4957 = vpack.c.b16 %v4945, %v4944
          %v4958 = vpack.c.b16 %v4947, %v4946
          %v4959 = vpack.c.b16 %v4949, %v4948
          %v4960 = vpack.c.b16 %v4951, %v4950
          %v4961 = vpack.c.b16 %v4953, %v4952
          %4970 = vmatprep.subr.bf16.mxu0 0
          %4971 = vmatpush1.bf16.msra.mxu0 %v4954
          %4972 = vmatprep.subr.bf16.mxu0 0
          %4973 = vmatpush1.bf16.msra.mxu0 %v4955
          %4974 = vmatprep.subr.bf16.mxu0 0
          %4975 = vmatpush1.bf16.msra.mxu0 %v4956
          %4976 = vmatprep.subr.bf16.mxu0 0
          %4977 = vmatpush1.bf16.msra.mxu0 %v4957
          %4978 = vmatprep.subr.bf16.mxu0 0
          %4979 = vmatpush1.bf16.msra.mxu0 %v4958
          %4980 = vmatprep.subr.bf16.mxu0 0
          %4981 = vmatpush1.bf16.msra.mxu0 %v4959
          %4982 = vmatprep.subr.bf16.mxu0 0
          %4983 = vmatpush1.bf16.msra.mxu0 %v4960
          %4984 = vmatprep.subr.bf16.mxu0 0
          %4985 = vmatpush1.bf16.msra.mxu0 %v4961
          %4986 = vmatprep.subr.bf16.mxu0 0
          %4987 = vmatpush1.bf16.msra.mxu0 0
          %4988 = vmatprep.subr.bf16.mxu0 0
          %4989 = vmatpush1.bf16.msra.mxu0 0
          %4990 = vmatprep.subr.bf16.mxu0 0
          %4991 = vmatpush1.bf16.msra.mxu0 0
          %4992 = vmatprep.subr.bf16.mxu0 0
          %4993 = vmatpush1.bf16.msra.mxu0 0
          %4994 = vmatprep.subr.bf16.mxu0 0
          %4995 = vmatpush1.bf16.msra.mxu0 0
          %4996 = vmatprep.subr.bf16.mxu0 0
          %4997 = vmatpush1.bf16.msra.mxu0 0
          %4998 = vmatprep.subr.bf16.mxu0 0
          %4999 = vmatpush1.bf16.msra.mxu0 0
          %5000 = vmatprep.subr.bf16.mxu0 0
          %5001 = vmatpush1.bf16.msra.mxu0 0
          %5002 = vmatprep.mubr.bf16.mxu0 0
          %5003 = vmatmul.mubr.bf16.gmra.mrb[0].mxu0 %v4884
          %v5004 = vpop.f32.mrb[0].mxu0
          %v5005 = vadd.f32 %v4920, %v5004
          %v5006 = vpop.f32.mrb[0].mxu0
          %v5007 = vpop.f32.mrb[0].mxu0
          %v5008 = vadd.f32 %v4920, %v5007
          %v5009 = vpop.f32.mrb[0].mxu0
          %5010 = vmatprep.mubr.bf16.mxu0 0
          %5011 = vmatmul.mubr.bf16.gmra.mrb[0].mxu0 %v4885
          %v5012 = vpop.f32.mrb[0].mxu0
          %v5013 = vadd.f32 %v4920, %v5012
          %v5014 = vpop.f32.mrb[0].mxu0
          %v5015 = vpop.f32.mrb[0].mxu0
          %v5016 = vadd.f32 %v4920, %v5015
          %v5017 = vpop.f32.mrb[0].mxu0
          %5018 = vmatprep.mubr.bf16.mxu0 0
          %5019 = vmatmul.mubr.bf16.gmra.mrb[0].mxu0 %v4886
          %v5020 = vpop.f32.mrb[0].mxu0
          %v5021 = vadd.f32 %v4920, %v5020
          %v5022 = vpop.f32.mrb[0].mxu0
          %v5023 = vpop.f32.mrb[0].mxu0
          %v5024 = vadd.f32 %v4920, %v5023
          %v5025 = vpop.f32.mrb[0].mxu0
          %5026 = vmatprep.mubr.bf16.mxu0 0
          %5027 = vmatmul.mubr.bf16.gmra.mrb[0].mxu0 %v4887
          %v5028 = vpop.f32.mrb[0].mxu0
          %v5029 = vadd.f32 %v4920, %v5028
          %v5030 = vpop.f32.mrb[0].mxu0
          %v5031 = vpop.f32.mrb[0].mxu0
          %v5032 = vadd.f32 %v4920, %v5031
          %v5033 = vpop.f32.mrb[0].mxu0
          %5034 = vmatprep.mubr.bf16.mxu0 0
          %5035 = vmatmul.mubr.bf16.gmra.mrb[0].mxu0 %v4888
          %v5036 = vpop.f32.mrb[0].mxu0
          %v5037 = vadd.f32 %v4920, %v5036
          %v5038 = vpop.f32.mrb[0].mxu0
          %v5039 = vpop.f32.mrb[0].mxu0
          %v5040 = vadd.f32 %v4920, %v5039
          %v5041 = vpop.f32.mrb[0].mxu0
          %5042 = vmatprep.mubr.bf16.mxu0 0
          %5043 = vmatmul.mubr.bf16.gmra.mrb[0].mxu0 %v4889
          %v5044 = vpop.f32.mrb[0].mxu0
          %v5045 = vadd.f32 %v4920, %v5044
          %v5046 = vpop.f32.mrb[0].mxu0
          %v5047 = vpop.f32.mrb[0].mxu0
          %v5048 = vadd.f32 %v4920, %v5047
          %v5049 = vpop.f32.mrb[0].mxu0
          %5050 = vmatprep.mubr.bf16.mxu0 0
          %5051 = vmatmul.mubr.bf16.gmra.mrb[0].mxu0 %v4890
          %v5052 = vpop.f32.mrb[0].mxu0
          %v5053 = vadd.f32 %v4920, %v5052
          %v5054 = vpop.f32.mrb[0].mxu0
          %v5055 = vpop.f32.mrb[0].mxu0
          %v5056 = vadd.f32 %v4920, %v5055
          %v5057 = vpop.f32.mrb[0].mxu0
          %5058 = vmatprep.mubr.bf16.mxu0 0
          %5059 = vmatmul.mubr.bf16.gmra.mrb[0].mxu0 %v4891
          %v5060 = vpop.f32.mrb[0].mxu0
          %v5061 = vadd.f32 %v4920, %v5060
          %v5062 = vpop.f32.mrb[0].mxu0
          %v5063 = vpop.f32.mrb[0].mxu0
          %v5064 = vadd.f32 %v4920, %v5063
          %v5065 = vpop.f32.mrb[0].mxu0
          %5066 = vmatprep.mubr.bf16.mxu0 0
          %5067 = vmatmul.mubr.bf16.gmra.mrb[0].mxu0 %v4892
          %v5068 = vpop.f32.mrb[0].mxu0
          %v5069 = vadd.f32 %v4920, %v5068
          %v5070 = vpop.f32.mrb[0].mxu0
          %v5071 = vpop.f32.mrb[0].mxu0
          %v5072 = vadd.f32 %v4920, %v5071
          %v5073 = vpop.f32.mrb[0].mxu0
          %5074 = vmatprep.mubr.bf16.mxu0 0
          %5075 = vmatmul.mubr.bf16.gmra.mrb[0].mxu0 %v4893
          %v5076 = vpop.f32.mrb[0].mxu0
          %v5077 = vadd.f32 %v4920, %v5076
          %v5078 = vpop.f32.mrb[0].mxu0
          %v5079 = vpop.f32.mrb[0].mxu0
          %v5080 = vadd.f32 %v4920, %v5079
          %v5081 = vpop.f32.mrb[0].mxu0
          %5082 = vmatprep.mubr.bf16.mxu0 0
          %5083 = vmatmul.mubr.bf16.gmra.mrb[0].mxu0 %v4894
          %v5084 = vpop.f32.mrb[0].mxu0
          %v5085 = vadd.f32 %v4920, %v5084
          %v5086 = vpop.f32.mrb[0].mxu0
          %v5087 = vpop.f32.mrb[0].mxu0
          %v5088 = vadd.f32 %v4920, %v5087
          %v5089 = vpop.f32.mrb[0].mxu0
          %5090 = vmatprep.mubr.bf16.mxu0 0
          %5091 = vmatmul.mubr.bf16.gmra.mrb[0].mxu0 %v4895
          %v5092 = vpop.f32.mrb[0].mxu0
          %v5093 = vadd.f32 %v4920, %v5092
          %v5094 = vpop.f32.mrb[0].mxu0
          %v5095 = vpop.f32.mrb[0].mxu0
          %v5096 = vadd.f32 %v4920, %v5095
          %v5097 = vpop.f32.mrb[0].mxu0
          %5098 = vmatprep.mubr.bf16.mxu0 0
          %5099 = vmatmul.mubr.bf16.gmra.mrb[0].mxu0 %v4896
          %v5100 = vpop.f32.mrb[0].mxu0
          %v5101 = vadd.f32 %v4920, %v5100
          %v5102 = vpop.f32.mrb[0].mxu0
          %v5103 = vpop.f32.mrb[0].mxu0
          %v5104 = vadd.f32 %v4920, %v5103
          %v5105 = vpop.f32.mrb[0].mxu0
          %5106 = vmatprep.mubr.bf16.mxu0 0
          %5107 = vmatmul.mubr.bf16.gmra.mrb[0].mxu0 %v4897
          %v5108 = vpop.f32.mrb[0].mxu0
          %v5109 = vadd.f32 %v4920, %v5108
          %v5110 = vpop.f32.mrb[0].mxu0
          %v5111 = vpop.f32.mrb[0].mxu0
          %v5112 = vadd.f32 %v4920, %v5111
          %v5113 = vpop.f32.mrb[0].mxu0
          %5114 = vmatprep.mubr.bf16.mxu0 0
          %5115 = vmatmul.mubr.bf16.gmra.mrb[0].mxu0 %v4898
          %v5116 = vpop.f32.mrb[0].mxu0
          %v5117 = vadd.f32 %v4920, %v5116
          %v5118 = vpop.f32.mrb[0].mxu0
          %v5119 = vpop.f32.mrb[0].mxu0
          %v5120 = vadd.f32 %v4920, %v5119
          %v5121 = vpop.f32.mrb[0].mxu0
          %5122 = vmatprep.mubr.bf16.mxu0 0
          %5123 = vmatmul.mubr.bf16.gmra.mrb[0].mxu0 %v4899
          %v5124 = vpop.f32.mrb[0].mxu0
          %v5125 = vadd.f32 %v4920, %v5124
          %v5126 = vpop.f32.mrb[0].mxu0
          %v5127 = vpop.f32.mrb[0].mxu0
          %v5128 = vadd.f32 %v4920, %v5127
          %v5129 = vpop.f32.mrb[0].mxu0
          %5130 = vdwg.mxu0
          %v5131 = vld [vmem:[%s9] sm:$0x1]
          %v5132 = vld [vmem:[%s10] sm:$0x1]
          %5133 = vadd.xlane.f32.xlu0 %v5005
          %v5134 = vpop.xlane.xlu0 %5133
          %5135 = vadd.xlane.f32.xlu0 %v5008
          %v5136 = vpop.xlane.xlu0 %5135
          %5137 = vadd.xlane.f32.xlu0 %v5013
          %v5138 = vpop.xlane.xlu0 %5137
          %5139 = vadd.xlane.f32.xlu0 %v5016
          %v5140 = vpop.xlane.xlu0 %5139
          %5141 = vadd.xlane.f32.xlu0 %v5021
          %v5142 = vpop.xlane.xlu0 %5141
          %5143 = vadd.xlane.f32.xlu0 %v5024
          %v5144 = vpop.xlane.xlu0 %5143
          %5145 = vadd.xlane.f32.xlu0 %v5029
          %v5146 = vpop.xlane.xlu0 %5145
          %5147 = vadd.xlane.f32.xlu0 %v5032
          %v5148 = vpop.xlane.xlu0 %5147
          %5149 = vadd.xlane.f32.xlu0 %v5037
          %v5150 = vpop.xlane.xlu0 %5149
          %5151 = vadd.xlane.f32.xlu0 %v5040
          %v5152 = vpop.xlane.xlu0 %5151
          %5153 = vadd.xlane.f32.xlu0 %v5045
          %v5154 = vpop.xlane.xlu0 %5153
          %5155 = vadd.xlane.f32.xlu0 %v5048
          %v5156 = vpop.xlane.xlu0 %5155
          %5157 = vadd.xlane.f32.xlu0 %v5053
          %v5158 = vpop.xlane.xlu0 %5157
          %5159 = vadd.xlane.f32.xlu0 %v5056
          %v5160 = vpop.xlane.xlu0 %5159
          %5161 = vadd.xlane.f32.xlu0 %v5061
          %v5162 = vpop.xlane.xlu0 %5161
          %5163 = vadd.xlane.f32.xlu0 %v5064
          %v5164 = vpop.xlane.xlu0 %5163
          %5165 = vadd.xlane.f32.xlu0 %v5069
          %v5166 = vpop.xlane.xlu0 %5165
          %5167 = vadd.xlane.f32.xlu0 %v5072
          %v5168 = vpop.xlane.xlu0 %5167
          %5169 = vadd.xlane.f32.xlu0 %v5077
          %v5170 = vpop.xlane.xlu0 %5169
          %5171 = vadd.xlane.f32.xlu0 %v5080
          %v5172 = vpop.xlane.xlu0 %5171
          %5173 = vadd.xlane.f32.xlu0 %v5085
          %v5174 = vpop.xlane.xlu0 %5173
          %5175 = vadd.xlane.f32.xlu0 %v5088
          %v5176 = vpop.xlane.xlu0 %5175
          %5177 = vadd.xlane.f32.xlu0 %v5093
          %v5178 = vpop.xlane.xlu0 %5177
          %5179 = vadd.xlane.f32.xlu0 %v5096
          %v5180 = vpop.xlane.xlu0 %5179
          %5181 = vadd.xlane.f32.xlu0 %v5101
          %v5182 = vpop.xlane.xlu0 %5181
          %5183 = vadd.xlane.f32.xlu0 %v5104
          %v5184 = vpop.xlane.xlu0 %5183
          %5185 = vadd.xlane.f32.xlu0 %v5109
          %v5186 = vpop.xlane.xlu0 %5185
          %5187 = vadd.xlane.f32.xlu0 %v5112
          %v5188 = vpop.xlane.xlu0 %5187
          %5189 = vadd.xlane.f32.xlu0 %v5117
          %v5190 = vpop.xlane.xlu0 %5189
          %5191 = vadd.xlane.f32.xlu0 %v5120
          %v5192 = vpop.xlane.xlu0 %5191
          %5193 = vadd.xlane.f32.xlu0 %v5125
          %v5194 = vpop.xlane.xlu0 %5193
          %5195 = vadd.xlane.f32.xlu0 %v5128
          %v5196 = vpop.xlane.xlu0 %5195
          %v5197 = vrcp.pop 128.0
          %v5198 = vmul.f32 %v5134, %v5197
          %v5199 = vmul.f32 %v5136, %v5197
          %v5200 = vmul.f32 %v5138, %v5197
          %v5201 = vmul.f32 %v5140, %v5197
          %v5202 = vmul.f32 %v5142, %v5197
          %v5203 = vmul.f32 %v5144, %v5197
          %v5204 = vmul.f32 %v5146, %v5197
          %v5205 = vmul.f32 %v5148, %v5197
          %v5206 = vmul.f32 %v5150, %v5197
          %v5207 = vmul.f32 %v5152, %v5197
          %v5208 = vmul.f32 %v5154, %v5197
          %v5209 = vmul.f32 %v5156, %v5197
          %v5210 = vmul.f32 %v5158, %v5197
          %v5211 = vmul.f32 %v5160, %v5197
          %v5212 = vmul.f32 %v5162, %v5197
          %v5213 = vmul.f32 %v5164, %v5197
          %v5214 = vmul.f32 %v5166, %v5197
          %v5215 = vmul.f32 %v5168, %v5197
          %v5216 = vmul.f32 %v5170, %v5197
          %v5217 = vmul.f32 %v5172, %v5197
          %v5218 = vmul.f32 %v5174, %v5197
          %v5219 = vmul.f32 %v5176, %v5197
          %v5220 = vmul.f32 %v5178, %v5197
          %v5221 = vmul.f32 %v5180, %v5197
          %v5222 = vmul.f32 %v5182, %v5197
          %v5223 = vmul.f32 %v5184, %v5197
          %v5224 = vmul.f32 %v5186, %v5197
          %v5225 = vmul.f32 %v5188, %v5197
          %v5226 = vmul.f32 %v5190, %v5197
          %v5227 = vmul.f32 %v5192, %v5197
          %v5228 = vmul.f32 %v5194, %v5197
          %v5229 = vmul.f32 %v5196, %v5197
          %v5230 = vmul.f32 %v5005, %v5005
          %v5231 = vmul.f32 %v5008, %v5008
          %v5232 = vmul.f32 %v5013, %v5013
          %v5233 = vmul.f32 %v5016, %v5016
          %v5234 = vmul.f32 %v5021, %v5021
          %v5235 = vmul.f32 %v5024, %v5024
          %v5236 = vmul.f32 %v5029, %v5029
          %v5237 = vmul.f32 %v5032, %v5032
          %v5238 = vmul.f32 %v5037, %v5037
          %v5239 = vmul.f32 %v5040, %v5040
          %v5240 = vmul.f32 %v5045, %v5045
          %v5241 = vmul.f32 %v5048, %v5048
          %v5242 = vmul.f32 %v5053, %v5053
          %v5243 = vmul.f32 %v5056, %v5056
          %v5244 = vmul.f32 %v5061, %v5061
          %v5245 = vmul.f32 %v5064, %v5064
          %v5246 = vmul.f32 %v5069, %v5069
          %v5247 = vmul.f32 %v5072, %v5072
          %v5248 = vmul.f32 %v5077, %v5077
          %v5249 = vmul.f32 %v5080, %v5080
          %v5250 = vmul.f32 %v5085, %v5085
          %v5251 = vmul.f32 %v5088, %v5088
          %v5252 = vmul.f32 %v5093, %v5093
          %v5253 = vmul.f32 %v5096, %v5096
          %v5254 = vmul.f32 %v5101, %v5101
          %v5255 = vmul.f32 %v5104, %v5104
          %v5256 = vmul.f32 %v5109, %v5109
          %v5257 = vmul.f32 %v5112, %v5112
          %v5258 = vmul.f32 %v5117, %v5117
          %v5259 = vmul.f32 %v5120, %v5120
          %v5260 = vmul.f32 %v5125, %v5125
          %v5261 = vmul.f32 %v5128, %v5128
          %5262 = vadd.xlane.f32.xlu0 %v5230
          %v5263 = vpop.xlane.xlu0 %5262
          %5264 = vadd.xlane.f32.xlu0 %v5231
          %v5265 = vpop.xlane.xlu0 %5264
          %5266 = vadd.xlane.f32.xlu0 %v5232
          %v5267 = vpop.xlane.xlu0 %5266
          %5268 = vadd.xlane.f32.xlu0 %v5233
          %v5269 = vpop.xlane.xlu0 %5268
          %5270 = vadd.xlane.f32.xlu0 %v5234
          %v5271 = vpop.xlane.xlu0 %5270
          %5272 = vadd.xlane.f32.xlu0 %v5235
          %v5273 = vpop.xlane.xlu0 %5272
          %5274 = vadd.xlane.f32.xlu0 %v5236
          %v5275 = vpop.xlane.xlu0 %5274
          %5276 = vadd.xlane.f32.xlu0 %v5237
          %v5277 = vpop.xlane.xlu0 %5276
          %5278 = vadd.xlane.f32.xlu0 %v5238
          %v5279 = vpop.xlane.xlu0 %5278
          %5280 = vadd.xlane.f32.xlu0 %v5239
          %v5281 = vpop.xlane.xlu0 %5280
          %5282 = vadd.xlane.f32.xlu0 %v5240
          %v5283 = vpop.xlane.xlu0 %5282
          %5284 = vadd.xlane.f32.xlu0 %v5241
          %v5285 = vpop.xlane.xlu0 %5284
          %5286 = vadd.xlane.f32.xlu0 %v5242
          %v5287 = vpop.xlane.xlu0 %5286
          %5288 = vadd.xlane.f32.xlu0 %v5243
          %v5289 = vpop.xlane.xlu0 %5288
          %5290 = vadd.xlane.f32.xlu0 %v5244
          %v5291 = vpop.xlane.xlu0 %5290
          %5292 = vadd.xlane.f32.xlu0 %v5245
          %v5293 = vpop.xlane.xlu0 %5292
          %5294 = vadd.xlane.f32.xlu0 %v5246
          %v5295 = vpop.xlane.xlu0 %5294
          %5296 = vadd.xlane.f32.xlu0 %v5247
          %v5297 = vpop.xlane.xlu0 %5296
          %5298 = vadd.xlane.f32.xlu0 %v5248
          %v5299 = vpop.xlane.xlu0 %5298
          %5300 = vadd.xlane.f32.xlu0 %v5249
          %v5301 = vpop.xlane.xlu0 %5300
          %5302 = vadd.xlane.f32.xlu0 %v5250
          %v5303 = vpop.xlane.xlu0 %5302
          %5304 = vadd.xlane.f32.xlu0 %v5251
          %v5305 = vpop.xlane.xlu0 %5304
          %5306 = vadd.xlane.f32.xlu0 %v5252
          %v5307 = vpop.xlane.xlu0 %5306
          %5308 = vadd.xlane.f32.xlu0 %v5253
          %v5309 = vpop.xlane.xlu0 %5308
          %5310 = vadd.xlane.f32.xlu0 %v5254
          %v5311 = vpop.xlane.xlu0 %5310
          %5312 = vadd.xlane.f32.xlu0 %v5255
          %v5313 = vpop.xlane.xlu0 %5312
          %5314 = vadd.xlane.f32.xlu0 %v5256
          %v5315 = vpop.xlane.xlu0 %5314
          %5316 = vadd.xlane.f32.xlu0 %v5257
          %v5317 = vpop.xlane.xlu0 %5316
          %5318 = vadd.xlane.f32.xlu0 %v5258
          %v5319 = vpop.xlane.xlu0 %5318
          %5320 = vadd.xlane.f32.xlu0 %v5259
          %v5321 = vpop.xlane.xlu0 %5320
          %5322 = vadd.xlane.f32.xlu0 %v5260
          %v5323 = vpop.xlane.xlu0 %5322
          %5324 = vadd.xlane.f32.xlu0 %v5261
          %v5325 = vpop.xlane.xlu0 %5324
          %v5326 = vmul.f32 %v5263, %v5197
          %v5327 = vmul.f32 %v5265, %v5197
          %v5328 = vmul.f32 %v5267, %v5197
          %v5329 = vmul.f32 %v5269, %v5197
          %v5330 = vmul.f32 %v5271, %v5197
          %v5331 = vmul.f32 %v5273, %v5197
          %v5332 = vmul.f32 %v5275, %v5197
          %v5333 = vmul.f32 %v5277, %v5197
          %v5334 = vmul.f32 %v5279, %v5197
          %v5335 = vmul.f32 %v5281, %v5197
          %v5336 = vmul.f32 %v5283, %v5197
          %v5337 = vmul.f32 %v5285, %v5197
          %v5338 = vmul.f32 %v5287, %v5197
          %v5339 = vmul.f32 %v5289, %v5197
          %v5340 = vmul.f32 %v5291, %v5197
          %v5341 = vmul.f32 %v5293, %v5197
          %v5342 = vmul.f32 %v5295, %v5197
          %v5343 = vmul.f32 %v5297, %v5197
          %v5344 = vmul.f32 %v5299, %v5197
          %v5345 = vmul.f32 %v5301, %v5197
          %v5346 = vmul.f32 %v5303, %v5197
          %v5347 = vmul.f32 %v5305, %v5197
          %v5348 = vmul.f32 %v5307, %v5197
          %v5349 = vmul.f32 %v5309, %v5197
          %v5350 = vmul.f32 %v5311, %v5197
          %v5351 = vmul.f32 %v5313, %v5197
          %v5352 = vmul.f32 %v5315, %v5197
          %v5353 = vmul.f32 %v5317, %v5197
          %v5354 = vmul.f32 %v5319, %v5197
          %v5355 = vmul.f32 %v5321, %v5197
          %v5356 = vmul.f32 %v5323, %v5197
          %v5357 = vmul.f32 %v5325, %v5197
          %v5358 = vmul.f32 %v5198, %v5198
          %v5359 = vmul.f32 %v5199, %v5199
          %v5360 = vmul.f32 %v5200, %v5200
          %v5361 = vmul.f32 %v5201, %v5201
          %v5362 = vmul.f32 %v5202, %v5202
          %v5363 = vmul.f32 %v5203, %v5203
          %v5364 = vmul.f32 %v5204, %v5204
          %v5365 = vmul.f32 %v5205, %v5205
          %v5366 = vmul.f32 %v5206, %v5206
          %v5367 = vmul.f32 %v5207, %v5207
          %v5368 = vmul.f32 %v5208, %v5208
          %v5369 = vmul.f32 %v5209, %v5209
          %v5370 = vmul.f32 %v5210, %v5210
          %v5371 = vmul.f32 %v5211, %v5211
          %v5372 = vmul.f32 %v5212, %v5212
          %v5373 = vmul.f32 %v5213, %v5213
          %v5374 = vmul.f32 %v5214, %v5214
          %v5375 = vmul.f32 %v5215, %v5215
          %v5376 = vmul.f32 %v5216, %v5216
          %v5377 = vmul.f32 %v5217, %v5217
          %v5378 = vmul.f32 %v5218, %v5218
          %v5379 = vmul.f32 %v5219, %v5219
          %v5380 = vmul.f32 %v5220, %v5220
          %v5381 = vmul.f32 %v5221, %v5221
          %v5382 = vmul.f32 %v5222, %v5222
          %v5383 = vmul.f32 %v5223, %v5223
          %v5384 = vmul.f32 %v5224, %v5224
          %v5385 = vmul.f32 %v5225, %v5225
          %v5386 = vmul.f32 %v5226, %v5226
          %v5387 = vmul.f32 %v5227, %v5227
          %v5388 = vmul.f32 %v5228, %v5228
          %v5389 = vmul.f32 %v5229, %v5229
          %v5390 = vsub.f32 %v5326, %v5358
          %v5391 = vsub.f32 %v5327, %v5359
          %v5392 = vsub.f32 %v5328, %v5360
          %v5393 = vsub.f32 %v5329, %v5361
          %v5394 = vsub.f32 %v5330, %v5362
          %v5395 = vsub.f32 %v5331, %v5363
          %v5396 = vsub.f32 %v5332, %v5364
          %v5397 = vsub.f32 %v5333, %v5365
          %v5398 = vsub.f32 %v5334, %v5366
          %v5399 = vsub.f32 %v5335, %v5367
          %v5400 = vsub.f32 %v5336, %v5368
          %v5401 = vsub.f32 %v5337, %v5369
          %v5402 = vsub.f32 %v5338, %v5370
          %v5403 = vsub.f32 %v5339, %v5371
          %v5404 = vsub.f32 %v5340, %v5372
          %v5405 = vsub.f32 %v5341, %v5373
          %v5406 = vsub.f32 %v5342, %v5374
          %v5407 = vsub.f32 %v5343, %v5375
          %v5408 = vsub.f32 %v5344, %v5376
          %v5409 = vsub.f32 %v5345, %v5377
          %v5410 = vsub.f32 %v5346, %v5378
          %v5411 = vsub.f32 %v5347, %v5379
          %v5412 = vsub.f32 %v5348, %v5380
          %v5413 = vsub.f32 %v5349, %v5381
          %v5414 = vsub.f32 %v5350, %v5382
          %v5415 = vsub.f32 %v5351, %v5383
          %v5416 = vsub.f32 %v5352, %v5384
          %v5417 = vsub.f32 %v5353, %v5385
          %v5418 = vsub.f32 %v5354, %v5386
          %v5419 = vsub.f32 %v5355, %v5387
          %v5420 = vsub.f32 %v5356, %v5388
          %v5421 = vsub.f32 %v5357, %v5389
          %v5422 = vsub.f32 %v5005, %v5198
          %v5423 = vsub.f32 %v5008, %v5199
          %v5424 = vsub.f32 %v5013, %v5200
          %v5425 = vsub.f32 %v5016, %v5201
          %v5426 = vsub.f32 %v5021, %v5202
          %v5427 = vsub.f32 %v5024, %v5203
          %v5428 = vsub.f32 %v5029, %v5204
          %v5429 = vsub.f32 %v5032, %v5205
          %v5430 = vsub.f32 %v5037, %v5206
          %v5431 = vsub.f32 %v5040, %v5207
          %v5432 = vsub.f32 %v5045, %v5208
          %v5433 = vsub.f32 %v5048, %v5209
          %v5434 = vsub.f32 %v5053, %v5210
          %v5435 = vsub.f32 %v5056, %v5211
          %v5436 = vsub.f32 %v5061, %v5212
          %v5437 = vsub.f32 %v5064, %v5213
          %v5438 = vsub.f32 %v5069, %v5214
          %v5439 = vsub.f32 %v5072, %v5215
          %v5440 = vsub.f32 %v5077, %v5216
          %v5441 = vsub.f32 %v5080, %v5217
          %v5442 = vsub.f32 %v5085, %v5218
          %v5443 = vsub.f32 %v5088, %v5219
          %v5444 = vsub.f32 %v5093, %v5220
          %v5445 = vsub.f32 %v5096, %v5221
          %v5446 = vsub.f32 %v5101, %v5222
          %v5447 = vsub.f32 %v5104, %v5223
          %v5448 = vsub.f32 %v5109, %v5224
          %v5449 = vsub.f32 %v5112, %v5225
          %v5450 = vsub.f32 %v5117, %v5226
          %v5451 = vsub.f32 %v5120, %v5227
          %v5452 = vsub.f32 %v5125, %v5228
          %v5453 = vsub.f32 %v5128, %v5229
          %v5454 = vadd.f32 %v5390, 1e-05
          %v5455 = vadd.f32 %v5391, 1e-05
          %v5456 = vadd.f32 %v5392, 1e-05
          %v5457 = vadd.f32 %v5393, 1e-05
          %v5458 = vadd.f32 %v5394, 1e-05
          %v5459 = vadd.f32 %v5395, 1e-05
          %v5460 = vadd.f32 %v5396, 1e-05
          %v5461 = vadd.f32 %v5397, 1e-05
          %v5462 = vadd.f32 %v5398, 1e-05
          %v5463 = vadd.f32 %v5399, 1e-05
          %v5464 = vadd.f32 %v5400, 1e-05
          %v5465 = vadd.f32 %v5401, 1e-05
          %v5466 = vadd.f32 %v5402, 1e-05
          %v5467 = vadd.f32 %v5403, 1e-05
          %v5468 = vadd.f32 %v5404, 1e-05
          %v5469 = vadd.f32 %v5405, 1e-05
          %v5470 = vadd.f32 %v5406, 1e-05
          %v5471 = vadd.f32 %v5407, 1e-05
          %v5472 = vadd.f32 %v5408, 1e-05
          %v5473 = vadd.f32 %v5409, 1e-05
          %v5474 = vadd.f32 %v5410, 1e-05
          %v5475 = vadd.f32 %v5411, 1e-05
          %v5476 = vadd.f32 %v5412, 1e-05
          %v5477 = vadd.f32 %v5413, 1e-05
          %v5478 = vadd.f32 %v5414, 1e-05
          %v5479 = vadd.f32 %v5415, 1e-05
          %v5480 = vadd.f32 %v5416, 1e-05
          %v5481 = vadd.f32 %v5417, 1e-05
          %v5482 = vadd.f32 %v5418, 1e-05
          %v5483 = vadd.f32 %v5419, 1e-05
          %v5484 = vadd.f32 %v5420, 1e-05
          %v5485 = vadd.f32 %v5421, 1e-05
          %v5486 = vrsqrt.pop %v5454
          %v5487 = vrsqrt.pop %v5455
          %v5488 = vrsqrt.pop %v5456
          %v5489 = vrsqrt.pop %v5457
          %v5490 = vrsqrt.pop %v5458
          %v5491 = vrsqrt.pop %v5459
          %v5492 = vrsqrt.pop %v5460
          %v5493 = vrsqrt.pop %v5461
          %v5494 = vrsqrt.pop %v5462
          %v5495 = vrsqrt.pop %v5463
          %v5496 = vrsqrt.pop %v5464
          %v5497 = vrsqrt.pop %v5465
          %v5498 = vrsqrt.pop %v5466
          %v5499 = vrsqrt.pop %v5467
          %v5500 = vrsqrt.pop %v5468
          %v5501 = vrsqrt.pop %v5469
          %v5502 = vrsqrt.pop %v5470
          %v5503 = vrsqrt.pop %v5471
          %v5504 = vrsqrt.pop %v5472
          %v5505 = vrsqrt.pop %v5473
          %v5506 = vrsqrt.pop %v5474
          %v5507 = vrsqrt.pop %v5475
          %v5508 = vrsqrt.pop %v5476
          %v5509 = vrsqrt.pop %v5477
          %v5510 = vrsqrt.pop %v5478
          %v5511 = vrsqrt.pop %v5479
          %v5512 = vrsqrt.pop %v5480
          %v5513 = vrsqrt.pop %v5481
          %v5514 = vrsqrt.pop %v5482
          %v5515 = vrsqrt.pop %v5483
          %v5516 = vrsqrt.pop %v5484
          %v5517 = vrsqrt.pop %v5485
          %v5518 = vmul.f32 %v5422, %v5486
          %v5519 = vmul.f32 %v5423, %v5487
          %v5520 = vmul.f32 %v5424, %v5488
          %v5521 = vmul.f32 %v5425, %v5489
          %v5522 = vmul.f32 %v5426, %v5490
          %v5523 = vmul.f32 %v5427, %v5491
          %v5524 = vmul.f32 %v5428, %v5492
          %v5525 = vmul.f32 %v5429, %v5493
          %v5526 = vmul.f32 %v5430, %v5494
          %v5527 = vmul.f32 %v5431, %v5495
          %v5528 = vmul.f32 %v5432, %v5496
          %v5529 = vmul.f32 %v5433, %v5497
          %v5530 = vmul.f32 %v5434, %v5498
          %v5531 = vmul.f32 %v5435, %v5499
          %v5532 = vmul.f32 %v5436, %v5500
          %v5533 = vmul.f32 %v5437, %v5501
          %v5534 = vmul.f32 %v5438, %v5502
          %v5535 = vmul.f32 %v5439, %v5503
          %v5536 = vmul.f32 %v5440, %v5504
          %v5537 = vmul.f32 %v5441, %v5505
          %v5538 = vmul.f32 %v5442, %v5506
          %v5539 = vmul.f32 %v5443, %v5507
          %v5540 = vmul.f32 %v5444, %v5508
          %v5541 = vmul.f32 %v5445, %v5509
          %v5542 = vmul.f32 %v5446, %v5510
          %v5543 = vmul.f32 %v5447, %v5511
          %v5544 = vmul.f32 %v5448, %v5512
          %v5545 = vmul.f32 %v5449, %v5513
          %v5546 = vmul.f32 %v5450, %v5514
          %v5547 = vmul.f32 %v5451, %v5515
          %v5548 = vmul.f32 %v5452, %v5516
          %v5549 = vmul.f32 %v5453, %v5517
          %v5551 = vlaneseq
          %v5552 = vshrl.u32 %v5551, 7
          %v5553 = vsub.s32 0, %v5552
          %v5554 = vrot.slane %v5131, %v5553
          %v5556 = vmul.f32 %v5518, %v5554
          %v5557 = vmul.f32 %v5519, %v5554
          %v5558 = vmul.f32 %v5520, %v5554
          %v5559 = vmul.f32 %v5521, %v5554
          %v5560 = vmul.f32 %v5522, %v5554
          %v5561 = vmul.f32 %v5523, %v5554
          %v5562 = vmul.f32 %v5524, %v5554
          %v5563 = vmul.f32 %v5525, %v5554
          %v5564 = vmul.f32 %v5526, %v5554
          %v5565 = vmul.f32 %v5527, %v5554
          %v5566 = vmul.f32 %v5528, %v5554
          %v5567 = vmul.f32 %v5529, %v5554
          %v5568 = vmul.f32 %v5530, %v5554
          %v5569 = vmul.f32 %v5531, %v5554
          %v5570 = vmul.f32 %v5532, %v5554
          %v5571 = vmul.f32 %v5533, %v5554
          %v5572 = vmul.f32 %v5534, %v5554
          %v5573 = vmul.f32 %v5535, %v5554
          %v5574 = vmul.f32 %v5536, %v5554
          %v5575 = vmul.f32 %v5537, %v5554
          %v5576 = vmul.f32 %v5538, %v5554
          %v5577 = vmul.f32 %v5539, %v5554
          %v5578 = vmul.f32 %v5540, %v5554
          %v5579 = vmul.f32 %v5541, %v5554
          %v5580 = vmul.f32 %v5542, %v5554
          %v5581 = vmul.f32 %v5543, %v5554
          %v5582 = vmul.f32 %v5544, %v5554
          %v5583 = vmul.f32 %v5545, %v5554
          %v5584 = vmul.f32 %v5546, %v5554
          %v5585 = vmul.f32 %v5547, %v5554
          %v5586 = vmul.f32 %v5548, %v5554
          %v5587 = vmul.f32 %v5549, %v5554
          %v5589 = vlaneseq
          %v5590 = vshrl.u32 %v5589, 7
          %v5591 = vsub.s32 0, %v5590
          %v5592 = vrot.slane %v5132, %v5591
          %v5594 = vadd.f32 %v5556, %v5592
          %v5595 = vadd.f32 %v5557, %v5592
          %v5596 = vadd.f32 %v5558, %v5592
          %v5597 = vadd.f32 %v5559, %v5592
          %v5598 = vadd.f32 %v5560, %v5592
          %v5599 = vadd.f32 %v5561, %v5592
          %v5600 = vadd.f32 %v5562, %v5592
          %v5601 = vadd.f32 %v5563, %v5592
          %v5602 = vadd.f32 %v5564, %v5592
          %v5603 = vadd.f32 %v5565, %v5592
          %v5604 = vadd.f32 %v5566, %v5592
          %v5605 = vadd.f32 %v5567, %v5592
          %v5606 = vadd.f32 %v5568, %v5592
          %v5607 = vadd.f32 %v5569, %v5592
          %v5608 = vadd.f32 %v5570, %v5592
          %v5609 = vadd.f32 %v5571, %v5592
          %v5610 = vadd.f32 %v5572, %v5592
          %v5611 = vadd.f32 %v5573, %v5592
          %v5612 = vadd.f32 %v5574, %v5592
          %v5613 = vadd.f32 %v5575, %v5592
          %v5614 = vadd.f32 %v5576, %v5592
          %v5615 = vadd.f32 %v5577, %v5592
          %v5616 = vadd.f32 %v5578, %v5592
          %v5617 = vadd.f32 %v5579, %v5592
          %v5618 = vadd.f32 %v5580, %v5592
          %v5619 = vadd.f32 %v5581, %v5592
          %v5620 = vadd.f32 %v5582, %v5592
          %v5621 = vadd.f32 %v5583, %v5592
          %v5622 = vadd.f32 %v5584, %v5592
          %v5623 = vadd.f32 %v5585, %v5592
          %v5624 = vadd.f32 %v5586, %v5592
          %v5625 = vadd.f32 %v5587, %v5592
          %v5626 = vmul.f32 %v5594, 0.5
          %v5627 = vmul.f32 %v5595, 0.5
          %v5628 = vmul.f32 %v5596, 0.5
          %v5629 = vmul.f32 %v5597, 0.5
          %v5630 = vmul.f32 %v5598, 0.5
          %v5631 = vmul.f32 %v5599, 0.5
          %v5632 = vmul.f32 %v5600, 0.5
          %v5633 = vmul.f32 %v5601, 0.5
          %v5634 = vmul.f32 %v5602, 0.5
          %v5635 = vmul.f32 %v5603, 0.5
          %v5636 = vmul.f32 %v5604, 0.5
          %v5637 = vmul.f32 %v5605, 0.5
          %v5638 = vmul.f32 %v5606, 0.5
          %v5639 = vmul.f32 %v5607, 0.5
          %v5640 = vmul.f32 %v5608, 0.5
          %v5641 = vmul.f32 %v5609, 0.5
          %v5642 = vmul.f32 %v5610, 0.5
          %v5643 = vmul.f32 %v5611, 0.5
          %v5644 = vmul.f32 %v5612, 0.5
          %v5645 = vmul.f32 %v5613, 0.5
          %v5646 = vmul.f32 %v5614, 0.5
          %v5647 = vmul.f32 %v5615, 0.5
          %v5648 = vmul.f32 %v5616, 0.5
          %v5649 = vmul.f32 %v5617, 0.5
          %v5650 = vmul.f32 %v5618, 0.5
          %v5651 = vmul.f32 %v5619, 0.5
          %v5652 = vmul.f32 %v5620, 0.5
          %v5653 = vmul.f32 %v5621, 0.5
          %v5654 = vmul.f32 %v5622, 0.5
          %v5655 = vmul.f32 %v5623, 0.5
          %v5656 = vmul.f32 %v5624, 0.5
          %v5657 = vmul.f32 %v5625, 0.5
          %v5658 = vtanh.pop %v5626
          %v5659 = vtanh.pop %v5627
          %v5660 = vtanh.pop %v5628
          %v5661 = vtanh.pop %v5629
          %v5662 = vtanh.pop %v5630
          %v5663 = vtanh.pop %v5631
          %v5664 = vtanh.pop %v5632
          %v5665 = vtanh.pop %v5633
          %v5666 = vtanh.pop %v5634
          %v5667 = vtanh.pop %v5635
          %v5668 = vtanh.pop %v5636
          %v5669 = vtanh.pop %v5637
          %v5670 = vtanh.pop %v5638
          %v5671 = vtanh.pop %v5639
          %v5672 = vtanh.pop %v5640
          %v5673 = vtanh.pop %v5641
          %v5674 = vtanh.pop %v5642
          %v5675 = vtanh.pop %v5643
          %v5676 = vtanh.pop %v5644
          %v5677 = vtanh.pop %v5645
          %v5678 = vtanh.pop %v5646
          %v5679 = vtanh.pop %v5647
          %v5680 = vtanh.pop %v5648
          %v5681 = vtanh.pop %v5649
          %v5682 = vtanh.pop %v5650
          %v5683 = vtanh.pop %v5651
          %v5684 = vtanh.pop %v5652
          %v5685 = vtanh.pop %v5653
          %v5686 = vtanh.pop %v5654
          %v5687 = vtanh.pop %v5655
          %v5688 = vtanh.pop %v5656
          %v5689 = vtanh.pop %v5657
          %v5690 = vadd.f32 %v5658, 1.0
          %v5691 = vadd.f32 %v5659, 1.0
          %v5692 = vadd.f32 %v5660, 1.0
          %v5693 = vadd.f32 %v5661, 1.0
          %v5694 = vadd.f32 %v5662, 1.0
          %v5695 = vadd.f32 %v5663, 1.0
          %v5696 = vadd.f32 %v5664, 1.0
          %v5697 = vadd.f32 %v5665, 1.0
          %v5698 = vadd.f32 %v5666, 1.0
          %v5699 = vadd.f32 %v5667, 1.0
          %v5700 = vadd.f32 %v5668, 1.0
          %v5701 = vadd.f32 %v5669, 1.0
          %v5702 = vadd.f32 %v5670, 1.0
          %v5703 = vadd.f32 %v5671, 1.0
          %v5704 = vadd.f32 %v5672, 1.0
          %v5705 = vadd.f32 %v5673, 1.0
          %v5706 = vadd.f32 %v5674, 1.0
          %v5707 = vadd.f32 %v5675, 1.0
          %v5708 = vadd.f32 %v5676, 1.0
          %v5709 = vadd.f32 %v5677, 1.0
          %v5710 = vadd.f32 %v5678, 1.0
          %v5711 = vadd.f32 %v5679, 1.0
          %v5712 = vadd.f32 %v5680, 1.0
          %v5713 = vadd.f32 %v5681, 1.0
          %v5714 = vadd.f32 %v5682, 1.0
          %v5715 = vadd.f32 %v5683, 1.0
          %v5716 = vadd.f32 %v5684, 1.0
          %v5717 = vadd.f32 %v5685, 1.0
          %v5718 = vadd.f32 %v5686, 1.0
          %v5719 = vadd.f32 %v5687, 1.0
          %v5720 = vadd.f32 %v5688, 1.0
          %v5721 = vadd.f32 %v5689, 1.0
          %v5722 = vmul.f32 %v5690, 0.5
          %v5723 = vmul.f32 %v5691, 0.5
          %v5724 = vmul.f32 %v5692, 0.5
          %v5725 = vmul.f32 %v5693, 0.5
          %v5726 = vmul.f32 %v5694, 0.5
          %v5727 = vmul.f32 %v5695, 0.5
          %v5728 = vmul.f32 %v5696, 0.5
          %v5729 = vmul.f32 %v5697, 0.5
          %v5730 = vmul.f32 %v5698, 0.5
          %v5731 = vmul.f32 %v5699, 0.5
          %v5732 = vmul.f32 %v5700, 0.5
          %v5733 = vmul.f32 %v5701, 0.5
          %v5734 = vmul.f32 %v5702, 0.5
          %v5735 = vmul.f32 %v5703, 0.5
          %v5736 = vmul.f32 %v5704, 0.5
          %v5737 = vmul.f32 %v5705, 0.5
          %v5738 = vmul.f32 %v5706, 0.5
          %v5739 = vmul.f32 %v5707, 0.5
          %v5740 = vmul.f32 %v5708, 0.5
          %v5741 = vmul.f32 %v5709, 0.5
          %v5742 = vmul.f32 %v5710, 0.5
          %v5743 = vmul.f32 %v5711, 0.5
          %v5744 = vmul.f32 %v5712, 0.5
          %v5745 = vmul.f32 %v5713, 0.5
          %v5746 = vmul.f32 %v5714, 0.5
          %v5747 = vmul.f32 %v5715, 0.5
          %v5748 = vmul.f32 %v5716, 0.5
          %v5749 = vmul.f32 %v5717, 0.5
          %v5750 = vmul.f32 %v5718, 0.5
          %v5751 = vmul.f32 %v5719, 0.5
          %v5752 = vmul.f32 %v5720, 0.5
          %v5753 = vmul.f32 %v5721, 0.5
          %v5754 = vmul.f32 %v5594, %v5722
          %v5755 = vmul.f32 %v5595, %v5723
          %v5756 = vmul.f32 %v5596, %v5724
          %v5757 = vmul.f32 %v5597, %v5725
          %v5758 = vmul.f32 %v5598, %v5726
          %v5759 = vmul.f32 %v5599, %v5727
          %v5760 = vmul.f32 %v5600, %v5728
          %v5761 = vmul.f32 %v5601, %v5729
          %v5762 = vmul.f32 %v5602, %v5730
          %v5763 = vmul.f32 %v5603, %v5731
          %v5764 = vmul.f32 %v5604, %v5732
          %v5765 = vmul.f32 %v5605, %v5733
          %v5766 = vmul.f32 %v5606, %v5734
          %v5767 = vmul.f32 %v5607, %v5735
          %v5768 = vmul.f32 %v5608, %v5736
          %v5769 = vmul.f32 %v5609, %v5737
          %v5770 = vmul.f32 %v5610, %v5738
          %v5771 = vmul.f32 %v5611, %v5739
          %v5772 = vmul.f32 %v5612, %v5740
          %v5773 = vmul.f32 %v5613, %v5741
          %v5774 = vmul.f32 %v5614, %v5742
          %v5775 = vmul.f32 %v5615, %v5743
          %v5776 = vmul.f32 %v5616, %v5744
          %v5777 = vmul.f32 %v5617, %v5745
          %v5778 = vmul.f32 %v5618, %v5746
          %v5779 = vmul.f32 %v5619, %v5747
          %v5780 = vmul.f32 %v5620, %v5748
          %v5781 = vmul.f32 %v5621, %v5749
          %v5782 = vmul.f32 %v5622, %v5750
          %v5783 = vmul.f32 %v5623, %v5751
          %v5784 = vmul.f32 %v5624, %v5752
          %v5785 = vmul.f32 %v5625, %v5753
          %5786 = vst [vmem:[#allocation2] sm:$0xff] %v5754
          %5787 = vst [vmem:[#allocation2 + $0x8] sm:$0xff] %v5755
          %5788 = vst [vmem:[#allocation2 + $0x10] sm:$0xff] %v5756
          %5789 = vst [vmem:[#allocation2 + $0x18] sm:$0xff] %v5757
          %5790 = vst [vmem:[#allocation2 + $0x20] sm:$0xff] %v5758
          %5791 = vst [vmem:[#allocation2 + $0x28] sm:$0xff] %v5759
          %5792 = vst [vmem:[#allocation2 + $0x30] sm:$0xff] %v5760
          %5793 = vst [vmem:[#allocation2 + $0x38] sm:$0xff] %v5761
          %5794 = vst [vmem:[#allocation2 + $0x40] sm:$0xff] %v5762
          %5795 = vst [vmem:[#allocation2 + $0x48] sm:$0xff] %v5763
          %5796 = vst [vmem:[#allocation2 + $0x50] sm:$0xff] %v5764
          %5797 = vst [vmem:[#allocation2 + $0x58] sm:$0xff] %v5765
          %5798 = vst [vmem:[#allocation2 + $0x60] sm:$0xff] %v5766
          %5799 = vst [vmem:[#allocation2 + $0x68] sm:$0xff] %v5767
          %5800 = vst [vmem:[#allocation2 + $0x70] sm:$0xff] %v5768
          %5801 = vst [vmem:[#allocation2 + $0x78] sm:$0xff] %v5769
          %5802 = vst [vmem:[#allocation2 + $0x80] sm:$0xff] %v5770
          %5803 = vst [vmem:[#allocation2 + $0x88] sm:$0xff] %v5771
          %5804 = vst [vmem:[#allocation2 + $0x90] sm:$0xff] %v5772
          %5805 = vst [vmem:[#allocation2 + $0x98] sm:$0xff] %v5773
          %5806 = vst [vmem:[#allocation2 + $0xa0] sm:$0xff] %v5774
          %5807 = vst [vmem:[#allocation2 + $0xa8] sm:$0xff] %v5775
          %5808 = vst [vmem:[#allocation2 + $0xb0] sm:$0xff] %v5776
          %5809 = vst [vmem:[#allocation2 + $0xb8] sm:$0xff] %v5777
          %5810 = vst [vmem:[#allocation2 + $0xc0] sm:$0xff] %v5778
          %5811 = vst [vmem:[#allocation2 + $0xc8] sm:$0xff] %v5779
          %5812 = vst [vmem:[#allocation2 + $0xd0] sm:$0xff] %v5780
          %5813 = vst [vmem:[#allocation2 + $0xd8] sm:$0xff] %v5781
          %5814 = vst [vmem:[#allocation2 + $0xe0] sm:$0xff] %v5782
          %5815 = vst [vmem:[#allocation2 + $0xe8] sm:$0xff] %v5783
          %5816 = vst [vmem:[#allocation2 + $0xf0] sm:$0xff] %v5784
          %5817 = vst [vmem:[#allocation2 + $0xf8] sm:$0xff] %v5785
        $region92: #{tpu_custom_call.1} parent=87 // pred_fallthru
          _
        %v5818 = vld [vmem:[#allocation2] sm:$0xff]
        %v5819 = vld [vmem:[#allocation2 + $0x8] sm:$0xff]
        %v5820 = vld [vmem:[#allocation2 + $0x10] sm:$0xff]
        %v5821 = vld [vmem:[#allocation2 + $0x18] sm:$0xff]
        %v5822 = vld [vmem:[#allocation2 + $0x20] sm:$0xff]
        %v5823 = vld [vmem:[#allocation2 + $0x28] sm:$0xff]
        %v5824 = vld [vmem:[#allocation2 + $0x30] sm:$0xff]
        %v5825 = vld [vmem:[#allocation2 + $0x38] sm:$0xff]
        %v5826 = vld [vmem:[#allocation2 + $0x40] sm:$0xff]
        %v5827 = vld [vmem:[#allocation2 + $0x48] sm:$0xff]
        %v5828 = vld [vmem:[#allocation2 + $0x50] sm:$0xff]
        %v5829 = vld [vmem:[#allocation2 + $0x58] sm:$0xff]
        %v5830 = vld [vmem:[#allocation2 + $0x60] sm:$0xff]
        %v5831 = vld [vmem:[#allocation2 + $0x68] sm:$0xff]
        %v5832 = vld [vmem:[#allocation2 + $0x70] sm:$0xff]
        %v5833 = vld [vmem:[#allocation2 + $0x78] sm:$0xff]
        %v5834 = vld [vmem:[#allocation2 + $0x80] sm:$0xff]
        %v5835 = vld [vmem:[#allocation2 + $0x88] sm:$0xff]
        %v5836 = vld [vmem:[#allocation2 + $0x90] sm:$0xff]
        %v5837 = vld [vmem:[#allocation2 + $0x98] sm:$0xff]
        %v5838 = vld [vmem:[#allocation2 + $0xa0] sm:$0xff]
        %v5839 = vld [vmem:[#allocation2 + $0xa8] sm:$0xff]
        %v5840 = vld [vmem:[#allocation2 + $0xb0] sm:$0xff]
        %v5841 = vld [vmem:[#allocation2 + $0xb8] sm:$0xff]
        %v5842 = vld [vmem:[#allocation2 + $0xc0] sm:$0xff]
        %v5843 = vld [vmem:[#allocation2 + $0xc8] sm:$0xff]
        %v5844 = vld [vmem:[#allocation2 + $0xd0] sm:$0xff]
        %v5845 = vld [vmem:[#allocation2 + $0xd8] sm:$0xff]
        %v5846 = vld [vmem:[#allocation2 + $0xe0] sm:$0xff]
        %v5847 = vld [vmem:[#allocation2 + $0xe8] sm:$0xff]
        %v5848 = vld [vmem:[#allocation2 + $0xf0] sm:$0xff]
        %v5849 = vld [vmem:[#allocation2 + $0xf8] sm:$0xff]
        %v5850 = vld [vmem:[#allocation3] sm:$0xff]
        %v5851 = vld [vmem:[#allocation3 + $0x8] sm:$0xff]
        %v5852 = vld [vmem:[#allocation3 + $0x10] sm:$0xff]
        %v5853 = vld [vmem:[#allocation3 + $0x18] sm:$0xff]
        %v5854 = vld [vmem:[#allocation3 + $0x20] sm:$0xff]
        %v5855 = vld [vmem:[#allocation3 + $0x28] sm:$0xff]
        %v5856 = vld [vmem:[#allocation3 + $0x30] sm:$0xff]
        %v5857 = vld [vmem:[#allocation3 + $0x38] sm:$0xff]
        %v5858 = vld [vmem:[#allocation3 + $0x40] sm:$0xff]
        %v5859 = vld [vmem:[#allocation3 + $0x48] sm:$0xff]
        %v5860 = vld [vmem:[#allocation3 + $0x50] sm:$0xff]
        %v5861 = vld [vmem:[#allocation3 + $0x58] sm:$0xff]
        %v5862 = vld [vmem:[#allocation3 + $0x60] sm:$0xff]
        %v5863 = vld [vmem:[#allocation3 + $0x68] sm:$0xff]
        %v5864 = vld [vmem:[#allocation3 + $0x70] sm:$0xff]
        %v5865 = vld [vmem:[#allocation3 + $0x78] sm:$0xff]
        %v5866 = vunpack.c.l.bf16 %v5850
        %v5867 = vunpack.c.h.bf16 %v5850
        %v5868 = vunpack.c.l.bf16 %v5851
        %v5869 = vunpack.c.h.bf16 %v5851
        %v5870 = vunpack.c.l.bf16 %v5852
        %v5871 = vunpack.c.h.bf16 %v5852
        %v5872 = vunpack.c.l.bf16 %v5853
        %v5873 = vunpack.c.h.bf16 %v5853
        %v5874 = vunpack.c.l.bf16 %v5854
        %v5875 = vunpack.c.h.bf16 %v5854
        %v5876 = vunpack.c.l.bf16 %v5855
        %v5877 = vunpack.c.h.bf16 %v5855
        %v5878 = vunpack.c.l.bf16 %v5856
        %v5879 = vunpack.c.h.bf16 %v5856
        %v5880 = vunpack.c.l.bf16 %v5857
        %v5881 = vunpack.c.h.bf16 %v5857
        %v5882 = vunpack.c.l.bf16 %v5858
        %v5883 = vunpack.c.h.bf16 %v5858
        %v5884 = vunpack.c.l.bf16 %v5859
        %v5885 = vunpack.c.h.bf16 %v5859
        %v5886 = vunpack.c.l.bf16 %v5860
        %v5887 = vunpack.c.h.bf16 %v5860
        %v5888 = vunpack.c.l.bf16 %v5861
        %v5889 = vunpack.c.h.bf16 %v5861
        %v5890 = vunpack.c.l.bf16 %v5862
        %v5891 = vunpack.c.h.bf16 %v5862
        %v5892 = vunpack.c.l.bf16 %v5863
        %v5893 = vunpack.c.h.bf16 %v5863
        %v5894 = vunpack.c.l.bf16 %v5864
        %v5895 = vunpack.c.h.bf16 %v5864
        %v5896 = vunpack.c.l.bf16 %v5865
        %v5897 = vunpack.c.h.bf16 %v5865
        %v5898 = vadd.f32 %v5818, %v5866
        %v5899 = vadd.f32 %v5819, %v5867
        %v5900 = vadd.f32 %v5820, %v5868
        %v5901 = vadd.f32 %v5821, %v5869
        %v5902 = vadd.f32 %v5822, %v5870
        %v5903 = vadd.f32 %v5823, %v5871
        %v5904 = vadd.f32 %v5824, %v5872
        %v5905 = vadd.f32 %v5825, %v5873
        %v5906 = vadd.f32 %v5826, %v5874
        %v5907 = vadd.f32 %v5827, %v5875
        %v5908 = vadd.f32 %v5828, %v5876
        %v5909 = vadd.f32 %v5829, %v5877
        %v5910 = vadd.f32 %v5830, %v5878
        %v5911 = vadd.f32 %v5831, %v5879
        %v5912 = vadd.f32 %v5832, %v5880
        %v5913 = vadd.f32 %v5833, %v5881
        %v5914 = vadd.f32 %v5834, %v5882
        %v5915 = vadd.f32 %v5835, %v5883
        %v5916 = vadd.f32 %v5836, %v5884
        %v5917 = vadd.f32 %v5837, %v5885
        %v5918 = vadd.f32 %v5838, %v5886
        %v5919 = vadd.f32 %v5839, %v5887
        %v5920 = vadd.f32 %v5840, %v5888
        %v5921 = vadd.f32 %v5841, %v5889
        %v5922 = vadd.f32 %v5842, %v5890
        %v5923 = vadd.f32 %v5843, %v5891
        %v5924 = vadd.f32 %v5844, %v5892
        %v5925 = vadd.f32 %v5845, %v5893
        %v5926 = vadd.f32 %v5846, %v5894
        %v5927 = vadd.f32 %v5847, %v5895
        %v5928 = vadd.f32 %v5848, %v5896
        %v5929 = vadd.f32 %v5849, %v5897
        %v5930 = vpack.c.bf16 %v5899, %v5898
        %v5931 = vpack.c.bf16 %v5901, %v5900
        %v5932 = vpack.c.bf16 %v5903, %v5902
        %v5933 = vpack.c.bf16 %v5905, %v5904
        %v5934 = vpack.c.bf16 %v5907, %v5906
        %v5935 = vpack.c.bf16 %v5909, %v5908
        %v5936 = vpack.c.bf16 %v5911, %v5910
        %v5937 = vpack.c.bf16 %v5913, %v5912
        %v5938 = vpack.c.bf16 %v5915, %v5914
        %v5939 = vpack.c.bf16 %v5917, %v5916
        %v5940 = vpack.c.bf16 %v5919, %v5918
        %v5941 = vpack.c.bf16 %v5921, %v5920
        %v5942 = vpack.c.bf16 %v5923, %v5922
        %v5943 = vpack.c.bf16 %v5925, %v5924
        %v5944 = vpack.c.bf16 %v5927, %v5926
        %v5945 = vpack.c.bf16 %v5929, %v5928
        %v5946 = vld [vmem:[%s657] sm:$0xf]
        %v5947 = vld [vmem:[%s657 + $0x4] sm:$0xf]
        %v5948 = vld [vmem:[%s657 + $0x8] sm:$0xf]
        %v5949 = vld [vmem:[%s657 + $0xc] sm:$0xf]
        %v5950 = vld [vmem:[%s657 + $0x10] sm:$0xf]
        %v5951 = vld [vmem:[%s657 + $0x14] sm:$0xf]
        %v5952 = vld [vmem:[%s657 + $0x18] sm:$0xf]
        %v5953 = vld [vmem:[%s657 + $0x1c] sm:$0xf]
        %v5954 = vld [vmem:[%s657 + $0x20] sm:$0xf]
        %v5955 = vld [vmem:[%s657 + $0x24] sm:$0xf]
        %v5956 = vld [vmem:[%s657 + $0x28] sm:$0xf]
        %v5957 = vld [vmem:[%s657 + $0x2c] sm:$0xf]
        %v5958 = vld [vmem:[%s657 + $0x30] sm:$0xf]
        %v5959 = vld [vmem:[%s657 + $0x34] sm:$0xf]
        %v5960 = vld [vmem:[%s657 + $0x38] sm:$0xf]
        %v5961 = vld [vmem:[%s657 + $0x3c] sm:$0xf]
        %v5962 = vld [vmem:[%s660] sm:$0x1]
        %v5964 = vlaneseq
        %v5965 = vshrl.u32 %v5964, 7
        %v5966 = vsub.s32 0, %v5965
        %v5967 = vrot.slane %v5962, %v5966
        %v5985 = vunpack.c.l.b16 %v5946
        %v5986 = vunpack.c.l.b16 %v5947
        %v5987 = vunpack.c.l.b16 %v5948
        %v5988 = vunpack.c.l.b16 %v5949
        %v5989 = vunpack.c.l.b16 %v5950
        %v5990 = vunpack.c.l.b16 %v5951
        %v5991 = vunpack.c.l.b16 %v5952
        %v5992 = vunpack.c.l.b16 %v5953
        %v5993 = vunpack.c.l.b16 %v5954
        %v5994 = vunpack.c.l.b16 %v5955
        %v5995 = vunpack.c.l.b16 %v5956
        %v5996 = vunpack.c.l.b16 %v5957
        %v5997 = vunpack.c.l.b16 %v5958
        %v5998 = vunpack.c.l.b16 %v5959
        %v5999 = vunpack.c.l.b16 %v5960
        %v6000 = vunpack.c.l.b16 %v5961
        %v6001 = vpack.c.b16 %v5986, %v5985
        %v6002 = vpack.c.b16 %v5988, %v5987
        %v6003 = vpack.c.b16 %v5990, %v5989
        %v6004 = vpack.c.b16 %v5992, %v5991
        %v6005 = vpack.c.b16 %v5994, %v5993
        %v6006 = vpack.c.b16 %v5996, %v5995
        %v6007 = vpack.c.b16 %v5998, %v5997
        %v6008 = vpack.c.b16 %v6000, %v5999
        %6017 = vmatprep.subr.bf16.mxu0 0
        %6018 = vmatpush1.bf16.msra.mxu0 %v6001
        %6019 = vmatprep.subr.bf16.mxu0 0
        %6020 = vmatpush1.bf16.msra.mxu0 %v6002
        %6021 = vmatprep.subr.bf16.mxu0 0
        %6022 = vmatpush1.bf16.msra.mxu0 %v6003
        %6023 = vmatprep.subr.bf16.mxu0 0
        %6024 = vmatpush1.bf16.msra.mxu0 %v6004
        %6025 = vmatprep.subr.bf16.mxu0 0
        %6026 = vmatpush1.bf16.msra.mxu0 %v6005
        %6027 = vmatprep.subr.bf16.mxu0 0
        %6028 = vmatpush1.bf16.msra.mxu0 %v6006
        %6029 = vmatprep.subr.bf16.mxu0 0
        %6030 = vmatpush1.bf16.msra.mxu0 %v6007
        %6031 = vmatprep.subr.bf16.mxu0 0
        %6032 = vmatpush1.bf16.msra.mxu0 %v6008
        %6033 = vmatprep.subr.bf16.mxu0 0
        %6034 = vmatpush1.bf16.msra.mxu0 0
        %6035 = vmatprep.subr.bf16.mxu0 0
        %6036 = vmatpush1.bf16.msra.mxu0 0
        %6037 = vmatprep.subr.bf16.mxu0 0
        %6038 = vmatpush1.bf16.msra.mxu0 0
        %6039 = vmatprep.subr.bf16.mxu0 0
        %6040 = vmatpush1.bf16.msra.mxu0 0
        %6041 = vmatprep.subr.bf16.mxu0 0
        %6042 = vmatpush1.bf16.msra.mxu0 0
        %6043 = vmatprep.subr.bf16.mxu0 0
        %6044 = vmatpush1.bf16.msra.mxu0 0
        %6045 = vmatprep.subr.bf16.mxu0 0
        %6046 = vmatpush1.bf16.msra.mxu0 0
        %6047 = vmatprep.subr.bf16.mxu0 0
        %6048 = vmatpush1.bf16.msra.mxu0 0
        %6049 = vmatprep.mubr.bf16.mxu0 0
        %6050 = vmatmul.mubr.bf16.gmra.mrb[0].mxu0 %v5930
        %v6051 = vpop.f32.mrb[0].mxu0
        %v6052 = vadd.f32 %v5967, %v6051
        %v6053 = vpop.f32.mrb[0].mxu0
        %v6054 = vpop.f32.mrb[0].mxu0
        %v6055 = vadd.f32 %v5967, %v6054
        %v6056 = vpop.f32.mrb[0].mxu0
        %6057 = vmatprep.mubr.bf16.mxu0 0
        %6058 = vmatmul.mubr.bf16.gmra.mrb[0].mxu0 %v5931
        %v6059 = vpop.f32.mrb[0].mxu0
        %v6060 = vadd.f32 %v5967, %v6059
        %v6061 = vpop.f32.mrb[0].mxu0
        %v6062 = vpop.f32.mrb[0].mxu0
        %v6063 = vadd.f32 %v5967, %v6062
        %v6064 = vpop.f32.mrb[0].mxu0
        %6065 = vmatprep.mubr.bf16.mxu0 0
        %6066 = vmatmul.mubr.bf16.gmra.mrb[0].mxu0 %v5932
        %v6067 = vpop.f32.mrb[0].mxu0
        %v6068 = vadd.f32 %v5967, %v6067
        %v6069 = vpop.f32.mrb[0].mxu0
        %v6070 = vpop.f32.mrb[0].mxu0
        %v6071 = vadd.f32 %v5967, %v6070
        %v6072 = vpop.f32.mrb[0].mxu0
        %6073 = vmatprep.mubr.bf16.mxu0 0
        %6074 = vmatmul.mubr.bf16.gmra.mrb[0].mxu0 %v5933
        %v6075 = vpop.f32.mrb[0].mxu0
        %v6076 = vadd.f32 %v5967, %v6075
        %v6077 = vpop.f32.mrb[0].mxu0
        %v6078 = vpop.f32.mrb[0].mxu0
        %v6079 = vadd.f32 %v5967, %v6078
        %v6080 = vpop.f32.mrb[0].mxu0
        %6081 = vmatprep.mubr.bf16.mxu0 0
        %6082 = vmatmul.mubr.bf16.gmra.mrb[0].mxu0 %v5934
        %v6083 = vpop.f32.mrb[0].mxu0
        %v6084 = vadd.f32 %v5967, %v6083
        %v6085 = vpop.f32.mrb[0].mxu0
        %v6086 = vpop.f32.mrb[0].mxu0
        %v6087 = vadd.f32 %v5967, %v6086
        %v6088 = vpop.f32.mrb[0].mxu0
        %6089 = vmatprep.mubr.bf16.mxu0 0
        %6090 = vmatmul.mubr.bf16.gmra.mrb[0].mxu0 %v5935
        %v6091 = vpop.f32.mrb[0].mxu0
        %v6092 = vadd.f32 %v5967, %v6091
        %v6093 = vpop.f32.mrb[0].mxu0
        %v6094 = vpop.f32.mrb[0].mxu0
        %v6095 = vadd.f32 %v5967, %v6094
        %v6096 = vpop.f32.mrb[0].mxu0
        %6097 = vmatprep.mubr.bf16.mxu0 0
        %6098 = vmatmul.mubr.bf16.gmra.mrb[0].mxu0 %v5936
        %v6099 = vpop.f32.mrb[0].mxu0
        %v6100 = vadd.f32 %v5967, %v6099
        %v6101 = vpop.f32.mrb[0].mxu0
        %v6102 = vpop.f32.mrb[0].mxu0
        %v6103 = vadd.f32 %v5967, %v6102
        %v6104 = vpop.f32.mrb[0].mxu0
        %6105 = vmatprep.mubr.bf16.mxu0 0
        %6106 = vmatmul.mubr.bf16.gmra.mrb[0].mxu0 %v5937
        %v6107 = vpop.f32.mrb[0].mxu0
        %v6108 = vadd.f32 %v5967, %v6107
        %v6109 = vpop.f32.mrb[0].mxu0
        %v6110 = vpop.f32.mrb[0].mxu0
        %v6111 = vadd.f32 %v5967, %v6110
        %v6112 = vpop.f32.mrb[0].mxu0
        %6113 = vmatprep.mubr.bf16.mxu0 0
        %6114 = vmatmul.mubr.bf16.gmra.mrb[0].mxu0 %v5938
        %v6115 = vpop.f32.mrb[0].mxu0
        %v6116 = vadd.f32 %v5967, %v6115
        %v6117 = vpop.f32.mrb[0].mxu0
        %v6118 = vpop.f32.mrb[0].mxu0
        %v6119 = vadd.f32 %v5967, %v6118
        %v6120 = vpop.f32.mrb[0].mxu0
        %6121 = vmatprep.mubr.bf16.mxu0 0
        %6122 = vmatmul.mubr.bf16.gmra.mrb[0].mxu0 %v5939
        %v6123 = vpop.f32.mrb[0].mxu0
        %v6124 = vadd.f32 %v5967, %v6123
        %v6125 = vpop.f32.mrb[0].mxu0
        %v6126 = vpop.f32.mrb[0].mxu0
        %v6127 = vadd.f32 %v5967, %v6126
        %v6128 = vpop.f32.mrb[0].mxu0
        %6129 = vmatprep.mubr.bf16.mxu0 0
        %6130 = vmatmul.mubr.bf16.gmra.mrb[0].mxu0 %v5940
        %v6131 = vpop.f32.mrb[0].mxu0
        %v6132 = vadd.f32 %v5967, %v6131
        %v6133 = vpop.f32.mrb[0].mxu0
        %v6134 = vpop.f32.mrb[0].mxu0
        %v6135 = vadd.f32 %v5967, %v6134
        %v6136 = vpop.f32.mrb[0].mxu0
        %6137 = vmatprep.mubr.bf16.mxu0 0
        %6138 = vmatmul.mubr.bf16.gmra.mrb[0].mxu0 %v5941
        %v6139 = vpop.f32.mrb[0].mxu0
        %v6140 = vadd.f32 %v5967, %v6139
        %v6141 = vpop.f32.mrb[0].mxu0
        %v6142 = vpop.f32.mrb[0].mxu0
        %v6143 = vadd.f32 %v5967, %v6142
        %v6144 = vpop.f32.mrb[0].mxu0
        %6145 = vmatprep.mubr.bf16.mxu0 0
        %6146 = vmatmul.mubr.bf16.gmra.mrb[0].mxu0 %v5942
        %v6147 = vpop.f32.mrb[0].mxu0
        %v6148 = vadd.f32 %v5967, %v6147
        %v6149 = vpop.f32.mrb[0].mxu0
        %v6150 = vpop.f32.mrb[0].mxu0
        %v6151 = vadd.f32 %v5967, %v6150
        %v6152 = vpop.f32.mrb[0].mxu0
        %6153 = vmatprep.mubr.bf16.mxu0 0
        %6154 = vmatmul.mubr.bf16.gmra.mrb[0].mxu0 %v5943
        %v6155 = vpop.f32.mrb[0].mxu0
        %v6156 = vadd.f32 %v5967, %v6155
        %v6157 = vpop.f32.mrb[0].mxu0
        %v6158 = vpop.f32.mrb[0].mxu0
        %v6159 = vadd.f32 %v5967, %v6158
        %v6160 = vpop.f32.mrb[0].mxu0
        %6161 = vmatprep.mubr.bf16.mxu0 0
        %6162 = vmatmul.mubr.bf16.gmra.mrb[0].mxu0 %v5944
        %v6163 = vpop.f32.mrb[0].mxu0
        %v6164 = vadd.f32 %v5967, %v6163
        %v6165 = vpop.f32.mrb[0].mxu0
        %v6166 = vpop.f32.mrb[0].mxu0
        %v6167 = vadd.f32 %v5967, %v6166
        %v6168 = vpop.f32.mrb[0].mxu0
        %6169 = vmatprep.mubr.bf16.mxu0 0
        %6170 = vmatmul.mubr.bf16.gmra.mrb[0].mxu0 %v5945
        %v6171 = vpop.f32.mrb[0].mxu0
        %v6172 = vadd.f32 %v5967, %v6171
        %v6173 = vpop.f32.mrb[0].mxu0
        %v6174 = vpop.f32.mrb[0].mxu0
        %v6175 = vadd.f32 %v5967, %v6174
        %v6176 = vpop.f32.mrb[0].mxu0
        %6177 = vdwg.mxu0
        %v6178 = vld [vmem:[%s663] sm:$0x1]
        %v6179 = vld [vmem:[%s666] sm:$0x1]
        %6180 = vadd.xlane.f32.xlu0 %v6052
        %v6181 = vpop.xlane.xlu0 %6180
        %6182 = vadd.xlane.f32.xlu0 %v6055
        %v6183 = vpop.xlane.xlu0 %6182
        %6184 = vadd.xlane.f32.xlu0 %v6060
        %v6185 = vpop.xlane.xlu0 %6184
        %6186 = vadd.xlane.f32.xlu0 %v6063
        %v6187 = vpop.xlane.xlu0 %6186
        %6188 = vadd.xlane.f32.xlu0 %v6068
        %v6189 = vpop.xlane.xlu0 %6188
        %6190 = vadd.xlane.f32.xlu0 %v6071
        %v6191 = vpop.xlane.xlu0 %6190
        %6192 = vadd.xlane.f32.xlu0 %v6076
        %v6193 = vpop.xlane.xlu0 %6192
        %6194 = vadd.xlane.f32.xlu0 %v6079
        %v6195 = vpop.xlane.xlu0 %6194
        %6196 = vadd.xlane.f32.xlu0 %v6084
        %v6197 = vpop.xlane.xlu0 %6196
        %6198 = vadd.xlane.f32.xlu0 %v6087
        %v6199 = vpop.xlane.xlu0 %6198
        %6200 = vadd.xlane.f32.xlu0 %v6092
        %v6201 = vpop.xlane.xlu0 %6200
        %6202 = vadd.xlane.f32.xlu0 %v6095
        %v6203 = vpop.xlane.xlu0 %6202
        %6204 = vadd.xlane.f32.xlu0 %v6100
        %v6205 = vpop.xlane.xlu0 %6204
        %6206 = vadd.xlane.f32.xlu0 %v6103
        %v6207 = vpop.xlane.xlu0 %6206
        %6208 = vadd.xlane.f32.xlu0 %v6108
        %v6209 = vpop.xlane.xlu0 %6208
        %6210 = vadd.xlane.f32.xlu0 %v6111
        %v6211 = vpop.xlane.xlu0 %6210
        %6212 = vadd.xlane.f32.xlu0 %v6116
        %v6213 = vpop.xlane.xlu0 %6212
        %6214 = vadd.xlane.f32.xlu0 %v6119
        %v6215 = vpop.xlane.xlu0 %6214
        %6216 = vadd.xlane.f32.xlu0 %v6124
        %v6217 = vpop.xlane.xlu0 %6216
        %6218 = vadd.xlane.f32.xlu0 %v6127
        %v6219 = vpop.xlane.xlu0 %6218
        %6220 = vadd.xlane.f32.xlu0 %v6132
        %v6221 = vpop.xlane.xlu0 %6220
        %6222 = vadd.xlane.f32.xlu0 %v6135
        %v6223 = vpop.xlane.xlu0 %6222
        %6224 = vadd.xlane.f32.xlu0 %v6140
        %v6225 = vpop.xlane.xlu0 %6224
        %6226 = vadd.xlane.f32.xlu0 %v6143
        %v6227 = vpop.xlane.xlu0 %6226
        %6228 = vadd.xlane.f32.xlu0 %v6148
        %v6229 = vpop.xlane.xlu0 %6228
        %6230 = vadd.xlane.f32.xlu0 %v6151
        %v6231 = vpop.xlane.xlu0 %6230
        %6232 = vadd.xlane.f32.xlu0 %v6156
        %v6233 = vpop.xlane.xlu0 %6232
        %6234 = vadd.xlane.f32.xlu0 %v6159
        %v6235 = vpop.xlane.xlu0 %6234
        %6236 = vadd.xlane.f32.xlu0 %v6164
        %v6237 = vpop.xlane.xlu0 %6236
        %6238 = vadd.xlane.f32.xlu0 %v6167
        %v6239 = vpop.xlane.xlu0 %6238
        %6240 = vadd.xlane.f32.xlu0 %v6172
        %v6241 = vpop.xlane.xlu0 %6240
        %6242 = vadd.xlane.f32.xlu0 %v6175
        %v6243 = vpop.xlane.xlu0 %6242
        %v6244 = vrcp.pop 128.0
        %v6245 = vmul.f32 %v6181, %v6244
        %v6246 = vmul.f32 %v6183, %v6244
        %v6247 = vmul.f32 %v6185, %v6244
        %v6248 = vmul.f32 %v6187, %v6244
        %v6249 = vmul.f32 %v6189, %v6244
        %v6250 = vmul.f32 %v6191, %v6244
        %v6251 = vmul.f32 %v6193, %v6244
        %v6252 = vmul.f32 %v6195, %v6244
        %v6253 = vmul.f32 %v6197, %v6244
        %v6254 = vmul.f32 %v6199, %v6244
        %v6255 = vmul.f32 %v6201, %v6244
        %v6256 = vmul.f32 %v6203, %v6244
        %v6257 = vmul.f32 %v6205, %v6244
        %v6258 = vmul.f32 %v6207, %v6244
        %v6259 = vmul.f32 %v6209, %v6244
        %v6260 = vmul.f32 %v6211, %v6244
        %v6261 = vmul.f32 %v6213, %v6244
        %v6262 = vmul.f32 %v6215, %v6244
        %v6263 = vmul.f32 %v6217, %v6244
        %v6264 = vmul.f32 %v6219, %v6244
        %v6265 = vmul.f32 %v6221, %v6244
        %v6266 = vmul.f32 %v6223, %v6244
        %v6267 = vmul.f32 %v6225, %v6244
        %v6268 = vmul.f32 %v6227, %v6244
        %v6269 = vmul.f32 %v6229, %v6244
        %v6270 = vmul.f32 %v6231, %v6244
        %v6271 = vmul.f32 %v6233, %v6244
        %v6272 = vmul.f32 %v6235, %v6244
        %v6273 = vmul.f32 %v6237, %v6244
        %v6274 = vmul.f32 %v6239, %v6244
        %v6275 = vmul.f32 %v6241, %v6244
        %v6276 = vmul.f32 %v6243, %v6244
        %v6277 = vmul.f32 %v6052, %v6052
        %v6278 = vmul.f32 %v6055, %v6055
        %v6279 = vmul.f32 %v6060, %v6060
        %v6280 = vmul.f32 %v6063, %v6063
        %v6281 = vmul.f32 %v6068, %v6068
        %v6282 = vmul.f32 %v6071, %v6071
        %v6283 = vmul.f32 %v6076, %v6076
        %v6284 = vmul.f32 %v6079, %v6079
        %v6285 = vmul.f32 %v6084, %v6084
        %v6286 = vmul.f32 %v6087, %v6087
        %v6287 = vmul.f32 %v6092, %v6092
        %v6288 = vmul.f32 %v6095, %v6095
        %v6289 = vmul.f32 %v6100, %v6100
        %v6290 = vmul.f32 %v6103, %v6103
        %v6291 = vmul.f32 %v6108, %v6108
        %v6292 = vmul.f32 %v6111, %v6111
        %v6293 = vmul.f32 %v6116, %v6116
        %v6294 = vmul.f32 %v6119, %v6119
        %v6295 = vmul.f32 %v6124, %v6124
        %v6296 = vmul.f32 %v6127, %v6127
        %v6297 = vmul.f32 %v6132, %v6132
        %v6298 = vmul.f32 %v6135, %v6135
        %v6299 = vmul.f32 %v6140, %v6140
        %v6300 = vmul.f32 %v6143, %v6143
        %v6301 = vmul.f32 %v6148, %v6148
        %v6302 = vmul.f32 %v6151, %v6151
        %v6303 = vmul.f32 %v6156, %v6156
        %v6304 = vmul.f32 %v6159, %v6159
        %v6305 = vmul.f32 %v6164, %v6164
        %v6306 = vmul.f32 %v6167, %v6167
        %v6307 = vmul.f32 %v6172, %v6172
        %v6308 = vmul.f32 %v6175, %v6175
        %6309 = vadd.xlane.f32.xlu0 %v6277
        %v6310 = vpop.xlane.xlu0 %6309
        %6311 = vadd.xlane.f32.xlu0 %v6278
        %v6312 = vpop.xlane.xlu0 %6311
        %6313 = vadd.xlane.f32.xlu0 %v6279
        %v6314 = vpop.xlane.xlu0 %6313
        %6315 = vadd.xlane.f32.xlu0 %v6280
        %v6316 = vpop.xlane.xlu0 %6315
        %6317 = vadd.xlane.f32.xlu0 %v6281
        %v6318 = vpop.xlane.xlu0 %6317
        %6319 = vadd.xlane.f32.xlu0 %v6282
        %v6320 = vpop.xlane.xlu0 %6319
        %6321 = vadd.xlane.f32.xlu0 %v6283
        %v6322 = vpop.xlane.xlu0 %6321
        %6323 = vadd.xlane.f32.xlu0 %v6284
        %v6324 = vpop.xlane.xlu0 %6323
        %6325 = vadd.xlane.f32.xlu0 %v6285
        %v6326 = vpop.xlane.xlu0 %6325
        %6327 = vadd.xlane.f32.xlu0 %v6286
        %v6328 = vpop.xlane.xlu0 %6327
        %6329 = vadd.xlane.f32.xlu0 %v6287
        %v6330 = vpop.xlane.xlu0 %6329
        %6331 = vadd.xlane.f32.xlu0 %v6288
        %v6332 = vpop.xlane.xlu0 %6331
        %6333 = vadd.xlane.f32.xlu0 %v6289
        %v6334 = vpop.xlane.xlu0 %6333
        %6335 = vadd.xlane.f32.xlu0 %v6290
        %v6336 = vpop.xlane.xlu0 %6335
        %6337 = vadd.xlane.f32.xlu0 %v6291
        %v6338 = vpop.xlane.xlu0 %6337
        %6339 = vadd.xlane.f32.xlu0 %v6292
        %v6340 = vpop.xlane.xlu0 %6339
        %6341 = vadd.xlane.f32.xlu0 %v6293
        %v6342 = vpop.xlane.xlu0 %6341
        %6343 = vadd.xlane.f32.xlu0 %v6294
        %v6344 = vpop.xlane.xlu0 %6343
        %6345 = vadd.xlane.f32.xlu0 %v6295
        %v6346 = vpop.xlane.xlu0 %6345
        %6347 = vadd.xlane.f32.xlu0 %v6296
        %v6348 = vpop.xlane.xlu0 %6347
        %6349 = vadd.xlane.f32.xlu0 %v6297
        %v6350 = vpop.xlane.xlu0 %6349
        %6351 = vadd.xlane.f32.xlu0 %v6298
        %v6352 = vpop.xlane.xlu0 %6351
        %6353 = vadd.xlane.f32.xlu0 %v6299
        %v6354 = vpop.xlane.xlu0 %6353
        %6355 = vadd.xlane.f32.xlu0 %v6300
        %v6356 = vpop.xlane.xlu0 %6355
        %6357 = vadd.xlane.f32.xlu0 %v6301
        %v6358 = vpop.xlane.xlu0 %6357
        %6359 = vadd.xlane.f32.xlu0 %v6302
        %v6360 = vpop.xlane.xlu0 %6359
        %6361 = vadd.xlane.f32.xlu0 %v6303
        %v6362 = vpop.xlane.xlu0 %6361
        %6363 = vadd.xlane.f32.xlu0 %v6304
        %v6364 = vpop.xlane.xlu0 %6363
        %6365 = vadd.xlane.f32.xlu0 %v6305
        %v6366 = vpop.xlane.xlu0 %6365
        %6367 = vadd.xlane.f32.xlu0 %v6306
        %v6368 = vpop.xlane.xlu0 %6367
        %6369 = vadd.xlane.f32.xlu0 %v6307
        %v6370 = vpop.xlane.xlu0 %6369
        %6371 = vadd.xlane.f32.xlu0 %v6308
        %v6372 = vpop.xlane.xlu0 %6371
        %v6373 = vmul.f32 %v6310, %v6244
        %v6374 = vmul.f32 %v6312, %v6244
        %v6375 = vmul.f32 %v6314, %v6244
        %v6376 = vmul.f32 %v6316, %v6244
        %v6377 = vmul.f32 %v6318, %v6244
        %v6378 = vmul.f32 %v6320, %v6244
        %v6379 = vmul.f32 %v6322, %v6244
        %v6380 = vmul.f32 %v6324, %v6244
        %v6381 = vmul.f32 %v6326, %v6244
        %v6382 = vmul.f32 %v6328, %v6244
        %v6383 = vmul.f32 %v6330, %v6244
        %v6384 = vmul.f32 %v6332, %v6244
        %v6385 = vmul.f32 %v6334, %v6244
        %v6386 = vmul.f32 %v6336, %v6244
        %v6387 = vmul.f32 %v6338, %v6244
        %v6388 = vmul.f32 %v6340, %v6244
        %v6389 = vmul.f32 %v6342, %v6244
        %v6390 = vmul.f32 %v6344, %v6244
        %v6391 = vmul.f32 %v6346, %v6244
        %v6392 = vmul.f32 %v6348, %v6244
        %v6393 = vmul.f32 %v6350, %v6244
        %v6394 = vmul.f32 %v6352, %v6244
        %v6395 = vmul.f32 %v6354, %v6244
        %v6396 = vmul.f32 %v6356, %v6244
        %v6397 = vmul.f32 %v6358, %v6244
        %v6398 = vmul.f32 %v6360, %v6244
        %v6399 = vmul.f32 %v6362, %v6244
        %v6400 = vmul.f32 %v6364, %v6244
        %v6401 = vmul.f32 %v6366, %v6244
        %v6402 = vmul.f32 %v6368, %v6244
        %v6403 = vmul.f32 %v6370, %v6244
        %v6404 = vmul.f32 %v6372, %v6244
        %v6405 = vmul.f32 %v6245, %v6245
        %v6406 = vmul.f32 %v6246, %v6246
        %v6407 = vmul.f32 %v6247, %v6247
        %v6408 = vmul.f32 %v6248, %v6248
        %v6409 = vmul.f32 %v6249, %v6249
        %v6410 = vmul.f32 %v6250, %v6250
        %v6411 = vmul.f32 %v6251, %v6251
        %v6412 = vmul.f32 %v6252, %v6252
        %v6413 = vmul.f32 %v6253, %v6253
        %v6414 = vmul.f32 %v6254, %v6254
        %v6415 = vmul.f32 %v6255, %v6255
        %v6416 = vmul.f32 %v6256, %v6256
        %v6417 = vmul.f32 %v6257, %v6257
        %v6418 = vmul.f32 %v6258, %v6258
        %v6419 = vmul.f32 %v6259, %v6259
        %v6420 = vmul.f32 %v6260, %v6260
        %v6421 = vmul.f32 %v6261, %v6261
        %v6422 = vmul.f32 %v6262, %v6262
        %v6423 = vmul.f32 %v6263, %v6263
        %v6424 = vmul.f32 %v6264, %v6264
        %v6425 = vmul.f32 %v6265, %v6265
        %v6426 = vmul.f32 %v6266, %v6266
        %v6427 = vmul.f32 %v6267, %v6267
        %v6428 = vmul.f32 %v6268, %v6268
        %v6429 = vmul.f32 %v6269, %v6269
        %v6430 = vmul.f32 %v6270, %v6270
        %v6431 = vmul.f32 %v6271, %v6271
        %v6432 = vmul.f32 %v6272, %v6272
        %v6433 = vmul.f32 %v6273, %v6273
        %v6434 = vmul.f32 %v6274, %v6274
        %v6435 = vmul.f32 %v6275, %v6275
        %v6436 = vmul.f32 %v6276, %v6276
        %v6437 = vsub.f32 %v6373, %v6405
        %v6438 = vsub.f32 %v6374, %v6406
        %v6439 = vsub.f32 %v6375, %v6407
        %v6440 = vsub.f32 %v6376, %v6408
        %v6441 = vsub.f32 %v6377, %v6409
        %v6442 = vsub.f32 %v6378, %v6410
        %v6443 = vsub.f32 %v6379, %v6411
        %v6444 = vsub.f32 %v6380, %v6412
        %v6445 = vsub.f32 %v6381, %v6413
        %v6446 = vsub.f32 %v6382, %v6414
        %v6447 = vsub.f32 %v6383, %v6415
        %v6448 = vsub.f32 %v6384, %v6416
        %v6449 = vsub.f32 %v6385, %v6417
        %v6450 = vsub.f32 %v6386, %v6418
        %v6451 = vsub.f32 %v6387, %v6419
        %v6452 = vsub.f32 %v6388, %v6420
        %v6453 = vsub.f32 %v6389, %v6421
        %v6454 = vsub.f32 %v6390, %v6422
        %v6455 = vsub.f32 %v6391, %v6423
        %v6456 = vsub.f32 %v6392, %v6424
        %v6457 = vsub.f32 %v6393, %v6425
        %v6458 = vsub.f32 %v6394, %v6426
        %v6459 = vsub.f32 %v6395, %v6427
        %v6460 = vsub.f32 %v6396, %v6428
        %v6461 = vsub.f32 %v6397, %v6429
        %v6462 = vsub.f32 %v6398, %v6430
        %v6463 = vsub.f32 %v6399, %v6431
        %v6464 = vsub.f32 %v6400, %v6432
        %v6465 = vsub.f32 %v6401, %v6433
        %v6466 = vsub.f32 %v6402, %v6434
        %v6467 = vsub.f32 %v6403, %v6435
        %v6468 = vsub.f32 %v6404, %v6436
        %v6469 = vsub.f32 %v6052, %v6245
        %v6470 = vsub.f32 %v6055, %v6246
        %v6471 = vsub.f32 %v6060, %v6247
        %v6472 = vsub.f32 %v6063, %v6248
        %v6473 = vsub.f32 %v6068, %v6249
        %v6474 = vsub.f32 %v6071, %v6250
        %v6475 = vsub.f32 %v6076, %v6251
        %v6476 = vsub.f32 %v6079, %v6252
        %v6477 = vsub.f32 %v6084, %v6253
        %v6478 = vsub.f32 %v6087, %v6254
        %v6479 = vsub.f32 %v6092, %v6255
        %v6480 = vsub.f32 %v6095, %v6256
        %v6481 = vsub.f32 %v6100, %v6257
        %v6482 = vsub.f32 %v6103, %v6258
        %v6483 = vsub.f32 %v6108, %v6259
        %v6484 = vsub.f32 %v6111, %v6260
        %v6485 = vsub.f32 %v6116, %v6261
        %v6486 = vsub.f32 %v6119, %v6262
        %v6487 = vsub.f32 %v6124, %v6263
        %v6488 = vsub.f32 %v6127, %v6264
        %v6489 = vsub.f32 %v6132, %v6265
        %v6490 = vsub.f32 %v6135, %v6266
        %v6491 = vsub.f32 %v6140, %v6267
        %v6492 = vsub.f32 %v6143, %v6268
        %v6493 = vsub.f32 %v6148, %v6269
        %v6494 = vsub.f32 %v6151, %v6270
        %v6495 = vsub.f32 %v6156, %v6271
        %v6496 = vsub.f32 %v6159, %v6272
        %v6497 = vsub.f32 %v6164, %v6273
        %v6498 = vsub.f32 %v6167, %v6274
        %v6499 = vsub.f32 %v6172, %v6275
        %v6500 = vsub.f32 %v6175, %v6276
        %v6501 = vadd.f32 %v6437, 1e-05
        %v6502 = vadd.f32 %v6438, 1e-05
        %v6503 = vadd.f32 %v6439, 1e-05
        %v6504 = vadd.f32 %v6440, 1e-05
        %v6505 = vadd.f32 %v6441, 1e-05
        %v6506 = vadd.f32 %v6442, 1e-05
        %v6507 = vadd.f32 %v6443, 1e-05
        %v6508 = vadd.f32 %v6444, 1e-05
        %v6509 = vadd.f32 %v6445, 1e-05
        %v6510 = vadd.f32 %v6446, 1e-05
        %v6511 = vadd.f32 %v6447, 1e-05
        %v6512 = vadd.f32 %v6448, 1e-05
        %v6513 = vadd.f32 %v6449, 1e-05
        %v6514 = vadd.f32 %v6450, 1e-05
        %v6515 = vadd.f32 %v6451, 1e-05
        %v6516 = vadd.f32 %v6452, 1e-05
        %v6517 = vadd.f32 %v6453, 1e-05
        %v6518 = vadd.f32 %v6454, 1e-05
        %v6519 = vadd.f32 %v6455, 1e-05
        %v6520 = vadd.f32 %v6456, 1e-05
        %v6521 = vadd.f32 %v6457, 1e-05
        %v6522 = vadd.f32 %v6458, 1e-05
        %v6523 = vadd.f32 %v6459, 1e-05
        %v6524 = vadd.f32 %v6460, 1e-05
        %v6525 = vadd.f32 %v6461, 1e-05
        %v6526 = vadd.f32 %v6462, 1e-05
        %v6527 = vadd.f32 %v6463, 1e-05
        %v6528 = vadd.f32 %v6464, 1e-05
        %v6529 = vadd.f32 %v6465, 1e-05
        %v6530 = vadd.f32 %v6466, 1e-05
        %v6531 = vadd.f32 %v6467, 1e-05
        %v6532 = vadd.f32 %v6468, 1e-05
        %v6533 = vrsqrt.pop %v6501
        %v6534 = vrsqrt.pop %v6502
        %v6535 = vrsqrt.pop %v6503
        %v6536 = vrsqrt.pop %v6504
        %v6537 = vrsqrt.pop %v6505
        %v6538 = vrsqrt.pop %v6506
        %v6539 = vrsqrt.pop %v6507
        %v6540 = vrsqrt.pop %v6508
        %v6541 = vrsqrt.pop %v6509
        %v6542 = vrsqrt.pop %v6510
        %v6543 = vrsqrt.pop %v6511
        %v6544 = vrsqrt.pop %v6512
        %v6545 = vrsqrt.pop %v6513
        %v6546 = vrsqrt.pop %v6514
        %v6547 = vrsqrt.pop %v6515
        %v6548 = vrsqrt.pop %v6516
        %v6549 = vrsqrt.pop %v6517
        %v6550 = vrsqrt.pop %v6518
        %v6551 = vrsqrt.pop %v6519
        %v6552 = vrsqrt.pop %v6520
        %v6553 = vrsqrt.pop %v6521
        %v6554 = vrsqrt.pop %v6522
        %v6555 = vrsqrt.pop %v6523
        %v6556 = vrsqrt.pop %v6524
        %v6557 = vrsqrt.pop %v6525
        %v6558 = vrsqrt.pop %v6526
        %v6559 = vrsqrt.pop %v6527
        %v6560 = vrsqrt.pop %v6528
        %v6561 = vrsqrt.pop %v6529
        %v6562 = vrsqrt.pop %v6530
        %v6563 = vrsqrt.pop %v6531
        %v6564 = vrsqrt.pop %v6532
        %v6565 = vmul.f32 %v6469, %v6533
        %v6566 = vmul.f32 %v6470, %v6534
        %v6567 = vmul.f32 %v6471, %v6535
        %v6568 = vmul.f32 %v6472, %v6536
        %v6569 = vmul.f32 %v6473, %v6537
        %v6570 = vmul.f32 %v6474, %v6538
        %v6571 = vmul.f32 %v6475, %v6539
        %v6572 = vmul.f32 %v6476, %v6540
        %v6573 = vmul.f32 %v6477, %v6541
        %v6574 = vmul.f32 %v6478, %v6542
        %v6575 = vmul.f32 %v6479, %v6543
        %v6576 = vmul.f32 %v6480, %v6544
        %v6577 = vmul.f32 %v6481, %v6545
        %v6578 = vmul.f32 %v6482, %v6546
        %v6579 = vmul.f32 %v6483, %v6547
        %v6580 = vmul.f32 %v6484, %v6548
        %v6581 = vmul.f32 %v6485, %v6549
        %v6582 = vmul.f32 %v6486, %v6550
        %v6583 = vmul.f32 %v6487, %v6551
        %v6584 = vmul.f32 %v6488, %v6552
        %v6585 = vmul.f32 %v6489, %v6553
        %v6586 = vmul.f32 %v6490, %v6554
        %v6587 = vmul.f32 %v6491, %v6555
        %v6588 = vmul.f32 %v6492, %v6556
        %v6589 = vmul.f32 %v6493, %v6557
        %v6590 = vmul.f32 %v6494, %v6558
        %v6591 = vmul.f32 %v6495, %v6559
        %v6592 = vmul.f32 %v6496, %v6560
        %v6593 = vmul.f32 %v6497, %v6561
        %v6594 = vmul.f32 %v6498, %v6562
        %v6595 = vmul.f32 %v6499, %v6563
        %v6596 = vmul.f32 %v6500, %v6564
        %v6598 = vlaneseq
        %v6599 = vshrl.u32 %v6598, 7
        %v6600 = vsub.s32 0, %v6599
        %v6601 = vrot.slane %v6178, %v6600
        %v6603 = vmul.f32 %v6565, %v6601
        %v6604 = vmul.f32 %v6566, %v6601
        %v6605 = vmul.f32 %v6567, %v6601
        %v6606 = vmul.f32 %v6568, %v6601
        %v6607 = vmul.f32 %v6569, %v6601
        %v6608 = vmul.f32 %v6570, %v6601
        %v6609 = vmul.f32 %v6571, %v6601
        %v6610 = vmul.f32 %v6572, %v6601
        %v6611 = vmul.f32 %v6573, %v6601
        %v6612 = vmul.f32 %v6574, %v6601
        %v6613 = vmul.f32 %v6575, %v6601
        %v6614 = vmul.f32 %v6576, %v6601
        %v6615 = vmul.f32 %v6577, %v6601
        %v6616 = vmul.f32 %v6578, %v6601
        %v6617 = vmul.f32 %v6579, %v6601
        %v6618 = vmul.f32 %v6580, %v6601
        %v6619 = vmul.f32 %v6581, %v6601
        %v6620 = vmul.f32 %v6582, %v6601
        %v6621 = vmul.f32 %v6583, %v6601
        %v6622 = vmul.f32 %v6584, %v6601
        %v6623 = vmul.f32 %v6585, %v6601
        %v6624 = vmul.f32 %v6586, %v6601
        %v6625 = vmul.f32 %v6587, %v6601
        %v6626 = vmul.f32 %v6588, %v6601
        %v6627 = vmul.f32 %v6589, %v6601
        %v6628 = vmul.f32 %v6590, %v6601
        %v6629 = vmul.f32 %v6591, %v6601
        %v6630 = vmul.f32 %v6592, %v6601
        %v6631 = vmul.f32 %v6593, %v6601
        %v6632 = vmul.f32 %v6594, %v6601
        %v6633 = vmul.f32 %v6595, %v6601
        %v6634 = vmul.f32 %v6596, %v6601
        %v6636 = vlaneseq
        %v6637 = vshrl.u32 %v6636, 7
        %v6638 = vsub.s32 0, %v6637
        %v6639 = vrot.slane %v6179, %v6638
        %v6641 = vadd.f32 %v6603, %v6639
        %v6642 = vadd.f32 %v6604, %v6639
        %v6643 = vadd.f32 %v6605, %v6639
        %v6644 = vadd.f32 %v6606, %v6639
        %v6645 = vadd.f32 %v6607, %v6639
        %v6646 = vadd.f32 %v6608, %v6639
        %v6647 = vadd.f32 %v6609, %v6639
        %v6648 = vadd.f32 %v6610, %v6639
        %v6649 = vadd.f32 %v6611, %v6639
        %v6650 = vadd.f32 %v6612, %v6639
        %v6651 = vadd.f32 %v6613, %v6639
        %v6652 = vadd.f32 %v6614, %v6639
        %v6653 = vadd.f32 %v6615, %v6639
        %v6654 = vadd.f32 %v6616, %v6639
        %v6655 = vadd.f32 %v6617, %v6639
        %v6656 = vadd.f32 %v6618, %v6639
        %v6657 = vadd.f32 %v6619, %v6639
        %v6658 = vadd.f32 %v6620, %v6639
        %v6659 = vadd.f32 %v6621, %v6639
        %v6660 = vadd.f32 %v6622, %v6639
        %v6661 = vadd.f32 %v6623, %v6639
        %v6662 = vadd.f32 %v6624, %v6639
        %v6663 = vadd.f32 %v6625, %v6639
        %v6664 = vadd.f32 %v6626, %v6639
        %v6665 = vadd.f32 %v6627, %v6639
        %v6666 = vadd.f32 %v6628, %v6639
        %v6667 = vadd.f32 %v6629, %v6639
        %v6668 = vadd.f32 %v6630, %v6639
        %v6669 = vadd.f32 %v6631, %v6639
        %v6670 = vadd.f32 %v6632, %v6639
        %v6671 = vadd.f32 %v6633, %v6639
        %v6672 = vadd.f32 %v6634, %v6639
        %v6673 = vmul.f32 %v6641, 0.5
        %v6674 = vmul.f32 %v6642, 0.5
        %v6675 = vmul.f32 %v6643, 0.5
        %v6676 = vmul.f32 %v6644, 0.5
        %v6677 = vmul.f32 %v6645, 0.5
        %v6678 = vmul.f32 %v6646, 0.5
        %v6679 = vmul.f32 %v6647, 0.5
        %v6680 = vmul.f32 %v6648, 0.5
        %v6681 = vmul.f32 %v6649, 0.5
        %v6682 = vmul.f32 %v6650, 0.5
        %v6683 = vmul.f32 %v6651, 0.5
        %v6684 = vmul.f32 %v6652, 0.5
        %v6685 = vmul.f32 %v6653, 0.5
        %v6686 = vmul.f32 %v6654, 0.5
        %v6687 = vmul.f32 %v6655, 0.5
        %v6688 = vmul.f32 %v6656, 0.5
        %v6689 = vmul.f32 %v6657, 0.5
        %v6690 = vmul.f32 %v6658, 0.5
        %v6691 = vmul.f32 %v6659, 0.5
        %v6692 = vmul.f32 %v6660, 0.5
        %v6693 = vmul.f32 %v6661, 0.5
        %v6694 = vmul.f32 %v6662, 0.5
        %v6695 = vmul.f32 %v6663, 0.5
        %v6696 = vmul.f32 %v6664, 0.5
        %v6697 = vmul.f32 %v6665, 0.5
        %v6698 = vmul.f32 %v6666, 0.5
        %v6699 = vmul.f32 %v6667, 0.5
        %v6700 = vmul.f32 %v6668, 0.5
        %v6701 = vmul.f32 %v6669, 0.5
        %v6702 = vmul.f32 %v6670, 0.5
        %v6703 = vmul.f32 %v6671, 0.5
        %v6704 = vmul.f32 %v6672, 0.5
        %v6705 = vtanh.pop %v6673
        %v6706 = vtanh.pop %v6674
        %v6707 = vtanh.pop %v6675
        %v6708 = vtanh.pop %v6676
        %v6709 = vtanh.pop %v6677
        %v6710 = vtanh.pop %v6678
        %v6711 = vtanh.pop %v6679
        %v6712 = vtanh.pop %v6680
        %v6713 = vtanh.pop %v6681
        %v6714 = vtanh.pop %v6682
        %v6715 = vtanh.pop %v6683
        %v6716 = vtanh.pop %v6684
        %v6717 = vtanh.pop %v6685
        %v6718 = vtanh.pop %v6686
        %v6719 = vtanh.pop %v6687
        %v6720 = vtanh.pop %v6688
        %v6721 = vtanh.pop %v6689
        %v6722 = vtanh.pop %v6690
        %v6723 = vtanh.pop %v6691
        %v6724 = vtanh.pop %v6692
        %v6725 = vtanh.pop %v6693
        %v6726 = vtanh.pop %v6694
        %v6727 = vtanh.pop %v6695
        %v6728 = vtanh.pop %v6696
        %v6729 = vtanh.pop %v6697
        %v6730 = vtanh.pop %v6698
        %v6731 = vtanh.pop %v6699
        %v6732 = vtanh.pop %v6700
        %v6733 = vtanh.pop %v6701
        %v6734 = vtanh.pop %v6702
        %v6735 = vtanh.pop %v6703
        %v6736 = vtanh.pop %v6704
        %v6737 = vadd.f32 %v6705, 1.0
        %v6738 = vadd.f32 %v6706, 1.0
        %v6739 = vadd.f32 %v6707, 1.0
        %v6740 = vadd.f32 %v6708, 1.0
        %v6741 = vadd.f32 %v6709, 1.0
        %v6742 = vadd.f32 %v6710, 1.0
        %v6743 = vadd.f32 %v6711, 1.0
        %v6744 = vadd.f32 %v6712, 1.0
        %v6745 = vadd.f32 %v6713, 1.0
        %v6746 = vadd.f32 %v6714, 1.0
        %v6747 = vadd.f32 %v6715, 1.0
        %v6748 = vadd.f32 %v6716, 1.0
        %v6749 = vadd.f32 %v6717, 1.0
        %v6750 = vadd.f32 %v6718, 1.0
        %v6751 = vadd.f32 %v6719, 1.0
        %v6752 = vadd.f32 %v6720, 1.0
        %v6753 = vadd.f32 %v6721, 1.0
        %v6754 = vadd.f32 %v6722, 1.0
        %v6755 = vadd.f32 %v6723, 1.0
        %v6756 = vadd.f32 %v6724, 1.0
        %v6757 = vadd.f32 %v6725, 1.0
        %v6758 = vadd.f32 %v6726, 1.0
        %v6759 = vadd.f32 %v6727, 1.0
        %v6760 = vadd.f32 %v6728, 1.0
        %v6761 = vadd.f32 %v6729, 1.0
        %v6762 = vadd.f32 %v6730, 1.0
        %v6763 = vadd.f32 %v6731, 1.0
        %v6764 = vadd.f32 %v6732, 1.0
        %v6765 = vadd.f32 %v6733, 1.0
        %v6766 = vadd.f32 %v6734, 1.0
        %v6767 = vadd.f32 %v6735, 1.0
        %v6768 = vadd.f32 %v6736, 1.0
        %v6769 = vmul.f32 %v6737, 0.5
        %v6770 = vmul.f32 %v6738, 0.5
        %v6771 = vmul.f32 %v6739, 0.5
        %v6772 = vmul.f32 %v6740, 0.5
        %v6773 = vmul.f32 %v6741, 0.5
        %v6774 = vmul.f32 %v6742, 0.5
        %v6775 = vmul.f32 %v6743, 0.5
        %v6776 = vmul.f32 %v6744, 0.5
        %v6777 = vmul.f32 %v6745, 0.5
        %v6778 = vmul.f32 %v6746, 0.5
        %v6779 = vmul.f32 %v6747, 0.5
        %v6780 = vmul.f32 %v6748, 0.5
        %v6781 = vmul.f32 %v6749, 0.5
        %v6782 = vmul.f32 %v6750, 0.5
        %v6783 = vmul.f32 %v6751, 0.5
        %v6784 = vmul.f32 %v6752, 0.5
        %v6785 = vmul.f32 %v6753, 0.5
        %v6786 = vmul.f32 %v6754, 0.5
        %v6787 = vmul.f32 %v6755, 0.5
        %v6788 = vmul.f32 %v6756, 0.5
        %v6789 = vmul.f32 %v6757, 0.5
        %v6790 = vmul.f32 %v6758, 0.5
        %v6791 = vmul.f32 %v6759, 0.5
        %v6792 = vmul.f32 %v6760, 0.5
        %v6793 = vmul.f32 %v6761, 0.5
        %v6794 = vmul.f32 %v6762, 0.5
        %v6795 = vmul.f32 %v6763, 0.5
        %v6796 = vmul.f32 %v6764, 0.5
        %v6797 = vmul.f32 %v6765, 0.5
        %v6798 = vmul.f32 %v6766, 0.5
        %v6799 = vmul.f32 %v6767, 0.5
        %v6800 = vmul.f32 %v6768, 0.5
        %v6801 = vmul.f32 %v6641, %v6769
        %v6802 = vmul.f32 %v6642, %v6770
        %v6803 = vmul.f32 %v6643, %v6771
        %v6804 = vmul.f32 %v6644, %v6772
        %v6805 = vmul.f32 %v6645, %v6773
        %v6806 = vmul.f32 %v6646, %v6774
        %v6807 = vmul.f32 %v6647, %v6775
        %v6808 = vmul.f32 %v6648, %v6776
        %v6809 = vmul.f32 %v6649, %v6777
        %v6810 = vmul.f32 %v6650, %v6778
        %v6811 = vmul.f32 %v6651, %v6779
        %v6812 = vmul.f32 %v6652, %v6780
        %v6813 = vmul.f32 %v6653, %v6781
        %v6814 = vmul.f32 %v6654, %v6782
        %v6815 = vmul.f32 %v6655, %v6783
        %v6816 = vmul.f32 %v6656, %v6784
        %v6817 = vmul.f32 %v6657, %v6785
        %v6818 = vmul.f32 %v6658, %v6786
        %v6819 = vmul.f32 %v6659, %v6787
        %v6820 = vmul.f32 %v6660, %v6788
        %v6821 = vmul.f32 %v6661, %v6789
        %v6822 = vmul.f32 %v6662, %v6790
        %v6823 = vmul.f32 %v6663, %v6791
        %v6824 = vmul.f32 %v6664, %v6792
        %v6825 = vmul.f32 %v6665, %v6793
        %v6826 = vmul.f32 %v6666, %v6794
        %v6827 = vmul.f32 %v6667, %v6795
        %v6828 = vmul.f32 %v6668, %v6796
        %v6829 = vmul.f32 %v6669, %v6797
        %v6830 = vmul.f32 %v6670, %v6798
        %v6831 = vmul.f32 %v6671, %v6799
        %v6832 = vmul.f32 %v6672, %v6800
        %v6833 = vadd.f32 %v6801, %v5898
        %v6834 = vadd.f32 %v6802, %v5899
        %v6835 = vadd.f32 %v6803, %v5900
        %v6836 = vadd.f32 %v6804, %v5901
        %v6837 = vadd.f32 %v6805, %v5902
        %v6838 = vadd.f32 %v6806, %v5903
        %v6839 = vadd.f32 %v6807, %v5904
        %v6840 = vadd.f32 %v6808, %v5905
        %v6841 = vadd.f32 %v6809, %v5906
        %v6842 = vadd.f32 %v6810, %v5907
        %v6843 = vadd.f32 %v6811, %v5908
        %v6844 = vadd.f32 %v6812, %v5909
        %v6845 = vadd.f32 %v6813, %v5910
        %v6846 = vadd.f32 %v6814, %v5911
        %v6847 = vadd.f32 %v6815, %v5912
        %v6848 = vadd.f32 %v6816, %v5913
        %v6849 = vadd.f32 %v6817, %v5914
        %v6850 = vadd.f32 %v6818, %v5915
        %v6851 = vadd.f32 %v6819, %v5916
        %v6852 = vadd.f32 %v6820, %v5917
        %v6853 = vadd.f32 %v6821, %v5918
        %v6854 = vadd.f32 %v6822, %v5919
        %v6855 = vadd.f32 %v6823, %v5920
        %v6856 = vadd.f32 %v6824, %v5921
        %v6857 = vadd.f32 %v6825, %v5922
        %v6858 = vadd.f32 %v6826, %v5923
        %v6859 = vadd.f32 %v6827, %v5924
        %v6860 = vadd.f32 %v6828, %v5925
        %v6861 = vadd.f32 %v6829, %v5926
        %v6862 = vadd.f32 %v6830, %v5927
        %v6863 = vadd.f32 %v6831, %v5928
        %v6864 = vadd.f32 %v6832, %v5929
        %6865 = vst [vmem:[#allocation2] sm:$0xff] %v6833
        %6866 = vst [vmem:[#allocation2 + $0x8] sm:$0xff] %v6834
        %6867 = vst [vmem:[#allocation2 + $0x10] sm:$0xff] %v6835
        %6868 = vst [vmem:[#allocation2 + $0x18] sm:$0xff] %v6836
        %6869 = vst [vmem:[#allocation2 + $0x20] sm:$0xff] %v6837
        %6870 = vst [vmem:[#allocation2 + $0x28] sm:$0xff] %v6838
        %6871 = vst [vmem:[#allocation2 + $0x30] sm:$0xff] %v6839
        %6872 = vst [vmem:[#allocation2 + $0x38] sm:$0xff] %v6840
        %6873 = vst [vmem:[#allocation2 + $0x40] sm:$0xff] %v6841
        %6874 = vst [vmem:[#allocation2 + $0x48] sm:$0xff] %v6842
        %6875 = vst [vmem:[#allocation2 + $0x50] sm:$0xff] %v6843
        %6876 = vst [vmem:[#allocation2 + $0x58] sm:$0xff] %v6844
        %6877 = vst [vmem:[#allocation2 + $0x60] sm:$0xff] %v6845
        %6878 = vst [vmem:[#allocation2 + $0x68] sm:$0xff] %v6846
        %6879 = vst [vmem:[#allocation2 + $0x70] sm:$0xff] %v6847
        %6880 = vst [vmem:[#allocation2 + $0x78] sm:$0xff] %v6848
        %6881 = vst [vmem:[#allocation2 + $0x80] sm:$0xff] %v6849
        %6882 = vst [vmem:[#allocation2 + $0x88] sm:$0xff] %v6850
        %6883 = vst [vmem:[#allocation2 + $0x90] sm:$0xff] %v6851
        %6884 = vst [vmem:[#allocation2 + $0x98] sm:$0xff] %v6852
        %6885 = vst [vmem:[#allocation2 + $0xa0] sm:$0xff] %v6853
        %6886 = vst [vmem:[#allocation2 + $0xa8] sm:$0xff] %v6854
        %6887 = vst [vmem:[#allocation2 + $0xb0] sm:$0xff] %v6855
        %6888 = vst [vmem:[#allocation2 + $0xb8] sm:$0xff] %v6856
        %6889 = vst [vmem:[#allocation2 + $0xc0] sm:$0xff] %v6857
        %6890 = vst [vmem:[#allocation2 + $0xc8] sm:$0xff] %v6858
        %6891 = vst [vmem:[#allocation2 + $0xd0] sm:$0xff] %v6859
        %6892 = vst [vmem:[#allocation2 + $0xd8] sm:$0xff] %v6860
        %6893 = vst [vmem:[#allocation2 + $0xe0] sm:$0xff] %v6861
        %6894 = vst [vmem:[#allocation2 + $0xe8] sm:$0xff] %v6862
        %6895 = vst [vmem:[#allocation2 + $0xf0] sm:$0xff] %v6863
        %6896 = vst [vmem:[#allocation2 + $0xf8] sm:$0xff] %v6864
        %p6897 = scmp.eq.s32.totalorder %s36, 3
        // Predicated region
        $region93: #{tpu_custom_call.1} parent=87 // pred_check
          %p6898 = pneg %p6897
        $region94: #{tpu_custom_call.1} parent=87 // pred_check_branch
          %6900 = sbr.rel (%p6898) target = $region96
        $region95: #{tpu_custom_call.1} parent=87 // pred_region
          %v6901 = vld [vmem:[#allocation2] sm:$0xff]
          %v6902 = vld [vmem:[#allocation2 + $0x8] sm:$0xff]
          %v6903 = vld [vmem:[#allocation2 + $0x10] sm:$0xff]
          %v6904 = vld [vmem:[#allocation2 + $0x18] sm:$0xff]
          %v6905 = vld [vmem:[#allocation2 + $0x20] sm:$0xff]
          %v6906 = vld [vmem:[#allocation2 + $0x28] sm:$0xff]
          %v6907 = vld [vmem:[#allocation2 + $0x30] sm:$0xff]
          %v6908 = vld [vmem:[#allocation2 + $0x38] sm:$0xff]
          %v6909 = vld [vmem:[#allocation2 + $0x40] sm:$0xff]
          %v6910 = vld [vmem:[#allocation2 + $0x48] sm:$0xff]
          %v6911 = vld [vmem:[#allocation2 + $0x50] sm:$0xff]
          %v6912 = vld [vmem:[#allocation2 + $0x58] sm:$0xff]
          %v6913 = vld [vmem:[#allocation2 + $0x60] sm:$0xff]
          %v6914 = vld [vmem:[#allocation2 + $0x68] sm:$0xff]
          %v6915 = vld [vmem:[#allocation2 + $0x70] sm:$0xff]
          %v6916 = vld [vmem:[#allocation2 + $0x78] sm:$0xff]
          %v6917 = vld [vmem:[#allocation2 + $0x80] sm:$0xff]
          %v6918 = vld [vmem:[#allocation2 + $0x88] sm:$0xff]
          %v6919 = vld [vmem:[#allocation2 + $0x90] sm:$0xff]
          %v6920 = vld [vmem:[#allocation2 + $0x98] sm:$0xff]
          %v6921 = vld [vmem:[#allocation2 + $0xa0] sm:$0xff]
          %v6922 = vld [vmem:[#allocation2 + $0xa8] sm:$0xff]
          %v6923 = vld [vmem:[#allocation2 + $0xb0] sm:$0xff]
          %v6924 = vld [vmem:[#allocation2 + $0xb8] sm:$0xff]
          %v6925 = vld [vmem:[#allocation2 + $0xc0] sm:$0xff]
          %v6926 = vld [vmem:[#allocation2 + $0xc8] sm:$0xff]
          %v6927 = vld [vmem:[#allocation2 + $0xd0] sm:$0xff]
          %v6928 = vld [vmem:[#allocation2 + $0xd8] sm:$0xff]
          %v6929 = vld [vmem:[#allocation2 + $0xe0] sm:$0xff]
          %v6930 = vld [vmem:[#allocation2 + $0xe8] sm:$0xff]
          %v6931 = vld [vmem:[#allocation2 + $0xf0] sm:$0xff]
          %v6932 = vld [vmem:[#allocation2 + $0xf8] sm:$0xff]
          %v6933 = vld [vmem:[%s16] sm:$0x1]
          %v6934 = vpack.c.bf16 %v6902, %v6901
          %v6935 = vpack.c.bf16 %v6904, %v6903
          %v6936 = vpack.c.bf16 %v6906, %v6905
          %v6937 = vpack.c.bf16 %v6908, %v6907
          %v6938 = vpack.c.bf16 %v6910, %v6909
          %v6939 = vpack.c.bf16 %v6912, %v6911
          %v6940 = vpack.c.bf16 %v6914, %v6913
          %v6941 = vpack.c.bf16 %v6916, %v6915
          %v6942 = vpack.c.bf16 %v6918, %v6917
          %v6943 = vpack.c.bf16 %v6920, %v6919
          %v6944 = vpack.c.bf16 %v6922, %v6921
          %v6945 = vpack.c.bf16 %v6924, %v6923
          %v6946 = vpack.c.bf16 %v6926, %v6925
          %v6947 = vpack.c.bf16 %v6928, %v6927
          %v6948 = vpack.c.bf16 %v6930, %v6929
          %v6949 = vpack.c.bf16 %v6932, %v6931
          %v6950 = vld [vmem:[%s15] sm:$0xf]
          %v6951 = vld [vmem:[%s15 + $0x4] sm:$0xf]
          %v6952 = vld [vmem:[%s15 + $0x8] sm:$0xf]
          %v6953 = vld [vmem:[%s15 + $0xc] sm:$0xf]
          %v6954 = vld [vmem:[%s15 + $0x10] sm:$0xf]
          %v6955 = vld [vmem:[%s15 + $0x14] sm:$0xf]
          %v6956 = vld [vmem:[%s15 + $0x18] sm:$0xf]
          %v6957 = vld [vmem:[%s15 + $0x1c] sm:$0xf]
          %v6958 = vld [vmem:[%s15 + $0x20] sm:$0xf]
          %v6959 = vld [vmem:[%s15 + $0x24] sm:$0xf]
          %v6960 = vld [vmem:[%s15 + $0x28] sm:$0xf]
          %v6961 = vld [vmem:[%s15 + $0x2c] sm:$0xf]
          %v6962 = vld [vmem:[%s15 + $0x30] sm:$0xf]
          %v6963 = vld [vmem:[%s15 + $0x34] sm:$0xf]
          %v6964 = vld [vmem:[%s15 + $0x38] sm:$0xf]
          %v6965 = vld [vmem:[%s15 + $0x3c] sm:$0xf]
          %v6967 = vlaneseq
          %v6968 = vshrl.u32 %v6967, 7
          %v6969 = vsub.s32 0, %v6968
          %v6970 = vrot.slane %v6933, %v6969
          %v6988 = vunpack.c.l.b16 %v6950
          %v6989 = vunpack.c.l.b16 %v6951
          %v6990 = vunpack.c.l.b16 %v6952
          %v6991 = vunpack.c.l.b16 %v6953
          %v6992 = vunpack.c.l.b16 %v6954
          %v6993 = vunpack.c.l.b16 %v6955
          %v6994 = vunpack.c.l.b16 %v6956
          %v6995 = vunpack.c.l.b16 %v6957
          %v6996 = vunpack.c.l.b16 %v6958
          %v6997 = vunpack.c.l.b16 %v6959
          %v6998 = vunpack.c.l.b16 %v6960
          %v6999 = vunpack.c.l.b16 %v6961
          %v7000 = vunpack.c.l.b16 %v6962
          %v7001 = vunpack.c.l.b16 %v6963
          %v7002 = vunpack.c.l.b16 %v6964
          %v7003 = vunpack.c.l.b16 %v6965
          %v7004 = vpack.c.b16 %v6989, %v6988
          %v7005 = vpack.c.b16 %v6991, %v6990
          %v7006 = vpack.c.b16 %v6993, %v6992
          %v7007 = vpack.c.b16 %v6995, %v6994
          %v7008 = vpack.c.b16 %v6997, %v6996
          %v7009 = vpack.c.b16 %v6999, %v6998
          %v7010 = vpack.c.b16 %v7001, %v7000
          %v7011 = vpack.c.b16 %v7003, %v7002
          %7020 = vmatprep.subr.bf16.mxu0 0
          %7021 = vmatpush1.bf16.msra.mxu0 %v7004
          %7022 = vmatprep.subr.bf16.mxu0 0
          %7023 = vmatpush1.bf16.msra.mxu0 %v7005
          %7024 = vmatprep.subr.bf16.mxu0 0
          %7025 = vmatpush1.bf16.msra.mxu0 %v7006
          %7026 = vmatprep.subr.bf16.mxu0 0
          %7027 = vmatpush1.bf16.msra.mxu0 %v7007
          %7028 = vmatprep.subr.bf16.mxu0 0
          %7029 = vmatpush1.bf16.msra.mxu0 %v7008
          %7030 = vmatprep.subr.bf16.mxu0 0
          %7031 = vmatpush1.bf16.msra.mxu0 %v7009
          %7032 = vmatprep.subr.bf16.mxu0 0
          %7033 = vmatpush1.bf16.msra.mxu0 %v7010
          %7034 = vmatprep.subr.bf16.mxu0 0
          %7035 = vmatpush1.bf16.msra.mxu0 %v7011
          %7036 = vmatprep.subr.bf16.mxu0 0
          %7037 = vmatpush1.bf16.msra.mxu0 0
          %7038 = vmatprep.subr.bf16.mxu0 0
          %7039 = vmatpush1.bf16.msra.mxu0 0
          %7040 = vmatprep.subr.bf16.mxu0 0
          %7041 = vmatpush1.bf16.msra.mxu0 0
          %7042 = vmatprep.subr.bf16.mxu0 0
          %7043 = vmatpush1.bf16.msra.mxu0 0
          %7044 = vmatprep.subr.bf16.mxu0 0
          %7045 = vmatpush1.bf16.msra.mxu0 0
          %7046 = vmatprep.subr.bf16.mxu0 0
          %7047 = vmatpush1.bf16.msra.mxu0 0
          %7048 = vmatprep.subr.bf16.mxu0 0
          %7049 = vmatpush1.bf16.msra.mxu0 0
          %7050 = vmatprep.subr.bf16.mxu0 0
          %7051 = vmatpush1.bf16.msra.mxu0 0
          %7052 = vmatprep.mubr.bf16.mxu0 0
          %7053 = vmatmul.mubr.bf16.gmra.mrb[0].mxu0 %v6934
          %v7054 = vpop.f32.mrb[0].mxu0
          %v7055 = vadd.f32 %v6970, %v7054
          %v7056 = vpop.f32.mrb[0].mxu0
          %v7057 = vpop.f32.mrb[0].mxu0
          %v7058 = vadd.f32 %v6970, %v7057
          %v7059 = vpop.f32.mrb[0].mxu0
          %7060 = vmatprep.mubr.bf16.mxu0 0
          %7061 = vmatmul.mubr.bf16.gmra.mrb[0].mxu0 %v6935
          %v7062 = vpop.f32.mrb[0].mxu0
          %v7063 = vadd.f32 %v6970, %v7062
          %v7064 = vpop.f32.mrb[0].mxu0
          %v7065 = vpop.f32.mrb[0].mxu0
          %v7066 = vadd.f32 %v6970, %v7065
          %v7067 = vpop.f32.mrb[0].mxu0
          %7068 = vmatprep.mubr.bf16.mxu0 0
          %7069 = vmatmul.mubr.bf16.gmra.mrb[0].mxu0 %v6936
          %v7070 = vpop.f32.mrb[0].mxu0
          %v7071 = vadd.f32 %v6970, %v7070
          %v7072 = vpop.f32.mrb[0].mxu0
          %v7073 = vpop.f32.mrb[0].mxu0
          %v7074 = vadd.f32 %v6970, %v7073
          %v7075 = vpop.f32.mrb[0].mxu0
          %7076 = vmatprep.mubr.bf16.mxu0 0
          %7077 = vmatmul.mubr.bf16.gmra.mrb[0].mxu0 %v6937
          %v7078 = vpop.f32.mrb[0].mxu0
          %v7079 = vadd.f32 %v6970, %v7078
          %v7080 = vpop.f32.mrb[0].mxu0
          %v7081 = vpop.f32.mrb[0].mxu0
          %v7082 = vadd.f32 %v6970, %v7081
          %v7083 = vpop.f32.mrb[0].mxu0
          %7084 = vmatprep.mubr.bf16.mxu0 0
          %7085 = vmatmul.mubr.bf16.gmra.mrb[0].mxu0 %v6938
          %v7086 = vpop.f32.mrb[0].mxu0
          %v7087 = vadd.f32 %v6970, %v7086
          %v7088 = vpop.f32.mrb[0].mxu0
          %v7089 = vpop.f32.mrb[0].mxu0
          %v7090 = vadd.f32 %v6970, %v7089
          %v7091 = vpop.f32.mrb[0].mxu0
          %7092 = vmatprep.mubr.bf16.mxu0 0
          %7093 = vmatmul.mubr.bf16.gmra.mrb[0].mxu0 %v6939
          %v7094 = vpop.f32.mrb[0].mxu0
          %v7095 = vadd.f32 %v6970, %v7094
          %v7096 = vpop.f32.mrb[0].mxu0
          %v7097 = vpop.f32.mrb[0].mxu0
          %v7098 = vadd.f32 %v6970, %v7097
          %v7099 = vpop.f32.mrb[0].mxu0
          %7100 = vmatprep.mubr.bf16.mxu0 0
          %7101 = vmatmul.mubr.bf16.gmra.mrb[0].mxu0 %v6940
          %v7102 = vpop.f32.mrb[0].mxu0
          %v7103 = vadd.f32 %v6970, %v7102
          %v7104 = vpop.f32.mrb[0].mxu0
          %v7105 = vpop.f32.mrb[0].mxu0
          %v7106 = vadd.f32 %v6970, %v7105
          %v7107 = vpop.f32.mrb[0].mxu0
          %7108 = vmatprep.mubr.bf16.mxu0 0
          %7109 = vmatmul.mubr.bf16.gmra.mrb[0].mxu0 %v6941
          %v7110 = vpop.f32.mrb[0].mxu0
          %v7111 = vadd.f32 %v6970, %v7110
          %v7112 = vpop.f32.mrb[0].mxu0
          %v7113 = vpop.f32.mrb[0].mxu0
          %v7114 = vadd.f32 %v6970, %v7113
          %v7115 = vpop.f32.mrb[0].mxu0
          %7116 = vmatprep.mubr.bf16.mxu0 0
          %7117 = vmatmul.mubr.bf16.gmra.mrb[0].mxu0 %v6942
          %v7118 = vpop.f32.mrb[0].mxu0
          %v7119 = vadd.f32 %v6970, %v7118
          %v7120 = vpop.f32.mrb[0].mxu0
          %v7121 = vpop.f32.mrb[0].mxu0
          %v7122 = vadd.f32 %v6970, %v7121
          %v7123 = vpop.f32.mrb[0].mxu0
          %7124 = vmatprep.mubr.bf16.mxu0 0
          %7125 = vmatmul.mubr.bf16.gmra.mrb[0].mxu0 %v6943
          %v7126 = vpop.f32.mrb[0].mxu0
          %v7127 = vadd.f32 %v6970, %v7126
          %v7128 = vpop.f32.mrb[0].mxu0
          %v7129 = vpop.f32.mrb[0].mxu0
          %v7130 = vadd.f32 %v6970, %v7129
          %v7131 = vpop.f32.mrb[0].mxu0
          %7132 = vmatprep.mubr.bf16.mxu0 0
          %7133 = vmatmul.mubr.bf16.gmra.mrb[0].mxu0 %v6944
          %v7134 = vpop.f32.mrb[0].mxu0
          %v7135 = vadd.f32 %v6970, %v7134
          %v7136 = vpop.f32.mrb[0].mxu0
          %v7137 = vpop.f32.mrb[0].mxu0
          %v7138 = vadd.f32 %v6970, %v7137
          %v7139 = vpop.f32.mrb[0].mxu0
          %7140 = vmatprep.mubr.bf16.mxu0 0
          %7141 = vmatmul.mubr.bf16.gmra.mrb[0].mxu0 %v6945
          %v7142 = vpop.f32.mrb[0].mxu0
          %v7143 = vadd.f32 %v6970, %v7142
          %v7144 = vpop.f32.mrb[0].mxu0
          %v7145 = vpop.f32.mrb[0].mxu0
          %v7146 = vadd.f32 %v6970, %v7145
          %v7147 = vpop.f32.mrb[0].mxu0
          %7148 = vmatprep.mubr.bf16.mxu0 0
          %7149 = vmatmul.mubr.bf16.gmra.mrb[0].mxu0 %v6946
          %v7150 = vpop.f32.mrb[0].mxu0
          %v7151 = vadd.f32 %v6970, %v7150
          %v7152 = vpop.f32.mrb[0].mxu0
          %v7153 = vpop.f32.mrb[0].mxu0
          %v7154 = vadd.f32 %v6970, %v7153
          %v7155 = vpop.f32.mrb[0].mxu0
          %7156 = vmatprep.mubr.bf16.mxu0 0
          %7157 = vmatmul.mubr.bf16.gmra.mrb[0].mxu0 %v6947
          %v7158 = vpop.f32.mrb[0].mxu0
          %v7159 = vadd.f32 %v6970, %v7158
          %v7160 = vpop.f32.mrb[0].mxu0
          %v7161 = vpop.f32.mrb[0].mxu0
          %v7162 = vadd.f32 %v6970, %v7161
          %v7163 = vpop.f32.mrb[0].mxu0
          %7164 = vmatprep.mubr.bf16.mxu0 0
          %7165 = vmatmul.mubr.bf16.gmra.mrb[0].mxu0 %v6948
          %v7166 = vpop.f32.mrb[0].mxu0
          %v7167 = vadd.f32 %v6970, %v7166
          %v7168 = vpop.f32.mrb[0].mxu0
          %v7169 = vpop.f32.mrb[0].mxu0
          %v7170 = vadd.f32 %v6970, %v7169
          %v7171 = vpop.f32.mrb[0].mxu0
          %7172 = vmatprep.mubr.bf16.mxu0 0
          %7173 = vmatmul.mubr.bf16.gmra.mrb[0].mxu0 %v6949
          %v7174 = vpop.f32.mrb[0].mxu0
          %v7175 = vadd.f32 %v6970, %v7174
          %v7176 = vpop.f32.mrb[0].mxu0
          %v7177 = vpop.f32.mrb[0].mxu0
          %v7178 = vadd.f32 %v6970, %v7177
          %v7179 = vpop.f32.mrb[0].mxu0
          %7180 = vdwg.mxu0
          %7181 = vst [vmem:[%s634] sm:$0xff] %v7055
          %7182 = vst [vmem:[%s634 + $0x8] sm:$0xff] %v7058
          %7183 = vst [vmem:[%s634 + $0x10] sm:$0xff] %v7063
          %7184 = vst [vmem:[%s634 + $0x18] sm:$0xff] %v7066
          %7185 = vst [vmem:[%s634 + $0x20] sm:$0xff] %v7071
          %7186 = vst [vmem:[%s634 + $0x28] sm:$0xff] %v7074
          %7187 = vst [vmem:[%s634 + $0x30] sm:$0xff] %v7079
          %7188 = vst [vmem:[%s634 + $0x38] sm:$0xff] %v7082
          %7189 = vst [vmem:[%s634 + $0x40] sm:$0xff] %v7087
          %7190 = vst [vmem:[%s634 + $0x48] sm:$0xff] %v7090
          %7191 = vst [vmem:[%s634 + $0x50] sm:$0xff] %v7095
          %7192 = vst [vmem:[%s634 + $0x58] sm:$0xff] %v7098
          %7193 = vst [vmem:[%s634 + $0x60] sm:$0xff] %v7103
          %7194 = vst [vmem:[%s634 + $0x68] sm:$0xff] %v7106
          %7195 = vst [vmem:[%s634 + $0x70] sm:$0xff] %v7111
          %7196 = vst [vmem:[%s634 + $0x78] sm:$0xff] %v7114
          %7197 = vst [vmem:[%s634 + $0x80] sm:$0xff] %v7119
          %7198 = vst [vmem:[%s634 + $0x88] sm:$0xff] %v7122
          %7199 = vst [vmem:[%s634 + $0x90] sm:$0xff] %v7127
          %7200 = vst [vmem:[%s634 + $0x98] sm:$0xff] %v7130
          %7201 = vst [vmem:[%s634 + $0xa0] sm:$0xff] %v7135
          %7202 = vst [vmem:[%s634 + $0xa8] sm:$0xff] %v7138
          %7203 = vst [vmem:[%s634 + $0xb0] sm:$0xff] %v7143
          %7204 = vst [vmem:[%s634 + $0xb8] sm:$0xff] %v7146
          %7205 = vst [vmem:[%s634 + $0xc0] sm:$0xff] %v7151
          %7206 = vst [vmem:[%s634 + $0xc8] sm:$0xff] %v7154
          %7207 = vst [vmem:[%s634 + $0xd0] sm:$0xff] %v7159
          %7208 = vst [vmem:[%s634 + $0xd8] sm:$0xff] %v7162
          %7209 = vst [vmem:[%s634 + $0xe0] sm:$0xff] %v7167
          %7210 = vst [vmem:[%s634 + $0xe8] sm:$0xff] %v7170
          %7211 = vst [vmem:[%s634 + $0xf0] sm:$0xff] %v7175
          %7212 = vst [vmem:[%s634 + $0xf8] sm:$0xff] %v7178
        $region96: #{tpu_custom_call.1} parent=87 // pred_fallthru
          _
        %s7213 = sand.u32 %s443, 1
        %s7214 = scalar_lea.sflag [#allocation5], %s7213
        %s7215 = sand.u32 %s443, 1
        %s7216 = smul.addr %s7215, 256
        %s7217 = scalar_lea.vmem [#allocation4], %s7216
        // Predicated region
        $region97: #{tpu_custom_call.1} parent=87 // pred_check
          %p7218 = pneg %p453
        $region98: #{tpu_custom_call.1} parent=87 // pred_check_branch
          %7220 = sbr.rel (%p7218) target = $region100
        $region99: #{tpu_custom_call.1} parent=87 // pred_region
          %s7221 = smul.u32 32, %s35
          %s7223 = ssub.s32 4096, 4096
          %7224 = vsyncadd %s7214, %s7223
          %s7225 = smul.addr %s7221, 128
          %s7226 = scalar_lea.hbm %s17, %s7225
          %s7227 = sshll.u32 %s7217, 4
          %s7228 = int_to_ptr.vmem [resolvable:$true] %s7227
          %7233 = dma.vmem_to_hbm [thread:$0]  %s7228, 4096, %s7226, %s7214, 128, 128, 8
        $region100: #{tpu_custom_call.1} parent=87 // pred_fallthru
          _
      $region88: #{tpu_custom_call.1} parent=5 // pred_fallthru
        _
      %p7234 = scmp.le.s32.totalorder 2, %s26
      // Predicated region
      $region101: #{tpu_custom_call.1} parent=5 // pred_check
        %p7235 = pneg %p7234
      $region102: #{tpu_custom_call.1} parent=5 // pred_check_branch
        %7237 = sbr.rel (%p7235) target = $region104
      $region103: #{tpu_custom_call.1} parent=5 // pred_region
        %s7238 = ssub.s32 %s26, 2
        // Predicated region
        $region105: #{tpu_custom_call.1} parent=103 // pred_check
          %p7239 = pneg %p459
        $region106: #{tpu_custom_call.1} parent=103 // pred_check_branch
          %7241 = sbr.rel (%p7239) target = $region108
        $region107: #{tpu_custom_call.1} parent=103 // pred_region
          %s7242 = sand.u32 %s444, 1
          %s7243 = scalar_lea.sflag [#allocation5], %s7242
          %s7244 = sand.u32 %s444, 1
          %s7245 = smul.addr %s7244, 256
          %s7246 = scalar_lea.vmem [#allocation4], %s7245
          %7247 = dma.done %s7243, 4096
        $region108: #{tpu_custom_call.1} parent=103 // pred_fallthru
          _
      $region104: #{tpu_custom_call.1} parent=5 // pred_fallthru
        _
    $region6: #{tpu_custom_call.1} parent=1 // loop_footer
      %s30 = sadd.s32 1, %s26
    $region7: #{tpu_custom_call.1} parent=1 // loop_footer_branch
      %25 = sbr.rel target = $region3
    $region8: #{tpu_custom_call.1} parent=1 // loop_exit
      _
    %7248 = vsyncpa [#allocation5], 1
    %s7249 = scalar_lea.sflag [#allocation5], 1
    %7250 = vsyncpa %s7249, 1

</llo_original>
